<compile_context>
chip_gen: v6e
topology: v6e:2x2x1
jax: 0.10.0
libtpu: 0.0.40
codegen_flags: <defaults>
</compile_context>

<pallas_src>
import functools

import numpy as np
import jax
import jax.numpy as jnp
from jax.experimental import pallas as pl
from jax.experimental.pallas import tpu as pltpu

EMBEDDING_DIM = 16
OUT_LANES = 128          # lane-dense head output width (val @ lane 0, adv @ lanes 1..A)


def _vmem():
    return pl.BlockSpec(memory_space=pltpu.MemorySpace.VMEM)


# ------------------------------ fused Pallas kernel ------------------------------ #

def _dueldqn_kernel(n_actions,
                    p1_ref, w1_ref, b1_ref,
                    s2_ref, w2_ref, b2_ref,
                    s3_ref, w3_ref, b3_ref,
                    wf1_ref, bf1_ref,
                    wv2_ref, bv2_ref, wa2_ref, ba2_ref,
                    w3c_ref, b3c_ref,
                    o_ref):
    f32, bf16 = jnp.float32, jnp.bfloat16
    B = o_ref.shape[0]

    # ---- conv1: patch matrix was produced by the embedding gather -> one matmul ----
    y1 = jnp.dot(p1_ref[...], w1_ref[...], preferred_element_type=f32)
    y1 = jnp.maximum(y1 + b1_ref[...], 0.0).astype(bf16)            # (B*11*11, 32)

    # ---- conv2: selection matmul gathers the 16 tap slabs, then tap-accumulate ----
    t2, _, cout2 = w2_ref.shape                                      # (16, 32, 64)
    r2 = s2_ref.shape[0] // t2                                       # B*4*4
    # exact: 0/1 gather of bf16 values -> f32 result is bf16-representable
    slabs2 = jnp.dot(s2_ref[...], y1, preferred_element_type=f32).astype(bf16)
    acc2 = jnp.zeros((r2, cout2), f32)
    for t in range(t2):
        acc2 = acc2 + jnp.dot(slabs2[t * r2:(t + 1) * r2, :], w2_ref[t],
                              preferred_element_type=f32)
    y2 = jnp.maximum(acc2 + b2_ref[...], 0.0).astype(bf16)           # (B*16, 64)

    # ---- conv3 (same scheme, 9 taps); output rows ordered (hw, b) for the head ----
    t3, _, cout3 = w3_ref.shape                                      # (9, 64, 64)
    r3 = s3_ref.shape[0] // t3                                       # B*2*2
    slabs3 = jnp.dot(s3_ref[...], y2, preferred_element_type=f32).astype(bf16)
    acc3 = jnp.zeros((r3, cout3), f32)
    for t in range(t3):
        acc3 = acc3 + jnp.dot(slabs3[t * r3:(t + 1) * r3, :], w3_ref[t],
                              preferred_element_type=f32)
    y3 = jnp.maximum(acc3 + b3_ref[...], 0.0).astype(bf16)           # (B*4, 64) bf16

    # ---- head layer 1: fused [val | adv]; NCHW flatten folded into block matmuls ----
    hw_n = r3 // B                                                   # 4 spatial positions
    hid2 = wf1_ref.shape[1]                                          # 1024
    acc1 = jnp.zeros((B, hid2), f32)
    for hw in range(hw_n):
        acc1 = acc1 + jnp.dot(y3[hw * B:(hw + 1) * B, :],
                              wf1_ref[hw * cout3:(hw + 1) * cout3, :],
                              preferred_element_type=f32)
    h1 = jnp.maximum(acc1 + bf1_ref[...], 0.0).astype(bf16)          # (B, 1024)

    # ---- head layer 2: separate 512x512 val / adv branches ----
    hid = wv2_ref.shape[0]                                           # 512
    hv = jnp.maximum(jnp.dot(h1[:, :hid], wv2_ref[...], preferred_element_type=f32)
                     + bv2_ref[...], 0.0).astype(bf16)
    ha = jnp.maximum(jnp.dot(h1[:, hid:], wa2_ref[...], preferred_element_type=f32)
                     + ba2_ref[...], 0.0).astype(bf16)

    # ---- head layer 3, lane-dense combined: val -> lane 0, adv -> lanes 1..A ----
    out = (jnp.dot(hv, w3c_ref[:hid, :], preferred_element_type=f32)
           + jnp.dot(ha, w3c_ref[hid:, :], preferred_element_type=f32)
           + b3c_ref[...])                                           # (B, 128) f32

    # dueling combine: q = val + adv - adv.mean()   (global mean over B*A, as in torch)
    lane = jax.lax.broadcasted_iota(jnp.int32, (1, out.shape[1]), 1)
    adv_mask = jnp.logical_and(lane >= 1, lane <= n_actions).astype(f32)
    adv_mean = jnp.sum(out * adv_mask, keepdims=True) * (1.0 / float(B * n_actions))
    o_ref[...] = out[:, 0:1] + out - adv_mean


# ----------------------------------- wrapper ------------------------------------- #

def _cost_estimate(args, B, n_actions):
    """Advisory flop/byte counts for the scheduler (pure python ints, zero risk)."""
    itemsize = lambda a: jnp.dtype(a.dtype).itemsize
    bytes_accessed = sum(int(np.prod(a.shape)) * itemsize(a) for a in args)
    bytes_accessed += B * OUT_LANES * 4
    p1, w1, s2, w2, s3, w3, wf1, wv2, wa2, w3c = (
        args[0], args[1], args[3], args[4], args[6], args[7], args[9],
        args[11], args[13], args[15])
    flops = 2 * (
        p1.shape[0] * p1.shape[1] * w1.shape[1]                       # conv1
        + s2.shape[0] * s2.shape[1] * w1.shape[1]                     # conv2 select
        + s2.shape[0] * w2.shape[1] * w2.shape[2]                     # conv2 taps
        + s3.shape[0] * s3.shape[1] * w2.shape[2]                     # conv3 select
        + s3.shape[0] * w3.shape[1] * w3.shape[2]                     # conv3 taps
        + B * wf1.shape[0] * wf1.shape[1]                             # fc1 (fused)
        + B * wv2.shape[0] * wv2.shape[1]                             # fc2 val
        + B * wa2.shape[0] * wa2.shape[1]                             # fc2 adv
        + B * w3c.shape[0] * w3c.shape[1])                            # fc3 combined
    return pl.CostEstimate(flops=int(flops), transcendentals=0,
                           bytes_accessed=int(bytes_accessed))


def forward(packed, x_idx, n_actions):
    """x_idx: int32 (B, H, W) glyph indices in [0, 256). Returns (B, n_actions) f32."""
    B = x_idx.shape[0]
    # conv1 im2col fused into the embedding lookup: gather the table straight into
    # the (B*Ho1*Wo1, 16*16) bf16 patch matrix (no NHWC image, no f32 patch blow-up).
    n_pos1 = packed["p1_idx"].shape[0] // 16                          # Ho1*Wo1
    g = jnp.take(x_idx.reshape(B, -1), packed["p1_idx"], axis=1)      # (B, Ho1*Wo1*16)
    patches1 = jnp.take(packed["embedding"], g.reshape(-1), axis=0)   # (B*Ho1*Wo1*16, E)
    patches1 = patches1.reshape(B * n_pos1, 16 * EMBEDDING_DIM)       # (B*121, 256) bf16

    args = [patches1,
            packed["w1"], packed["b1"],
            packed["s2"], packed["w2"], packed["b2"],
            packed["s3"], packed["w3"], packed["b3"],
            packed["wf1"], packed["bf1"],
            packed["wv2"], packed["bv2"], packed["wa2"], packed["ba2"],
            packed["w3c"], packed["b3c"]]

    out = pl.pallas_call(
        functools.partial(_dueldqn_kernel, n_actions),
        out_shape=jax.ShapeDtypeStruct((B, OUT_LANES), jnp.float32),
        in_specs=[_vmem() for _ in args],
        out_specs=_vmem(),
        cost_estimate=_cost_estimate(args, B, n_actions),
    )(*args)
    return out[:, 1:1 + n_actions]


# ----------------------------- params: init + packing ---------------------------- #

def conv_out_hw(input_shape):
    h, w = input_shape
    h, w = (h - 4) // 2 + 1, (w - 4) // 2 + 1     # conv1 k=4 s=2
    h, w = (h - 4) // 2 + 1, (w - 4) // 2 + 1     # conv2 k=4 s=2
    h, w = (h - 3) + 1, (w - 3) + 1               # conv3 k=3 s=1
    return h, w


def init_params(key, input_shape, n_actions):
    """Torch-layout parameters (conv OIHW, Linear stored as (in, out), NCHW-flatten
    feature ordering).  Weights bf16, biases f32.  Each tensor gets its own key."""
    h3, w3 = conv_out_hw(input_shape)
    f = 64 * h3 * w3
    ks = iter(jax.random.split(key, 24))

    def nrm(shape, fan_in, dtype=jnp.bfloat16):
        return (jax.random.normal(next(ks), shape, jnp.float32)
                / jnp.sqrt(float(fan_in))).astype(dtype)

    return {
        "embedding": nrm((256, EMBEDDING_DIM), EMBEDDING_DIM),
        "conv1_w": nrm((32, EMBEDDING_DIM, 4, 4), EMBEDDING_DIM * 16),
        "conv1_b": nrm((32,), EMBEDDING_DIM * 16, jnp.float32),
        "conv2_w": nrm((64, 32, 4, 4), 32 * 16),
        "conv2_b": nrm((64,), 32 * 16, jnp.float32),
        "conv3_w": nrm((64, 64, 3, 3), 64 * 9),
        "conv3_b": nrm((64,), 64 * 9, jnp.float32),
        "val_w1": nrm((f, 512), f),     "val_b1": nrm((1, 512), f, jnp.float32),
        "val_w2": nrm((512, 512), 512), "val_b2": nrm((1, 512), 512, jnp.float32),
        "val_w3": nrm((512, 1), 512),   "val_b3": nrm((1, 1), 512, jnp.float32),
        "adv_w1": nrm((f, 512), f),     "adv_b1": nrm((1, 512), f, jnp.float32),
        "adv_w2": nrm((512, 512), 512), "adv_b2": nrm((1, 512), 512, jnp.float32),
        "adv_w3": nrm((512, n_actions), 512),
        "adv_b3": nrm((1, n_actions), 512, jnp.float32),
    }


def pack_params(params, input_shape, batch_size, n_actions):
    """One-time conversion of torch-layout params into kernel operands (matmul-layout
    conv weights, 0/1 selection matrices, permuted/fused/lane-dense head weights).
    Selection matrices are built for a fixed batch size."""
    B = batch_size
    H, W = input_shape
    H1, W1 = (H - 4) // 2 + 1, (W - 4) // 2 + 1
    H2, W2 = (H1 - 4) // 2 + 1, (W1 - 4) // 2 + 1
    H3, W3 = (H2 - 3) + 1, (W2 - 3) + 1
    R1, R2, R3 = B * H1 * W1, B * H2 * W2, B * H3 * W3

    # conv1 patch gather indices: row m=(h1*W1+w1), tap t=(i*4+j) -> flat spatial index
    idx = np.empty((H1 * W1, 16), np.int32)
    for h1 in range(H1):
        for w1 in range(W1):
            for i in range(4):
                for j in range(4):
                    idx[h1 * W1 + w1, i * 4 + j] = (2 * h1 + i) * W + (2 * w1 + j)

    # conv weights -> (kh*kw*cin, cout) / per-tap (cin, cout) matmul layouts
    w1 = jnp.transpose(params["conv1_w"], (2, 3, 1, 0)).reshape(16 * EMBEDDING_DIM, 32)
    w2 = jnp.transpose(params["conv2_w"], (2, 3, 1, 0)).reshape(16, 32, 64)
    w3 = jnp.transpose(params["conv3_w"], (2, 3, 1, 0)).reshape(9, 64, 64)

    # conv2 selection: row = t*R2 + (b*H2*W2 + h2*W2 + w2); col = b*H1*W1 + h1*W1 + w1
    s2 = np.zeros((16 * R2, R1), np.float32)
    for b in range(B):
        for h2 in range(H2):
            for w2_ in range(W2):
                r = b * H2 * W2 + h2 * W2 + w2_
                for i in range(4):
                    for j in range(4):
                        col = b * H1 * W1 + (2 * h2 + i) * W1 + (2 * w2_ + j)
                        s2[(i * 4 + j) * R2 + r, col] = 1.0

    # conv3 selection: output rows ordered (hw, b) so the head can take contiguous slices
    s3 = np.zeros((9 * R3, R2), np.float32)
    for b in range(B):
        for h3 in range(H3):
            for w3_ in range(W3):
                r = (h3 * W3 + w3_) * B + b
                for i in range(3):
                    for j in range(3):
                        col = b * H2 * W2 + (h3 + i) * W2 + (w3_ + j)
                        s3[(i * 3 + j) * R3 + r, col] = 1.0

    # FC1: permute rows from torch NCHW-flatten (c, h3, w3) to our (h3, w3, c) order,
    # then fuse val|adv along the output dim.
    hw_n = H3 * W3
    perm = np.array([c * hw_n + hw for hw in range(hw_n) for c in range(64)], np.int32)
    wf1 = jnp.concatenate([params["val_w1"][perm, :], params["adv_w1"][perm, :]], axis=1)
    bf1 = jnp.concatenate([params["val_b1"], params["adv_b1"]], axis=1)

    # lane-dense combined last layer: val -> lane 0 (from rows 0..511), adv -> lanes 1..A
    a = n_actions
    w3c = np.zeros((1024, OUT_LANES), np.float32)
    w3c[:512, 0] = np.asarray(params["val_w3"], np.float32)[:, 0]
    w3c[512:, 1:1 + a] = np.asarray(params["adv_w3"], np.float32)
    b3c = np.zeros((1, OUT_LANES), np.float32)
    b3c[0, 0] = float(np.asarray(params["val_b3"], np.float32)[0, 0])
    b3c[0, 1:1 + a] = np.asarray(params["adv_b3"], np.float32)[0]

    return {
        "embedding": params["embedding"],
        "p1_idx": jnp.asarray(idx.reshape(-1)),
        "w1": w1, "b1": params["conv1_b"].reshape(1, -1),
        "s2": jnp.asarray(s2, jnp.bfloat16), "w2": w2, "b2": params["conv2_b"].reshape(1, -1),
        "s3": jnp.asarray(s3, jnp.bfloat16), "w3": w3, "b3": params["conv3_b"].reshape(1, -1),
        "wf1": wf1, "bf1": bf1,
        "wv2": params["val_w2"], "bv2": params["val_b2"],
        "wa2": params["adv_w2"], "ba2": params["adv_b2"],
        "w3c": jnp.asarray(w3c, jnp.bfloat16), "b3c": jnp.asarray(b3c, jnp.float32),
    }


# ---------------------------- pure-JAX reference (check) -------------------------- #

def _im2col_ref(x, k, stride):
    b, h, w, c = x.shape
    ho = (h - k) // stride + 1
    wo = (w - k) // stride + 1
    cols = []
    for i in range(k):
        for j in range(k):
            cols.append(x[:, i:i + stride * (ho - 1) + 1:stride,
                          j:j + stride * (wo - 1) + 1:stride, :])
    return jnp.concatenate(cols, axis=-1).reshape(b * ho * wo, k * k * c), ho, wo


def forward_ref(params, x_idx):
    """Straightforward im2col / full-matmul reference mirroring the kernel's dtype
    path (bf16 operands, f32 accumulation) and torch's NCHW flatten + global adv mean."""
    f32, bf16 = jnp.float32, jnp.bfloat16
    emb = jnp.take(params["embedding"], x_idx, axis=0)                # (B,H,W,16) bf16

    def conv(x, w_oihw, bias, stride):
        cout, cin, kh, kw = w_oihw.shape
        patches, ho, wo = _im2col_ref(x, kh, stride)
        wmat = jnp.transpose(w_oihw, (2, 3, 1, 0)).reshape(kh * kw * cin, cout)
        y = jnp.dot(patches, wmat, preferred_element_type=f32) + bias.reshape(1, cout)
        return jnp.maximum(y, 0.0).astype(bf16).reshape(x.shape[0], ho, wo, cout)

    h = conv(emb, params["conv1_w"], params["conv1_b"], 2)
    h = conv(h, params["conv2_w"], params["conv2_b"], 2)
    h = conv(h, params["conv3_w"], params["conv3_b"], 1)
    b, ho, wo, c = h.shape
    feat = jnp.transpose(h, (0, 3, 1, 2)).reshape(b, c * ho * wo)     # NCHW flatten (torch)

    def mlp(x, w1, b1, w2, b2, w3, b3):
        x = jnp.maximum(jnp.dot(x, w1, preferred_element_type=f32) + b1, 0.0).astype(bf16)
        x = jnp.maximum(jnp.dot(x, w2, preferred_element_type=f32) + b2, 0.0).astype(bf16)
        return jnp.dot(x, w3, preferred_element_type=f32) + b3

    val = mlp(feat, params["val_w1"], params["val_b1"], params["val_w2"],
              params["val_b2"], params["val_w3"], params["val_b3"])
    adv = mlp(feat, params["adv_w1"], params["adv_b1"], params["adv_w2"],
              params["adv_b2"], params["adv_w3"], params["adv_b3"])
    return val + adv - jnp.mean(adv)


# ------------------------------------- main --------------------------------------- #

if __name__ == "__main__":
    B = 2
    INPUT_SHAPE = (24, 24)       # small "map" consistent with the conv stack
    N_ACTIONS = 8

    key = jax.random.PRNGKey(0)
    k_par, k_x = jax.random.split(key)
    params = init_params(k_par, INPUT_SHAPE, N_ACTIONS)
    packed = pack_params(params, INPUT_SHAPE, B, N_ACTIONS)
    x = jax.random.randint(k_x, (B,) + INPUT_SHAPE, 0, 256, dtype=jnp.int32)

    fwd = jax.jit(forward, static_argnames=("n_actions",))
    out = jax.block_until_ready(fwd(packed, x, n_actions=N_ACTIONS))
    ref = jax.block_until_ready(forward_ref(params, x))

    assert out.shape == (B, N_ACTIONS), out.shape
    assert bool(jnp.all(jnp.isfinite(out)))
    assert jnp.allclose(out, ref, rtol=1e-2, atol=1e-2), (out, ref)
    print("KERNEL_OK")
</pallas_src>

<mosaic_0001>
module attributes {stable_mosaic.version = 11 : i64} {
  func.func @_dueldqn_kernel(%arg0: memref<242x256xbf16, #tpu.memory_space<vmem>>, %arg1: memref<256x32xbf16, #tpu.memory_space<vmem>>, %arg2: memref<1x32xf32, #tpu.memory_space<vmem>>, %arg3: memref<512x242xbf16, #tpu.memory_space<vmem>>, %arg4: memref<16x32x64xbf16, #tpu.memory_space<vmem>>, %arg5: memref<1x64xf32, #tpu.memory_space<vmem>>, %arg6: memref<72x32xbf16, #tpu.memory_space<vmem>>, %arg7: memref<9x64x64xbf16, #tpu.memory_space<vmem>>, %arg8: memref<1x64xf32, #tpu.memory_space<vmem>>, %arg9: memref<256x1024xbf16, #tpu.memory_space<vmem>>, %arg10: memref<1x1024xf32, #tpu.memory_space<vmem>>, %arg11: memref<512x512xbf16, #tpu.memory_space<vmem>>, %arg12: memref<1x512xf32, #tpu.memory_space<vmem>>, %arg13: memref<512x512xbf16, #tpu.memory_space<vmem>>, %arg14: memref<1x512xf32, #tpu.memory_space<vmem>>, %arg15: memref<1024x128xbf16, #tpu.memory_space<vmem>>, %arg16: memref<1x128xf32, #tpu.memory_space<vmem>>, %arg17: memref<2x128xf32, #tpu.memory_space<vmem>>) attributes {dimension_semantics = [], scalar_prefetch = 0 : i64, scratch_operands = 0 : i64, tpu.core_type = #tpu.core_type<tc>} {
    %c0 = arith.constant 0 : index
    %c0_0 = arith.constant 0 : index
    %0 = vector.load %arg0[%c0, %c0_0] : memref<242x256xbf16, #tpu.memory_space<vmem>>, vector<242x256xbf16>
    %c0_1 = arith.constant 0 : index
    %c0_2 = arith.constant 0 : index
    %1 = vector.load %arg1[%c0_1, %c0_2] : memref<256x32xbf16, #tpu.memory_space<vmem>>, vector<256x32xbf16>
    %cst = arith.constant dense<0.000000e+00> : vector<242x32xf32>
    %2 = tpu.matmul %0, %1, %cst {dimension_numbers = #tpu.dot_dimension_numbers<[1], [0], [0], [1], [0, 0, 1, 1], [], []>} : vector<242x256xbf16>, vector<256x32xbf16>, vector<242x32xf32> -> vector<242x32xf32>
    %c0_3 = arith.constant 0 : index
    %c0_4 = arith.constant 0 : index
    %3 = vector.load %arg2[%c0_3, %c0_4] : memref<1x32xf32, #tpu.memory_space<vmem>>, vector<1x32xf32>
    %4 = vector.broadcast %3 : vector<1x32xf32> to vector<242x32xf32>
    %5 = arith.addf %2, %4 : vector<242x32xf32>
    %cst_5 = arith.constant 0.000000e+00 : f32
    %6 = vector.broadcast %cst_5 : f32 to vector<242x32xf32>
    %7 = arith.maximumf %5, %6 : vector<242x32xf32>
    %8 = arith.truncf %7 : vector<242x32xf32> to vector<242x32xbf16>
    %c0_6 = arith.constant 0 : index
    %c0_7 = arith.constant 0 : index
    %9 = vector.load %arg3[%c0_6, %c0_7] : memref<512x242xbf16, #tpu.memory_space<vmem>>, vector<512x242xbf16>
    %cst_8 = arith.constant dense<0.000000e+00> : vector<512x32xf32>
    %10 = tpu.matmul %9, %8, %cst_8 {dimension_numbers = #tpu.dot_dimension_numbers<[1], [0], [0], [1], [0, 0, 1, 1], [], []>} : vector<512x242xbf16>, vector<242x32xbf16>, vector<512x32xf32> -> vector<512x32xf32>
    %11 = arith.truncf %10 : vector<512x32xf32> to vector<512x32xbf16>
    %cst_9 = arith.constant 0.000000e+00 : f32
    %12 = vector.broadcast %cst_9 : f32 to vector<32x64xf32>
    %13 = vector.extract_strided_slice %11 {offsets = [0, 0], sizes = [32, 32], strides = [1, 1]} : vector<512x32xbf16> to vector<32x32xbf16>
    %c0_10 = arith.constant 0 : index
    %c0_11 = arith.constant 0 : index
    %c0_12 = arith.constant 0 : index
    %14 = vector.load %arg4[%c0_10, %c0_11, %c0_12] : memref<16x32x64xbf16, #tpu.memory_space<vmem>>, vector<1x32x64xbf16>
    %15 = vector.shape_cast %14 : vector<1x32x64xbf16> to vector<32x64xbf16>
    %cst_13 = arith.constant dense<0.000000e+00> : vector<32x64xf32>
    %16 = tpu.matmul %13, %15, %cst_13 {dimension_numbers = #tpu.dot_dimension_numbers<[1], [0], [0], [1], [0, 0, 1, 1], [], []>} : vector<32x32xbf16>, vector<32x64xbf16>, vector<32x64xf32> -> vector<32x64xf32>
    %17 = arith.addf %12, %16 : vector<32x64xf32>
    %18 = vector.extract_strided_slice %11 {offsets = [32, 0], sizes = [32, 32], strides = [1, 1]} : vector<512x32xbf16> to vector<32x32xbf16>
    %c1 = arith.constant 1 : index
    %c0_14 = arith.constant 0 : index
    %c0_15 = arith.constant 0 : index
    %19 = vector.load %arg4[%c1, %c0_14, %c0_15] : memref<16x32x64xbf16, #tpu.memory_space<vmem>>, vector<1x32x64xbf16>
    %20 = vector.shape_cast %19 : vector<1x32x64xbf16> to vector<32x64xbf16>
    %cst_16 = arith.constant dense<0.000000e+00> : vector<32x64xf32>
    %21 = tpu.matmul %18, %20, %cst_16 {dimension_numbers = #tpu.dot_dimension_numbers<[1], [0], [0], [1], [0, 0, 1, 1], [], []>} : vector<32x32xbf16>, vector<32x64xbf16>, vector<32x64xf32> -> vector<32x64xf32>
    %22 = arith.addf %17, %21 : vector<32x64xf32>
    %23 = vector.extract_strided_slice %11 {offsets = [64, 0], sizes = [32, 32], strides = [1, 1]} : vector<512x32xbf16> to vector<32x32xbf16>
    %c2 = arith.constant 2 : index
    %c0_17 = arith.constant 0 : index
    %c0_18 = arith.constant 0 : index
    %24 = vector.load %arg4[%c2, %c0_17, %c0_18] : memref<16x32x64xbf16, #tpu.memory_space<vmem>>, vector<1x32x64xbf16>
    %25 = vector.shape_cast %24 : vector<1x32x64xbf16> to vector<32x64xbf16>
    %cst_19 = arith.constant dense<0.000000e+00> : vector<32x64xf32>
    %26 = tpu.matmul %23, %25, %cst_19 {dimension_numbers = #tpu.dot_dimension_numbers<[1], [0], [0], [1], [0, 0, 1, 1], [], []>} : vector<32x32xbf16>, vector<32x64xbf16>, vector<32x64xf32> -> vector<32x64xf32>
    %27 = arith.addf %22, %26 : vector<32x64xf32>
    %28 = vector.extract_strided_slice %11 {offsets = [96, 0], sizes = [32, 32], strides = [1, 1]} : vector<512x32xbf16> to vector<32x32xbf16>
    %c3 = arith.constant 3 : index
    %c0_20 = arith.constant 0 : index
    %c0_21 = arith.constant 0 : index
    %29 = vector.load %arg4[%c3, %c0_20, %c0_21] : memref<16x32x64xbf16, #tpu.memory_space<vmem>>, vector<1x32x64xbf16>
    %30 = vector.shape_cast %29 : vector<1x32x64xbf16> to vector<32x64xbf16>
    %cst_22 = arith.constant dense<0.000000e+00> : vector<32x64xf32>
    %31 = tpu.matmul %28, %30, %cst_22 {dimension_numbers = #tpu.dot_dimension_numbers<[1], [0], [0], [1], [0, 0, 1, 1], [], []>} : vector<32x32xbf16>, vector<32x64xbf16>, vector<32x64xf32> -> vector<32x64xf32>
    %32 = arith.addf %27, %31 : vector<32x64xf32>
    %33 = vector.extract_strided_slice %11 {offsets = [128, 0], sizes = [32, 32], strides = [1, 1]} : vector<512x32xbf16> to vector<32x32xbf16>
    %c4 = arith.constant 4 : index
    %c0_23 = arith.constant 0 : index
    %c0_24 = arith.constant 0 : index
    %34 = vector.load %arg4[%c4, %c0_23, %c0_24] : memref<16x32x64xbf16, #tpu.memory_space<vmem>>, vector<1x32x64xbf16>
    %35 = vector.shape_cast %34 : vector<1x32x64xbf16> to vector<32x64xbf16>
    %cst_25 = arith.constant dense<0.000000e+00> : vector<32x64xf32>
    %36 = tpu.matmul %33, %35, %cst_25 {dimension_numbers = #tpu.dot_dimension_numbers<[1], [0], [0], [1], [0, 0, 1, 1], [], []>} : vector<32x32xbf16>, vector<32x64xbf16>, vector<32x64xf32> -> vector<32x64xf32>
    %37 = arith.addf %32, %36 : vector<32x64xf32>
    %38 = vector.extract_strided_slice %11 {offsets = [160, 0], sizes = [32, 32], strides = [1, 1]} : vector<512x32xbf16> to vector<32x32xbf16>
    %c5 = arith.constant 5 : index
    %c0_26 = arith.constant 0 : index
    %c0_27 = arith.constant 0 : index
    %39 = vector.load %arg4[%c5, %c0_26, %c0_27] : memref<16x32x64xbf16, #tpu.memory_space<vmem>>, vector<1x32x64xbf16>
    %40 = vector.shape_cast %39 : vector<1x32x64xbf16> to vector<32x64xbf16>
    %cst_28 = arith.constant dense<0.000000e+00> : vector<32x64xf32>
    %41 = tpu.matmul %38, %40, %cst_28 {dimension_numbers = #tpu.dot_dimension_numbers<[1], [0], [0], [1], [0, 0, 1, 1], [], []>} : vector<32x32xbf16>, vector<32x64xbf16>, vector<32x64xf32> -> vector<32x64xf32>
    %42 = arith.addf %37, %41 : vector<32x64xf32>
    %43 = vector.extract_strided_slice %11 {offsets = [192, 0], sizes = [32, 32], strides = [1, 1]} : vector<512x32xbf16> to vector<32x32xbf16>
    %c6 = arith.constant 6 : index
    %c0_29 = arith.constant 0 : index
    %c0_30 = arith.constant 0 : index
    %44 = vector.load %arg4[%c6, %c0_29, %c0_30] : memref<16x32x64xbf16, #tpu.memory_space<vmem>>, vector<1x32x64xbf16>
    %45 = vector.shape_cast %44 : vector<1x32x64xbf16> to vector<32x64xbf16>
    %cst_31 = arith.constant dense<0.000000e+00> : vector<32x64xf32>
    %46 = tpu.matmul %43, %45, %cst_31 {dimension_numbers = #tpu.dot_dimension_numbers<[1], [0], [0], [1], [0, 0, 1, 1], [], []>} : vector<32x32xbf16>, vector<32x64xbf16>, vector<32x64xf32> -> vector<32x64xf32>
    %47 = arith.addf %42, %46 : vector<32x64xf32>
    %48 = vector.extract_strided_slice %11 {offsets = [224, 0], sizes = [32, 32], strides = [1, 1]} : vector<512x32xbf16> to vector<32x32xbf16>
    %c7 = arith.constant 7 : index
    %c0_32 = arith.constant 0 : index
    %c0_33 = arith.constant 0 : index
    %49 = vector.load %arg4[%c7, %c0_32, %c0_33] : memref<16x32x64xbf16, #tpu.memory_space<vmem>>, vector<1x32x64xbf16>
    %50 = vector.shape_cast %49 : vector<1x32x64xbf16> to vector<32x64xbf16>
    %cst_34 = arith.constant dense<0.000000e+00> : vector<32x64xf32>
    %51 = tpu.matmul %48, %50, %cst_34 {dimension_numbers = #tpu.dot_dimension_numbers<[1], [0], [0], [1], [0, 0, 1, 1], [], []>} : vector<32x32xbf16>, vector<32x64xbf16>, vector<32x64xf32> -> vector<32x64xf32>
    %52 = arith.addf %47, %51 : vector<32x64xf32>
    %53 = vector.extract_strided_slice %11 {offsets = [256, 0], sizes = [32, 32], strides = [1, 1]} : vector<512x32xbf16> to vector<32x32xbf16>
    %c8 = arith.constant 8 : index
    %c0_35 = arith.constant 0 : index
    %c0_36 = arith.constant 0 : index
    %54 = vector.load %arg4[%c8, %c0_35, %c0_36] : memref<16x32x64xbf16, #tpu.memory_space<vmem>>, vector<1x32x64xbf16>
    %55 = vector.shape_cast %54 : vector<1x32x64xbf16> to vector<32x64xbf16>
    %cst_37 = arith.constant dense<0.000000e+00> : vector<32x64xf32>
    %56 = tpu.matmul %53, %55, %cst_37 {dimension_numbers = #tpu.dot_dimension_numbers<[1], [0], [0], [1], [0, 0, 1, 1], [], []>} : vector<32x32xbf16>, vector<32x64xbf16>, vector<32x64xf32> -> vector<32x64xf32>
    %57 = arith.addf %52, %56 : vector<32x64xf32>
    %58 = vector.extract_strided_slice %11 {offsets = [288, 0], sizes = [32, 32], strides = [1, 1]} : vector<512x32xbf16> to vector<32x32xbf16>
    %c9 = arith.constant 9 : index
    %c0_38 = arith.constant 0 : index
    %c0_39 = arith.constant 0 : index
    %59 = vector.load %arg4[%c9, %c0_38, %c0_39] : memref<16x32x64xbf16, #tpu.memory_space<vmem>>, vector<1x32x64xbf16>
    %60 = vector.shape_cast %59 : vector<1x32x64xbf16> to vector<32x64xbf16>
    %cst_40 = arith.constant dense<0.000000e+00> : vector<32x64xf32>
    %61 = tpu.matmul %58, %60, %cst_40 {dimension_numbers = #tpu.dot_dimension_numbers<[1], [0], [0], [1], [0, 0, 1, 1], [], []>} : vector<32x32xbf16>, vector<32x64xbf16>, vector<32x64xf32> -> vector<32x64xf32>
    %62 = arith.addf %57, %61 : vector<32x64xf32>
    %63 = vector.extract_strided_slice %11 {offsets = [320, 0], sizes = [32, 32], strides = [1, 1]} : vector<512x32xbf16> to vector<32x32xbf16>
    %c10 = arith.constant 10 : index
    %c0_41 = arith.constant 0 : index
    %c0_42 = arith.constant 0 : index
    %64 = vector.load %arg4[%c10, %c0_41, %c0_42] : memref<16x32x64xbf16, #tpu.memory_space<vmem>>, vector<1x32x64xbf16>
    %65 = vector.shape_cast %64 : vector<1x32x64xbf16> to vector<32x64xbf16>
    %cst_43 = arith.constant dense<0.000000e+00> : vector<32x64xf32>
    %66 = tpu.matmul %63, %65, %cst_43 {dimension_numbers = #tpu.dot_dimension_numbers<[1], [0], [0], [1], [0, 0, 1, 1], [], []>} : vector<32x32xbf16>, vector<32x64xbf16>, vector<32x64xf32> -> vector<32x64xf32>
    %67 = arith.addf %62, %66 : vector<32x64xf32>
    %68 = vector.extract_strided_slice %11 {offsets = [352, 0], sizes = [32, 32], strides = [1, 1]} : vector<512x32xbf16> to vector<32x32xbf16>
    %c11 = arith.constant 11 : index
    %c0_44 = arith.constant 0 : index
    %c0_45 = arith.constant 0 : index
    %69 = vector.load %arg4[%c11, %c0_44, %c0_45] : memref<16x32x64xbf16, #tpu.memory_space<vmem>>, vector<1x32x64xbf16>
    %70 = vector.shape_cast %69 : vector<1x32x64xbf16> to vector<32x64xbf16>
    %cst_46 = arith.constant dense<0.000000e+00> : vector<32x64xf32>
    %71 = tpu.matmul %68, %70, %cst_46 {dimension_numbers = #tpu.dot_dimension_numbers<[1], [0], [0], [1], [0, 0, 1, 1], [], []>} : vector<32x32xbf16>, vector<32x64xbf16>, vector<32x64xf32> -> vector<32x64xf32>
    %72 = arith.addf %67, %71 : vector<32x64xf32>
    %73 = vector.extract_strided_slice %11 {offsets = [384, 0], sizes = [32, 32], strides = [1, 1]} : vector<512x32xbf16> to vector<32x32xbf16>
    %c12 = arith.constant 12 : index
    %c0_47 = arith.constant 0 : index
    %c0_48 = arith.constant 0 : index
    %74 = vector.load %arg4[%c12, %c0_47, %c0_48] : memref<16x32x64xbf16, #tpu.memory_space<vmem>>, vector<1x32x64xbf16>
    %75 = vector.shape_cast %74 : vector<1x32x64xbf16> to vector<32x64xbf16>
    %cst_49 = arith.constant dense<0.000000e+00> : vector<32x64xf32>
    %76 = tpu.matmul %73, %75, %cst_49 {dimension_numbers = #tpu.dot_dimension_numbers<[1], [0], [0], [1], [0, 0, 1, 1], [], []>} : vector<32x32xbf16>, vector<32x64xbf16>, vector<32x64xf32> -> vector<32x64xf32>
    %77 = arith.addf %72, %76 : vector<32x64xf32>
    %78 = vector.extract_strided_slice %11 {offsets = [416, 0], sizes = [32, 32], strides = [1, 1]} : vector<512x32xbf16> to vector<32x32xbf16>
    %c13 = arith.constant 13 : index
    %c0_50 = arith.constant 0 : index
    %c0_51 = arith.constant 0 : index
    %79 = vector.load %arg4[%c13, %c0_50, %c0_51] : memref<16x32x64xbf16, #tpu.memory_space<vmem>>, vector<1x32x64xbf16>
    %80 = vector.shape_cast %79 : vector<1x32x64xbf16> to vector<32x64xbf16>
    %cst_52 = arith.constant dense<0.000000e+00> : vector<32x64xf32>
    %81 = tpu.matmul %78, %80, %cst_52 {dimension_numbers = #tpu.dot_dimension_numbers<[1], [0], [0], [1], [0, 0, 1, 1], [], []>} : vector<32x32xbf16>, vector<32x64xbf16>, vector<32x64xf32> -> vector<32x64xf32>
    %82 = arith.addf %77, %81 : vector<32x64xf32>
    %83 = vector.extract_strided_slice %11 {offsets = [448, 0], sizes = [32, 32], strides = [1, 1]} : vector<512x32xbf16> to vector<32x32xbf16>
    %c14 = arith.constant 14 : index
    %c0_53 = arith.constant 0 : index
    %c0_54 = arith.constant 0 : index
    %84 = vector.load %arg4[%c14, %c0_53, %c0_54] : memref<16x32x64xbf16, #tpu.memory_space<vmem>>, vector<1x32x64xbf16>
    %85 = vector.shape_cast %84 : vector<1x32x64xbf16> to vector<32x64xbf16>
    %cst_55 = arith.constant dense<0.000000e+00> : vector<32x64xf32>
    %86 = tpu.matmul %83, %85, %cst_55 {dimension_numbers = #tpu.dot_dimension_numbers<[1], [0], [0], [1], [0, 0, 1, 1], [], []>} : vector<32x32xbf16>, vector<32x64xbf16>, vector<32x64xf32> -> vector<32x64xf32>
    %87 = arith.addf %82, %86 : vector<32x64xf32>
    %88 = vector.extract_strided_slice %11 {offsets = [480, 0], sizes = [32, 32], strides = [1, 1]} : vector<512x32xbf16> to vector<32x32xbf16>
    %c15 = arith.constant 15 : index
    %c0_56 = arith.constant 0 : index
    %c0_57 = arith.constant 0 : index
    %89 = vector.load %arg4[%c15, %c0_56, %c0_57] : memref<16x32x64xbf16, #tpu.memory_space<vmem>>, vector<1x32x64xbf16>
    %90 = vector.shape_cast %89 : vector<1x32x64xbf16> to vector<32x64xbf16>
    %cst_58 = arith.constant dense<0.000000e+00> : vector<32x64xf32>
    %91 = tpu.matmul %88, %90, %cst_58 {dimension_numbers = #tpu.dot_dimension_numbers<[1], [0], [0], [1], [0, 0, 1, 1], [], []>} : vector<32x32xbf16>, vector<32x64xbf16>, vector<32x64xf32> -> vector<32x64xf32>
    %92 = arith.addf %87, %91 : vector<32x64xf32>
    %c0_59 = arith.constant 0 : index
    %c0_60 = arith.constant 0 : index
    %93 = vector.load %arg5[%c0_59, %c0_60] : memref<1x64xf32, #tpu.memory_space<vmem>>, vector<1x64xf32>
    %94 = vector.broadcast %93 : vector<1x64xf32> to vector<32x64xf32>
    %95 = arith.addf %92, %94 : vector<32x64xf32>
    %cst_61 = arith.constant 0.000000e+00 : f32
    %96 = vector.broadcast %cst_61 : f32 to vector<32x64xf32>
    %97 = arith.maximumf %95, %96 : vector<32x64xf32>
    %98 = arith.truncf %97 : vector<32x64xf32> to vector<32x64xbf16>
    %c0_62 = arith.constant 0 : index
    %c0_63 = arith.constant 0 : index
    %99 = vector.load %arg6[%c0_62, %c0_63] : memref<72x32xbf16, #tpu.memory_space<vmem>>, vector<72x32xbf16>
    %cst_64 = arith.constant dense<0.000000e+00> : vector<72x64xf32>
    %100 = tpu.matmul %99, %98, %cst_64 {dimension_numbers = #tpu.dot_dimension_numbers<[1], [0], [0], [1], [0, 0, 1, 1], [], []>} : vector<72x32xbf16>, vector<32x64xbf16>, vector<72x64xf32> -> vector<72x64xf32>
    %101 = arith.truncf %100 : vector<72x64xf32> to vector<72x64xbf16>
    %cst_65 = arith.constant 0.000000e+00 : f32
    %102 = vector.broadcast %cst_65 : f32 to vector<8x64xf32>
    %103 = vector.extract_strided_slice %101 {offsets = [0, 0], sizes = [8, 64], strides = [1, 1]} : vector<72x64xbf16> to vector<8x64xbf16>
    %c0_66 = arith.constant 0 : index
    %c0_67 = arith.constant 0 : index
    %c0_68 = arith.constant 0 : index
    %104 = vector.load %arg7[%c0_66, %c0_67, %c0_68] : memref<9x64x64xbf16, #tpu.memory_space<vmem>>, vector<1x64x64xbf16>
    %105 = vector.shape_cast %104 : vector<1x64x64xbf16> to vector<64x64xbf16>
    %cst_69 = arith.constant dense<0.000000e+00> : vector<8x64xf32>
    %106 = tpu.matmul %103, %105, %cst_69 {dimension_numbers = #tpu.dot_dimension_numbers<[1], [0], [0], [1], [0, 0, 1, 1], [], []>} : vector<8x64xbf16>, vector<64x64xbf16>, vector<8x64xf32> -> vector<8x64xf32>
    %107 = arith.addf %102, %106 : vector<8x64xf32>
    %108 = vector.extract_strided_slice %101 {offsets = [8, 0], sizes = [8, 64], strides = [1, 1]} : vector<72x64xbf16> to vector<8x64xbf16>
    %c1_70 = arith.constant 1 : index
    %c0_71 = arith.constant 0 : index
    %c0_72 = arith.constant 0 : index
    %109 = vector.load %arg7[%c1_70, %c0_71, %c0_72] : memref<9x64x64xbf16, #tpu.memory_space<vmem>>, vector<1x64x64xbf16>
    %110 = vector.shape_cast %109 : vector<1x64x64xbf16> to vector<64x64xbf16>
    %cst_73 = arith.constant dense<0.000000e+00> : vector<8x64xf32>
    %111 = tpu.matmul %108, %110, %cst_73 {dimension_numbers = #tpu.dot_dimension_numbers<[1], [0], [0], [1], [0, 0, 1, 1], [], []>} : vector<8x64xbf16>, vector<64x64xbf16>, vector<8x64xf32> -> vector<8x64xf32>
    %112 = arith.addf %107, %111 : vector<8x64xf32>
    %113 = vector.extract_strided_slice %101 {offsets = [16, 0], sizes = [8, 64], strides = [1, 1]} : vector<72x64xbf16> to vector<8x64xbf16>
    %c2_74 = arith.constant 2 : index
    %c0_75 = arith.constant 0 : index
    %c0_76 = arith.constant 0 : index
    %114 = vector.load %arg7[%c2_74, %c0_75, %c0_76] : memref<9x64x64xbf16, #tpu.memory_space<vmem>>, vector<1x64x64xbf16>
    %115 = vector.shape_cast %114 : vector<1x64x64xbf16> to vector<64x64xbf16>
    %cst_77 = arith.constant dense<0.000000e+00> : vector<8x64xf32>
    %116 = tpu.matmul %113, %115, %cst_77 {dimension_numbers = #tpu.dot_dimension_numbers<[1], [0], [0], [1], [0, 0, 1, 1], [], []>} : vector<8x64xbf16>, vector<64x64xbf16>, vector<8x64xf32> -> vector<8x64xf32>
    %117 = arith.addf %112, %116 : vector<8x64xf32>
    %118 = vector.extract_strided_slice %101 {offsets = [24, 0], sizes = [8, 64], strides = [1, 1]} : vector<72x64xbf16> to vector<8x64xbf16>
    %c3_78 = arith.constant 3 : index
    %c0_79 = arith.constant 0 : index
    %c0_80 = arith.constant 0 : index
    %119 = vector.load %arg7[%c3_78, %c0_79, %c0_80] : memref<9x64x64xbf16, #tpu.memory_space<vmem>>, vector<1x64x64xbf16>
    %120 = vector.shape_cast %119 : vector<1x64x64xbf16> to vector<64x64xbf16>
    %cst_81 = arith.constant dense<0.000000e+00> : vector<8x64xf32>
    %121 = tpu.matmul %118, %120, %cst_81 {dimension_numbers = #tpu.dot_dimension_numbers<[1], [0], [0], [1], [0, 0, 1, 1], [], []>} : vector<8x64xbf16>, vector<64x64xbf16>, vector<8x64xf32> -> vector<8x64xf32>
    %122 = arith.addf %117, %121 : vector<8x64xf32>
    %123 = vector.extract_strided_slice %101 {offsets = [32, 0], sizes = [8, 64], strides = [1, 1]} : vector<72x64xbf16> to vector<8x64xbf16>
    %c4_82 = arith.constant 4 : index
    %c0_83 = arith.constant 0 : index
    %c0_84 = arith.constant 0 : index
    %124 = vector.load %arg7[%c4_82, %c0_83, %c0_84] : memref<9x64x64xbf16, #tpu.memory_space<vmem>>, vector<1x64x64xbf16>
    %125 = vector.shape_cast %124 : vector<1x64x64xbf16> to vector<64x64xbf16>
    %cst_85 = arith.constant dense<0.000000e+00> : vector<8x64xf32>
    %126 = tpu.matmul %123, %125, %cst_85 {dimension_numbers = #tpu.dot_dimension_numbers<[1], [0], [0], [1], [0, 0, 1, 1], [], []>} : vector<8x64xbf16>, vector<64x64xbf16>, vector<8x64xf32> -> vector<8x64xf32>
    %127 = arith.addf %122, %126 : vector<8x64xf32>
    %128 = vector.extract_strided_slice %101 {offsets = [40, 0], sizes = [8, 64], strides = [1, 1]} : vector<72x64xbf16> to vector<8x64xbf16>
    %c5_86 = arith.constant 5 : index
    %c0_87 = arith.constant 0 : index
    %c0_88 = arith.constant 0 : index
    %129 = vector.load %arg7[%c5_86, %c0_87, %c0_88] : memref<9x64x64xbf16, #tpu.memory_space<vmem>>, vector<1x64x64xbf16>
    %130 = vector.shape_cast %129 : vector<1x64x64xbf16> to vector<64x64xbf16>
    %cst_89 = arith.constant dense<0.000000e+00> : vector<8x64xf32>
    %131 = tpu.matmul %128, %130, %cst_89 {dimension_numbers = #tpu.dot_dimension_numbers<[1], [0], [0], [1], [0, 0, 1, 1], [], []>} : vector<8x64xbf16>, vector<64x64xbf16>, vector<8x64xf32> -> vector<8x64xf32>
    %132 = arith.addf %127, %131 : vector<8x64xf32>
    %133 = vector.extract_strided_slice %101 {offsets = [48, 0], sizes = [8, 64], strides = [1, 1]} : vector<72x64xbf16> to vector<8x64xbf16>
    %c6_90 = arith.constant 6 : index
    %c0_91 = arith.constant 0 : index
    %c0_92 = arith.constant 0 : index
    %134 = vector.load %arg7[%c6_90, %c0_91, %c0_92] : memref<9x64x64xbf16, #tpu.memory_space<vmem>>, vector<1x64x64xbf16>
    %135 = vector.shape_cast %134 : vector<1x64x64xbf16> to vector<64x64xbf16>
    %cst_93 = arith.constant dense<0.000000e+00> : vector<8x64xf32>
    %136 = tpu.matmul %133, %135, %cst_93 {dimension_numbers = #tpu.dot_dimension_numbers<[1], [0], [0], [1], [0, 0, 1, 1], [], []>} : vector<8x64xbf16>, vector<64x64xbf16>, vector<8x64xf32> -> vector<8x64xf32>
    %137 = arith.addf %132, %136 : vector<8x64xf32>
    %138 = vector.extract_strided_slice %101 {offsets = [56, 0], sizes = [8, 64], strides = [1, 1]} : vector<72x64xbf16> to vector<8x64xbf16>
    %c7_94 = arith.constant 7 : index
    %c0_95 = arith.constant 0 : index
    %c0_96 = arith.constant 0 : index
    %139 = vector.load %arg7[%c7_94, %c0_95, %c0_96] : memref<9x64x64xbf16, #tpu.memory_space<vmem>>, vector<1x64x64xbf16>
    %140 = vector.shape_cast %139 : vector<1x64x64xbf16> to vector<64x64xbf16>
    %cst_97 = arith.constant dense<0.000000e+00> : vector<8x64xf32>
    %141 = tpu.matmul %138, %140, %cst_97 {dimension_numbers = #tpu.dot_dimension_numbers<[1], [0], [0], [1], [0, 0, 1, 1], [], []>} : vector<8x64xbf16>, vector<64x64xbf16>, vector<8x64xf32> -> vector<8x64xf32>
    %142 = arith.addf %137, %141 : vector<8x64xf32>
    %143 = vector.extract_strided_slice %101 {offsets = [64, 0], sizes = [8, 64], strides = [1, 1]} : vector<72x64xbf16> to vector<8x64xbf16>
    %c8_98 = arith.constant 8 : index
    %c0_99 = arith.constant 0 : index
    %c0_100 = arith.constant 0 : index
    %144 = vector.load %arg7[%c8_98, %c0_99, %c0_100] : memref<9x64x64xbf16, #tpu.memory_space<vmem>>, vector<1x64x64xbf16>
    %145 = vector.shape_cast %144 : vector<1x64x64xbf16> to vector<64x64xbf16>
    %cst_101 = arith.constant dense<0.000000e+00> : vector<8x64xf32>
    %146 = tpu.matmul %143, %145, %cst_101 {dimension_numbers = #tpu.dot_dimension_numbers<[1], [0], [0], [1], [0, 0, 1, 1], [], []>} : vector<8x64xbf16>, vector<64x64xbf16>, vector<8x64xf32> -> vector<8x64xf32>
    %147 = arith.addf %142, %146 : vector<8x64xf32>
    %c0_102 = arith.constant 0 : index
    %c0_103 = arith.constant 0 : index
    %148 = vector.load %arg8[%c0_102, %c0_103] : memref<1x64xf32, #tpu.memory_space<vmem>>, vector<1x64xf32>
    %149 = vector.broadcast %148 : vector<1x64xf32> to vector<8x64xf32>
    %150 = arith.addf %147, %149 : vector<8x64xf32>
    %cst_104 = arith.constant 0.000000e+00 : f32
    %151 = vector.broadcast %cst_104 : f32 to vector<8x64xf32>
    %152 = arith.maximumf %150, %151 : vector<8x64xf32>
    %153 = arith.truncf %152 : vector<8x64xf32> to vector<8x64xbf16>
    %cst_105 = arith.constant 0.000000e+00 : f32
    %154 = vector.broadcast %cst_105 : f32 to vector<2x1024xf32>
    %155 = vector.extract_strided_slice %153 {offsets = [0, 0], sizes = [2, 64], strides = [1, 1]} : vector<8x64xbf16> to vector<2x64xbf16>
    %c0_106 = arith.constant 0 : index
    %c0_107 = arith.constant 0 : index
    %156 = vector.load %arg9[%c0_106, %c0_107] : memref<256x1024xbf16, #tpu.memory_space<vmem>>, vector<64x1024xbf16>
    %cst_108 = arith.constant dense<0.000000e+00> : vector<2x1024xf32>
    %157 = tpu.matmul %155, %156, %cst_108 {dimension_numbers = #tpu.dot_dimension_numbers<[1], [0], [0], [1], [0, 0, 1, 1], [], []>} : vector<2x64xbf16>, vector<64x1024xbf16>, vector<2x1024xf32> -> vector<2x1024xf32>
    %158 = arith.addf %154, %157 : vector<2x1024xf32>
    %159 = vector.extract_strided_slice %153 {offsets = [2, 0], sizes = [2, 64], strides = [1, 1]} : vector<8x64xbf16> to vector<2x64xbf16>
    %c64 = arith.constant 64 : index
    %c0_109 = arith.constant 0 : index
    %160 = vector.load %arg9[%c64, %c0_109] : memref<256x1024xbf16, #tpu.memory_space<vmem>>, vector<64x1024xbf16>
    %cst_110 = arith.constant dense<0.000000e+00> : vector<2x1024xf32>
    %161 = tpu.matmul %159, %160, %cst_110 {dimension_numbers = #tpu.dot_dimension_numbers<[1], [0], [0], [1], [0, 0, 1, 1], [], []>} : vector<2x64xbf16>, vector<64x1024xbf16>, vector<2x1024xf32> -> vector<2x1024xf32>
    %162 = arith.addf %158, %161 : vector<2x1024xf32>
    %163 = vector.extract_strided_slice %153 {offsets = [4, 0], sizes = [2, 64], strides = [1, 1]} : vector<8x64xbf16> to vector<2x64xbf16>
    %c128 = arith.constant 128 : index
    %c0_111 = arith.constant 0 : index
    %164 = vector.load %arg9[%c128, %c0_111] : memref<256x1024xbf16, #tpu.memory_space<vmem>>, vector<64x1024xbf16>
    %cst_112 = arith.constant dense<0.000000e+00> : vector<2x1024xf32>
    %165 = tpu.matmul %163, %164, %cst_112 {dimension_numbers = #tpu.dot_dimension_numbers<[1], [0], [0], [1], [0, 0, 1, 1], [], []>} : vector<2x64xbf16>, vector<64x1024xbf16>, vector<2x1024xf32> -> vector<2x1024xf32>
    %166 = arith.addf %162, %165 : vector<2x1024xf32>
    %167 = vector.extract_strided_slice %153 {offsets = [6, 0], sizes = [2, 64], strides = [1, 1]} : vector<8x64xbf16> to vector<2x64xbf16>
    %c192 = arith.constant 192 : index
    %c0_113 = arith.constant 0 : index
    %168 = vector.load %arg9[%c192, %c0_113] : memref<256x1024xbf16, #tpu.memory_space<vmem>>, vector<64x1024xbf16>
    %cst_114 = arith.constant dense<0.000000e+00> : vector<2x1024xf32>
    %169 = tpu.matmul %167, %168, %cst_114 {dimension_numbers = #tpu.dot_dimension_numbers<[1], [0], [0], [1], [0, 0, 1, 1], [], []>} : vector<2x64xbf16>, vector<64x1024xbf16>, vector<2x1024xf32> -> vector<2x1024xf32>
    %170 = arith.addf %166, %169 : vector<2x1024xf32>
    %c0_115 = arith.constant 0 : index
    %c0_116 = arith.constant 0 : index
    %171 = vector.load %arg10[%c0_115, %c0_116] : memref<1x1024xf32, #tpu.memory_space<vmem>>, vector<1x1024xf32>
    %172 = vector.broadcast %171 : vector<1x1024xf32> to vector<2x1024xf32>
    %173 = arith.addf %170, %172 : vector<2x1024xf32>
    %cst_117 = arith.constant 0.000000e+00 : f32
    %174 = vector.broadcast %cst_117 : f32 to vector<2x1024xf32>
    %175 = arith.maximumf %173, %174 : vector<2x1024xf32>
    %176 = arith.truncf %175 : vector<2x1024xf32> to vector<2x1024xbf16>
    %177 = vector.extract_strided_slice %176 {offsets = [0, 0], sizes = [2, 512], strides = [1, 1]} : vector<2x1024xbf16> to vector<2x512xbf16>
    %c0_118 = arith.constant 0 : index
    %c0_119 = arith.constant 0 : index
    %178 = vector.load %arg11[%c0_118, %c0_119] : memref<512x512xbf16, #tpu.memory_space<vmem>>, vector<512x512xbf16>
    %cst_120 = arith.constant dense<0.000000e+00> : vector<2x512xf32>
    %179 = tpu.matmul %177, %178, %cst_120 {dimension_numbers = #tpu.dot_dimension_numbers<[1], [0], [0], [1], [0, 0, 1, 1], [], []>} : vector<2x512xbf16>, vector<512x512xbf16>, vector<2x512xf32> -> vector<2x512xf32>
    %c0_121 = arith.constant 0 : index
    %c0_122 = arith.constant 0 : index
    %180 = vector.load %arg12[%c0_121, %c0_122] : memref<1x512xf32, #tpu.memory_space<vmem>>, vector<1x512xf32>
    %181 = vector.broadcast %180 : vector<1x512xf32> to vector<2x512xf32>
    %182 = arith.addf %179, %181 : vector<2x512xf32>
    %cst_123 = arith.constant 0.000000e+00 : f32
    %183 = vector.broadcast %cst_123 : f32 to vector<2x512xf32>
    %184 = arith.maximumf %182, %183 : vector<2x512xf32>
    %185 = arith.truncf %184 : vector<2x512xf32> to vector<2x512xbf16>
    %186 = vector.extract_strided_slice %176 {offsets = [0, 512], sizes = [2, 512], strides = [1, 1]} : vector<2x1024xbf16> to vector<2x512xbf16>
    %c0_124 = arith.constant 0 : index
    %c0_125 = arith.constant 0 : index
    %187 = vector.load %arg13[%c0_124, %c0_125] : memref<512x512xbf16, #tpu.memory_space<vmem>>, vector<512x512xbf16>
    %cst_126 = arith.constant dense<0.000000e+00> : vector<2x512xf32>
    %188 = tpu.matmul %186, %187, %cst_126 {dimension_numbers = #tpu.dot_dimension_numbers<[1], [0], [0], [1], [0, 0, 1, 1], [], []>} : vector<2x512xbf16>, vector<512x512xbf16>, vector<2x512xf32> -> vector<2x512xf32>
    %c0_127 = arith.constant 0 : index
    %c0_128 = arith.constant 0 : index
    %189 = vector.load %arg14[%c0_127, %c0_128] : memref<1x512xf32, #tpu.memory_space<vmem>>, vector<1x512xf32>
    %190 = vector.broadcast %189 : vector<1x512xf32> to vector<2x512xf32>
    %191 = arith.addf %188, %190 : vector<2x512xf32>
    %cst_129 = arith.constant 0.000000e+00 : f32
    %192 = vector.broadcast %cst_129 : f32 to vector<2x512xf32>
    %193 = arith.maximumf %191, %192 : vector<2x512xf32>
    %194 = arith.truncf %193 : vector<2x512xf32> to vector<2x512xbf16>
    %c0_130 = arith.constant 0 : index
    %c0_131 = arith.constant 0 : index
    %195 = vector.load %arg15[%c0_130, %c0_131] : memref<1024x128xbf16, #tpu.memory_space<vmem>>, vector<512x128xbf16>
    %cst_132 = arith.constant dense<0.000000e+00> : vector<2x128xf32>
    %196 = tpu.matmul %185, %195, %cst_132 {dimension_numbers = #tpu.dot_dimension_numbers<[1], [0], [0], [1], [0, 0, 1, 1], [], []>} : vector<2x512xbf16>, vector<512x128xbf16>, vector<2x128xf32> -> vector<2x128xf32>
    %c512 = arith.constant 512 : index
    %c0_133 = arith.constant 0 : index
    %197 = vector.load %arg15[%c512, %c0_133] : memref<1024x128xbf16, #tpu.memory_space<vmem>>, vector<512x128xbf16>
    %cst_134 = arith.constant dense<0.000000e+00> : vector<2x128xf32>
    %198 = tpu.matmul %194, %197, %cst_134 {dimension_numbers = #tpu.dot_dimension_numbers<[1], [0], [0], [1], [0, 0, 1, 1], [], []>} : vector<2x512xbf16>, vector<512x128xbf16>, vector<2x128xf32> -> vector<2x128xf32>
    %199 = arith.addf %196, %198 : vector<2x128xf32>
    %c0_135 = arith.constant 0 : index
    %c0_136 = arith.constant 0 : index
    %200 = vector.load %arg16[%c0_135, %c0_136] : memref<1x128xf32, #tpu.memory_space<vmem>>, vector<1x128xf32>
    %201 = vector.broadcast %200 : vector<1x128xf32> to vector<2x128xf32>
    %202 = arith.addf %199, %201 : vector<2x128xf32>
    %203 = tpu.iota {dimensions = array<i32: 1>} : vector<1x128xi32>
    %c1_i32 = arith.constant 1 : i32
    %204 = vector.broadcast %c1_i32 : i32 to vector<1x128xi32>
    %205 = arith.cmpi sge, %203, %204 : vector<1x128xi32>
    %c8_i32 = arith.constant 8 : i32
    %206 = vector.broadcast %c8_i32 : i32 to vector<1x128xi32>
    %207 = arith.cmpi sle, %203, %206 : vector<1x128xi32>
    %208 = arith.andi %205, %207 : vector<1x128xi1>
    %209 = arith.extui %208 : vector<1x128xi1> to vector<1x128xi32>
    %210 = arith.sitofp %209 : vector<1x128xi32> to vector<1x128xf32>
    %211 = vector.broadcast %210 : vector<1x128xf32> to vector<2x128xf32>
    %212 = arith.mulf %202, %211 : vector<2x128xf32>
    %213 = vector.shape_cast %212 : vector<2x128xf32> to vector<1x2x128xf32>
    %cst_137 = arith.constant dense<0.000000e+00> : vector<1xf32>
    %214 = vector.multi_reduction <add>, %213, %cst_137 [1, 2] : vector<1x2x128xf32> to vector<1xf32>
    %215 = vector.shape_cast %214 : vector<1xf32> to vector<1x1x1xf32>
    %216 = vector.extract %215[0, 0, 0] : f32 from vector<1x1x1xf32>
    %217 = vector.broadcast %216 : f32 to vector<1x1xf32>
    %cst_138 = arith.constant 6.250000e-02 : f32
    %218 = vector.broadcast %cst_138 : f32 to vector<1x1xf32>
    %219 = arith.mulf %217, %218 : vector<1x1xf32>
    %220 = vector.extract_strided_slice %202 {offsets = [0, 0], sizes = [2, 1], strides = [1, 1]} : vector<2x128xf32> to vector<2x1xf32>
    %221 = vector.broadcast %220 : vector<2x1xf32> to vector<2x128xf32>
    %222 = arith.addf %221, %202 : vector<2x128xf32>
    %223 = vector.broadcast %219 : vector<1x1xf32> to vector<2x128xf32>
    %224 = arith.subf %222, %223 : vector<2x128xf32>
    %c0_139 = arith.constant 0 : index
    %c0_140 = arith.constant 0 : index
    %225 = vector.load %arg17[%c0_139, %c0_140] : memref<2x128xf32, #tpu.memory_space<vmem>>, vector<2x128xf32>
    tpu.vector_store %arg17[%c0_139, %c0_140], %224 {strides = array<i32>} : memref<2x128xf32, #tpu.memory_space<vmem>>, vector<2x128xf32>,
    return
  }
}

</mosaic_0001>

<llo_original>
// kernel: forward.1
$region0: #{forward.1}
  #allocation0 [shape = 'u32[]', space=smem, size = 0x4, offset = 0x4, fixed_abs, tag = 'smem constant byte address 0x4 - core index']
  #allocation1 [shape = 'u32[144,128]{1,0:T(1,128)}', space=vmem, size = 0x12000, scoped, tag = 'internal scratch']
  %s0 = inlined_call_operand.vmem [shape: bf16[242,256], index: 0, kind: input, shape index: {}]
  %s1 = inlined_call_operand.vmem [shape: bf16[256,32], index: 1, kind: input, shape index: {}]
  %s2 = inlined_call_operand.vmem [shape: f32[1,32], index: 2, kind: input, shape index: {}]
  %s3 = inlined_call_operand.vmem [shape: bf16[512,242], index: 3, kind: input, shape index: {}]
  %s4 = inlined_call_operand.vmem [shape: bf16[16,32,64], index: 4, kind: input, shape index: {}]
  %s5 = inlined_call_operand.vmem [shape: f32[1,64], index: 5, kind: input, shape index: {}]
  %s6 = inlined_call_operand.vmem [shape: bf16[72,32], index: 6, kind: input, shape index: {}]
  %s7 = inlined_call_operand.vmem [shape: bf16[9,64,64], index: 7, kind: input, shape index: {}]
  %s8 = inlined_call_operand.vmem [shape: f32[1,64], index: 8, kind: input, shape index: {}]
  %s9 = inlined_call_operand.vmem [shape: bf16[256,1024], index: 9, kind: input, shape index: {}]
  %s10 = inlined_call_operand.vmem [shape: f32[1,1024], index: 10, kind: input, shape index: {}]
  %s11 = inlined_call_operand.vmem [shape: bf16[512,512], index: 11, kind: input, shape index: {}]
  %s12 = inlined_call_operand.vmem [shape: f32[1,512], index: 12, kind: input, shape index: {}]
  %s13 = inlined_call_operand.vmem [shape: bf16[512,512], index: 13, kind: input, shape index: {}]
  %s14 = inlined_call_operand.vmem [shape: f32[1,512], index: 14, kind: input, shape index: {}]
  %s15 = inlined_call_operand.vmem [shape: bf16[1024,128], index: 15, kind: input, shape index: {}]
  %s16 = inlined_call_operand.vmem [shape: f32[1,128], index: 16, kind: input, shape index: {}]
  %s17 = inlined_call_operand.vmem [shape: f32[2,128], index: 17, kind: output, shape index: {}]
  %s18 = sld [smem:[#allocation0]]
  $region78: #{forward.1} parent=0
    _
  %s20 = ssub.s32 1, %s18
  %s21 = scalar_select 0, %s20, %s18
  // Predicated region
  $region2: #{forward.1} parent=0 // pred_check
    _
  $region3: #{forward.1} parent=0 // pred_check_branch
    %23 = sbr.rel (0) target = $region5
  $region4: #{forward.1} parent=0 // pred_region
    _
  $region5: #{forward.1} parent=0 // pred_fallthru
    _
  // Predicated region
  $region6: #{forward.1} parent=0 // pred_check
    _
  $region7: #{forward.1} parent=0 // pred_check_branch
    %25 = sbr.rel (0) target = $region9
  $region8: #{forward.1} parent=0 // pred_region
    _
  $region9: #{forward.1} parent=0 // pred_fallthru
    _
  // Predicated region
  $region10: #{forward.1} parent=0 // pred_check
    _
  $region11: #{forward.1} parent=0 // pred_check_branch
    %27 = sbr.rel (0) target = $region13
  $region12: #{forward.1} parent=0 // pred_region
    _
  $region13: #{forward.1} parent=0 // pred_fallthru
    _
  // Predicated region
  $region14: #{forward.1} parent=0 // pred_check
    _
  $region15: #{forward.1} parent=0 // pred_check_branch
    %29 = sbr.rel (0) target = $region17
  $region16: #{forward.1} parent=0 // pred_region
    _
  $region17: #{forward.1} parent=0 // pred_fallthru
    _
  // Predicated region
  $region18: #{forward.1} parent=0 // pred_check
    _
  $region19: #{forward.1} parent=0 // pred_check_branch
    %31 = sbr.rel (0) target = $region21
  $region20: #{forward.1} parent=0 // pred_region
    _
  $region21: #{forward.1} parent=0 // pred_fallthru
    _
  // Predicated region
  $region22: #{forward.1} parent=0 // pred_check
    _
  $region23: #{forward.1} parent=0 // pred_check_branch
    %33 = sbr.rel (0) target = $region25
  $region24: #{forward.1} parent=0 // pred_region
    _
  $region25: #{forward.1} parent=0 // pred_fallthru
    _
  // Predicated region
  $region26: #{forward.1} parent=0 // pred_check
    _
  $region27: #{forward.1} parent=0 // pred_check_branch
    %35 = sbr.rel (0) target = $region29
  $region28: #{forward.1} parent=0 // pred_region
    _
  $region29: #{forward.1} parent=0 // pred_fallthru
    _
  // Predicated region
  $region30: #{forward.1} parent=0 // pred_check
    _
  $region31: #{forward.1} parent=0 // pred_check_branch
    %37 = sbr.rel (0) target = $region33
  $region32: #{forward.1} parent=0 // pred_region
    _
  $region33: #{forward.1} parent=0 // pred_fallthru
    _
  // Predicated region
  $region34: #{forward.1} parent=0 // pred_check
    _
  $region35: #{forward.1} parent=0 // pred_check_branch
    %39 = sbr.rel (0) target = $region37
  $region36: #{forward.1} parent=0 // pred_region
    _
  $region37: #{forward.1} parent=0 // pred_fallthru
    _
  // Predicated region
  $region38: #{forward.1} parent=0 // pred_check
    _
  $region39: #{forward.1} parent=0 // pred_check_branch
    %41 = sbr.rel (0) target = $region41
  $region40: #{forward.1} parent=0 // pred_region
    _
  $region41: #{forward.1} parent=0 // pred_fallthru
    _
  // Predicated region
  $region42: #{forward.1} parent=0 // pred_check
    _
  $region43: #{forward.1} parent=0 // pred_check_branch
    %43 = sbr.rel (0) target = $region45
  $region44: #{forward.1} parent=0 // pred_region
    _
  $region45: #{forward.1} parent=0 // pred_fallthru
    _
  // Predicated region
  $region46: #{forward.1} parent=0 // pred_check
    _
  $region47: #{forward.1} parent=0 // pred_check_branch
    %45 = sbr.rel (0) target = $region49
  $region48: #{forward.1} parent=0 // pred_region
    _
  $region49: #{forward.1} parent=0 // pred_fallthru
    _
  // Predicated region
  $region50: #{forward.1} parent=0 // pred_check
    _
  $region51: #{forward.1} parent=0 // pred_check_branch
    %47 = sbr.rel (0) target = $region53
  $region52: #{forward.1} parent=0 // pred_region
    _
  $region53: #{forward.1} parent=0 // pred_fallthru
    _
  // Predicated region
  $region54: #{forward.1} parent=0 // pred_check
    _
  $region55: #{forward.1} parent=0 // pred_check_branch
    %49 = sbr.rel (0) target = $region57
  $region56: #{forward.1} parent=0 // pred_region
    _
  $region57: #{forward.1} parent=0 // pred_fallthru
    _
  // Predicated region
  $region58: #{forward.1} parent=0 // pred_check
    _
  $region59: #{forward.1} parent=0 // pred_check_branch
    %51 = sbr.rel (0) target = $region61
  $region60: #{forward.1} parent=0 // pred_region
    _
  $region61: #{forward.1} parent=0 // pred_fallthru
    _
  // Predicated region
  $region62: #{forward.1} parent=0 // pred_check
    _
  $region63: #{forward.1} parent=0 // pred_check_branch
    %53 = sbr.rel (0) target = $region65
  $region64: #{forward.1} parent=0 // pred_region
    _
  $region65: #{forward.1} parent=0 // pred_fallthru
    _
  // Predicated region
  $region66: #{forward.1} parent=0 // pred_check
    _
  $region67: #{forward.1} parent=0 // pred_check_branch
    %55 = sbr.rel (0) target = $region69
  $region68: #{forward.1} parent=0 // pred_region
    _
  $region69: #{forward.1} parent=0 // pred_fallthru
    _
  %v57 = vld [vmem:[%s0] sm:$0xff]
  %v58 = vld [vmem:[%s0 + $0x8] sm:$0xff]
  %v59 = vld [vmem:[%s0 + $0x10] sm:$0xff]
  %v60 = vld [vmem:[%s0 + $0x18] sm:$0xff]
  %v61 = vld [vmem:[%s0 + $0x20] sm:$0xff]
  %v62 = vld [vmem:[%s0 + $0x28] sm:$0xff]
  %v63 = vld [vmem:[%s0 + $0x30] sm:$0xff]
  %v64 = vld [vmem:[%s0 + $0x38] sm:$0xff]
  %v65 = vld [vmem:[%s0 + $0x40] sm:$0xff]
  %v66 = vld [vmem:[%s0 + $0x48] sm:$0xff]
  %v67 = vld [vmem:[%s0 + $0x50] sm:$0xff]
  %v68 = vld [vmem:[%s0 + $0x58] sm:$0xff]
  %v69 = vld [vmem:[%s0 + $0x60] sm:$0xff]
  %v70 = vld [vmem:[%s0 + $0x68] sm:$0xff]
  %v71 = vld [vmem:[%s0 + $0x70] sm:$0xff]
  %v72 = vld [vmem:[%s0 + $0x78] sm:$0xff]
  %v73 = vld [vmem:[%s0 + $0x80] sm:$0xff]
  %v74 = vld [vmem:[%s0 + $0x88] sm:$0xff]
  %v75 = vld [vmem:[%s0 + $0x90] sm:$0xff]
  %v76 = vld [vmem:[%s0 + $0x98] sm:$0xff]
  %v77 = vld [vmem:[%s0 + $0xa0] sm:$0xff]
  %v78 = vld [vmem:[%s0 + $0xa8] sm:$0xff]
  %v79 = vld [vmem:[%s0 + $0xb0] sm:$0xff]
  %v80 = vld [vmem:[%s0 + $0xb8] sm:$0xff]
  %v81 = vld [vmem:[%s0 + $0xc0] sm:$0xff]
  %v82 = vld [vmem:[%s0 + $0xc8] sm:$0xff]
  %v83 = vld [vmem:[%s0 + $0xd0] sm:$0xff]
  %v84 = vld [vmem:[%s0 + $0xd8] sm:$0xff]
  %v85 = vld [vmem:[%s0 + $0xe0] sm:$0xff]
  %v86 = vld [vmem:[%s0 + $0xe8] sm:$0xff]
  %v87 = vld [vmem:[%s0 + $0xf0] sm:$0x11]
  %v88 = vld [vmem:[%s1] sm:$0xf]
  %v89 = vld [vmem:[%s1 + $0x4] sm:$0xf]
  %v90 = vld [vmem:[%s1 + $0x8] sm:$0xf]
  %v91 = vld [vmem:[%s1 + $0xc] sm:$0xf]
  %v92 = vld [vmem:[%s1 + $0x10] sm:$0xf]
  %v93 = vld [vmem:[%s1 + $0x14] sm:$0xf]
  %v94 = vld [vmem:[%s1 + $0x18] sm:$0xf]
  %v95 = vld [vmem:[%s1 + $0x1c] sm:$0xf]
  %v96 = vld [vmem:[%s1 + $0x20] sm:$0xf]
  %v97 = vld [vmem:[%s1 + $0x24] sm:$0xf]
  %v98 = vld [vmem:[%s1 + $0x28] sm:$0xf]
  %v99 = vld [vmem:[%s1 + $0x2c] sm:$0xf]
  %v100 = vld [vmem:[%s1 + $0x30] sm:$0xf]
  %v101 = vld [vmem:[%s1 + $0x34] sm:$0xf]
  %v102 = vld [vmem:[%s1 + $0x38] sm:$0xf]
  %v103 = vld [vmem:[%s1 + $0x3c] sm:$0xf]
  %v104 = vld [vmem:[%s1 + $0x40] sm:$0xf]
  %v105 = vld [vmem:[%s1 + $0x44] sm:$0xf]
  %v106 = vld [vmem:[%s1 + $0x48] sm:$0xf]
  %v107 = vld [vmem:[%s1 + $0x4c] sm:$0xf]
  %v108 = vld [vmem:[%s1 + $0x50] sm:$0xf]
  %v109 = vld [vmem:[%s1 + $0x54] sm:$0xf]
  %v110 = vld [vmem:[%s1 + $0x58] sm:$0xf]
  %v111 = vld [vmem:[%s1 + $0x5c] sm:$0xf]
  %v112 = vld [vmem:[%s1 + $0x60] sm:$0xf]
  %v113 = vld [vmem:[%s1 + $0x64] sm:$0xf]
  %v114 = vld [vmem:[%s1 + $0x68] sm:$0xf]
  %v115 = vld [vmem:[%s1 + $0x6c] sm:$0xf]
  %v116 = vld [vmem:[%s1 + $0x70] sm:$0xf]
  %v117 = vld [vmem:[%s1 + $0x74] sm:$0xf]
  %v118 = vld [vmem:[%s1 + $0x78] sm:$0xf]
  %v119 = vld [vmem:[%s1 + $0x7c] sm:$0xf]
  %v120 = vld [vmem:[%s2] sm:$0x1]
  %v122 = vlaneseq
  %v123 = vshrl.u32 %v122, 7
  %v124 = vsub.s32 0, %v123
  %v125 = vrot.slane %v120, %v124
  %v158 = vunpack.c.l.b16 %v57
  %v159 = vunpack.c.h.b16 %v57
  %v160 = vunpack.c.l.b16 %v58
  %v161 = vunpack.c.h.b16 %v58
  %v162 = vunpack.c.l.b16 %v59
  %v163 = vunpack.c.h.b16 %v59
  %v164 = vunpack.c.l.b16 %v60
  %v165 = vunpack.c.h.b16 %v60
  %v166 = vunpack.c.l.b16 %v61
  %v167 = vunpack.c.h.b16 %v61
  %v168 = vunpack.c.l.b16 %v62
  %v169 = vunpack.c.h.b16 %v62
  %v170 = vunpack.c.l.b16 %v63
  %v171 = vunpack.c.h.b16 %v63
  %v172 = vunpack.c.l.b16 %v64
  %v173 = vunpack.c.h.b16 %v64
  %v174 = vunpack.c.l.b16 %v65
  %v175 = vunpack.c.h.b16 %v65
  %v176 = vunpack.c.l.b16 %v66
  %v177 = vunpack.c.h.b16 %v66
  %v178 = vunpack.c.l.b16 %v67
  %v179 = vunpack.c.h.b16 %v67
  %v180 = vunpack.c.l.b16 %v68
  %v181 = vunpack.c.h.b16 %v68
  %v182 = vunpack.c.l.b16 %v69
  %v183 = vunpack.c.h.b16 %v69
  %v184 = vunpack.c.l.b16 %v70
  %v185 = vunpack.c.h.b16 %v70
  %v186 = vunpack.c.l.b16 %v71
  %v187 = vunpack.c.h.b16 %v71
  %v188 = vunpack.c.l.b16 %v72
  %v189 = vunpack.c.h.b16 %v72
  %v190 = vunpack.c.l.b16 %v73
  %v191 = vunpack.c.h.b16 %v73
  %v192 = vunpack.c.l.b16 %v74
  %v193 = vunpack.c.h.b16 %v74
  %v194 = vunpack.c.l.b16 %v75
  %v195 = vunpack.c.h.b16 %v75
  %v196 = vunpack.c.l.b16 %v76
  %v197 = vunpack.c.h.b16 %v76
  %v198 = vunpack.c.l.b16 %v77
  %v199 = vunpack.c.h.b16 %v77
  %v200 = vunpack.c.l.b16 %v78
  %v201 = vunpack.c.h.b16 %v78
  %v202 = vunpack.c.l.b16 %v79
  %v203 = vunpack.c.h.b16 %v79
  %v204 = vunpack.c.l.b16 %v80
  %v205 = vunpack.c.h.b16 %v80
  %v206 = vunpack.c.l.b16 %v81
  %v207 = vunpack.c.h.b16 %v81
  %v208 = vunpack.c.l.b16 %v82
  %v209 = vunpack.c.h.b16 %v82
  %v210 = vunpack.c.l.b16 %v83
  %v211 = vunpack.c.h.b16 %v83
  %v212 = vunpack.c.l.b16 %v84
  %v213 = vunpack.c.h.b16 %v84
  %v214 = vunpack.c.l.b16 %v85
  %v215 = vunpack.c.h.b16 %v85
  %v216 = vunpack.c.l.b16 %v86
  %v217 = vunpack.c.h.b16 %v86
  %v218 = vunpack.c.l.b16 %v87
  %v219 = vunpack.c.h.b16 %v87
  %v220 = vpack.c.b16 %v160, %v158
  %v221 = vpack.c.b16 %v161, %v159
  %v222 = vpack.c.b16 %v164, %v162
  %v223 = vpack.c.b16 %v165, %v163
  %v224 = vpack.c.b16 %v168, %v166
  %v225 = vpack.c.b16 %v169, %v167
  %v226 = vpack.c.b16 %v172, %v170
  %v227 = vpack.c.b16 %v173, %v171
  %v228 = vpack.c.b16 %v176, %v174
  %v229 = vpack.c.b16 %v177, %v175
  %v230 = vpack.c.b16 %v180, %v178
  %v231 = vpack.c.b16 %v181, %v179
  %v232 = vpack.c.b16 %v184, %v182
  %v233 = vpack.c.b16 %v185, %v183
  %v234 = vpack.c.b16 %v188, %v186
  %v235 = vpack.c.b16 %v189, %v187
  %v236 = vpack.c.b16 %v192, %v190
  %v237 = vpack.c.b16 %v193, %v191
  %v238 = vpack.c.b16 %v196, %v194
  %v239 = vpack.c.b16 %v197, %v195
  %v240 = vpack.c.b16 %v200, %v198
  %v241 = vpack.c.b16 %v201, %v199
  %v242 = vpack.c.b16 %v204, %v202
  %v243 = vpack.c.b16 %v205, %v203
  %v244 = vpack.c.b16 %v208, %v206
  %v245 = vpack.c.b16 %v209, %v207
  %v246 = vpack.c.b16 %v212, %v210
  %v247 = vpack.c.b16 %v213, %v211
  %v248 = vpack.c.b16 %v216, %v214
  %v249 = vpack.c.b16 %v217, %v215
  %v250 = vpack.c.b16 %v218, %v218
  %v251 = vpack.c.b16 %v219, %v219
  %v316 = vunpack.c.l.b16 %v88
  %v317 = vunpack.c.l.b16 %v89
  %v318 = vunpack.c.l.b16 %v90
  %v319 = vunpack.c.l.b16 %v91
  %v320 = vunpack.c.l.b16 %v92
  %v321 = vunpack.c.l.b16 %v93
  %v322 = vunpack.c.l.b16 %v94
  %v323 = vunpack.c.l.b16 %v95
  %v324 = vunpack.c.l.b16 %v96
  %v325 = vunpack.c.l.b16 %v97
  %v326 = vunpack.c.l.b16 %v98
  %v327 = vunpack.c.l.b16 %v99
  %v328 = vunpack.c.l.b16 %v100
  %v329 = vunpack.c.l.b16 %v101
  %v330 = vunpack.c.l.b16 %v102
  %v331 = vunpack.c.l.b16 %v103
  %v332 = vunpack.c.l.b16 %v104
  %v333 = vunpack.c.l.b16 %v105
  %v334 = vunpack.c.l.b16 %v106
  %v335 = vunpack.c.l.b16 %v107
  %v336 = vunpack.c.l.b16 %v108
  %v337 = vunpack.c.l.b16 %v109
  %v338 = vunpack.c.l.b16 %v110
  %v339 = vunpack.c.l.b16 %v111
  %v340 = vunpack.c.l.b16 %v112
  %v341 = vunpack.c.l.b16 %v113
  %v342 = vunpack.c.l.b16 %v114
  %v343 = vunpack.c.l.b16 %v115
  %v344 = vunpack.c.l.b16 %v116
  %v345 = vunpack.c.l.b16 %v117
  %v346 = vunpack.c.l.b16 %v118
  %v347 = vunpack.c.l.b16 %v119
  %v348 = vpack.c.b16 %v317, %v316
  %v349 = vpack.c.b16 %v319, %v318
  %v350 = vpack.c.b16 %v321, %v320
  %v351 = vpack.c.b16 %v323, %v322
  %v352 = vpack.c.b16 %v325, %v324
  %v353 = vpack.c.b16 %v327, %v326
  %v354 = vpack.c.b16 %v329, %v328
  %v355 = vpack.c.b16 %v331, %v330
  %v356 = vpack.c.b16 %v333, %v332
  %v357 = vpack.c.b16 %v335, %v334
  %v358 = vpack.c.b16 %v337, %v336
  %v359 = vpack.c.b16 %v339, %v338
  %v360 = vpack.c.b16 %v341, %v340
  %v361 = vpack.c.b16 %v343, %v342
  %v362 = vpack.c.b16 %v345, %v344
  %v363 = vpack.c.b16 %v347, %v346
  %380 = vmatprep.subr.bf16.mxu0 0
  %381 = vmatpush1.bf16.msra.mxu0 %v355
  %382 = vmatprep.subr.bf16.mxu0 0
  %383 = vmatpush1.bf16.msra.mxu0 %v354
  %384 = vmatprep.subr.bf16.mxu0 0
  %385 = vmatpush1.bf16.msra.mxu0 %v353
  %386 = vmatprep.subr.bf16.mxu0 0
  %387 = vmatpush1.bf16.msra.mxu0 %v352
  %388 = vmatprep.subr.bf16.mxu0 0
  %389 = vmatpush1.bf16.msra.mxu0 %v351
  %390 = vmatprep.subr.bf16.mxu0 0
  %391 = vmatpush1.bf16.msra.mxu0 %v350
  %392 = vmatprep.subr.bf16.mxu0 0
  %393 = vmatpush1.bf16.msra.mxu0 %v349
  %394 = vmatprep.subr.bf16.mxu0 0
  %395 = vmatpush1.bf16.msra.mxu0 %v348
  %396 = vmatprep.subr.bf16.mxu0 0
  %397 = vmatpush2.bf16.msra.mxu0 %v363
  %398 = vmatprep.subr.bf16.mxu0 0
  %399 = vmatpush2.bf16.msra.mxu0 %v362
  %400 = vmatprep.subr.bf16.mxu0 0
  %401 = vmatpush2.bf16.msra.mxu0 %v361
  %402 = vmatprep.subr.bf16.mxu0 0
  %403 = vmatpush2.bf16.msra.mxu0 %v360
  %404 = vmatprep.subr.bf16.mxu0 0
  %405 = vmatpush2.bf16.msra.mxu0 %v359
  %406 = vmatprep.subr.bf16.mxu0 0
  %407 = vmatpush2.bf16.msra.mxu0 %v358
  %408 = vmatprep.subr.bf16.mxu0 0
  %409 = vmatpush2.bf16.msra.mxu0 %v357
  %410 = vmatprep.subr.bf16.mxu0 0
  %411 = vmatpush2.bf16.msra.mxu0 %v356
  %412 = vmatprep.mubr.bf16.mxu0 %v221
  %413 = vmatmul.mubr.bf16.gmra.mxu0 %v220
  %v414 = vpop.f32.mrf.mxu0
  %v415 = vadd.f32 %v125, %v414
  %v416 = vpop.f32.mrf.mxu0
  %v417 = vpop.f32.mrf.mxu0
  %v418 = vadd.f32 %v125, %v417
  %v419 = vpop.f32.mrf.mxu0
  %420 = vmatprep.mubr.bf16.mxu0 %v223
  %421 = vmatmul.mubr.bf16.gmra.mxu0 %v222
  %v422 = vpop.f32.mrf.mxu0
  %v423 = vadd.f32 %v125, %v422
  %v424 = vpop.f32.mrf.mxu0
  %v425 = vpop.f32.mrf.mxu0
  %v426 = vadd.f32 %v125, %v425
  %v427 = vpop.f32.mrf.mxu0
  %428 = vmatprep.mubr.bf16.mxu0 %v225
  %429 = vmatmul.mubr.bf16.gmra.mxu0 %v224
  %v430 = vpop.f32.mrf.mxu0
  %v431 = vadd.f32 %v125, %v430
  %v432 = vpop.f32.mrf.mxu0
  %v433 = vpop.f32.mrf.mxu0
  %v434 = vadd.f32 %v125, %v433
  %v435 = vpop.f32.mrf.mxu0
  %436 = vmatprep.mubr.bf16.mxu0 %v227
  %437 = vmatmul.mubr.bf16.gmra.mxu0 %v226
  %v438 = vpop.f32.mrf.mxu0
  %v439 = vadd.f32 %v125, %v438
  %v440 = vpop.f32.mrf.mxu0
  %v441 = vpop.f32.mrf.mxu0
  %v442 = vadd.f32 %v125, %v441
  %v443 = vpop.f32.mrf.mxu0
  %444 = vmatprep.mubr.bf16.mxu0 %v229
  %445 = vmatmul.mubr.bf16.gmra.mxu0 %v228
  %v446 = vpop.f32.mrf.mxu0
  %v447 = vadd.f32 %v125, %v446
  %v448 = vpop.f32.mrf.mxu0
  %v449 = vpop.f32.mrf.mxu0
  %v450 = vadd.f32 %v125, %v449
  %v451 = vpop.f32.mrf.mxu0
  %452 = vmatprep.mubr.bf16.mxu0 %v231
  %453 = vmatmul.mubr.bf16.gmra.mxu0 %v230
  %v454 = vpop.f32.mrf.mxu0
  %v455 = vadd.f32 %v125, %v454
  %v456 = vpop.f32.mrf.mxu0
  %v457 = vpop.f32.mrf.mxu0
  %v458 = vadd.f32 %v125, %v457
  %v459 = vpop.f32.mrf.mxu0
  %460 = vmatprep.mubr.bf16.mxu0 %v233
  %461 = vmatmul.mubr.bf16.gmra.mxu0 %v232
  %v462 = vpop.f32.mrf.mxu0
  %v463 = vadd.f32 %v125, %v462
  %v464 = vpop.f32.mrf.mxu0
  %v465 = vpop.f32.mrf.mxu0
  %v466 = vadd.f32 %v125, %v465
  %v467 = vpop.f32.mrf.mxu0
  %468 = vmatprep.mubr.bf16.mxu0 %v235
  %469 = vmatmul.mubr.bf16.gmra.mxu0 %v234
  %v470 = vpop.f32.mrf.mxu0
  %v471 = vadd.f32 %v125, %v470
  %v472 = vpop.f32.mrf.mxu0
  %v473 = vpop.f32.mrf.mxu0
  %v474 = vadd.f32 %v125, %v473
  %v475 = vpop.f32.mrf.mxu0
  %476 = vmatprep.mubr.bf16.mxu0 %v237
  %477 = vmatmul.mubr.bf16.gmra.mxu0 %v236
  %v478 = vpop.f32.mrf.mxu0
  %v479 = vadd.f32 %v125, %v478
  %v480 = vpop.f32.mrf.mxu0
  %v481 = vpop.f32.mrf.mxu0
  %v482 = vadd.f32 %v125, %v481
  %v483 = vpop.f32.mrf.mxu0
  %484 = vmatprep.mubr.bf16.mxu0 %v239
  %485 = vmatmul.mubr.bf16.gmra.mxu0 %v238
  %v486 = vpop.f32.mrf.mxu0
  %v487 = vadd.f32 %v125, %v486
  %v488 = vpop.f32.mrf.mxu0
  %v489 = vpop.f32.mrf.mxu0
  %v490 = vadd.f32 %v125, %v489
  %v491 = vpop.f32.mrf.mxu0
  %492 = vmatprep.mubr.bf16.mxu0 %v241
  %493 = vmatmul.mubr.bf16.gmra.mxu0 %v240
  %v494 = vpop.f32.mrf.mxu0
  %v495 = vadd.f32 %v125, %v494
  %v496 = vpop.f32.mrf.mxu0
  %v497 = vpop.f32.mrf.mxu0
  %v498 = vadd.f32 %v125, %v497
  %v499 = vpop.f32.mrf.mxu0
  %500 = vmatprep.mubr.bf16.mxu0 %v243
  %501 = vmatmul.mubr.bf16.gmra.mxu0 %v242
  %v502 = vpop.f32.mrf.mxu0
  %v503 = vadd.f32 %v125, %v502
  %v504 = vpop.f32.mrf.mxu0
  %v505 = vpop.f32.mrf.mxu0
  %v506 = vadd.f32 %v125, %v505
  %v507 = vpop.f32.mrf.mxu0
  %508 = vmatprep.mubr.bf16.mxu0 %v245
  %509 = vmatmul.mubr.bf16.gmra.mxu0 %v244
  %v510 = vpop.f32.mrf.mxu0
  %v511 = vadd.f32 %v125, %v510
  %v512 = vpop.f32.mrf.mxu0
  %v513 = vpop.f32.mrf.mxu0
  %v514 = vadd.f32 %v125, %v513
  %v515 = vpop.f32.mrf.mxu0
  %516 = vmatprep.mubr.bf16.mxu0 %v247
  %517 = vmatmul.mubr.bf16.gmra.mxu0 %v246
  %v518 = vpop.f32.mrf.mxu0
  %v519 = vadd.f32 %v125, %v518
  %v520 = vpop.f32.mrf.mxu0
  %v521 = vpop.f32.mrf.mxu0
  %v522 = vadd.f32 %v125, %v521
  %v523 = vpop.f32.mrf.mxu0
  %524 = vmatprep.mubr.bf16.mxu0 %v249
  %525 = vmatmul.mubr.bf16.gmra.mxu0 %v248
  %v526 = vpop.f32.mrf.mxu0
  %v527 = vadd.f32 %v125, %v526
  %v528 = vpop.f32.mrf.mxu0
  %v529 = vpop.f32.mrf.mxu0
  %v530 = vadd.f32 %v125, %v529
  %v531 = vpop.f32.mrf.mxu0
  %532 = vmatprep.mubr.bf16.mxu0 %v251
  %533 = vmatmul.mubr.bf16.gmra.mxu0 %v250
  %v534 = vpop.f32.mrf.mxu0
  %v535 = vadd.f32 %v125, %v534
  %v536 = vpop.f32.mrf.mxu0
  %v537 = vpop.f32.mrf.mxu0
  %v538 = vpop.f32.mrf.mxu0
  %539 = vdwg.mxu0
  %v540 = vmax.f32 %v415, 0.0
  %v541 = vmax.f32 %v418, 0.0
  %v542 = vmax.f32 %v423, 0.0
  %v543 = vmax.f32 %v426, 0.0
  %v544 = vmax.f32 %v431, 0.0
  %v545 = vmax.f32 %v434, 0.0
  %v546 = vmax.f32 %v439, 0.0
  %v547 = vmax.f32 %v442, 0.0
  %v548 = vmax.f32 %v447, 0.0
  %v549 = vmax.f32 %v450, 0.0
  %v550 = vmax.f32 %v455, 0.0
  %v551 = vmax.f32 %v458, 0.0
  %v552 = vmax.f32 %v463, 0.0
  %v553 = vmax.f32 %v466, 0.0
  %v554 = vmax.f32 %v471, 0.0
  %v555 = vmax.f32 %v474, 0.0
  %v556 = vmax.f32 %v479, 0.0
  %v557 = vmax.f32 %v482, 0.0
  %v558 = vmax.f32 %v487, 0.0
  %v559 = vmax.f32 %v490, 0.0
  %v560 = vmax.f32 %v495, 0.0
  %v561 = vmax.f32 %v498, 0.0
  %v562 = vmax.f32 %v503, 0.0
  %v563 = vmax.f32 %v506, 0.0
  %v564 = vmax.f32 %v511, 0.0
  %v565 = vmax.f32 %v514, 0.0
  %v566 = vmax.f32 %v519, 0.0
  %v567 = vmax.f32 %v522, 0.0
  %v568 = vmax.f32 %v527, 0.0
  %v569 = vmax.f32 %v530, 0.0
  %v570 = vmax.f32 %v535, 0.0
  %v571 = vpack.c.bf16 %v541, %v540
  %v572 = vpack.c.bf16 %v543, %v542
  %v573 = vpack.c.bf16 %v545, %v544
  %v574 = vpack.c.bf16 %v547, %v546
  %v575 = vpack.c.bf16 %v549, %v548
  %v576 = vpack.c.bf16 %v551, %v550
  %v577 = vpack.c.bf16 %v553, %v552
  %v578 = vpack.c.bf16 %v555, %v554
  %v579 = vpack.c.bf16 %v557, %v556
  %v580 = vpack.c.bf16 %v559, %v558
  %v581 = vpack.c.bf16 %v561, %v560
  %v582 = vpack.c.bf16 %v563, %v562
  %v583 = vpack.c.bf16 %v565, %v564
  %v584 = vpack.c.bf16 %v567, %v566
  %v585 = vpack.c.bf16 %v569, %v568
  %v586 = vpack.c.bf16 %v570, %v570
  %v587 = vld [vmem:[%s3] sm:$0xff]
  %v588 = vld [vmem:[%s3 + $0x8] sm:$0xff]
  %v589 = vld [vmem:[%s3 + $0x10] sm:$0xff]
  %v590 = vld [vmem:[%s3 + $0x18] sm:$0xff]
  %v591 = vld [vmem:[%s3 + $0x20] sm:$0xff]
  %v592 = vld [vmem:[%s3 + $0x28] sm:$0xff]
  %v593 = vld [vmem:[%s3 + $0x30] sm:$0xff]
  %v594 = vld [vmem:[%s3 + $0x38] sm:$0xff]
  %v595 = vld [vmem:[%s3 + $0x40] sm:$0xff]
  %v596 = vld [vmem:[%s3 + $0x48] sm:$0xff]
  %v597 = vld [vmem:[%s3 + $0x50] sm:$0xff]
  %v598 = vld [vmem:[%s3 + $0x58] sm:$0xff]
  %v599 = vld [vmem:[%s3 + $0x60] sm:$0xff]
  %v600 = vld [vmem:[%s3 + $0x68] sm:$0xff]
  %v601 = vld [vmem:[%s3 + $0x70] sm:$0xff]
  %v602 = vld [vmem:[%s3 + $0x78] sm:$0xff]
  %v603 = vld [vmem:[%s3 + $0x80] sm:$0xff]
  %v604 = vld [vmem:[%s3 + $0x88] sm:$0xff]
  %v605 = vld [vmem:[%s3 + $0x90] sm:$0xff]
  %v606 = vld [vmem:[%s3 + $0x98] sm:$0xff]
  %v607 = vld [vmem:[%s3 + $0xa0] sm:$0xff]
  %v608 = vld [vmem:[%s3 + $0xa8] sm:$0xff]
  %v609 = vld [vmem:[%s3 + $0xb0] sm:$0xff]
  %v610 = vld [vmem:[%s3 + $0xb8] sm:$0xff]
  %v611 = vld [vmem:[%s3 + $0xc0] sm:$0xff]
  %v612 = vld [vmem:[%s3 + $0xc8] sm:$0xff]
  %v613 = vld [vmem:[%s3 + $0xd0] sm:$0xff]
  %v614 = vld [vmem:[%s3 + $0xd8] sm:$0xff]
  %v615 = vld [vmem:[%s3 + $0xe0] sm:$0xff]
  %v616 = vld [vmem:[%s3 + $0xe8] sm:$0xff]
  %v617 = vld [vmem:[%s3 + $0xf0] sm:$0xff]
  %v618 = vld [vmem:[%s3 + $0xf8] sm:$0xff]
  %v619 = vld [vmem:[%s3 + $0x100] sm:$0xff]
  %v620 = vld [vmem:[%s3 + $0x108] sm:$0xff]
  %v621 = vld [vmem:[%s3 + $0x110] sm:$0xff]
  %v622 = vld [vmem:[%s3 + $0x118] sm:$0xff]
  %v623 = vld [vmem:[%s3 + $0x120] sm:$0xff]
  %v624 = vld [vmem:[%s3 + $0x128] sm:$0xff]
  %v625 = vld [vmem:[%s3 + $0x130] sm:$0xff]
  %v626 = vld [vmem:[%s3 + $0x138] sm:$0xff]
  %v627 = vld [vmem:[%s3 + $0x140] sm:$0xff]
  %v628 = vld [vmem:[%s3 + $0x148] sm:$0xff]
  %v629 = vld [vmem:[%s3 + $0x150] sm:$0xff]
  %v630 = vld [vmem:[%s3 + $0x158] sm:$0xff]
  %v631 = vld [vmem:[%s3 + $0x160] sm:$0xff]
  %v632 = vld [vmem:[%s3 + $0x168] sm:$0xff]
  %v633 = vld [vmem:[%s3 + $0x170] sm:$0xff]
  %v634 = vld [vmem:[%s3 + $0x178] sm:$0xff]
  %v635 = vld [vmem:[%s3 + $0x180] sm:$0xff]
  %v636 = vld [vmem:[%s3 + $0x188] sm:$0xff]
  %v637 = vld [vmem:[%s3 + $0x190] sm:$0xff]
  %v638 = vld [vmem:[%s3 + $0x198] sm:$0xff]
  %v639 = vld [vmem:[%s3 + $0x1a0] sm:$0xff]
  %v640 = vld [vmem:[%s3 + $0x1a8] sm:$0xff]
  %v641 = vld [vmem:[%s3 + $0x1b0] sm:$0xff]
  %v642 = vld [vmem:[%s3 + $0x1b8] sm:$0xff]
  %v643 = vld [vmem:[%s3 + $0x1c0] sm:$0xff]
  %v644 = vld [vmem:[%s3 + $0x1c8] sm:$0xff]
  %v645 = vld [vmem:[%s3 + $0x1d0] sm:$0xff]
  %v646 = vld [vmem:[%s3 + $0x1d8] sm:$0xff]
  %v647 = vld [vmem:[%s3 + $0x1e0] sm:$0xff]
  %v648 = vld [vmem:[%s3 + $0x1e8] sm:$0xff]
  %v649 = vld [vmem:[%s3 + $0x1f0] sm:$0xff]
  %v650 = vld [vmem:[%s3 + $0x1f8] sm:$0xff]
  %v715 = vunpack.c.l.b16 %v587
  %v716 = vunpack.c.h.b16 %v587
  %v717 = vunpack.c.l.b16 %v588
  %v718 = vunpack.c.h.b16 %v588
  %v719 = vunpack.c.l.b16 %v589
  %v720 = vunpack.c.h.b16 %v589
  %v721 = vunpack.c.l.b16 %v590
  %v722 = vunpack.c.h.b16 %v590
  %v723 = vunpack.c.l.b16 %v591
  %v724 = vunpack.c.h.b16 %v591
  %v725 = vunpack.c.l.b16 %v592
  %v726 = vunpack.c.h.b16 %v592
  %v727 = vunpack.c.l.b16 %v593
  %v728 = vunpack.c.h.b16 %v593
  %v729 = vunpack.c.l.b16 %v594
  %v730 = vunpack.c.h.b16 %v594
  %v731 = vunpack.c.l.b16 %v595
  %v732 = vunpack.c.h.b16 %v595
  %v733 = vunpack.c.l.b16 %v596
  %v734 = vunpack.c.h.b16 %v596
  %v735 = vunpack.c.l.b16 %v597
  %v736 = vunpack.c.h.b16 %v597
  %v737 = vunpack.c.l.b16 %v598
  %v738 = vunpack.c.h.b16 %v598
  %v739 = vunpack.c.l.b16 %v599
  %v740 = vunpack.c.h.b16 %v599
  %v741 = vunpack.c.l.b16 %v600
  %v742 = vunpack.c.h.b16 %v600
  %v743 = vunpack.c.l.b16 %v601
  %v744 = vunpack.c.h.b16 %v601
  %v745 = vunpack.c.l.b16 %v602
  %v746 = vunpack.c.h.b16 %v602
  %v747 = vunpack.c.l.b16 %v603
  %v748 = vunpack.c.h.b16 %v603
  %v749 = vunpack.c.l.b16 %v604
  %v750 = vunpack.c.h.b16 %v604
  %v751 = vunpack.c.l.b16 %v605
  %v752 = vunpack.c.h.b16 %v605
  %v753 = vunpack.c.l.b16 %v606
  %v754 = vunpack.c.h.b16 %v606
  %v755 = vunpack.c.l.b16 %v607
  %v756 = vunpack.c.h.b16 %v607
  %v757 = vunpack.c.l.b16 %v608
  %v758 = vunpack.c.h.b16 %v608
  %v759 = vunpack.c.l.b16 %v609
  %v760 = vunpack.c.h.b16 %v609
  %v761 = vunpack.c.l.b16 %v610
  %v762 = vunpack.c.h.b16 %v610
  %v763 = vunpack.c.l.b16 %v611
  %v764 = vunpack.c.h.b16 %v611
  %v765 = vunpack.c.l.b16 %v612
  %v766 = vunpack.c.h.b16 %v612
  %v767 = vunpack.c.l.b16 %v613
  %v768 = vunpack.c.h.b16 %v613
  %v769 = vunpack.c.l.b16 %v614
  %v770 = vunpack.c.h.b16 %v614
  %v771 = vunpack.c.l.b16 %v615
  %v772 = vunpack.c.h.b16 %v615
  %v773 = vunpack.c.l.b16 %v616
  %v774 = vunpack.c.h.b16 %v616
  %v775 = vunpack.c.l.b16 %v617
  %v776 = vunpack.c.h.b16 %v617
  %v777 = vunpack.c.l.b16 %v618
  %v778 = vunpack.c.h.b16 %v618
  %v779 = vunpack.c.l.b16 %v619
  %v780 = vunpack.c.h.b16 %v619
  %v781 = vunpack.c.l.b16 %v620
  %v782 = vunpack.c.h.b16 %v620
  %v783 = vunpack.c.l.b16 %v621
  %v784 = vunpack.c.h.b16 %v621
  %v785 = vunpack.c.l.b16 %v622
  %v786 = vunpack.c.h.b16 %v622
  %v787 = vunpack.c.l.b16 %v623
  %v788 = vunpack.c.h.b16 %v623
  %v789 = vunpack.c.l.b16 %v624
  %v790 = vunpack.c.h.b16 %v624
  %v791 = vunpack.c.l.b16 %v625
  %v792 = vunpack.c.h.b16 %v625
  %v793 = vunpack.c.l.b16 %v626
  %v794 = vunpack.c.h.b16 %v626
  %v795 = vunpack.c.l.b16 %v627
  %v796 = vunpack.c.h.b16 %v627
  %v797 = vunpack.c.l.b16 %v628
  %v798 = vunpack.c.h.b16 %v628
  %v799 = vunpack.c.l.b16 %v629
  %v800 = vunpack.c.h.b16 %v629
  %v801 = vunpack.c.l.b16 %v630
  %v802 = vunpack.c.h.b16 %v630
  %v803 = vunpack.c.l.b16 %v631
  %v804 = vunpack.c.h.b16 %v631
  %v805 = vunpack.c.l.b16 %v632
  %v806 = vunpack.c.h.b16 %v632
  %v807 = vunpack.c.l.b16 %v633
  %v808 = vunpack.c.h.b16 %v633
  %v809 = vunpack.c.l.b16 %v634
  %v810 = vunpack.c.h.b16 %v634
  %v811 = vunpack.c.l.b16 %v635
  %v812 = vunpack.c.h.b16 %v635
  %v813 = vunpack.c.l.b16 %v636
  %v814 = vunpack.c.h.b16 %v636
  %v815 = vunpack.c.l.b16 %v637
  %v816 = vunpack.c.h.b16 %v637
  %v817 = vunpack.c.l.b16 %v638
  %v818 = vunpack.c.h.b16 %v638
  %v819 = vunpack.c.l.b16 %v639
  %v820 = vunpack.c.h.b16 %v639
  %v821 = vunpack.c.l.b16 %v640
  %v822 = vunpack.c.h.b16 %v640
  %v823 = vunpack.c.l.b16 %v641
  %v824 = vunpack.c.h.b16 %v641
  %v825 = vunpack.c.l.b16 %v642
  %v826 = vunpack.c.h.b16 %v642
  %v827 = vunpack.c.l.b16 %v643
  %v828 = vunpack.c.h.b16 %v643
  %v829 = vunpack.c.l.b16 %v644
  %v830 = vunpack.c.h.b16 %v644
  %v831 = vunpack.c.l.b16 %v645
  %v832 = vunpack.c.h.b16 %v645
  %v833 = vunpack.c.l.b16 %v646
  %v834 = vunpack.c.h.b16 %v646
  %v835 = vunpack.c.l.b16 %v647
  %v836 = vunpack.c.h.b16 %v647
  %v837 = vunpack.c.l.b16 %v648
  %v838 = vunpack.c.h.b16 %v648
  %v839 = vunpack.c.l.b16 %v649
  %v840 = vunpack.c.h.b16 %v649
  %v841 = vunpack.c.l.b16 %v650
  %v842 = vunpack.c.h.b16 %v650
  %v843 = vpack.c.b16 %v717, %v715
  %v844 = vpack.c.b16 %v718, %v716
  %v845 = vpack.c.b16 %v721, %v719
  %v846 = vpack.c.b16 %v722, %v720
  %v847 = vpack.c.b16 %v725, %v723
  %v848 = vpack.c.b16 %v726, %v724
  %v849 = vpack.c.b16 %v729, %v727
  %v850 = vpack.c.b16 %v730, %v728
  %v851 = vpack.c.b16 %v733, %v731
  %v852 = vpack.c.b16 %v734, %v732
  %v853 = vpack.c.b16 %v737, %v735
  %v854 = vpack.c.b16 %v738, %v736
  %v855 = vpack.c.b16 %v741, %v739
  %v856 = vpack.c.b16 %v742, %v740
  %v857 = vpack.c.b16 %v745, %v743
  %v858 = vpack.c.b16 %v746, %v744
  %v859 = vpack.c.b16 %v749, %v747
  %v860 = vpack.c.b16 %v750, %v748
  %v861 = vpack.c.b16 %v753, %v751
  %v862 = vpack.c.b16 %v754, %v752
  %v863 = vpack.c.b16 %v757, %v755
  %v864 = vpack.c.b16 %v758, %v756
  %v865 = vpack.c.b16 %v761, %v759
  %v866 = vpack.c.b16 %v762, %v760
  %v867 = vpack.c.b16 %v765, %v763
  %v868 = vpack.c.b16 %v766, %v764
  %v869 = vpack.c.b16 %v769, %v767
  %v870 = vpack.c.b16 %v770, %v768
  %v871 = vpack.c.b16 %v773, %v771
  %v872 = vpack.c.b16 %v774, %v772
  %v873 = vpack.c.b16 %v777, %v775
  %v874 = vpack.c.b16 %v778, %v776
  %v875 = vpack.c.b16 %v781, %v779
  %v876 = vpack.c.b16 %v782, %v780
  %v877 = vpack.c.b16 %v785, %v783
  %v878 = vpack.c.b16 %v786, %v784
  %v879 = vpack.c.b16 %v789, %v787
  %v880 = vpack.c.b16 %v790, %v788
  %v881 = vpack.c.b16 %v793, %v791
  %v882 = vpack.c.b16 %v794, %v792
  %v883 = vpack.c.b16 %v797, %v795
  %v884 = vpack.c.b16 %v798, %v796
  %v885 = vpack.c.b16 %v801, %v799
  %v886 = vpack.c.b16 %v802, %v800
  %v887 = vpack.c.b16 %v805, %v803
  %v888 = vpack.c.b16 %v806, %v804
  %v889 = vpack.c.b16 %v809, %v807
  %v890 = vpack.c.b16 %v810, %v808
  %v891 = vpack.c.b16 %v813, %v811
  %v892 = vpack.c.b16 %v814, %v812
  %v893 = vpack.c.b16 %v817, %v815
  %v894 = vpack.c.b16 %v818, %v816
  %v895 = vpack.c.b16 %v821, %v819
  %v896 = vpack.c.b16 %v822, %v820
  %v897 = vpack.c.b16 %v825, %v823
  %v898 = vpack.c.b16 %v826, %v824
  %v899 = vpack.c.b16 %v829, %v827
  %v900 = vpack.c.b16 %v830, %v828
  %v901 = vpack.c.b16 %v833, %v831
  %v902 = vpack.c.b16 %v834, %v832
  %v903 = vpack.c.b16 %v837, %v835
  %v904 = vpack.c.b16 %v838, %v836
  %v905 = vpack.c.b16 %v841, %v839
  %v906 = vpack.c.b16 %v842, %v840
  %vm939 = vcmask 932864
  %v941 = vsel %vm939, %v844, 0
  %v944 = vsel %vm939, %v846, 0
  %v947 = vsel %vm939, %v848, 0
  %v950 = vsel %vm939, %v850, 0
  %v953 = vsel %vm939, %v852, 0
  %v956 = vsel %vm939, %v854, 0
  %v959 = vsel %vm939, %v856, 0
  %v962 = vsel %vm939, %v858, 0
  %v965 = vsel %vm939, %v860, 0
  %v968 = vsel %vm939, %v862, 0
  %v971 = vsel %vm939, %v864, 0
  %v974 = vsel %vm939, %v866, 0
  %v977 = vsel %vm939, %v868, 0
  %v980 = vsel %vm939, %v870, 0
  %v983 = vsel %vm939, %v872, 0
  %v986 = vsel %vm939, %v874, 0
  %v989 = vsel %vm939, %v876, 0
  %v992 = vsel %vm939, %v878, 0
  %v995 = vsel %vm939, %v880, 0
  %v998 = vsel %vm939, %v882, 0
  %v1001 = vsel %vm939, %v884, 0
  %v1004 = vsel %vm939, %v886, 0
  %v1007 = vsel %vm939, %v888, 0
  %v1010 = vsel %vm939, %v890, 0
  %v1013 = vsel %vm939, %v892, 0
  %v1016 = vsel %vm939, %v894, 0
  %v1019 = vsel %vm939, %v896, 0
  %v1022 = vsel %vm939, %v898, 0
  %v1025 = vsel %vm939, %v900, 0
  %v1028 = vsel %vm939, %v902, 0
  %v1031 = vsel %vm939, %v904, 0
  %v1034 = vsel %vm939, %v906, 0
  %vm1036 = vcmask 1040384
  %v1038 = vsel %vm1036, %v586, 0
  %1040 = vmatprep.subr.bf16.mxu0 0
  %1041 = vmatpush1.bf16.msra.mxu0 %v578
  %1042 = vmatprep.subr.bf16.mxu0 0
  %1043 = vmatpush1.bf16.msra.mxu0 %v577
  %1044 = vmatprep.subr.bf16.mxu0 0
  %1045 = vmatpush1.bf16.msra.mxu0 %v576
  %1046 = vmatprep.subr.bf16.mxu0 0
  %1047 = vmatpush1.bf16.msra.mxu0 %v575
  %1048 = vmatprep.subr.bf16.mxu0 0
  %1049 = vmatpush1.bf16.msra.mxu0 %v574
  %1050 = vmatprep.subr.bf16.mxu0 0
  %1051 = vmatpush1.bf16.msra.mxu0 %v573
  %1052 = vmatprep.subr.bf16.mxu0 0
  %1053 = vmatpush1.bf16.msra.mxu0 %v572
  %1054 = vmatprep.subr.bf16.mxu0 0
  %1055 = vmatpush1.bf16.msra.mxu0 %v571
  %1056 = vmatprep.subr.bf16.mxu0 0
  %1057 = vmatpush2.bf16.msra.mxu0 %v1038
  %1058 = vmatprep.subr.bf16.mxu0 0
  %1059 = vmatpush2.bf16.msra.mxu0 %v585
  %1060 = vmatprep.subr.bf16.mxu0 0
  %1061 = vmatpush2.bf16.msra.mxu0 %v584
  %1062 = vmatprep.subr.bf16.mxu0 0
  %1063 = vmatpush2.bf16.msra.mxu0 %v583
  %1064 = vmatprep.subr.bf16.mxu0 0
  %1065 = vmatpush2.bf16.msra.mxu0 %v582
  %1066 = vmatprep.subr.bf16.mxu0 0
  %1067 = vmatpush2.bf16.msra.mxu0 %v581
  %1068 = vmatprep.subr.bf16.mxu0 0
  %1069 = vmatpush2.bf16.msra.mxu0 %v580
  %1070 = vmatprep.subr.bf16.mxu0 0
  %1071 = vmatpush2.bf16.msra.mxu0 %v579
  %1072 = vmatprep.mubr.bf16.mxu0 %v941
  %1073 = vmatmul.mubr.bf16.gmra.mxu0 %v843
  %v1074 = vpop.f32.mrf.mxu0
  %v1075 = vadd.f32 0.0, %v1074
  %v1076 = vpop.f32.mrf.mxu0
  %v1077 = vpop.f32.mrf.mxu0
  %v1078 = vadd.f32 0.0, %v1077
  %v1079 = vpop.f32.mrf.mxu0
  %1080 = vmatprep.mubr.bf16.mxu0 %v944
  %1081 = vmatmul.mubr.bf16.gmra.mxu0 %v845
  %v1082 = vpop.f32.mrf.mxu0
  %v1083 = vadd.f32 0.0, %v1082
  %v1084 = vpop.f32.mrf.mxu0
  %v1085 = vpop.f32.mrf.mxu0
  %v1086 = vadd.f32 0.0, %v1085
  %v1087 = vpop.f32.mrf.mxu0
  %1088 = vmatprep.mubr.bf16.mxu0 %v947
  %1089 = vmatmul.mubr.bf16.gmra.mxu0 %v847
  %v1090 = vpop.f32.mrf.mxu0
  %v1091 = vadd.f32 0.0, %v1090
  %v1092 = vpop.f32.mrf.mxu0
  %v1093 = vpop.f32.mrf.mxu0
  %v1094 = vadd.f32 0.0, %v1093
  %v1095 = vpop.f32.mrf.mxu0
  %1096 = vmatprep.mubr.bf16.mxu0 %v950
  %1097 = vmatmul.mubr.bf16.gmra.mxu0 %v849
  %v1098 = vpop.f32.mrf.mxu0
  %v1099 = vadd.f32 0.0, %v1098
  %v1100 = vpop.f32.mrf.mxu0
  %v1101 = vpop.f32.mrf.mxu0
  %v1102 = vadd.f32 0.0, %v1101
  %v1103 = vpop.f32.mrf.mxu0
  %1104 = vmatprep.mubr.bf16.mxu0 %v953
  %1105 = vmatmul.mubr.bf16.gmra.mxu0 %v851
  %v1106 = vpop.f32.mrf.mxu0
  %v1107 = vadd.f32 0.0, %v1106
  %v1108 = vpop.f32.mrf.mxu0
  %v1109 = vpop.f32.mrf.mxu0
  %v1110 = vadd.f32 0.0, %v1109
  %v1111 = vpop.f32.mrf.mxu0
  %1112 = vmatprep.mubr.bf16.mxu0 %v956
  %1113 = vmatmul.mubr.bf16.gmra.mxu0 %v853
  %v1114 = vpop.f32.mrf.mxu0
  %v1115 = vadd.f32 0.0, %v1114
  %v1116 = vpop.f32.mrf.mxu0
  %v1117 = vpop.f32.mrf.mxu0
  %v1118 = vadd.f32 0.0, %v1117
  %v1119 = vpop.f32.mrf.mxu0
  %1120 = vmatprep.mubr.bf16.mxu0 %v959
  %1121 = vmatmul.mubr.bf16.gmra.mxu0 %v855
  %v1122 = vpop.f32.mrf.mxu0
  %v1123 = vadd.f32 0.0, %v1122
  %v1124 = vpop.f32.mrf.mxu0
  %v1125 = vpop.f32.mrf.mxu0
  %v1126 = vadd.f32 0.0, %v1125
  %v1127 = vpop.f32.mrf.mxu0
  %1128 = vmatprep.mubr.bf16.mxu0 %v962
  %1129 = vmatmul.mubr.bf16.gmra.mxu0 %v857
  %v1130 = vpop.f32.mrf.mxu0
  %v1131 = vadd.f32 0.0, %v1130
  %v1132 = vpop.f32.mrf.mxu0
  %v1133 = vpop.f32.mrf.mxu0
  %v1134 = vadd.f32 0.0, %v1133
  %v1135 = vpop.f32.mrf.mxu0
  %1136 = vmatprep.mubr.bf16.mxu0 %v965
  %1137 = vmatmul.mubr.bf16.gmra.mxu0 %v859
  %v1138 = vpop.f32.mrf.mxu0
  %v1139 = vadd.f32 0.0, %v1138
  %v1140 = vpop.f32.mrf.mxu0
  %v1141 = vpop.f32.mrf.mxu0
  %v1142 = vadd.f32 0.0, %v1141
  %v1143 = vpop.f32.mrf.mxu0
  %1144 = vmatprep.mubr.bf16.mxu0 %v968
  %1145 = vmatmul.mubr.bf16.gmra.mxu0 %v861
  %v1146 = vpop.f32.mrf.mxu0
  %v1147 = vadd.f32 0.0, %v1146
  %v1148 = vpop.f32.mrf.mxu0
  %v1149 = vpop.f32.mrf.mxu0
  %v1150 = vadd.f32 0.0, %v1149
  %v1151 = vpop.f32.mrf.mxu0
  %1152 = vmatprep.mubr.bf16.mxu0 %v971
  %1153 = vmatmul.mubr.bf16.gmra.mxu0 %v863
  %v1154 = vpop.f32.mrf.mxu0
  %v1155 = vadd.f32 0.0, %v1154
  %v1156 = vpop.f32.mrf.mxu0
  %v1157 = vpop.f32.mrf.mxu0
  %v1158 = vadd.f32 0.0, %v1157
  %v1159 = vpop.f32.mrf.mxu0
  %1160 = vmatprep.mubr.bf16.mxu0 %v974
  %1161 = vmatmul.mubr.bf16.gmra.mxu0 %v865
  %v1162 = vpop.f32.mrf.mxu0
  %v1163 = vadd.f32 0.0, %v1162
  %v1164 = vpop.f32.mrf.mxu0
  %v1165 = vpop.f32.mrf.mxu0
  %v1166 = vadd.f32 0.0, %v1165
  %v1167 = vpop.f32.mrf.mxu0
  %1168 = vmatprep.mubr.bf16.mxu0 %v977
  %1169 = vmatmul.mubr.bf16.gmra.mxu0 %v867
  %v1170 = vpop.f32.mrf.mxu0
  %v1171 = vadd.f32 0.0, %v1170
  %v1172 = vpop.f32.mrf.mxu0
  %v1173 = vpop.f32.mrf.mxu0
  %v1174 = vadd.f32 0.0, %v1173
  %v1175 = vpop.f32.mrf.mxu0
  %1176 = vmatprep.mubr.bf16.mxu0 %v980
  %1177 = vmatmul.mubr.bf16.gmra.mxu0 %v869
  %v1178 = vpop.f32.mrf.mxu0
  %v1179 = vadd.f32 0.0, %v1178
  %v1180 = vpop.f32.mrf.mxu0
  %v1181 = vpop.f32.mrf.mxu0
  %v1182 = vadd.f32 0.0, %v1181
  %v1183 = vpop.f32.mrf.mxu0
  %1184 = vmatprep.mubr.bf16.mxu0 %v983
  %1185 = vmatmul.mubr.bf16.gmra.mxu0 %v871
  %v1186 = vpop.f32.mrf.mxu0
  %v1187 = vadd.f32 0.0, %v1186
  %v1188 = vpop.f32.mrf.mxu0
  %v1189 = vpop.f32.mrf.mxu0
  %v1190 = vadd.f32 0.0, %v1189
  %v1191 = vpop.f32.mrf.mxu0
  %1192 = vmatprep.mubr.bf16.mxu0 %v986
  %1193 = vmatmul.mubr.bf16.gmra.mxu0 %v873
  %v1194 = vpop.f32.mrf.mxu0
  %v1195 = vadd.f32 0.0, %v1194
  %v1196 = vpop.f32.mrf.mxu0
  %v1197 = vpop.f32.mrf.mxu0
  %v1198 = vadd.f32 0.0, %v1197
  %v1199 = vpop.f32.mrf.mxu0
  %1200 = vmatprep.mubr.bf16.mxu0 %v989
  %1201 = vmatmul.mubr.bf16.gmra.mxu0 %v875
  %v1202 = vpop.f32.mrf.mxu0
  %v1203 = vadd.f32 0.0, %v1202
  %v1204 = vpop.f32.mrf.mxu0
  %v1205 = vpop.f32.mrf.mxu0
  %v1206 = vadd.f32 0.0, %v1205
  %v1207 = vpop.f32.mrf.mxu0
  %1208 = vmatprep.mubr.bf16.mxu0 %v992
  %1209 = vmatmul.mubr.bf16.gmra.mxu0 %v877
  %v1210 = vpop.f32.mrf.mxu0
  %v1211 = vadd.f32 0.0, %v1210
  %v1212 = vpop.f32.mrf.mxu0
  %v1213 = vpop.f32.mrf.mxu0
  %v1214 = vadd.f32 0.0, %v1213
  %v1215 = vpop.f32.mrf.mxu0
  %1216 = vmatprep.mubr.bf16.mxu0 %v995
  %1217 = vmatmul.mubr.bf16.gmra.mxu0 %v879
  %v1218 = vpop.f32.mrf.mxu0
  %v1219 = vadd.f32 0.0, %v1218
  %v1220 = vpop.f32.mrf.mxu0
  %v1221 = vpop.f32.mrf.mxu0
  %v1222 = vadd.f32 0.0, %v1221
  %v1223 = vpop.f32.mrf.mxu0
  %1224 = vmatprep.mubr.bf16.mxu0 %v998
  %1225 = vmatmul.mubr.bf16.gmra.mxu0 %v881
  %v1226 = vpop.f32.mrf.mxu0
  %v1227 = vadd.f32 0.0, %v1226
  %v1228 = vpop.f32.mrf.mxu0
  %v1229 = vpop.f32.mrf.mxu0
  %v1230 = vadd.f32 0.0, %v1229
  %v1231 = vpop.f32.mrf.mxu0
  %1232 = vmatprep.mubr.bf16.mxu0 %v1001
  %1233 = vmatmul.mubr.bf16.gmra.mxu0 %v883
  %v1234 = vpop.f32.mrf.mxu0
  %v1235 = vadd.f32 0.0, %v1234
  %v1236 = vpop.f32.mrf.mxu0
  %v1237 = vpop.f32.mrf.mxu0
  %v1238 = vadd.f32 0.0, %v1237
  %v1239 = vpop.f32.mrf.mxu0
  %1240 = vmatprep.mubr.bf16.mxu0 %v1004
  %1241 = vmatmul.mubr.bf16.gmra.mxu0 %v885
  %v1242 = vpop.f32.mrf.mxu0
  %v1243 = vadd.f32 0.0, %v1242
  %v1244 = vpop.f32.mrf.mxu0
  %v1245 = vpop.f32.mrf.mxu0
  %v1246 = vadd.f32 0.0, %v1245
  %v1247 = vpop.f32.mrf.mxu0
  %1248 = vmatprep.mubr.bf16.mxu0 %v1007
  %1249 = vmatmul.mubr.bf16.gmra.mxu0 %v887
  %v1250 = vpop.f32.mrf.mxu0
  %v1251 = vadd.f32 0.0, %v1250
  %v1252 = vpop.f32.mrf.mxu0
  %v1253 = vpop.f32.mrf.mxu0
  %v1254 = vadd.f32 0.0, %v1253
  %v1255 = vpop.f32.mrf.mxu0
  %1256 = vmatprep.mubr.bf16.mxu0 %v1010
  %1257 = vmatmul.mubr.bf16.gmra.mxu0 %v889
  %v1258 = vpop.f32.mrf.mxu0
  %v1259 = vadd.f32 0.0, %v1258
  %v1260 = vpop.f32.mrf.mxu0
  %v1261 = vpop.f32.mrf.mxu0
  %v1262 = vadd.f32 0.0, %v1261
  %v1263 = vpop.f32.mrf.mxu0
  %1264 = vmatprep.mubr.bf16.mxu0 %v1013
  %1265 = vmatmul.mubr.bf16.gmra.mxu0 %v891
  %v1266 = vpop.f32.mrf.mxu0
  %v1267 = vadd.f32 0.0, %v1266
  %v1268 = vpop.f32.mrf.mxu0
  %v1269 = vpop.f32.mrf.mxu0
  %v1270 = vadd.f32 0.0, %v1269
  %v1271 = vpop.f32.mrf.mxu0
  %1272 = vmatprep.mubr.bf16.mxu0 %v1016
  %1273 = vmatmul.mubr.bf16.gmra.mxu0 %v893
  %v1274 = vpop.f32.mrf.mxu0
  %v1275 = vadd.f32 0.0, %v1274
  %v1276 = vpop.f32.mrf.mxu0
  %v1277 = vpop.f32.mrf.mxu0
  %v1278 = vadd.f32 0.0, %v1277
  %v1279 = vpop.f32.mrf.mxu0
  %1280 = vmatprep.mubr.bf16.mxu0 %v1019
  %1281 = vmatmul.mubr.bf16.gmra.mxu0 %v895
  %v1282 = vpop.f32.mrf.mxu0
  %v1283 = vadd.f32 0.0, %v1282
  %v1284 = vpop.f32.mrf.mxu0
  %v1285 = vpop.f32.mrf.mxu0
  %v1286 = vadd.f32 0.0, %v1285
  %v1287 = vpop.f32.mrf.mxu0
  %1288 = vmatprep.mubr.bf16.mxu0 %v1022
  %1289 = vmatmul.mubr.bf16.gmra.mxu0 %v897
  %v1290 = vpop.f32.mrf.mxu0
  %v1291 = vadd.f32 0.0, %v1290
  %v1292 = vpop.f32.mrf.mxu0
  %v1293 = vpop.f32.mrf.mxu0
  %v1294 = vadd.f32 0.0, %v1293
  %v1295 = vpop.f32.mrf.mxu0
  %1296 = vmatprep.mubr.bf16.mxu0 %v1025
  %1297 = vmatmul.mubr.bf16.gmra.mxu0 %v899
  %v1298 = vpop.f32.mrf.mxu0
  %v1299 = vadd.f32 0.0, %v1298
  %v1300 = vpop.f32.mrf.mxu0
  %v1301 = vpop.f32.mrf.mxu0
  %v1302 = vadd.f32 0.0, %v1301
  %v1303 = vpop.f32.mrf.mxu0
  %1304 = vmatprep.mubr.bf16.mxu0 %v1028
  %1305 = vmatmul.mubr.bf16.gmra.mxu0 %v901
  %v1306 = vpop.f32.mrf.mxu0
  %v1307 = vadd.f32 0.0, %v1306
  %v1308 = vpop.f32.mrf.mxu0
  %v1309 = vpop.f32.mrf.mxu0
  %v1310 = vadd.f32 0.0, %v1309
  %v1311 = vpop.f32.mrf.mxu0
  %1312 = vmatprep.mubr.bf16.mxu0 %v1031
  %1313 = vmatmul.mubr.bf16.gmra.mxu0 %v903
  %v1314 = vpop.f32.mrf.mxu0
  %v1315 = vadd.f32 0.0, %v1314
  %v1316 = vpop.f32.mrf.mxu0
  %v1317 = vpop.f32.mrf.mxu0
  %v1318 = vadd.f32 0.0, %v1317
  %v1319 = vpop.f32.mrf.mxu0
  %1320 = vmatprep.mubr.bf16.mxu0 %v1034
  %1321 = vmatmul.mubr.bf16.gmra.mxu0 %v905
  %v1322 = vpop.f32.mrf.mxu0
  %v1323 = vadd.f32 0.0, %v1322
  %v1324 = vpop.f32.mrf.mxu0
  %v1325 = vpop.f32.mrf.mxu0
  %v1326 = vadd.f32 0.0, %v1325
  %v1327 = vpop.f32.mrf.mxu0
  %1328 = vdwg.mxu0
  %v1329 = vpack.c.bf16 %v1078, %v1075
  %v1330 = vpack.c.bf16 %v1086, %v1083
  %v1331 = vpack.c.bf16 %v1094, %v1091
  %v1332 = vpack.c.bf16 %v1102, %v1099
  %v1333 = vpack.c.bf16 %v1110, %v1107
  %v1334 = vpack.c.bf16 %v1118, %v1115
  %v1335 = vpack.c.bf16 %v1126, %v1123
  %v1336 = vpack.c.bf16 %v1134, %v1131
  %v1337 = vpack.c.bf16 %v1142, %v1139
  %v1338 = vpack.c.bf16 %v1150, %v1147
  %v1339 = vpack.c.bf16 %v1158, %v1155
  %v1340 = vpack.c.bf16 %v1166, %v1163
  %v1341 = vpack.c.bf16 %v1174, %v1171
  %v1342 = vpack.c.bf16 %v1182, %v1179
  %v1343 = vpack.c.bf16 %v1190, %v1187
  %v1344 = vpack.c.bf16 %v1198, %v1195
  %v1345 = vpack.c.bf16 %v1206, %v1203
  %v1346 = vpack.c.bf16 %v1214, %v1211
  %v1347 = vpack.c.bf16 %v1222, %v1219
  %v1348 = vpack.c.bf16 %v1230, %v1227
  %v1349 = vpack.c.bf16 %v1238, %v1235
  %v1350 = vpack.c.bf16 %v1246, %v1243
  %v1351 = vpack.c.bf16 %v1254, %v1251
  %v1352 = vpack.c.bf16 %v1262, %v1259
  %v1353 = vpack.c.bf16 %v1270, %v1267
  %v1354 = vpack.c.bf16 %v1278, %v1275
  %v1355 = vpack.c.bf16 %v1286, %v1283
  %v1356 = vpack.c.bf16 %v1294, %v1291
  %v1357 = vpack.c.bf16 %v1302, %v1299
  %v1358 = vpack.c.bf16 %v1310, %v1307
  %v1359 = vpack.c.bf16 %v1318, %v1315
  %v1360 = vpack.c.bf16 %v1326, %v1323
  %v1361 = vld [vmem:[%s4] sm:$0xf]
  %v1362 = vld [vmem:[%s4 + $0x4] sm:$0xf]
  %v1363 = vld [vmem:[%s4 + $0x8] sm:$0xf]
  %v1364 = vld [vmem:[%s4 + $0xc] sm:$0xf]
  %s1365 = scalar_lea.vmem %s4, 16
  %v1366 = vld [vmem:[%s1365] sm:$0xf]
  %v1367 = vld [vmem:[%s1365 + $0x4] sm:$0xf]
  %v1368 = vld [vmem:[%s1365 + $0x8] sm:$0xf]
  %v1369 = vld [vmem:[%s1365 + $0xc] sm:$0xf]
  %v1374 = vunpack.c.l.b16 %v1366
  %v1375 = vunpack.c.l.b16 %v1367
  %v1376 = vunpack.c.l.b16 %v1368
  %v1377 = vunpack.c.l.b16 %v1369
  %v1378 = vpack.c.b16 %v1375, %v1374
  %v1379 = vpack.c.b16 %v1377, %v1376
  %vm1382 = vcmask 261120
  %v1384 = vsel %vm1382, %v1331, 0
  %v1387 = vsel %vm1382, %v1332, 0
  %1389 = vmatprep.subr.bf16.mxu0 0
  %1390 = vmatpush1.bf16.msra.mxu0 0
  %1391 = vmatprep.subr.bf16.mxu0 0
  %1392 = vmatpush1.bf16.msra.mxu0 0
  %1393 = vmatprep.subr.bf16.mxu0 0
  %1394 = vmatpush1.bf16.msra.mxu0 0
  %1395 = vmatprep.subr.bf16.mxu0 0
  %1396 = vmatpush1.bf16.msra.mxu0 0
  %1397 = vmatprep.subr.bf16.mxu0 0
  %1398 = vmatpush1.bf16.msra.mxu0 0
  %1399 = vmatprep.subr.bf16.mxu0 0
  %1400 = vmatpush1.bf16.msra.mxu0 0
  %1401 = vmatprep.subr.bf16.mxu0 0
  %1402 = vmatpush1.bf16.msra.mxu0 %v1379
  %1403 = vmatprep.subr.bf16.mxu0 0
  %1404 = vmatpush1.bf16.msra.mxu0 %v1378
  %1405 = vmatprep.subr.bf16.mxu0 0
  %1406 = vmatpush2.bf16.msra.mxu0 0
  %1407 = vmatprep.subr.bf16.mxu0 0
  %1408 = vmatpush2.bf16.msra.mxu0 0
  %1409 = vmatprep.subr.bf16.mxu0 0
  %1410 = vmatpush2.bf16.msra.mxu0 0
  %1411 = vmatprep.subr.bf16.mxu0 0
  %1412 = vmatpush2.bf16.msra.mxu0 0
  %1413 = vmatprep.subr.bf16.mxu0 0
  %1414 = vmatpush2.bf16.msra.mxu0 0
  %1415 = vmatprep.subr.bf16.mxu0 0
  %1416 = vmatpush2.bf16.msra.mxu0 0
  %1417 = vmatprep.subr.bf16.mxu0 0
  %1418 = vmatpush2.bf16.msra.mxu0 0
  %1419 = vmatprep.subr.bf16.mxu0 0
  %1420 = vmatpush2.bf16.msra.mxu0 0
  %1421 = vmatprep.mubr.bf16.mxu0 0
  %1422 = vmatmul.mubr.bf16.gmra.mxu0 %v1384
  %v1423 = vpop.f32.mrf.mxu0
  %v1424 = vadd.f32 0.0, %v1423
  %v1425 = vpop.f32.mrf.mxu0
  %v1426 = vpop.f32.mrf.mxu0
  %v1427 = vadd.f32 0.0, %v1426
  %v1428 = vpop.f32.mrf.mxu0
  %1429 = vmatprep.mubr.bf16.mxu0 0
  %1430 = vmatmul.mubr.bf16.gmra.mxu0 %v1387
  %v1431 = vpop.f32.mrf.mxu0
  %v1432 = vadd.f32 0.0, %v1431
  %v1433 = vpop.f32.mrf.mxu0
  %v1434 = vpop.f32.mrf.mxu0
  %v1435 = vadd.f32 0.0, %v1434
  %v1436 = vpop.f32.mrf.mxu0
  %1437 = vdwg.mxu0
  %v1442 = vunpack.c.l.b16 %v1361
  %v1443 = vunpack.c.l.b16 %v1362
  %v1444 = vunpack.c.l.b16 %v1363
  %v1445 = vunpack.c.l.b16 %v1364
  %v1446 = vpack.c.b16 %v1443, %v1442
  %v1447 = vpack.c.b16 %v1445, %v1444
  %v1451 = vsel %vm1382, %v1329, 0
  %v1454 = vsel %vm1382, %v1330, 0
  %1456 = vmatprep.subr.bf16.mxu0 0
  %1457 = vmatpush1.bf16.msra.mxu0 0
  %1458 = vmatprep.subr.bf16.mxu0 0
  %1459 = vmatpush1.bf16.msra.mxu0 0
  %1460 = vmatprep.subr.bf16.mxu0 0
  %1461 = vmatpush1.bf16.msra.mxu0 0
  %1462 = vmatprep.subr.bf16.mxu0 0
  %1463 = vmatpush1.bf16.msra.mxu0 0
  %1464 = vmatprep.subr.bf16.mxu0 0
  %1465 = vmatpush1.bf16.msra.mxu0 0
  %1466 = vmatprep.subr.bf16.mxu0 0
  %1467 = vmatpush1.bf16.msra.mxu0 0
  %1468 = vmatprep.subr.bf16.mxu0 0
  %1469 = vmatpush1.bf16.msra.mxu0 %v1447
  %1470 = vmatprep.subr.bf16.mxu0 0
  %1471 = vmatpush1.bf16.msra.mxu0 %v1446
  %1472 = vmatprep.subr.bf16.mxu0 0
  %1473 = vmatpush2.bf16.msra.mxu0 0
  %1474 = vmatprep.subr.bf16.mxu0 0
  %1475 = vmatpush2.bf16.msra.mxu0 0
  %1476 = vmatprep.subr.bf16.mxu0 0
  %1477 = vmatpush2.bf16.msra.mxu0 0
  %1478 = vmatprep.subr.bf16.mxu0 0
  %1479 = vmatpush2.bf16.msra.mxu0 0
  %1480 = vmatprep.subr.bf16.mxu0 0
  %1481 = vmatpush2.bf16.msra.mxu0 0
  %1482 = vmatprep.subr.bf16.mxu0 0
  %1483 = vmatpush2.bf16.msra.mxu0 0
  %1484 = vmatprep.subr.bf16.mxu0 0
  %1485 = vmatpush2.bf16.msra.mxu0 0
  %1486 = vmatprep.subr.bf16.mxu0 0
  %1487 = vmatpush2.bf16.msra.mxu0 0
  %1488 = vmatprep.mubr.bf16.mxu0 0
  %1489 = vmatmul.mubr.bf16.gmra.mxu0 %v1451
  %v1490 = vpop.f32.mrf.mxu0
  %v1491 = vadd.f32 %v1424, %v1490
  %v1492 = vpop.f32.mrf.mxu0
  %v1493 = vpop.f32.mrf.mxu0
  %v1494 = vadd.f32 %v1427, %v1493
  %v1495 = vpop.f32.mrf.mxu0
  %1496 = vmatprep.mubr.bf16.mxu0 0
  %1497 = vmatmul.mubr.bf16.gmra.mxu0 %v1454
  %v1498 = vpop.f32.mrf.mxu0
  %v1499 = vadd.f32 %v1432, %v1498
  %v1500 = vpop.f32.mrf.mxu0
  %v1501 = vpop.f32.mrf.mxu0
  %v1502 = vadd.f32 %v1435, %v1501
  %v1503 = vpop.f32.mrf.mxu0
  %1504 = vdwg.mxu0
  %s1505 = scalar_lea.vmem %s4, 32
  %v1506 = vld [vmem:[%s1505] sm:$0xf]
  %v1507 = vld [vmem:[%s1505 + $0x4] sm:$0xf]
  %v1508 = vld [vmem:[%s1505 + $0x8] sm:$0xf]
  %v1509 = vld [vmem:[%s1505 + $0xc] sm:$0xf]
  %v1514 = vunpack.c.l.b16 %v1506
  %v1515 = vunpack.c.l.b16 %v1507
  %v1516 = vunpack.c.l.b16 %v1508
  %v1517 = vunpack.c.l.b16 %v1509
  %v1518 = vpack.c.b16 %v1515, %v1514
  %v1519 = vpack.c.b16 %v1517, %v1516
  %v1523 = vsel %vm1382, %v1333, 0
  %v1526 = vsel %vm1382, %v1334, 0
  %1528 = vmatprep.subr.bf16.mxu0 0
  %1529 = vmatpush1.bf16.msra.mxu0 0
  %1530 = vmatprep.subr.bf16.mxu0 0
  %1531 = vmatpush1.bf16.msra.mxu0 0
  %1532 = vmatprep.subr.bf16.mxu0 0
  %1533 = vmatpush1.bf16.msra.mxu0 0
  %1534 = vmatprep.subr.bf16.mxu0 0
  %1535 = vmatpush1.bf16.msra.mxu0 0
  %1536 = vmatprep.subr.bf16.mxu0 0
  %1537 = vmatpush1.bf16.msra.mxu0 0
  %1538 = vmatprep.subr.bf16.mxu0 0
  %1539 = vmatpush1.bf16.msra.mxu0 0
  %1540 = vmatprep.subr.bf16.mxu0 0
  %1541 = vmatpush1.bf16.msra.mxu0 %v1519
  %1542 = vmatprep.subr.bf16.mxu0 0
  %1543 = vmatpush1.bf16.msra.mxu0 %v1518
  %1544 = vmatprep.subr.bf16.mxu0 0
  %1545 = vmatpush2.bf16.msra.mxu0 0
  %1546 = vmatprep.subr.bf16.mxu0 0
  %1547 = vmatpush2.bf16.msra.mxu0 0
  %1548 = vmatprep.subr.bf16.mxu0 0
  %1549 = vmatpush2.bf16.msra.mxu0 0
  %1550 = vmatprep.subr.bf16.mxu0 0
  %1551 = vmatpush2.bf16.msra.mxu0 0
  %1552 = vmatprep.subr.bf16.mxu0 0
  %1553 = vmatpush2.bf16.msra.mxu0 0
  %1554 = vmatprep.subr.bf16.mxu0 0
  %1555 = vmatpush2.bf16.msra.mxu0 0
  %1556 = vmatprep.subr.bf16.mxu0 0
  %1557 = vmatpush2.bf16.msra.mxu0 0
  %1558 = vmatprep.subr.bf16.mxu0 0
  %1559 = vmatpush2.bf16.msra.mxu0 0
  %1560 = vmatprep.mubr.bf16.mxu0 0
  %1561 = vmatmul.mubr.bf16.gmra.mxu0 %v1523
  %v1562 = vpop.f32.mrf.mxu0
  %v1563 = vadd.f32 0.0, %v1562
  %v1564 = vpop.f32.mrf.mxu0
  %v1565 = vpop.f32.mrf.mxu0
  %v1566 = vadd.f32 0.0, %v1565
  %v1567 = vpop.f32.mrf.mxu0
  %1568 = vmatprep.mubr.bf16.mxu0 0
  %1569 = vmatmul.mubr.bf16.gmra.mxu0 %v1526
  %v1570 = vpop.f32.mrf.mxu0
  %v1571 = vadd.f32 0.0, %v1570
  %v1572 = vpop.f32.mrf.mxu0
  %v1573 = vpop.f32.mrf.mxu0
  %v1574 = vadd.f32 0.0, %v1573
  %v1575 = vpop.f32.mrf.mxu0
  %1576 = vdwg.mxu0
  %v1577 = vadd.f32 %v1491, %v1563
  %v1578 = vadd.f32 %v1494, %v1566
  %v1579 = vadd.f32 %v1499, %v1571
  %v1580 = vadd.f32 %v1502, %v1574
  %s1581 = scalar_lea.vmem %s4, 48
  %v1582 = vld [vmem:[%s1581] sm:$0xf]
  %v1583 = vld [vmem:[%s1581 + $0x4] sm:$0xf]
  %v1584 = vld [vmem:[%s1581 + $0x8] sm:$0xf]
  %v1585 = vld [vmem:[%s1581 + $0xc] sm:$0xf]
  %v1590 = vunpack.c.l.b16 %v1582
  %v1591 = vunpack.c.l.b16 %v1583
  %v1592 = vunpack.c.l.b16 %v1584
  %v1593 = vunpack.c.l.b16 %v1585
  %v1594 = vpack.c.b16 %v1591, %v1590
  %v1595 = vpack.c.b16 %v1593, %v1592
  %v1599 = vsel %vm1382, %v1335, 0
  %v1602 = vsel %vm1382, %v1336, 0
  %1604 = vmatprep.subr.bf16.mxu0 0
  %1605 = vmatpush1.bf16.msra.mxu0 0
  %1606 = vmatprep.subr.bf16.mxu0 0
  %1607 = vmatpush1.bf16.msra.mxu0 0
  %1608 = vmatprep.subr.bf16.mxu0 0
  %1609 = vmatpush1.bf16.msra.mxu0 0
  %1610 = vmatprep.subr.bf16.mxu0 0
  %1611 = vmatpush1.bf16.msra.mxu0 0
  %1612 = vmatprep.subr.bf16.mxu0 0
  %1613 = vmatpush1.bf16.msra.mxu0 0
  %1614 = vmatprep.subr.bf16.mxu0 0
  %1615 = vmatpush1.bf16.msra.mxu0 0
  %1616 = vmatprep.subr.bf16.mxu0 0
  %1617 = vmatpush1.bf16.msra.mxu0 %v1595
  %1618 = vmatprep.subr.bf16.mxu0 0
  %1619 = vmatpush1.bf16.msra.mxu0 %v1594
  %1620 = vmatprep.subr.bf16.mxu0 0
  %1621 = vmatpush2.bf16.msra.mxu0 0
  %1622 = vmatprep.subr.bf16.mxu0 0
  %1623 = vmatpush2.bf16.msra.mxu0 0
  %1624 = vmatprep.subr.bf16.mxu0 0
  %1625 = vmatpush2.bf16.msra.mxu0 0
  %1626 = vmatprep.subr.bf16.mxu0 0
  %1627 = vmatpush2.bf16.msra.mxu0 0
  %1628 = vmatprep.subr.bf16.mxu0 0
  %1629 = vmatpush2.bf16.msra.mxu0 0
  %1630 = vmatprep.subr.bf16.mxu0 0
  %1631 = vmatpush2.bf16.msra.mxu0 0
  %1632 = vmatprep.subr.bf16.mxu0 0
  %1633 = vmatpush2.bf16.msra.mxu0 0
  %1634 = vmatprep.subr.bf16.mxu0 0
  %1635 = vmatpush2.bf16.msra.mxu0 0
  %1636 = vmatprep.mubr.bf16.mxu0 0
  %1637 = vmatmul.mubr.bf16.gmra.mxu0 %v1599
  %v1638 = vpop.f32.mrf.mxu0
  %v1639 = vadd.f32 0.0, %v1638
  %v1640 = vpop.f32.mrf.mxu0
  %v1641 = vpop.f32.mrf.mxu0
  %v1642 = vadd.f32 0.0, %v1641
  %v1643 = vpop.f32.mrf.mxu0
  %1644 = vmatprep.mubr.bf16.mxu0 0
  %1645 = vmatmul.mubr.bf16.gmra.mxu0 %v1602
  %v1646 = vpop.f32.mrf.mxu0
  %v1647 = vadd.f32 0.0, %v1646
  %v1648 = vpop.f32.mrf.mxu0
  %v1649 = vpop.f32.mrf.mxu0
  %v1650 = vadd.f32 0.0, %v1649
  %v1651 = vpop.f32.mrf.mxu0
  %1652 = vdwg.mxu0
  %v1653 = vadd.f32 %v1577, %v1639
  %v1654 = vadd.f32 %v1578, %v1642
  %v1655 = vadd.f32 %v1579, %v1647
  %v1656 = vadd.f32 %v1580, %v1650
  %s1657 = scalar_lea.vmem %s4, 64
  %v1658 = vld [vmem:[%s1657] sm:$0xf]
  %v1659 = vld [vmem:[%s1657 + $0x4] sm:$0xf]
  %v1660 = vld [vmem:[%s1657 + $0x8] sm:$0xf]
  %v1661 = vld [vmem:[%s1657 + $0xc] sm:$0xf]
  %v1666 = vunpack.c.l.b16 %v1658
  %v1667 = vunpack.c.l.b16 %v1659
  %v1668 = vunpack.c.l.b16 %v1660
  %v1669 = vunpack.c.l.b16 %v1661
  %v1670 = vpack.c.b16 %v1667, %v1666
  %v1671 = vpack.c.b16 %v1669, %v1668
  %v1675 = vsel %vm1382, %v1337, 0
  %v1678 = vsel %vm1382, %v1338, 0
  %1680 = vmatprep.subr.bf16.mxu0 0
  %1681 = vmatpush1.bf16.msra.mxu0 0
  %1682 = vmatprep.subr.bf16.mxu0 0
  %1683 = vmatpush1.bf16.msra.mxu0 0
  %1684 = vmatprep.subr.bf16.mxu0 0
  %1685 = vmatpush1.bf16.msra.mxu0 0
  %1686 = vmatprep.subr.bf16.mxu0 0
  %1687 = vmatpush1.bf16.msra.mxu0 0
  %1688 = vmatprep.subr.bf16.mxu0 0
  %1689 = vmatpush1.bf16.msra.mxu0 0
  %1690 = vmatprep.subr.bf16.mxu0 0
  %1691 = vmatpush1.bf16.msra.mxu0 0
  %1692 = vmatprep.subr.bf16.mxu0 0
  %1693 = vmatpush1.bf16.msra.mxu0 %v1671
  %1694 = vmatprep.subr.bf16.mxu0 0
  %1695 = vmatpush1.bf16.msra.mxu0 %v1670
  %1696 = vmatprep.subr.bf16.mxu0 0
  %1697 = vmatpush2.bf16.msra.mxu0 0
  %1698 = vmatprep.subr.bf16.mxu0 0
  %1699 = vmatpush2.bf16.msra.mxu0 0
  %1700 = vmatprep.subr.bf16.mxu0 0
  %1701 = vmatpush2.bf16.msra.mxu0 0
  %1702 = vmatprep.subr.bf16.mxu0 0
  %1703 = vmatpush2.bf16.msra.mxu0 0
  %1704 = vmatprep.subr.bf16.mxu0 0
  %1705 = vmatpush2.bf16.msra.mxu0 0
  %1706 = vmatprep.subr.bf16.mxu0 0
  %1707 = vmatpush2.bf16.msra.mxu0 0
  %1708 = vmatprep.subr.bf16.mxu0 0
  %1709 = vmatpush2.bf16.msra.mxu0 0
  %1710 = vmatprep.subr.bf16.mxu0 0
  %1711 = vmatpush2.bf16.msra.mxu0 0
  %1712 = vmatprep.mubr.bf16.mxu0 0
  %1713 = vmatmul.mubr.bf16.gmra.mxu0 %v1675
  %v1714 = vpop.f32.mrf.mxu0
  %v1715 = vadd.f32 0.0, %v1714
  %v1716 = vpop.f32.mrf.mxu0
  %v1717 = vpop.f32.mrf.mxu0
  %v1718 = vadd.f32 0.0, %v1717
  %v1719 = vpop.f32.mrf.mxu0
  %1720 = vmatprep.mubr.bf16.mxu0 0
  %1721 = vmatmul.mubr.bf16.gmra.mxu0 %v1678
  %v1722 = vpop.f32.mrf.mxu0
  %v1723 = vadd.f32 0.0, %v1722
  %v1724 = vpop.f32.mrf.mxu0
  %v1725 = vpop.f32.mrf.mxu0
  %v1726 = vadd.f32 0.0, %v1725
  %v1727 = vpop.f32.mrf.mxu0
  %1728 = vdwg.mxu0
  %v1729 = vadd.f32 %v1653, %v1715
  %v1730 = vadd.f32 %v1654, %v1718
  %v1731 = vadd.f32 %v1655, %v1723
  %v1732 = vadd.f32 %v1656, %v1726
  %s1733 = scalar_lea.vmem %s4, 80
  %v1734 = vld [vmem:[%s1733] sm:$0xf]
  %v1735 = vld [vmem:[%s1733 + $0x4] sm:$0xf]
  %v1736 = vld [vmem:[%s1733 + $0x8] sm:$0xf]
  %v1737 = vld [vmem:[%s1733 + $0xc] sm:$0xf]
  %v1742 = vunpack.c.l.b16 %v1734
  %v1743 = vunpack.c.l.b16 %v1735
  %v1744 = vunpack.c.l.b16 %v1736
  %v1745 = vunpack.c.l.b16 %v1737
  %v1746 = vpack.c.b16 %v1743, %v1742
  %v1747 = vpack.c.b16 %v1745, %v1744
  %v1751 = vsel %vm1382, %v1339, 0
  %v1754 = vsel %vm1382, %v1340, 0
  %1756 = vmatprep.subr.bf16.mxu0 0
  %1757 = vmatpush1.bf16.msra.mxu0 0
  %1758 = vmatprep.subr.bf16.mxu0 0
  %1759 = vmatpush1.bf16.msra.mxu0 0
  %1760 = vmatprep.subr.bf16.mxu0 0
  %1761 = vmatpush1.bf16.msra.mxu0 0
  %1762 = vmatprep.subr.bf16.mxu0 0
  %1763 = vmatpush1.bf16.msra.mxu0 0
  %1764 = vmatprep.subr.bf16.mxu0 0
  %1765 = vmatpush1.bf16.msra.mxu0 0
  %1766 = vmatprep.subr.bf16.mxu0 0
  %1767 = vmatpush1.bf16.msra.mxu0 0
  %1768 = vmatprep.subr.bf16.mxu0 0
  %1769 = vmatpush1.bf16.msra.mxu0 %v1747
  %1770 = vmatprep.subr.bf16.mxu0 0
  %1771 = vmatpush1.bf16.msra.mxu0 %v1746
  %1772 = vmatprep.subr.bf16.mxu0 0
  %1773 = vmatpush2.bf16.msra.mxu0 0
  %1774 = vmatprep.subr.bf16.mxu0 0
  %1775 = vmatpush2.bf16.msra.mxu0 0
  %1776 = vmatprep.subr.bf16.mxu0 0
  %1777 = vmatpush2.bf16.msra.mxu0 0
  %1778 = vmatprep.subr.bf16.mxu0 0
  %1779 = vmatpush2.bf16.msra.mxu0 0
  %1780 = vmatprep.subr.bf16.mxu0 0
  %1781 = vmatpush2.bf16.msra.mxu0 0
  %1782 = vmatprep.subr.bf16.mxu0 0
  %1783 = vmatpush2.bf16.msra.mxu0 0
  %1784 = vmatprep.subr.bf16.mxu0 0
  %1785 = vmatpush2.bf16.msra.mxu0 0
  %1786 = vmatprep.subr.bf16.mxu0 0
  %1787 = vmatpush2.bf16.msra.mxu0 0
  %1788 = vmatprep.mubr.bf16.mxu0 0
  %1789 = vmatmul.mubr.bf16.gmra.mxu0 %v1751
  %v1790 = vpop.f32.mrf.mxu0
  %v1791 = vadd.f32 0.0, %v1790
  %v1792 = vpop.f32.mrf.mxu0
  %v1793 = vpop.f32.mrf.mxu0
  %v1794 = vadd.f32 0.0, %v1793
  %v1795 = vpop.f32.mrf.mxu0
  %1796 = vmatprep.mubr.bf16.mxu0 0
  %1797 = vmatmul.mubr.bf16.gmra.mxu0 %v1754
  %v1798 = vpop.f32.mrf.mxu0
  %v1799 = vadd.f32 0.0, %v1798
  %v1800 = vpop.f32.mrf.mxu0
  %v1801 = vpop.f32.mrf.mxu0
  %v1802 = vadd.f32 0.0, %v1801
  %v1803 = vpop.f32.mrf.mxu0
  %1804 = vdwg.mxu0
  %v1805 = vadd.f32 %v1729, %v1791
  %v1806 = vadd.f32 %v1730, %v1794
  %v1807 = vadd.f32 %v1731, %v1799
  %v1808 = vadd.f32 %v1732, %v1802
  %s1809 = scalar_lea.vmem %s4, 96
  %v1810 = vld [vmem:[%s1809] sm:$0xf]
  %v1811 = vld [vmem:[%s1809 + $0x4] sm:$0xf]
  %v1812 = vld [vmem:[%s1809 + $0x8] sm:$0xf]
  %v1813 = vld [vmem:[%s1809 + $0xc] sm:$0xf]
  %v1818 = vunpack.c.l.b16 %v1810
  %v1819 = vunpack.c.l.b16 %v1811
  %v1820 = vunpack.c.l.b16 %v1812
  %v1821 = vunpack.c.l.b16 %v1813
  %v1822 = vpack.c.b16 %v1819, %v1818
  %v1823 = vpack.c.b16 %v1821, %v1820
  %v1827 = vsel %vm1382, %v1341, 0
  %v1830 = vsel %vm1382, %v1342, 0
  %1832 = vmatprep.subr.bf16.mxu0 0
  %1833 = vmatpush1.bf16.msra.mxu0 0
  %1834 = vmatprep.subr.bf16.mxu0 0
  %1835 = vmatpush1.bf16.msra.mxu0 0
  %1836 = vmatprep.subr.bf16.mxu0 0
  %1837 = vmatpush1.bf16.msra.mxu0 0
  %1838 = vmatprep.subr.bf16.mxu0 0
  %1839 = vmatpush1.bf16.msra.mxu0 0
  %1840 = vmatprep.subr.bf16.mxu0 0
  %1841 = vmatpush1.bf16.msra.mxu0 0
  %1842 = vmatprep.subr.bf16.mxu0 0
  %1843 = vmatpush1.bf16.msra.mxu0 0
  %1844 = vmatprep.subr.bf16.mxu0 0
  %1845 = vmatpush1.bf16.msra.mxu0 %v1823
  %1846 = vmatprep.subr.bf16.mxu0 0
  %1847 = vmatpush1.bf16.msra.mxu0 %v1822
  %1848 = vmatprep.subr.bf16.mxu0 0
  %1849 = vmatpush2.bf16.msra.mxu0 0
  %1850 = vmatprep.subr.bf16.mxu0 0
  %1851 = vmatpush2.bf16.msra.mxu0 0
  %1852 = vmatprep.subr.bf16.mxu0 0
  %1853 = vmatpush2.bf16.msra.mxu0 0
  %1854 = vmatprep.subr.bf16.mxu0 0
  %1855 = vmatpush2.bf16.msra.mxu0 0
  %1856 = vmatprep.subr.bf16.mxu0 0
  %1857 = vmatpush2.bf16.msra.mxu0 0
  %1858 = vmatprep.subr.bf16.mxu0 0
  %1859 = vmatpush2.bf16.msra.mxu0 0
  %1860 = vmatprep.subr.bf16.mxu0 0
  %1861 = vmatpush2.bf16.msra.mxu0 0
  %1862 = vmatprep.subr.bf16.mxu0 0
  %1863 = vmatpush2.bf16.msra.mxu0 0
  %1864 = vmatprep.mubr.bf16.mxu0 0
  %1865 = vmatmul.mubr.bf16.gmra.mxu0 %v1827
  %v1866 = vpop.f32.mrf.mxu0
  %v1867 = vadd.f32 0.0, %v1866
  %v1868 = vpop.f32.mrf.mxu0
  %v1869 = vpop.f32.mrf.mxu0
  %v1870 = vadd.f32 0.0, %v1869
  %v1871 = vpop.f32.mrf.mxu0
  %1872 = vmatprep.mubr.bf16.mxu0 0
  %1873 = vmatmul.mubr.bf16.gmra.mxu0 %v1830
  %v1874 = vpop.f32.mrf.mxu0
  %v1875 = vadd.f32 0.0, %v1874
  %v1876 = vpop.f32.mrf.mxu0
  %v1877 = vpop.f32.mrf.mxu0
  %v1878 = vadd.f32 0.0, %v1877
  %v1879 = vpop.f32.mrf.mxu0
  %1880 = vdwg.mxu0
  %v1881 = vadd.f32 %v1805, %v1867
  %v1882 = vadd.f32 %v1806, %v1870
  %v1883 = vadd.f32 %v1807, %v1875
  %v1884 = vadd.f32 %v1808, %v1878
  %s1885 = scalar_lea.vmem %s4, 112
  %v1886 = vld [vmem:[%s1885] sm:$0xf]
  %v1887 = vld [vmem:[%s1885 + $0x4] sm:$0xf]
  %v1888 = vld [vmem:[%s1885 + $0x8] sm:$0xf]
  %v1889 = vld [vmem:[%s1885 + $0xc] sm:$0xf]
  %v1894 = vunpack.c.l.b16 %v1886
  %v1895 = vunpack.c.l.b16 %v1887
  %v1896 = vunpack.c.l.b16 %v1888
  %v1897 = vunpack.c.l.b16 %v1889
  %v1898 = vpack.c.b16 %v1895, %v1894
  %v1899 = vpack.c.b16 %v1897, %v1896
  %v1903 = vsel %vm1382, %v1343, 0
  %v1906 = vsel %vm1382, %v1344, 0
  %1908 = vmatprep.subr.bf16.mxu0 0
  %1909 = vmatpush1.bf16.msra.mxu0 0
  %1910 = vmatprep.subr.bf16.mxu0 0
  %1911 = vmatpush1.bf16.msra.mxu0 0
  %1912 = vmatprep.subr.bf16.mxu0 0
  %1913 = vmatpush1.bf16.msra.mxu0 0
  %1914 = vmatprep.subr.bf16.mxu0 0
  %1915 = vmatpush1.bf16.msra.mxu0 0
  %1916 = vmatprep.subr.bf16.mxu0 0
  %1917 = vmatpush1.bf16.msra.mxu0 0
  %1918 = vmatprep.subr.bf16.mxu0 0
  %1919 = vmatpush1.bf16.msra.mxu0 0
  %1920 = vmatprep.subr.bf16.mxu0 0
  %1921 = vmatpush1.bf16.msra.mxu0 %v1899
  %1922 = vmatprep.subr.bf16.mxu0 0
  %1923 = vmatpush1.bf16.msra.mxu0 %v1898
  %1924 = vmatprep.subr.bf16.mxu0 0
  %1925 = vmatpush2.bf16.msra.mxu0 0
  %1926 = vmatprep.subr.bf16.mxu0 0
  %1927 = vmatpush2.bf16.msra.mxu0 0
  %1928 = vmatprep.subr.bf16.mxu0 0
  %1929 = vmatpush2.bf16.msra.mxu0 0
  %1930 = vmatprep.subr.bf16.mxu0 0
  %1931 = vmatpush2.bf16.msra.mxu0 0
  %1932 = vmatprep.subr.bf16.mxu0 0
  %1933 = vmatpush2.bf16.msra.mxu0 0
  %1934 = vmatprep.subr.bf16.mxu0 0
  %1935 = vmatpush2.bf16.msra.mxu0 0
  %1936 = vmatprep.subr.bf16.mxu0 0
  %1937 = vmatpush2.bf16.msra.mxu0 0
  %1938 = vmatprep.subr.bf16.mxu0 0
  %1939 = vmatpush2.bf16.msra.mxu0 0
  %1940 = vmatprep.mubr.bf16.mxu0 0
  %1941 = vmatmul.mubr.bf16.gmra.mxu0 %v1903
  %v1942 = vpop.f32.mrf.mxu0
  %v1943 = vadd.f32 0.0, %v1942
  %v1944 = vpop.f32.mrf.mxu0
  %v1945 = vpop.f32.mrf.mxu0
  %v1946 = vadd.f32 0.0, %v1945
  %v1947 = vpop.f32.mrf.mxu0
  %1948 = vmatprep.mubr.bf16.mxu0 0
  %1949 = vmatmul.mubr.bf16.gmra.mxu0 %v1906
  %v1950 = vpop.f32.mrf.mxu0
  %v1951 = vadd.f32 0.0, %v1950
  %v1952 = vpop.f32.mrf.mxu0
  %v1953 = vpop.f32.mrf.mxu0
  %v1954 = vadd.f32 0.0, %v1953
  %v1955 = vpop.f32.mrf.mxu0
  %1956 = vdwg.mxu0
  %v1957 = vadd.f32 %v1881, %v1943
  %v1958 = vadd.f32 %v1882, %v1946
  %v1959 = vadd.f32 %v1883, %v1951
  %v1960 = vadd.f32 %v1884, %v1954
  %s1961 = scalar_lea.vmem %s4, 128
  %v1962 = vld [vmem:[%s1961] sm:$0xf]
  %v1963 = vld [vmem:[%s1961 + $0x4] sm:$0xf]
  %v1964 = vld [vmem:[%s1961 + $0x8] sm:$0xf]
  %v1965 = vld [vmem:[%s1961 + $0xc] sm:$0xf]
  %v1970 = vunpack.c.l.b16 %v1962
  %v1971 = vunpack.c.l.b16 %v1963
  %v1972 = vunpack.c.l.b16 %v1964
  %v1973 = vunpack.c.l.b16 %v1965
  %v1974 = vpack.c.b16 %v1971, %v1970
  %v1975 = vpack.c.b16 %v1973, %v1972
  %v1979 = vsel %vm1382, %v1345, 0
  %v1982 = vsel %vm1382, %v1346, 0
  %1984 = vmatprep.subr.bf16.mxu0 0
  %1985 = vmatpush1.bf16.msra.mxu0 0
  %1986 = vmatprep.subr.bf16.mxu0 0
  %1987 = vmatpush1.bf16.msra.mxu0 0
  %1988 = vmatprep.subr.bf16.mxu0 0
  %1989 = vmatpush1.bf16.msra.mxu0 0
  %1990 = vmatprep.subr.bf16.mxu0 0
  %1991 = vmatpush1.bf16.msra.mxu0 0
  %1992 = vmatprep.subr.bf16.mxu0 0
  %1993 = vmatpush1.bf16.msra.mxu0 0
  %1994 = vmatprep.subr.bf16.mxu0 0
  %1995 = vmatpush1.bf16.msra.mxu0 0
  %1996 = vmatprep.subr.bf16.mxu0 0
  %1997 = vmatpush1.bf16.msra.mxu0 %v1975
  %1998 = vmatprep.subr.bf16.mxu0 0
  %1999 = vmatpush1.bf16.msra.mxu0 %v1974
  %2000 = vmatprep.subr.bf16.mxu0 0
  %2001 = vmatpush2.bf16.msra.mxu0 0
  %2002 = vmatprep.subr.bf16.mxu0 0
  %2003 = vmatpush2.bf16.msra.mxu0 0
  %2004 = vmatprep.subr.bf16.mxu0 0
  %2005 = vmatpush2.bf16.msra.mxu0 0
  %2006 = vmatprep.subr.bf16.mxu0 0
  %2007 = vmatpush2.bf16.msra.mxu0 0
  %2008 = vmatprep.subr.bf16.mxu0 0
  %2009 = vmatpush2.bf16.msra.mxu0 0
  %2010 = vmatprep.subr.bf16.mxu0 0
  %2011 = vmatpush2.bf16.msra.mxu0 0
  %2012 = vmatprep.subr.bf16.mxu0 0
  %2013 = vmatpush2.bf16.msra.mxu0 0
  %2014 = vmatprep.subr.bf16.mxu0 0
  %2015 = vmatpush2.bf16.msra.mxu0 0
  %2016 = vmatprep.mubr.bf16.mxu0 0
  %2017 = vmatmul.mubr.bf16.gmra.mxu0 %v1979
  %v2018 = vpop.f32.mrf.mxu0
  %v2019 = vadd.f32 0.0, %v2018
  %v2020 = vpop.f32.mrf.mxu0
  %v2021 = vpop.f32.mrf.mxu0
  %v2022 = vadd.f32 0.0, %v2021
  %v2023 = vpop.f32.mrf.mxu0
  %2024 = vmatprep.mubr.bf16.mxu0 0
  %2025 = vmatmul.mubr.bf16.gmra.mxu0 %v1982
  %v2026 = vpop.f32.mrf.mxu0
  %v2027 = vadd.f32 0.0, %v2026
  %v2028 = vpop.f32.mrf.mxu0
  %v2029 = vpop.f32.mrf.mxu0
  %v2030 = vadd.f32 0.0, %v2029
  %v2031 = vpop.f32.mrf.mxu0
  %2032 = vdwg.mxu0
  %v2033 = vadd.f32 %v1957, %v2019
  %v2034 = vadd.f32 %v1958, %v2022
  %v2035 = vadd.f32 %v1959, %v2027
  %v2036 = vadd.f32 %v1960, %v2030
  %s2037 = scalar_lea.vmem %s4, 144
  %v2038 = vld [vmem:[%s2037] sm:$0xf]
  %v2039 = vld [vmem:[%s2037 + $0x4] sm:$0xf]
  %v2040 = vld [vmem:[%s2037 + $0x8] sm:$0xf]
  %v2041 = vld [vmem:[%s2037 + $0xc] sm:$0xf]
  %v2046 = vunpack.c.l.b16 %v2038
  %v2047 = vunpack.c.l.b16 %v2039
  %v2048 = vunpack.c.l.b16 %v2040
  %v2049 = vunpack.c.l.b16 %v2041
  %v2050 = vpack.c.b16 %v2047, %v2046
  %v2051 = vpack.c.b16 %v2049, %v2048
  %v2055 = vsel %vm1382, %v1347, 0
  %v2058 = vsel %vm1382, %v1348, 0
  %2060 = vmatprep.subr.bf16.mxu0 0
  %2061 = vmatpush1.bf16.msra.mxu0 0
  %2062 = vmatprep.subr.bf16.mxu0 0
  %2063 = vmatpush1.bf16.msra.mxu0 0
  %2064 = vmatprep.subr.bf16.mxu0 0
  %2065 = vmatpush1.bf16.msra.mxu0 0
  %2066 = vmatprep.subr.bf16.mxu0 0
  %2067 = vmatpush1.bf16.msra.mxu0 0
  %2068 = vmatprep.subr.bf16.mxu0 0
  %2069 = vmatpush1.bf16.msra.mxu0 0
  %2070 = vmatprep.subr.bf16.mxu0 0
  %2071 = vmatpush1.bf16.msra.mxu0 0
  %2072 = vmatprep.subr.bf16.mxu0 0
  %2073 = vmatpush1.bf16.msra.mxu0 %v2051
  %2074 = vmatprep.subr.bf16.mxu0 0
  %2075 = vmatpush1.bf16.msra.mxu0 %v2050
  %2076 = vmatprep.subr.bf16.mxu0 0
  %2077 = vmatpush2.bf16.msra.mxu0 0
  %2078 = vmatprep.subr.bf16.mxu0 0
  %2079 = vmatpush2.bf16.msra.mxu0 0
  %2080 = vmatprep.subr.bf16.mxu0 0
  %2081 = vmatpush2.bf16.msra.mxu0 0
  %2082 = vmatprep.subr.bf16.mxu0 0
  %2083 = vmatpush2.bf16.msra.mxu0 0
  %2084 = vmatprep.subr.bf16.mxu0 0
  %2085 = vmatpush2.bf16.msra.mxu0 0
  %2086 = vmatprep.subr.bf16.mxu0 0
  %2087 = vmatpush2.bf16.msra.mxu0 0
  %2088 = vmatprep.subr.bf16.mxu0 0
  %2089 = vmatpush2.bf16.msra.mxu0 0
  %2090 = vmatprep.subr.bf16.mxu0 0
  %2091 = vmatpush2.bf16.msra.mxu0 0
  %2092 = vmatprep.mubr.bf16.mxu0 0
  %2093 = vmatmul.mubr.bf16.gmra.mxu0 %v2055
  %v2094 = vpop.f32.mrf.mxu0
  %v2095 = vadd.f32 0.0, %v2094
  %v2096 = vpop.f32.mrf.mxu0
  %v2097 = vpop.f32.mrf.mxu0
  %v2098 = vadd.f32 0.0, %v2097
  %v2099 = vpop.f32.mrf.mxu0
  %2100 = vmatprep.mubr.bf16.mxu0 0
  %2101 = vmatmul.mubr.bf16.gmra.mxu0 %v2058
  %v2102 = vpop.f32.mrf.mxu0
  %v2103 = vadd.f32 0.0, %v2102
  %v2104 = vpop.f32.mrf.mxu0
  %v2105 = vpop.f32.mrf.mxu0
  %v2106 = vadd.f32 0.0, %v2105
  %v2107 = vpop.f32.mrf.mxu0
  %2108 = vdwg.mxu0
  %v2109 = vadd.f32 %v2033, %v2095
  %v2110 = vadd.f32 %v2034, %v2098
  %v2111 = vadd.f32 %v2035, %v2103
  %v2112 = vadd.f32 %v2036, %v2106
  %s2113 = scalar_lea.vmem %s4, 160
  %v2114 = vld [vmem:[%s2113] sm:$0xf]
  %v2115 = vld [vmem:[%s2113 + $0x4] sm:$0xf]
  %v2116 = vld [vmem:[%s2113 + $0x8] sm:$0xf]
  %v2117 = vld [vmem:[%s2113 + $0xc] sm:$0xf]
  %v2122 = vunpack.c.l.b16 %v2114
  %v2123 = vunpack.c.l.b16 %v2115
  %v2124 = vunpack.c.l.b16 %v2116
  %v2125 = vunpack.c.l.b16 %v2117
  %v2126 = vpack.c.b16 %v2123, %v2122
  %v2127 = vpack.c.b16 %v2125, %v2124
  %v2131 = vsel %vm1382, %v1349, 0
  %v2134 = vsel %vm1382, %v1350, 0
  %2136 = vmatprep.subr.bf16.mxu0 0
  %2137 = vmatpush1.bf16.msra.mxu0 0
  %2138 = vmatprep.subr.bf16.mxu0 0
  %2139 = vmatpush1.bf16.msra.mxu0 0
  %2140 = vmatprep.subr.bf16.mxu0 0
  %2141 = vmatpush1.bf16.msra.mxu0 0
  %2142 = vmatprep.subr.bf16.mxu0 0
  %2143 = vmatpush1.bf16.msra.mxu0 0
  %2144 = vmatprep.subr.bf16.mxu0 0
  %2145 = vmatpush1.bf16.msra.mxu0 0
  %2146 = vmatprep.subr.bf16.mxu0 0
  %2147 = vmatpush1.bf16.msra.mxu0 0
  %2148 = vmatprep.subr.bf16.mxu0 0
  %2149 = vmatpush1.bf16.msra.mxu0 %v2127
  %2150 = vmatprep.subr.bf16.mxu0 0
  %2151 = vmatpush1.bf16.msra.mxu0 %v2126
  %2152 = vmatprep.subr.bf16.mxu0 0
  %2153 = vmatpush2.bf16.msra.mxu0 0
  %2154 = vmatprep.subr.bf16.mxu0 0
  %2155 = vmatpush2.bf16.msra.mxu0 0
  %2156 = vmatprep.subr.bf16.mxu0 0
  %2157 = vmatpush2.bf16.msra.mxu0 0
  %2158 = vmatprep.subr.bf16.mxu0 0
  %2159 = vmatpush2.bf16.msra.mxu0 0
  %2160 = vmatprep.subr.bf16.mxu0 0
  %2161 = vmatpush2.bf16.msra.mxu0 0
  %2162 = vmatprep.subr.bf16.mxu0 0
  %2163 = vmatpush2.bf16.msra.mxu0 0
  %2164 = vmatprep.subr.bf16.mxu0 0
  %2165 = vmatpush2.bf16.msra.mxu0 0
  %2166 = vmatprep.subr.bf16.mxu0 0
  %2167 = vmatpush2.bf16.msra.mxu0 0
  %2168 = vmatprep.mubr.bf16.mxu0 0
  %2169 = vmatmul.mubr.bf16.gmra.mxu0 %v2131
  %v2170 = vpop.f32.mrf.mxu0
  %v2171 = vadd.f32 0.0, %v2170
  %v2172 = vpop.f32.mrf.mxu0
  %v2173 = vpop.f32.mrf.mxu0
  %v2174 = vadd.f32 0.0, %v2173
  %v2175 = vpop.f32.mrf.mxu0
  %2176 = vmatprep.mubr.bf16.mxu0 0
  %2177 = vmatmul.mubr.bf16.gmra.mxu0 %v2134
  %v2178 = vpop.f32.mrf.mxu0
  %v2179 = vadd.f32 0.0, %v2178
  %v2180 = vpop.f32.mrf.mxu0
  %v2181 = vpop.f32.mrf.mxu0
  %v2182 = vadd.f32 0.0, %v2181
  %v2183 = vpop.f32.mrf.mxu0
  %2184 = vdwg.mxu0
  %v2185 = vadd.f32 %v2109, %v2171
  %v2186 = vadd.f32 %v2110, %v2174
  %v2187 = vadd.f32 %v2111, %v2179
  %v2188 = vadd.f32 %v2112, %v2182
  %s2189 = scalar_lea.vmem %s4, 176
  %v2190 = vld [vmem:[%s2189] sm:$0xf]
  %v2191 = vld [vmem:[%s2189 + $0x4] sm:$0xf]
  %v2192 = vld [vmem:[%s2189 + $0x8] sm:$0xf]
  %v2193 = vld [vmem:[%s2189 + $0xc] sm:$0xf]
  %v2198 = vunpack.c.l.b16 %v2190
  %v2199 = vunpack.c.l.b16 %v2191
  %v2200 = vunpack.c.l.b16 %v2192
  %v2201 = vunpack.c.l.b16 %v2193
  %v2202 = vpack.c.b16 %v2199, %v2198
  %v2203 = vpack.c.b16 %v2201, %v2200
  %v2207 = vsel %vm1382, %v1351, 0
  %v2210 = vsel %vm1382, %v1352, 0
  %2212 = vmatprep.subr.bf16.mxu0 0
  %2213 = vmatpush1.bf16.msra.mxu0 0
  %2214 = vmatprep.subr.bf16.mxu0 0
  %2215 = vmatpush1.bf16.msra.mxu0 0
  %2216 = vmatprep.subr.bf16.mxu0 0
  %2217 = vmatpush1.bf16.msra.mxu0 0
  %2218 = vmatprep.subr.bf16.mxu0 0
  %2219 = vmatpush1.bf16.msra.mxu0 0
  %2220 = vmatprep.subr.bf16.mxu0 0
  %2221 = vmatpush1.bf16.msra.mxu0 0
  %2222 = vmatprep.subr.bf16.mxu0 0
  %2223 = vmatpush1.bf16.msra.mxu0 0
  %2224 = vmatprep.subr.bf16.mxu0 0
  %2225 = vmatpush1.bf16.msra.mxu0 %v2203
  %2226 = vmatprep.subr.bf16.mxu0 0
  %2227 = vmatpush1.bf16.msra.mxu0 %v2202
  %2228 = vmatprep.subr.bf16.mxu0 0
  %2229 = vmatpush2.bf16.msra.mxu0 0
  %2230 = vmatprep.subr.bf16.mxu0 0
  %2231 = vmatpush2.bf16.msra.mxu0 0
  %2232 = vmatprep.subr.bf16.mxu0 0
  %2233 = vmatpush2.bf16.msra.mxu0 0
  %2234 = vmatprep.subr.bf16.mxu0 0
  %2235 = vmatpush2.bf16.msra.mxu0 0
  %2236 = vmatprep.subr.bf16.mxu0 0
  %2237 = vmatpush2.bf16.msra.mxu0 0
  %2238 = vmatprep.subr.bf16.mxu0 0
  %2239 = vmatpush2.bf16.msra.mxu0 0
  %2240 = vmatprep.subr.bf16.mxu0 0
  %2241 = vmatpush2.bf16.msra.mxu0 0
  %2242 = vmatprep.subr.bf16.mxu0 0
  %2243 = vmatpush2.bf16.msra.mxu0 0
  %2244 = vmatprep.mubr.bf16.mxu0 0
  %2245 = vmatmul.mubr.bf16.gmra.mxu0 %v2207
  %v2246 = vpop.f32.mrf.mxu0
  %v2247 = vadd.f32 0.0, %v2246
  %v2248 = vpop.f32.mrf.mxu0
  %v2249 = vpop.f32.mrf.mxu0
  %v2250 = vadd.f32 0.0, %v2249
  %v2251 = vpop.f32.mrf.mxu0
  %2252 = vmatprep.mubr.bf16.mxu0 0
  %2253 = vmatmul.mubr.bf16.gmra.mxu0 %v2210
  %v2254 = vpop.f32.mrf.mxu0
  %v2255 = vadd.f32 0.0, %v2254
  %v2256 = vpop.f32.mrf.mxu0
  %v2257 = vpop.f32.mrf.mxu0
  %v2258 = vadd.f32 0.0, %v2257
  %v2259 = vpop.f32.mrf.mxu0
  %2260 = vdwg.mxu0
  %v2261 = vadd.f32 %v2185, %v2247
  %v2262 = vadd.f32 %v2186, %v2250
  %v2263 = vadd.f32 %v2187, %v2255
  %v2264 = vadd.f32 %v2188, %v2258
  %s2265 = scalar_lea.vmem %s4, 192
  %v2266 = vld [vmem:[%s2265] sm:$0xf]
  %v2267 = vld [vmem:[%s2265 + $0x4] sm:$0xf]
  %v2268 = vld [vmem:[%s2265 + $0x8] sm:$0xf]
  %v2269 = vld [vmem:[%s2265 + $0xc] sm:$0xf]
  %v2274 = vunpack.c.l.b16 %v2266
  %v2275 = vunpack.c.l.b16 %v2267
  %v2276 = vunpack.c.l.b16 %v2268
  %v2277 = vunpack.c.l.b16 %v2269
  %v2278 = vpack.c.b16 %v2275, %v2274
  %v2279 = vpack.c.b16 %v2277, %v2276
  %v2283 = vsel %vm1382, %v1353, 0
  %v2286 = vsel %vm1382, %v1354, 0
  %2288 = vmatprep.subr.bf16.mxu0 0
  %2289 = vmatpush1.bf16.msra.mxu0 0
  %2290 = vmatprep.subr.bf16.mxu0 0
  %2291 = vmatpush1.bf16.msra.mxu0 0
  %2292 = vmatprep.subr.bf16.mxu0 0
  %2293 = vmatpush1.bf16.msra.mxu0 0
  %2294 = vmatprep.subr.bf16.mxu0 0
  %2295 = vmatpush1.bf16.msra.mxu0 0
  %2296 = vmatprep.subr.bf16.mxu0 0
  %2297 = vmatpush1.bf16.msra.mxu0 0
  %2298 = vmatprep.subr.bf16.mxu0 0
  %2299 = vmatpush1.bf16.msra.mxu0 0
  %2300 = vmatprep.subr.bf16.mxu0 0
  %2301 = vmatpush1.bf16.msra.mxu0 %v2279
  %2302 = vmatprep.subr.bf16.mxu0 0
  %2303 = vmatpush1.bf16.msra.mxu0 %v2278
  %2304 = vmatprep.subr.bf16.mxu0 0
  %2305 = vmatpush2.bf16.msra.mxu0 0
  %2306 = vmatprep.subr.bf16.mxu0 0
  %2307 = vmatpush2.bf16.msra.mxu0 0
  %2308 = vmatprep.subr.bf16.mxu0 0
  %2309 = vmatpush2.bf16.msra.mxu0 0
  %2310 = vmatprep.subr.bf16.mxu0 0
  %2311 = vmatpush2.bf16.msra.mxu0 0
  %2312 = vmatprep.subr.bf16.mxu0 0
  %2313 = vmatpush2.bf16.msra.mxu0 0
  %2314 = vmatprep.subr.bf16.mxu0 0
  %2315 = vmatpush2.bf16.msra.mxu0 0
  %2316 = vmatprep.subr.bf16.mxu0 0
  %2317 = vmatpush2.bf16.msra.mxu0 0
  %2318 = vmatprep.subr.bf16.mxu0 0
  %2319 = vmatpush2.bf16.msra.mxu0 0
  %2320 = vmatprep.mubr.bf16.mxu0 0
  %2321 = vmatmul.mubr.bf16.gmra.mxu0 %v2283
  %v2322 = vpop.f32.mrf.mxu0
  %v2323 = vadd.f32 0.0, %v2322
  %v2324 = vpop.f32.mrf.mxu0
  %v2325 = vpop.f32.mrf.mxu0
  %v2326 = vadd.f32 0.0, %v2325
  %v2327 = vpop.f32.mrf.mxu0
  %2328 = vmatprep.mubr.bf16.mxu0 0
  %2329 = vmatmul.mubr.bf16.gmra.mxu0 %v2286
  %v2330 = vpop.f32.mrf.mxu0
  %v2331 = vadd.f32 0.0, %v2330
  %v2332 = vpop.f32.mrf.mxu0
  %v2333 = vpop.f32.mrf.mxu0
  %v2334 = vadd.f32 0.0, %v2333
  %v2335 = vpop.f32.mrf.mxu0
  %2336 = vdwg.mxu0
  %v2337 = vadd.f32 %v2261, %v2323
  %v2338 = vadd.f32 %v2262, %v2326
  %v2339 = vadd.f32 %v2263, %v2331
  %v2340 = vadd.f32 %v2264, %v2334
  %s2341 = scalar_lea.vmem %s4, 208
  %v2342 = vld [vmem:[%s2341] sm:$0xf]
  %v2343 = vld [vmem:[%s2341 + $0x4] sm:$0xf]
  %v2344 = vld [vmem:[%s2341 + $0x8] sm:$0xf]
  %v2345 = vld [vmem:[%s2341 + $0xc] sm:$0xf]
  %v2350 = vunpack.c.l.b16 %v2342
  %v2351 = vunpack.c.l.b16 %v2343
  %v2352 = vunpack.c.l.b16 %v2344
  %v2353 = vunpack.c.l.b16 %v2345
  %v2354 = vpack.c.b16 %v2351, %v2350
  %v2355 = vpack.c.b16 %v2353, %v2352
  %v2359 = vsel %vm1382, %v1355, 0
  %v2362 = vsel %vm1382, %v1356, 0
  %2364 = vmatprep.subr.bf16.mxu0 0
  %2365 = vmatpush1.bf16.msra.mxu0 0
  %2366 = vmatprep.subr.bf16.mxu0 0
  %2367 = vmatpush1.bf16.msra.mxu0 0
  %2368 = vmatprep.subr.bf16.mxu0 0
  %2369 = vmatpush1.bf16.msra.mxu0 0
  %2370 = vmatprep.subr.bf16.mxu0 0
  %2371 = vmatpush1.bf16.msra.mxu0 0
  %2372 = vmatprep.subr.bf16.mxu0 0
  %2373 = vmatpush1.bf16.msra.mxu0 0
  %2374 = vmatprep.subr.bf16.mxu0 0
  %2375 = vmatpush1.bf16.msra.mxu0 0
  %2376 = vmatprep.subr.bf16.mxu0 0
  %2377 = vmatpush1.bf16.msra.mxu0 %v2355
  %2378 = vmatprep.subr.bf16.mxu0 0
  %2379 = vmatpush1.bf16.msra.mxu0 %v2354
  %2380 = vmatprep.subr.bf16.mxu0 0
  %2381 = vmatpush2.bf16.msra.mxu0 0
  %2382 = vmatprep.subr.bf16.mxu0 0
  %2383 = vmatpush2.bf16.msra.mxu0 0
  %2384 = vmatprep.subr.bf16.mxu0 0
  %2385 = vmatpush2.bf16.msra.mxu0 0
  %2386 = vmatprep.subr.bf16.mxu0 0
  %2387 = vmatpush2.bf16.msra.mxu0 0
  %2388 = vmatprep.subr.bf16.mxu0 0
  %2389 = vmatpush2.bf16.msra.mxu0 0
  %2390 = vmatprep.subr.bf16.mxu0 0
  %2391 = vmatpush2.bf16.msra.mxu0 0
  %2392 = vmatprep.subr.bf16.mxu0 0
  %2393 = vmatpush2.bf16.msra.mxu0 0
  %2394 = vmatprep.subr.bf16.mxu0 0
  %2395 = vmatpush2.bf16.msra.mxu0 0
  %2396 = vmatprep.mubr.bf16.mxu0 0
  %2397 = vmatmul.mubr.bf16.gmra.mxu0 %v2359
  %v2398 = vpop.f32.mrf.mxu0
  %v2399 = vadd.f32 0.0, %v2398
  %v2400 = vpop.f32.mrf.mxu0
  %v2401 = vpop.f32.mrf.mxu0
  %v2402 = vadd.f32 0.0, %v2401
  %v2403 = vpop.f32.mrf.mxu0
  %2404 = vmatprep.mubr.bf16.mxu0 0
  %2405 = vmatmul.mubr.bf16.gmra.mxu0 %v2362
  %v2406 = vpop.f32.mrf.mxu0
  %v2407 = vadd.f32 0.0, %v2406
  %v2408 = vpop.f32.mrf.mxu0
  %v2409 = vpop.f32.mrf.mxu0
  %v2410 = vadd.f32 0.0, %v2409
  %v2411 = vpop.f32.mrf.mxu0
  %2412 = vdwg.mxu0
  %v2413 = vadd.f32 %v2337, %v2399
  %v2414 = vadd.f32 %v2338, %v2402
  %v2415 = vadd.f32 %v2339, %v2407
  %v2416 = vadd.f32 %v2340, %v2410
  %s2417 = scalar_lea.vmem %s4, 224
  %v2418 = vld [vmem:[%s2417] sm:$0xf]
  %v2419 = vld [vmem:[%s2417 + $0x4] sm:$0xf]
  %v2420 = vld [vmem:[%s2417 + $0x8] sm:$0xf]
  %v2421 = vld [vmem:[%s2417 + $0xc] sm:$0xf]
  %v2426 = vunpack.c.l.b16 %v2418
  %v2427 = vunpack.c.l.b16 %v2419
  %v2428 = vunpack.c.l.b16 %v2420
  %v2429 = vunpack.c.l.b16 %v2421
  %v2430 = vpack.c.b16 %v2427, %v2426
  %v2431 = vpack.c.b16 %v2429, %v2428
  %v2435 = vsel %vm1382, %v1357, 0
  %v2438 = vsel %vm1382, %v1358, 0
  %2440 = vmatprep.subr.bf16.mxu0 0
  %2441 = vmatpush1.bf16.msra.mxu0 0
  %2442 = vmatprep.subr.bf16.mxu0 0
  %2443 = vmatpush1.bf16.msra.mxu0 0
  %2444 = vmatprep.subr.bf16.mxu0 0
  %2445 = vmatpush1.bf16.msra.mxu0 0
  %2446 = vmatprep.subr.bf16.mxu0 0
  %2447 = vmatpush1.bf16.msra.mxu0 0
  %2448 = vmatprep.subr.bf16.mxu0 0
  %2449 = vmatpush1.bf16.msra.mxu0 0
  %2450 = vmatprep.subr.bf16.mxu0 0
  %2451 = vmatpush1.bf16.msra.mxu0 0
  %2452 = vmatprep.subr.bf16.mxu0 0
  %2453 = vmatpush1.bf16.msra.mxu0 %v2431
  %2454 = vmatprep.subr.bf16.mxu0 0
  %2455 = vmatpush1.bf16.msra.mxu0 %v2430
  %2456 = vmatprep.subr.bf16.mxu0 0
  %2457 = vmatpush2.bf16.msra.mxu0 0
  %2458 = vmatprep.subr.bf16.mxu0 0
  %2459 = vmatpush2.bf16.msra.mxu0 0
  %2460 = vmatprep.subr.bf16.mxu0 0
  %2461 = vmatpush2.bf16.msra.mxu0 0
  %2462 = vmatprep.subr.bf16.mxu0 0
  %2463 = vmatpush2.bf16.msra.mxu0 0
  %2464 = vmatprep.subr.bf16.mxu0 0
  %2465 = vmatpush2.bf16.msra.mxu0 0
  %2466 = vmatprep.subr.bf16.mxu0 0
  %2467 = vmatpush2.bf16.msra.mxu0 0
  %2468 = vmatprep.subr.bf16.mxu0 0
  %2469 = vmatpush2.bf16.msra.mxu0 0
  %2470 = vmatprep.subr.bf16.mxu0 0
  %2471 = vmatpush2.bf16.msra.mxu0 0
  %2472 = vmatprep.mubr.bf16.mxu0 0
  %2473 = vmatmul.mubr.bf16.gmra.mxu0 %v2435
  %v2474 = vpop.f32.mrf.mxu0
  %v2475 = vadd.f32 0.0, %v2474
  %v2476 = vpop.f32.mrf.mxu0
  %v2477 = vpop.f32.mrf.mxu0
  %v2478 = vadd.f32 0.0, %v2477
  %v2479 = vpop.f32.mrf.mxu0
  %2480 = vmatprep.mubr.bf16.mxu0 0
  %2481 = vmatmul.mubr.bf16.gmra.mxu0 %v2438
  %v2482 = vpop.f32.mrf.mxu0
  %v2483 = vadd.f32 0.0, %v2482
  %v2484 = vpop.f32.mrf.mxu0
  %v2485 = vpop.f32.mrf.mxu0
  %v2486 = vadd.f32 0.0, %v2485
  %v2487 = vpop.f32.mrf.mxu0
  %2488 = vdwg.mxu0
  %v2489 = vadd.f32 %v2413, %v2475
  %v2490 = vadd.f32 %v2414, %v2478
  %v2491 = vadd.f32 %v2415, %v2483
  %v2492 = vadd.f32 %v2416, %v2486
  %s2493 = scalar_lea.vmem %s4, 240
  %v2494 = vld [vmem:[%s2493] sm:$0xf]
  %v2495 = vld [vmem:[%s2493 + $0x4] sm:$0xf]
  %v2496 = vld [vmem:[%s2493 + $0x8] sm:$0xf]
  %v2497 = vld [vmem:[%s2493 + $0xc] sm:$0xf]
  %v2502 = vunpack.c.l.b16 %v2494
  %v2503 = vunpack.c.l.b16 %v2495
  %v2504 = vunpack.c.l.b16 %v2496
  %v2505 = vunpack.c.l.b16 %v2497
  %v2506 = vpack.c.b16 %v2503, %v2502
  %v2507 = vpack.c.b16 %v2505, %v2504
  %v2511 = vsel %vm1382, %v1359, 0
  %v2514 = vsel %vm1382, %v1360, 0
  %2516 = vmatprep.subr.bf16.mxu0 0
  %2517 = vmatpush1.bf16.msra.mxu0 0
  %2518 = vmatprep.subr.bf16.mxu0 0
  %2519 = vmatpush1.bf16.msra.mxu0 0
  %2520 = vmatprep.subr.bf16.mxu0 0
  %2521 = vmatpush1.bf16.msra.mxu0 0
  %2522 = vmatprep.subr.bf16.mxu0 0
  %2523 = vmatpush1.bf16.msra.mxu0 0
  %2524 = vmatprep.subr.bf16.mxu0 0
  %2525 = vmatpush1.bf16.msra.mxu0 0
  %2526 = vmatprep.subr.bf16.mxu0 0
  %2527 = vmatpush1.bf16.msra.mxu0 0
  %2528 = vmatprep.subr.bf16.mxu0 0
  %2529 = vmatpush1.bf16.msra.mxu0 %v2507
  %2530 = vmatprep.subr.bf16.mxu0 0
  %2531 = vmatpush1.bf16.msra.mxu0 %v2506
  %2532 = vmatprep.subr.bf16.mxu0 0
  %2533 = vmatpush2.bf16.msra.mxu0 0
  %2534 = vmatprep.subr.bf16.mxu0 0
  %2535 = vmatpush2.bf16.msra.mxu0 0
  %2536 = vmatprep.subr.bf16.mxu0 0
  %2537 = vmatpush2.bf16.msra.mxu0 0
  %2538 = vmatprep.subr.bf16.mxu0 0
  %2539 = vmatpush2.bf16.msra.mxu0 0
  %2540 = vmatprep.subr.bf16.mxu0 0
  %2541 = vmatpush2.bf16.msra.mxu0 0
  %2542 = vmatprep.subr.bf16.mxu0 0
  %2543 = vmatpush2.bf16.msra.mxu0 0
  %2544 = vmatprep.subr.bf16.mxu0 0
  %2545 = vmatpush2.bf16.msra.mxu0 0
  %2546 = vmatprep.subr.bf16.mxu0 0
  %2547 = vmatpush2.bf16.msra.mxu0 0
  %2548 = vmatprep.mubr.bf16.mxu0 0
  %2549 = vmatmul.mubr.bf16.gmra.mxu0 %v2511
  %v2550 = vpop.f32.mrf.mxu0
  %v2551 = vadd.f32 0.0, %v2550
  %v2552 = vpop.f32.mrf.mxu0
  %v2553 = vpop.f32.mrf.mxu0
  %v2554 = vadd.f32 0.0, %v2553
  %v2555 = vpop.f32.mrf.mxu0
  %2556 = vmatprep.mubr.bf16.mxu0 0
  %2557 = vmatmul.mubr.bf16.gmra.mxu0 %v2514
  %v2558 = vpop.f32.mrf.mxu0
  %v2559 = vadd.f32 0.0, %v2558
  %v2560 = vpop.f32.mrf.mxu0
  %v2561 = vpop.f32.mrf.mxu0
  %v2562 = vadd.f32 0.0, %v2561
  %v2563 = vpop.f32.mrf.mxu0
  %2564 = vdwg.mxu0
  %v2565 = vadd.f32 %v2489, %v2551
  %v2566 = vadd.f32 %v2490, %v2554
  %v2567 = vadd.f32 %v2491, %v2559
  %v2568 = vadd.f32 %v2492, %v2562
  %v2569 = vld [vmem:[%s5] sm:$0x1]
  %v2571 = vlaneseq
  %v2572 = vshrl.u32 %v2571, 7
  %v2573 = vsub.s32 0, %v2572
  %v2574 = vrot.slane %v2569, %v2573
  %v2576 = vadd.f32 %v2565, %v2574
  %v2577 = vadd.f32 %v2566, %v2574
  %v2578 = vadd.f32 %v2567, %v2574
  %v2579 = vadd.f32 %v2568, %v2574
  %v2580 = vmax.f32 %v2576, 0.0
  %v2581 = vmax.f32 %v2577, 0.0
  %v2582 = vmax.f32 %v2578, 0.0
  %v2583 = vmax.f32 %v2579, 0.0
  %v2584 = vpack.c.bf16 %v2581, %v2580
  %v2585 = vpack.c.bf16 %v2583, %v2582
  %v2586 = vld [vmem:[%s6] sm:$0xf]
  %v2587 = vld [vmem:[%s6 + $0x4] sm:$0xf]
  %v2588 = vld [vmem:[%s6 + $0x8] sm:$0xf]
  %v2589 = vld [vmem:[%s6 + $0xc] sm:$0xf]
  %v2590 = vld [vmem:[%s6 + $0x10] sm:$0xf]
  %v2591 = vld [vmem:[%s6 + $0x14] sm:$0xf]
  %v2592 = vld [vmem:[%s6 + $0x18] sm:$0xf]
  %v2593 = vld [vmem:[%s6 + $0x1c] sm:$0xf]
  %v2594 = vld [vmem:[%s6 + $0x20] sm:$0xf]
  %v2604 = vunpack.c.l.b16 %v2586
  %v2605 = vunpack.c.l.b16 %v2587
  %v2606 = vunpack.c.l.b16 %v2588
  %v2607 = vunpack.c.l.b16 %v2589
  %v2608 = vunpack.c.l.b16 %v2590
  %v2609 = vunpack.c.l.b16 %v2591
  %v2610 = vunpack.c.l.b16 %v2592
  %v2611 = vunpack.c.l.b16 %v2593
  %v2612 = vunpack.c.l.b16 %v2594
  %v2613 = vpack.c.b16 %v2605, %v2604
  %v2614 = vpack.c.b16 %v2607, %v2606
  %v2615 = vpack.c.b16 %v2609, %v2608
  %v2616 = vpack.c.b16 %v2611, %v2610
  %v2617 = vpack.c.b16 %v2612, %v2612
  %v2619 = vsel %vm1382, %v2613, 0
  %v2622 = vsel %vm1382, %v2614, 0
  %v2625 = vsel %vm1382, %v2615, 0
  %v2628 = vsel %vm1382, %v2616, 0
  %v2631 = vsel %vm1382, %v2617, 0
  %2633 = vmatprep.subr.bf16.mxu0 0
  %2634 = vmatpush1.bf16.msra.mxu0 0
  %2635 = vmatprep.subr.bf16.mxu0 0
  %2636 = vmatpush1.bf16.msra.mxu0 0
  %2637 = vmatprep.subr.bf16.mxu0 0
  %2638 = vmatpush1.bf16.msra.mxu0 0
  %2639 = vmatprep.subr.bf16.mxu0 0
  %2640 = vmatpush1.bf16.msra.mxu0 0
  %2641 = vmatprep.subr.bf16.mxu0 0
  %2642 = vmatpush1.bf16.msra.mxu0 0
  %2643 = vmatprep.subr.bf16.mxu0 0
  %2644 = vmatpush1.bf16.msra.mxu0 0
  %2645 = vmatprep.subr.bf16.mxu0 0
  %2646 = vmatpush1.bf16.msra.mxu0 %v2585
  %2647 = vmatprep.subr.bf16.mxu0 0
  %2648 = vmatpush1.bf16.msra.mxu0 %v2584
  %2649 = vmatprep.subr.bf16.mxu0 0
  %2650 = vmatpush2.bf16.msra.mxu0 0
  %2651 = vmatprep.subr.bf16.mxu0 0
  %2652 = vmatpush2.bf16.msra.mxu0 0
  %2653 = vmatprep.subr.bf16.mxu0 0
  %2654 = vmatpush2.bf16.msra.mxu0 0
  %2655 = vmatprep.subr.bf16.mxu0 0
  %2656 = vmatpush2.bf16.msra.mxu0 0
  %2657 = vmatprep.subr.bf16.mxu0 0
  %2658 = vmatpush2.bf16.msra.mxu0 0
  %2659 = vmatprep.subr.bf16.mxu0 0
  %2660 = vmatpush2.bf16.msra.mxu0 0
  %2661 = vmatprep.subr.bf16.mxu0 0
  %2662 = vmatpush2.bf16.msra.mxu0 0
  %2663 = vmatprep.subr.bf16.mxu0 0
  %2664 = vmatpush2.bf16.msra.mxu0 0
  %2665 = vmatprep.mubr.bf16.mxu0 0
  %2666 = vmatmul.mubr.bf16.gmra.mxu0 %v2619
  %v2667 = vpop.f32.mrf.mxu0
  %v2668 = vadd.f32 0.0, %v2667
  %v2669 = vpop.f32.mrf.mxu0
  %v2670 = vpop.f32.mrf.mxu0
  %v2671 = vadd.f32 0.0, %v2670
  %v2672 = vpop.f32.mrf.mxu0
  %2673 = vmatprep.mubr.bf16.mxu0 0
  %2674 = vmatmul.mubr.bf16.gmra.mxu0 %v2622
  %v2675 = vpop.f32.mrf.mxu0
  %v2676 = vadd.f32 0.0, %v2675
  %v2677 = vpop.f32.mrf.mxu0
  %v2678 = vpop.f32.mrf.mxu0
  %v2679 = vadd.f32 0.0, %v2678
  %v2680 = vpop.f32.mrf.mxu0
  %2681 = vmatprep.mubr.bf16.mxu0 0
  %2682 = vmatmul.mubr.bf16.gmra.mxu0 %v2625
  %v2683 = vpop.f32.mrf.mxu0
  %v2684 = vadd.f32 0.0, %v2683
  %v2685 = vpop.f32.mrf.mxu0
  %v2686 = vpop.f32.mrf.mxu0
  %v2687 = vadd.f32 0.0, %v2686
  %v2688 = vpop.f32.mrf.mxu0
  %2689 = vmatprep.mubr.bf16.mxu0 0
  %2690 = vmatmul.mubr.bf16.gmra.mxu0 %v2628
  %v2691 = vpop.f32.mrf.mxu0
  %v2692 = vadd.f32 0.0, %v2691
  %v2693 = vpop.f32.mrf.mxu0
  %v2694 = vpop.f32.mrf.mxu0
  %v2695 = vadd.f32 0.0, %v2694
  %v2696 = vpop.f32.mrf.mxu0
  %2697 = vmatprep.mubr.bf16.mxu0 0
  %2698 = vmatmul.mubr.bf16.gmra.mxu0 %v2631
  %v2699 = vpop.f32.mrf.mxu0
  %v2700 = vadd.f32 0.0, %v2699
  %v2701 = vpop.f32.mrf.mxu0
  %v2702 = vpop.f32.mrf.mxu0
  %v2703 = vpop.f32.mrf.mxu0
  %2704 = vdwg.mxu0
  %v2705 = vpack.c.bf16 %v2671, %v2668
  %v2706 = vpack.c.bf16 %v2679, %v2676
  %v2707 = vpack.c.bf16 %v2687, %v2684
  %v2708 = vpack.c.bf16 %v2695, %v2692
  %v2709 = vpack.c.bf16 %v2700, %v2700
  %v2710 = vld [vmem:[%s7] sm:$0xf]
  %v2711 = vld [vmem:[%s7 + $0x4] sm:$0xf]
  %v2712 = vld [vmem:[%s7 + $0x8] sm:$0xf]
  %v2713 = vld [vmem:[%s7 + $0xc] sm:$0xf]
  %v2714 = vld [vmem:[%s7 + $0x10] sm:$0xf]
  %v2715 = vld [vmem:[%s7 + $0x14] sm:$0xf]
  %v2716 = vld [vmem:[%s7 + $0x18] sm:$0xf]
  %v2717 = vld [vmem:[%s7 + $0x1c] sm:$0xf]
  %s2718 = scalar_lea.vmem %s7, 32
  %v2719 = vld [vmem:[%s2718] sm:$0xf]
  %v2720 = vld [vmem:[%s2718 + $0x4] sm:$0xf]
  %v2721 = vld [vmem:[%s2718 + $0x8] sm:$0xf]
  %v2722 = vld [vmem:[%s2718 + $0xc] sm:$0xf]
  %v2723 = vld [vmem:[%s2718 + $0x10] sm:$0xf]
  %v2724 = vld [vmem:[%s2718 + $0x14] sm:$0xf]
  %v2725 = vld [vmem:[%s2718 + $0x18] sm:$0xf]
  %v2726 = vld [vmem:[%s2718 + $0x1c] sm:$0xf]
  %v2728 = vrot.slane %v2705, 4
  %v2737 = vunpack.c.l.b16 %v2719
  %v2738 = vunpack.c.l.b16 %v2720
  %v2739 = vunpack.c.l.b16 %v2721
  %v2740 = vunpack.c.l.b16 %v2722
  %v2741 = vunpack.c.l.b16 %v2723
  %v2742 = vunpack.c.l.b16 %v2724
  %v2743 = vunpack.c.l.b16 %v2725
  %v2744 = vunpack.c.l.b16 %v2726
  %v2745 = vpack.c.b16 %v2738, %v2737
  %v2746 = vpack.c.b16 %v2740, %v2739
  %v2747 = vpack.c.b16 %v2742, %v2741
  %v2748 = vpack.c.b16 %v2744, %v2743
  %vm2753 = vcmask 523264
  %v2755 = vsel %vm2753, %v2728, 0
  %2757 = vmatprep.subr.bf16.mxu0 0
  %2758 = vmatpush1.bf16.msra.mxu0 0
  %2759 = vmatprep.subr.bf16.mxu0 0
  %2760 = vmatpush1.bf16.msra.mxu0 0
  %2761 = vmatprep.subr.bf16.mxu0 0
  %2762 = vmatpush1.bf16.msra.mxu0 0
  %2763 = vmatprep.subr.bf16.mxu0 0
  %2764 = vmatpush1.bf16.msra.mxu0 0
  %2765 = vmatprep.subr.bf16.mxu0 0
  %2766 = vmatpush1.bf16.msra.mxu0 %v2748
  %2767 = vmatprep.subr.bf16.mxu0 0
  %2768 = vmatpush1.bf16.msra.mxu0 %v2747
  %2769 = vmatprep.subr.bf16.mxu0 0
  %2770 = vmatpush1.bf16.msra.mxu0 %v2746
  %2771 = vmatprep.subr.bf16.mxu0 0
  %2772 = vmatpush1.bf16.msra.mxu0 %v2745
  %2773 = vmatprep.subr.bf16.mxu0 0
  %2774 = vmatpush2.bf16.msra.mxu0 0
  %2775 = vmatprep.subr.bf16.mxu0 0
  %2776 = vmatpush2.bf16.msra.mxu0 0
  %2777 = vmatprep.subr.bf16.mxu0 0
  %2778 = vmatpush2.bf16.msra.mxu0 0
  %2779 = vmatprep.subr.bf16.mxu0 0
  %2780 = vmatpush2.bf16.msra.mxu0 0
  %2781 = vmatprep.subr.bf16.mxu0 0
  %2782 = vmatpush2.bf16.msra.mxu0 0
  %2783 = vmatprep.subr.bf16.mxu0 0
  %2784 = vmatpush2.bf16.msra.mxu0 0
  %2785 = vmatprep.subr.bf16.mxu0 0
  %2786 = vmatpush2.bf16.msra.mxu0 0
  %2787 = vmatprep.subr.bf16.mxu0 0
  %2788 = vmatpush2.bf16.msra.mxu0 0
  %2789 = vmatprep.mubr.bf16.mxu0 0
  %2790 = vmatmul.mubr.bf16.gmra.mxu0 %v2755
  %v2791 = vpop.f32.mrf.mxu0
  %v2792 = vadd.f32 0.0, %v2791
  %v2793 = vpop.f32.mrf.mxu0
  %v2794 = vpop.f32.mrf.mxu0
  %v2795 = vpop.f32.mrf.mxu0
  %2796 = vdwg.mxu0
  %v2805 = vunpack.c.l.b16 %v2710
  %v2806 = vunpack.c.l.b16 %v2711
  %v2807 = vunpack.c.l.b16 %v2712
  %v2808 = vunpack.c.l.b16 %v2713
  %v2809 = vunpack.c.l.b16 %v2714
  %v2810 = vunpack.c.l.b16 %v2715
  %v2811 = vunpack.c.l.b16 %v2716
  %v2812 = vunpack.c.l.b16 %v2717
  %v2813 = vpack.c.b16 %v2806, %v2805
  %v2814 = vpack.c.b16 %v2808, %v2807
  %v2815 = vpack.c.b16 %v2810, %v2809
  %v2816 = vpack.c.b16 %v2812, %v2811
  %v2822 = vsel %vm2753, %v2705, 0
  %2824 = vmatprep.subr.bf16.mxu0 0
  %2825 = vmatpush1.bf16.msra.mxu0 0
  %2826 = vmatprep.subr.bf16.mxu0 0
  %2827 = vmatpush1.bf16.msra.mxu0 0
  %2828 = vmatprep.subr.bf16.mxu0 0
  %2829 = vmatpush1.bf16.msra.mxu0 0
  %2830 = vmatprep.subr.bf16.mxu0 0
  %2831 = vmatpush1.bf16.msra.mxu0 0
  %2832 = vmatprep.subr.bf16.mxu0 0
  %2833 = vmatpush1.bf16.msra.mxu0 %v2816
  %2834 = vmatprep.subr.bf16.mxu0 0
  %2835 = vmatpush1.bf16.msra.mxu0 %v2815
  %2836 = vmatprep.subr.bf16.mxu0 0
  %2837 = vmatpush1.bf16.msra.mxu0 %v2814
  %2838 = vmatprep.subr.bf16.mxu0 0
  %2839 = vmatpush1.bf16.msra.mxu0 %v2813
  %2840 = vmatprep.subr.bf16.mxu0 0
  %2841 = vmatpush2.bf16.msra.mxu0 0
  %2842 = vmatprep.subr.bf16.mxu0 0
  %2843 = vmatpush2.bf16.msra.mxu0 0
  %2844 = vmatprep.subr.bf16.mxu0 0
  %2845 = vmatpush2.bf16.msra.mxu0 0
  %2846 = vmatprep.subr.bf16.mxu0 0
  %2847 = vmatpush2.bf16.msra.mxu0 0
  %2848 = vmatprep.subr.bf16.mxu0 0
  %2849 = vmatpush2.bf16.msra.mxu0 0
  %2850 = vmatprep.subr.bf16.mxu0 0
  %2851 = vmatpush2.bf16.msra.mxu0 0
  %2852 = vmatprep.subr.bf16.mxu0 0
  %2853 = vmatpush2.bf16.msra.mxu0 0
  %2854 = vmatprep.subr.bf16.mxu0 0
  %2855 = vmatpush2.bf16.msra.mxu0 0
  %2856 = vmatprep.mubr.bf16.mxu0 0
  %2857 = vmatmul.mubr.bf16.gmra.mxu0 %v2822
  %v2858 = vpop.f32.mrf.mxu0
  %v2859 = vadd.f32 %v2792, %v2858
  %v2860 = vpop.f32.mrf.mxu0
  %v2861 = vpop.f32.mrf.mxu0
  %v2862 = vpop.f32.mrf.mxu0
  %2863 = vdwg.mxu0
  %s2864 = scalar_lea.vmem %s7, 64
  %v2865 = vld [vmem:[%s2864] sm:$0xf]
  %v2866 = vld [vmem:[%s2864 + $0x4] sm:$0xf]
  %v2867 = vld [vmem:[%s2864 + $0x8] sm:$0xf]
  %v2868 = vld [vmem:[%s2864 + $0xc] sm:$0xf]
  %v2869 = vld [vmem:[%s2864 + $0x10] sm:$0xf]
  %v2870 = vld [vmem:[%s2864 + $0x14] sm:$0xf]
  %v2871 = vld [vmem:[%s2864 + $0x18] sm:$0xf]
  %v2872 = vld [vmem:[%s2864 + $0x1c] sm:$0xf]
  %v2881 = vunpack.c.l.b16 %v2865
  %v2882 = vunpack.c.l.b16 %v2866
  %v2883 = vunpack.c.l.b16 %v2867
  %v2884 = vunpack.c.l.b16 %v2868
  %v2885 = vunpack.c.l.b16 %v2869
  %v2886 = vunpack.c.l.b16 %v2870
  %v2887 = vunpack.c.l.b16 %v2871
  %v2888 = vunpack.c.l.b16 %v2872
  %v2889 = vpack.c.b16 %v2882, %v2881
  %v2890 = vpack.c.b16 %v2884, %v2883
  %v2891 = vpack.c.b16 %v2886, %v2885
  %v2892 = vpack.c.b16 %v2888, %v2887
  %v2898 = vsel %vm2753, %v2706, 0
  %2900 = vmatprep.subr.bf16.mxu0 0
  %2901 = vmatpush1.bf16.msra.mxu0 0
  %2902 = vmatprep.subr.bf16.mxu0 0
  %2903 = vmatpush1.bf16.msra.mxu0 0
  %2904 = vmatprep.subr.bf16.mxu0 0
  %2905 = vmatpush1.bf16.msra.mxu0 0
  %2906 = vmatprep.subr.bf16.mxu0 0
  %2907 = vmatpush1.bf16.msra.mxu0 0
  %2908 = vmatprep.subr.bf16.mxu0 0
  %2909 = vmatpush1.bf16.msra.mxu0 %v2892
  %2910 = vmatprep.subr.bf16.mxu0 0
  %2911 = vmatpush1.bf16.msra.mxu0 %v2891
  %2912 = vmatprep.subr.bf16.mxu0 0
  %2913 = vmatpush1.bf16.msra.mxu0 %v2890
  %2914 = vmatprep.subr.bf16.mxu0 0
  %2915 = vmatpush1.bf16.msra.mxu0 %v2889
  %2916 = vmatprep.subr.bf16.mxu0 0
  %2917 = vmatpush2.bf16.msra.mxu0 0
  %2918 = vmatprep.subr.bf16.mxu0 0
  %2919 = vmatpush2.bf16.msra.mxu0 0
  %2920 = vmatprep.subr.bf16.mxu0 0
  %2921 = vmatpush2.bf16.msra.mxu0 0
  %2922 = vmatprep.subr.bf16.mxu0 0
  %2923 = vmatpush2.bf16.msra.mxu0 0
  %2924 = vmatprep.subr.bf16.mxu0 0
  %2925 = vmatpush2.bf16.msra.mxu0 0
  %2926 = vmatprep.subr.bf16.mxu0 0
  %2927 = vmatpush2.bf16.msra.mxu0 0
  %2928 = vmatprep.subr.bf16.mxu0 0
  %2929 = vmatpush2.bf16.msra.mxu0 0
  %2930 = vmatprep.subr.bf16.mxu0 0
  %2931 = vmatpush2.bf16.msra.mxu0 0
  %2932 = vmatprep.mubr.bf16.mxu0 0
  %2933 = vmatmul.mubr.bf16.gmra.mxu0 %v2898
  %v2934 = vpop.f32.mrf.mxu0
  %v2935 = vadd.f32 0.0, %v2934
  %v2936 = vpop.f32.mrf.mxu0
  %v2937 = vpop.f32.mrf.mxu0
  %v2938 = vpop.f32.mrf.mxu0
  %2939 = vdwg.mxu0
  %v2940 = vadd.f32 %v2859, %v2935
  %s2941 = scalar_lea.vmem %s7, 96
  %v2942 = vld [vmem:[%s2941] sm:$0xf]
  %v2943 = vld [vmem:[%s2941 + $0x4] sm:$0xf]
  %v2944 = vld [vmem:[%s2941 + $0x8] sm:$0xf]
  %v2945 = vld [vmem:[%s2941 + $0xc] sm:$0xf]
  %v2946 = vld [vmem:[%s2941 + $0x10] sm:$0xf]
  %v2947 = vld [vmem:[%s2941 + $0x14] sm:$0xf]
  %v2948 = vld [vmem:[%s2941 + $0x18] sm:$0xf]
  %v2949 = vld [vmem:[%s2941 + $0x1c] sm:$0xf]
  %v2951 = vrot.slane %v2706, 4
  %v2960 = vunpack.c.l.b16 %v2942
  %v2961 = vunpack.c.l.b16 %v2943
  %v2962 = vunpack.c.l.b16 %v2944
  %v2963 = vunpack.c.l.b16 %v2945
  %v2964 = vunpack.c.l.b16 %v2946
  %v2965 = vunpack.c.l.b16 %v2947
  %v2966 = vunpack.c.l.b16 %v2948
  %v2967 = vunpack.c.l.b16 %v2949
  %v2968 = vpack.c.b16 %v2961, %v2960
  %v2969 = vpack.c.b16 %v2963, %v2962
  %v2970 = vpack.c.b16 %v2965, %v2964
  %v2971 = vpack.c.b16 %v2967, %v2966
  %v2977 = vsel %vm2753, %v2951, 0
  %2979 = vmatprep.subr.bf16.mxu0 0
  %2980 = vmatpush1.bf16.msra.mxu0 0
  %2981 = vmatprep.subr.bf16.mxu0 0
  %2982 = vmatpush1.bf16.msra.mxu0 0
  %2983 = vmatprep.subr.bf16.mxu0 0
  %2984 = vmatpush1.bf16.msra.mxu0 0
  %2985 = vmatprep.subr.bf16.mxu0 0
  %2986 = vmatpush1.bf16.msra.mxu0 0
  %2987 = vmatprep.subr.bf16.mxu0 0
  %2988 = vmatpush1.bf16.msra.mxu0 %v2971
  %2989 = vmatprep.subr.bf16.mxu0 0
  %2990 = vmatpush1.bf16.msra.mxu0 %v2970
  %2991 = vmatprep.subr.bf16.mxu0 0
  %2992 = vmatpush1.bf16.msra.mxu0 %v2969
  %2993 = vmatprep.subr.bf16.mxu0 0
  %2994 = vmatpush1.bf16.msra.mxu0 %v2968
  %2995 = vmatprep.subr.bf16.mxu0 0
  %2996 = vmatpush2.bf16.msra.mxu0 0
  %2997 = vmatprep.subr.bf16.mxu0 0
  %2998 = vmatpush2.bf16.msra.mxu0 0
  %2999 = vmatprep.subr.bf16.mxu0 0
  %3000 = vmatpush2.bf16.msra.mxu0 0
  %3001 = vmatprep.subr.bf16.mxu0 0
  %3002 = vmatpush2.bf16.msra.mxu0 0
  %3003 = vmatprep.subr.bf16.mxu0 0
  %3004 = vmatpush2.bf16.msra.mxu0 0
  %3005 = vmatprep.subr.bf16.mxu0 0
  %3006 = vmatpush2.bf16.msra.mxu0 0
  %3007 = vmatprep.subr.bf16.mxu0 0
  %3008 = vmatpush2.bf16.msra.mxu0 0
  %3009 = vmatprep.subr.bf16.mxu0 0
  %3010 = vmatpush2.bf16.msra.mxu0 0
  %3011 = vmatprep.mubr.bf16.mxu0 0
  %3012 = vmatmul.mubr.bf16.gmra.mxu0 %v2977
  %v3013 = vpop.f32.mrf.mxu0
  %v3014 = vadd.f32 0.0, %v3013
  %v3015 = vpop.f32.mrf.mxu0
  %v3016 = vpop.f32.mrf.mxu0
  %v3017 = vpop.f32.mrf.mxu0
  %3018 = vdwg.mxu0
  %v3019 = vadd.f32 %v2940, %v3014
  %s3020 = scalar_lea.vmem %s7, 128
  %v3021 = vld [vmem:[%s3020] sm:$0xf]
  %v3022 = vld [vmem:[%s3020 + $0x4] sm:$0xf]
  %v3023 = vld [vmem:[%s3020 + $0x8] sm:$0xf]
  %v3024 = vld [vmem:[%s3020 + $0xc] sm:$0xf]
  %v3025 = vld [vmem:[%s3020 + $0x10] sm:$0xf]
  %v3026 = vld [vmem:[%s3020 + $0x14] sm:$0xf]
  %v3027 = vld [vmem:[%s3020 + $0x18] sm:$0xf]
  %v3028 = vld [vmem:[%s3020 + $0x1c] sm:$0xf]
  %v3037 = vunpack.c.l.b16 %v3021
  %v3038 = vunpack.c.l.b16 %v3022
  %v3039 = vunpack.c.l.b16 %v3023
  %v3040 = vunpack.c.l.b16 %v3024
  %v3041 = vunpack.c.l.b16 %v3025
  %v3042 = vunpack.c.l.b16 %v3026
  %v3043 = vunpack.c.l.b16 %v3027
  %v3044 = vunpack.c.l.b16 %v3028
  %v3045 = vpack.c.b16 %v3038, %v3037
  %v3046 = vpack.c.b16 %v3040, %v3039
  %v3047 = vpack.c.b16 %v3042, %v3041
  %v3048 = vpack.c.b16 %v3044, %v3043
  %v3054 = vsel %vm2753, %v2707, 0
  %3056 = vmatprep.subr.bf16.mxu0 0
  %3057 = vmatpush1.bf16.msra.mxu0 0
  %3058 = vmatprep.subr.bf16.mxu0 0
  %3059 = vmatpush1.bf16.msra.mxu0 0
  %3060 = vmatprep.subr.bf16.mxu0 0
  %3061 = vmatpush1.bf16.msra.mxu0 0
  %3062 = vmatprep.subr.bf16.mxu0 0
  %3063 = vmatpush1.bf16.msra.mxu0 0
  %3064 = vmatprep.subr.bf16.mxu0 0
  %3065 = vmatpush1.bf16.msra.mxu0 %v3048
  %3066 = vmatprep.subr.bf16.mxu0 0
  %3067 = vmatpush1.bf16.msra.mxu0 %v3047
  %3068 = vmatprep.subr.bf16.mxu0 0
  %3069 = vmatpush1.bf16.msra.mxu0 %v3046
  %3070 = vmatprep.subr.bf16.mxu0 0
  %3071 = vmatpush1.bf16.msra.mxu0 %v3045
  %3072 = vmatprep.subr.bf16.mxu0 0
  %3073 = vmatpush2.bf16.msra.mxu0 0
  %3074 = vmatprep.subr.bf16.mxu0 0
  %3075 = vmatpush2.bf16.msra.mxu0 0
  %3076 = vmatprep.subr.bf16.mxu0 0
  %3077 = vmatpush2.bf16.msra.mxu0 0
  %3078 = vmatprep.subr.bf16.mxu0 0
  %3079 = vmatpush2.bf16.msra.mxu0 0
  %3080 = vmatprep.subr.bf16.mxu0 0
  %3081 = vmatpush2.bf16.msra.mxu0 0
  %3082 = vmatprep.subr.bf16.mxu0 0
  %3083 = vmatpush2.bf16.msra.mxu0 0
  %3084 = vmatprep.subr.bf16.mxu0 0
  %3085 = vmatpush2.bf16.msra.mxu0 0
  %3086 = vmatprep.subr.bf16.mxu0 0
  %3087 = vmatpush2.bf16.msra.mxu0 0
  %3088 = vmatprep.mubr.bf16.mxu0 0
  %3089 = vmatmul.mubr.bf16.gmra.mxu0 %v3054
  %v3090 = vpop.f32.mrf.mxu0
  %v3091 = vadd.f32 0.0, %v3090
  %v3092 = vpop.f32.mrf.mxu0
  %v3093 = vpop.f32.mrf.mxu0
  %v3094 = vpop.f32.mrf.mxu0
  %3095 = vdwg.mxu0
  %v3096 = vadd.f32 %v3019, %v3091
  %s3097 = scalar_lea.vmem %s7, 160
  %v3098 = vld [vmem:[%s3097] sm:$0xf]
  %v3099 = vld [vmem:[%s3097 + $0x4] sm:$0xf]
  %v3100 = vld [vmem:[%s3097 + $0x8] sm:$0xf]
  %v3101 = vld [vmem:[%s3097 + $0xc] sm:$0xf]
  %v3102 = vld [vmem:[%s3097 + $0x10] sm:$0xf]
  %v3103 = vld [vmem:[%s3097 + $0x14] sm:$0xf]
  %v3104 = vld [vmem:[%s3097 + $0x18] sm:$0xf]
  %v3105 = vld [vmem:[%s3097 + $0x1c] sm:$0xf]
  %v3107 = vrot.slane %v2707, 4
  %v3116 = vunpack.c.l.b16 %v3098
  %v3117 = vunpack.c.l.b16 %v3099
  %v3118 = vunpack.c.l.b16 %v3100
  %v3119 = vunpack.c.l.b16 %v3101
  %v3120 = vunpack.c.l.b16 %v3102
  %v3121 = vunpack.c.l.b16 %v3103
  %v3122 = vunpack.c.l.b16 %v3104
  %v3123 = vunpack.c.l.b16 %v3105
  %v3124 = vpack.c.b16 %v3117, %v3116
  %v3125 = vpack.c.b16 %v3119, %v3118
  %v3126 = vpack.c.b16 %v3121, %v3120
  %v3127 = vpack.c.b16 %v3123, %v3122
  %v3133 = vsel %vm2753, %v3107, 0
  %3135 = vmatprep.subr.bf16.mxu0 0
  %3136 = vmatpush1.bf16.msra.mxu0 0
  %3137 = vmatprep.subr.bf16.mxu0 0
  %3138 = vmatpush1.bf16.msra.mxu0 0
  %3139 = vmatprep.subr.bf16.mxu0 0
  %3140 = vmatpush1.bf16.msra.mxu0 0
  %3141 = vmatprep.subr.bf16.mxu0 0
  %3142 = vmatpush1.bf16.msra.mxu0 0
  %3143 = vmatprep.subr.bf16.mxu0 0
  %3144 = vmatpush1.bf16.msra.mxu0 %v3127
  %3145 = vmatprep.subr.bf16.mxu0 0
  %3146 = vmatpush1.bf16.msra.mxu0 %v3126
  %3147 = vmatprep.subr.bf16.mxu0 0
  %3148 = vmatpush1.bf16.msra.mxu0 %v3125
  %3149 = vmatprep.subr.bf16.mxu0 0
  %3150 = vmatpush1.bf16.msra.mxu0 %v3124
  %3151 = vmatprep.subr.bf16.mxu0 0
  %3152 = vmatpush2.bf16.msra.mxu0 0
  %3153 = vmatprep.subr.bf16.mxu0 0
  %3154 = vmatpush2.bf16.msra.mxu0 0
  %3155 = vmatprep.subr.bf16.mxu0 0
  %3156 = vmatpush2.bf16.msra.mxu0 0
  %3157 = vmatprep.subr.bf16.mxu0 0
  %3158 = vmatpush2.bf16.msra.mxu0 0
  %3159 = vmatprep.subr.bf16.mxu0 0
  %3160 = vmatpush2.bf16.msra.mxu0 0
  %3161 = vmatprep.subr.bf16.mxu0 0
  %3162 = vmatpush2.bf16.msra.mxu0 0
  %3163 = vmatprep.subr.bf16.mxu0 0
  %3164 = vmatpush2.bf16.msra.mxu0 0
  %3165 = vmatprep.subr.bf16.mxu0 0
  %3166 = vmatpush2.bf16.msra.mxu0 0
  %3167 = vmatprep.mubr.bf16.mxu0 0
  %3168 = vmatmul.mubr.bf16.gmra.mxu0 %v3133
  %v3169 = vpop.f32.mrf.mxu0
  %v3170 = vadd.f32 0.0, %v3169
  %v3171 = vpop.f32.mrf.mxu0
  %v3172 = vpop.f32.mrf.mxu0
  %v3173 = vpop.f32.mrf.mxu0
  %3174 = vdwg.mxu0
  %v3175 = vadd.f32 %v3096, %v3170
  %s3176 = scalar_lea.vmem %s7, 192
  %v3177 = vld [vmem:[%s3176] sm:$0xf]
  %v3178 = vld [vmem:[%s3176 + $0x4] sm:$0xf]
  %v3179 = vld [vmem:[%s3176 + $0x8] sm:$0xf]
  %v3180 = vld [vmem:[%s3176 + $0xc] sm:$0xf]
  %v3181 = vld [vmem:[%s3176 + $0x10] sm:$0xf]
  %v3182 = vld [vmem:[%s3176 + $0x14] sm:$0xf]
  %v3183 = vld [vmem:[%s3176 + $0x18] sm:$0xf]
  %v3184 = vld [vmem:[%s3176 + $0x1c] sm:$0xf]
  %v3193 = vunpack.c.l.b16 %v3177
  %v3194 = vunpack.c.l.b16 %v3178
  %v3195 = vunpack.c.l.b16 %v3179
  %v3196 = vunpack.c.l.b16 %v3180
  %v3197 = vunpack.c.l.b16 %v3181
  %v3198 = vunpack.c.l.b16 %v3182
  %v3199 = vunpack.c.l.b16 %v3183
  %v3200 = vunpack.c.l.b16 %v3184
  %v3201 = vpack.c.b16 %v3194, %v3193
  %v3202 = vpack.c.b16 %v3196, %v3195
  %v3203 = vpack.c.b16 %v3198, %v3197
  %v3204 = vpack.c.b16 %v3200, %v3199
  %v3210 = vsel %vm2753, %v2708, 0
  %3212 = vmatprep.subr.bf16.mxu0 0
  %3213 = vmatpush1.bf16.msra.mxu0 0
  %3214 = vmatprep.subr.bf16.mxu0 0
  %3215 = vmatpush1.bf16.msra.mxu0 0
  %3216 = vmatprep.subr.bf16.mxu0 0
  %3217 = vmatpush1.bf16.msra.mxu0 0
  %3218 = vmatprep.subr.bf16.mxu0 0
  %3219 = vmatpush1.bf16.msra.mxu0 0
  %3220 = vmatprep.subr.bf16.mxu0 0
  %3221 = vmatpush1.bf16.msra.mxu0 %v3204
  %3222 = vmatprep.subr.bf16.mxu0 0
  %3223 = vmatpush1.bf16.msra.mxu0 %v3203
  %3224 = vmatprep.subr.bf16.mxu0 0
  %3225 = vmatpush1.bf16.msra.mxu0 %v3202
  %3226 = vmatprep.subr.bf16.mxu0 0
  %3227 = vmatpush1.bf16.msra.mxu0 %v3201
  %3228 = vmatprep.subr.bf16.mxu0 0
  %3229 = vmatpush2.bf16.msra.mxu0 0
  %3230 = vmatprep.subr.bf16.mxu0 0
  %3231 = vmatpush2.bf16.msra.mxu0 0
  %3232 = vmatprep.subr.bf16.mxu0 0
  %3233 = vmatpush2.bf16.msra.mxu0 0
  %3234 = vmatprep.subr.bf16.mxu0 0
  %3235 = vmatpush2.bf16.msra.mxu0 0
  %3236 = vmatprep.subr.bf16.mxu0 0
  %3237 = vmatpush2.bf16.msra.mxu0 0
  %3238 = vmatprep.subr.bf16.mxu0 0
  %3239 = vmatpush2.bf16.msra.mxu0 0
  %3240 = vmatprep.subr.bf16.mxu0 0
  %3241 = vmatpush2.bf16.msra.mxu0 0
  %3242 = vmatprep.subr.bf16.mxu0 0
  %3243 = vmatpush2.bf16.msra.mxu0 0
  %3244 = vmatprep.mubr.bf16.mxu0 0
  %3245 = vmatmul.mubr.bf16.gmra.mxu0 %v3210
  %v3246 = vpop.f32.mrf.mxu0
  %v3247 = vadd.f32 0.0, %v3246
  %v3248 = vpop.f32.mrf.mxu0
  %v3249 = vpop.f32.mrf.mxu0
  %v3250 = vpop.f32.mrf.mxu0
  %3251 = vdwg.mxu0
  %v3252 = vadd.f32 %v3175, %v3247
  %s3253 = scalar_lea.vmem %s7, 224
  %v3254 = vld [vmem:[%s3253] sm:$0xf]
  %v3255 = vld [vmem:[%s3253 + $0x4] sm:$0xf]
  %v3256 = vld [vmem:[%s3253 + $0x8] sm:$0xf]
  %v3257 = vld [vmem:[%s3253 + $0xc] sm:$0xf]
  %v3258 = vld [vmem:[%s3253 + $0x10] sm:$0xf]
  %v3259 = vld [vmem:[%s3253 + $0x14] sm:$0xf]
  %v3260 = vld [vmem:[%s3253 + $0x18] sm:$0xf]
  %v3261 = vld [vmem:[%s3253 + $0x1c] sm:$0xf]
  %v3263 = vrot.slane %v2708, 4
  %v3272 = vunpack.c.l.b16 %v3254
  %v3273 = vunpack.c.l.b16 %v3255
  %v3274 = vunpack.c.l.b16 %v3256
  %v3275 = vunpack.c.l.b16 %v3257
  %v3276 = vunpack.c.l.b16 %v3258
  %v3277 = vunpack.c.l.b16 %v3259
  %v3278 = vunpack.c.l.b16 %v3260
  %v3279 = vunpack.c.l.b16 %v3261
  %v3280 = vpack.c.b16 %v3273, %v3272
  %v3281 = vpack.c.b16 %v3275, %v3274
  %v3282 = vpack.c.b16 %v3277, %v3276
  %v3283 = vpack.c.b16 %v3279, %v3278
  %v3289 = vsel %vm2753, %v3263, 0
  %3291 = vmatprep.subr.bf16.mxu0 0
  %3292 = vmatpush1.bf16.msra.mxu0 0
  %3293 = vmatprep.subr.bf16.mxu0 0
  %3294 = vmatpush1.bf16.msra.mxu0 0
  %3295 = vmatprep.subr.bf16.mxu0 0
  %3296 = vmatpush1.bf16.msra.mxu0 0
  %3297 = vmatprep.subr.bf16.mxu0 0
  %3298 = vmatpush1.bf16.msra.mxu0 0
  %3299 = vmatprep.subr.bf16.mxu0 0
  %3300 = vmatpush1.bf16.msra.mxu0 %v3283
  %3301 = vmatprep.subr.bf16.mxu0 0
  %3302 = vmatpush1.bf16.msra.mxu0 %v3282
  %3303 = vmatprep.subr.bf16.mxu0 0
  %3304 = vmatpush1.bf16.msra.mxu0 %v3281
  %3305 = vmatprep.subr.bf16.mxu0 0
  %3306 = vmatpush1.bf16.msra.mxu0 %v3280
  %3307 = vmatprep.subr.bf16.mxu0 0
  %3308 = vmatpush2.bf16.msra.mxu0 0
  %3309 = vmatprep.subr.bf16.mxu0 0
  %3310 = vmatpush2.bf16.msra.mxu0 0
  %3311 = vmatprep.subr.bf16.mxu0 0
  %3312 = vmatpush2.bf16.msra.mxu0 0
  %3313 = vmatprep.subr.bf16.mxu0 0
  %3314 = vmatpush2.bf16.msra.mxu0 0
  %3315 = vmatprep.subr.bf16.mxu0 0
  %3316 = vmatpush2.bf16.msra.mxu0 0
  %3317 = vmatprep.subr.bf16.mxu0 0
  %3318 = vmatpush2.bf16.msra.mxu0 0
  %3319 = vmatprep.subr.bf16.mxu0 0
  %3320 = vmatpush2.bf16.msra.mxu0 0
  %3321 = vmatprep.subr.bf16.mxu0 0
  %3322 = vmatpush2.bf16.msra.mxu0 0
  %3323 = vmatprep.mubr.bf16.mxu0 0
  %3324 = vmatmul.mubr.bf16.gmra.mxu0 %v3289
  %v3325 = vpop.f32.mrf.mxu0
  %v3326 = vadd.f32 0.0, %v3325
  %v3327 = vpop.f32.mrf.mxu0
  %v3328 = vpop.f32.mrf.mxu0
  %v3329 = vpop.f32.mrf.mxu0
  %3330 = vdwg.mxu0
  %v3331 = vadd.f32 %v3252, %v3326
  %s3332 = scalar_lea.vmem %s7, 256
  %v3333 = vld [vmem:[%s3332] sm:$0xf]
  %v3334 = vld [vmem:[%s3332 + $0x4] sm:$0xf]
  %v3335 = vld [vmem:[%s3332 + $0x8] sm:$0xf]
  %v3336 = vld [vmem:[%s3332 + $0xc] sm:$0xf]
  %v3337 = vld [vmem:[%s3332 + $0x10] sm:$0xf]
  %v3338 = vld [vmem:[%s3332 + $0x14] sm:$0xf]
  %v3339 = vld [vmem:[%s3332 + $0x18] sm:$0xf]
  %v3340 = vld [vmem:[%s3332 + $0x1c] sm:$0xf]
  %v3349 = vunpack.c.l.b16 %v3333
  %v3350 = vunpack.c.l.b16 %v3334
  %v3351 = vunpack.c.l.b16 %v3335
  %v3352 = vunpack.c.l.b16 %v3336
  %v3353 = vunpack.c.l.b16 %v3337
  %v3354 = vunpack.c.l.b16 %v3338
  %v3355 = vunpack.c.l.b16 %v3339
  %v3356 = vunpack.c.l.b16 %v3340
  %v3357 = vpack.c.b16 %v3350, %v3349
  %v3358 = vpack.c.b16 %v3352, %v3351
  %v3359 = vpack.c.b16 %v3354, %v3353
  %v3360 = vpack.c.b16 %v3356, %v3355
  %v3366 = vsel %vm2753, %v2709, 0
  %3368 = vmatprep.subr.bf16.mxu0 0
  %3369 = vmatpush1.bf16.msra.mxu0 0
  %3370 = vmatprep.subr.bf16.mxu0 0
  %3371 = vmatpush1.bf16.msra.mxu0 0
  %3372 = vmatprep.subr.bf16.mxu0 0
  %3373 = vmatpush1.bf16.msra.mxu0 0
  %3374 = vmatprep.subr.bf16.mxu0 0
  %3375 = vmatpush1.bf16.msra.mxu0 0
  %3376 = vmatprep.subr.bf16.mxu0 0
  %3377 = vmatpush1.bf16.msra.mxu0 %v3360
  %3378 = vmatprep.subr.bf16.mxu0 0
  %3379 = vmatpush1.bf16.msra.mxu0 %v3359
  %3380 = vmatprep.subr.bf16.mxu0 0
  %3381 = vmatpush1.bf16.msra.mxu0 %v3358
  %3382 = vmatprep.subr.bf16.mxu0 0
  %3383 = vmatpush1.bf16.msra.mxu0 %v3357
  %3384 = vmatprep.subr.bf16.mxu0 0
  %3385 = vmatpush2.bf16.msra.mxu0 0
  %3386 = vmatprep.subr.bf16.mxu0 0
  %3387 = vmatpush2.bf16.msra.mxu0 0
  %3388 = vmatprep.subr.bf16.mxu0 0
  %3389 = vmatpush2.bf16.msra.mxu0 0
  %3390 = vmatprep.subr.bf16.mxu0 0
  %3391 = vmatpush2.bf16.msra.mxu0 0
  %3392 = vmatprep.subr.bf16.mxu0 0
  %3393 = vmatpush2.bf16.msra.mxu0 0
  %3394 = vmatprep.subr.bf16.mxu0 0
  %3395 = vmatpush2.bf16.msra.mxu0 0
  %3396 = vmatprep.subr.bf16.mxu0 0
  %3397 = vmatpush2.bf16.msra.mxu0 0
  %3398 = vmatprep.subr.bf16.mxu0 0
  %3399 = vmatpush2.bf16.msra.mxu0 0
  %3400 = vmatprep.mubr.bf16.mxu0 0
  %3401 = vmatmul.mubr.bf16.gmra.mxu0 %v3366
  %v3402 = vpop.f32.mrf.mxu0
  %v3403 = vadd.f32 0.0, %v3402
  %v3404 = vpop.f32.mrf.mxu0
  %v3405 = vpop.f32.mrf.mxu0
  %v3406 = vpop.f32.mrf.mxu0
  %3407 = vdwg.mxu0
  %v3408 = vadd.f32 %v3331, %v3403
  %v3409 = vld [vmem:[%s8] sm:$0x1]
  %v3411 = vlaneseq
  %v3412 = vshrl.u32 %v3411, 7
  %v3413 = vsub.s32 0, %v3412
  %v3414 = vrot.slane %v3409, %v3413
  %v3416 = vadd.f32 %v3408, %v3414
  %v3417 = vmax.f32 %v3416, 0.0
  %v3418 = vpack.c.bf16 %v3417, %v3417
  %v3419 = vld [vmem:[%s9] sm:$0xff]
  %v3420 = vld [vmem:[%s9 + $0x8] sm:$0xff]
  %v3421 = vld [vmem:[%s9 + $0x10] sm:$0xff]
  %v3422 = vld [vmem:[%s9 + $0x18] sm:$0xff]
  %v3423 = vld [vmem:[%s9 + $0x20] sm:$0xff]
  %v3424 = vld [vmem:[%s9 + $0x28] sm:$0xff]
  %v3425 = vld [vmem:[%s9 + $0x30] sm:$0xff]
  %v3426 = vld [vmem:[%s9 + $0x38] sm:$0xff]
  %v3427 = vld [vmem:[%s9 + $0x40] sm:$0xff]
  %v3428 = vld [vmem:[%s9 + $0x48] sm:$0xff]
  %v3429 = vld [vmem:[%s9 + $0x50] sm:$0xff]
  %v3430 = vld [vmem:[%s9 + $0x58] sm:$0xff]
  %v3431 = vld [vmem:[%s9 + $0x60] sm:$0xff]
  %v3432 = vld [vmem:[%s9 + $0x68] sm:$0xff]
  %v3433 = vld [vmem:[%s9 + $0x70] sm:$0xff]
  %v3434 = vld [vmem:[%s9 + $0x78] sm:$0xff]
  %v3435 = vld [vmem:[%s9 + $0x80] sm:$0xff]
  %v3436 = vld [vmem:[%s9 + $0x88] sm:$0xff]
  %v3437 = vld [vmem:[%s9 + $0x90] sm:$0xff]
  %v3438 = vld [vmem:[%s9 + $0x98] sm:$0xff]
  %v3439 = vld [vmem:[%s9 + $0xa0] sm:$0xff]
  %v3440 = vld [vmem:[%s9 + $0xa8] sm:$0xff]
  %v3441 = vld [vmem:[%s9 + $0xb0] sm:$0xff]
  %v3442 = vld [vmem:[%s9 + $0xb8] sm:$0xff]
  %v3443 = vld [vmem:[%s9 + $0xc0] sm:$0xff]
  %v3444 = vld [vmem:[%s9 + $0xc8] sm:$0xff]
  %v3445 = vld [vmem:[%s9 + $0xd0] sm:$0xff]
  %v3446 = vld [vmem:[%s9 + $0xd8] sm:$0xff]
  %v3447 = vld [vmem:[%s9 + $0xe0] sm:$0xff]
  %v3448 = vld [vmem:[%s9 + $0xe8] sm:$0xff]
  %v3449 = vld [vmem:[%s9 + $0xf0] sm:$0xff]
  %v3450 = vld [vmem:[%s9 + $0xf8] sm:$0xff]
  %v3451 = vld [vmem:[%s9 + $0x100] sm:$0xff]
  %v3452 = vld [vmem:[%s9 + $0x108] sm:$0xff]
  %v3453 = vld [vmem:[%s9 + $0x110] sm:$0xff]
  %v3454 = vld [vmem:[%s9 + $0x118] sm:$0xff]
  %v3455 = vld [vmem:[%s9 + $0x120] sm:$0xff]
  %v3456 = vld [vmem:[%s9 + $0x128] sm:$0xff]
  %v3457 = vld [vmem:[%s9 + $0x130] sm:$0xff]
  %v3458 = vld [vmem:[%s9 + $0x138] sm:$0xff]
  %v3459 = vld [vmem:[%s9 + $0x140] sm:$0xff]
  %v3460 = vld [vmem:[%s9 + $0x148] sm:$0xff]
  %v3461 = vld [vmem:[%s9 + $0x150] sm:$0xff]
  %v3462 = vld [vmem:[%s9 + $0x158] sm:$0xff]
  %v3463 = vld [vmem:[%s9 + $0x160] sm:$0xff]
  %v3464 = vld [vmem:[%s9 + $0x168] sm:$0xff]
  %v3465 = vld [vmem:[%s9 + $0x170] sm:$0xff]
  %v3466 = vld [vmem:[%s9 + $0x178] sm:$0xff]
  %v3467 = vld [vmem:[%s9 + $0x180] sm:$0xff]
  %v3468 = vld [vmem:[%s9 + $0x188] sm:$0xff]
  %v3469 = vld [vmem:[%s9 + $0x190] sm:$0xff]
  %v3470 = vld [vmem:[%s9 + $0x198] sm:$0xff]
  %v3471 = vld [vmem:[%s9 + $0x1a0] sm:$0xff]
  %v3472 = vld [vmem:[%s9 + $0x1a8] sm:$0xff]
  %v3473 = vld [vmem:[%s9 + $0x1b0] sm:$0xff]
  %v3474 = vld [vmem:[%s9 + $0x1b8] sm:$0xff]
  %v3475 = vld [vmem:[%s9 + $0x1c0] sm:$0xff]
  %v3476 = vld [vmem:[%s9 + $0x1c8] sm:$0xff]
  %v3477 = vld [vmem:[%s9 + $0x1d0] sm:$0xff]
  %v3478 = vld [vmem:[%s9 + $0x1d8] sm:$0xff]
  %v3479 = vld [vmem:[%s9 + $0x1e0] sm:$0xff]
  %v3480 = vld [vmem:[%s9 + $0x1e8] sm:$0xff]
  %v3481 = vld [vmem:[%s9 + $0x1f0] sm:$0xff]
  %v3482 = vld [vmem:[%s9 + $0x1f8] sm:$0xff]
  %v3484 = vrot.slane %v3418, 1
  %v3517 = vunpack.c.l.b16 %v3451
  %v3518 = vunpack.c.h.b16 %v3451
  %v3519 = vunpack.c.l.b16 %v3452
  %v3520 = vunpack.c.h.b16 %v3452
  %v3521 = vunpack.c.l.b16 %v3453
  %v3522 = vunpack.c.h.b16 %v3453
  %v3523 = vunpack.c.l.b16 %v3454
  %v3524 = vunpack.c.h.b16 %v3454
  %v3525 = vunpack.c.l.b16 %v3455
  %v3526 = vunpack.c.h.b16 %v3455
  %v3527 = vunpack.c.l.b16 %v3456
  %v3528 = vunpack.c.h.b16 %v3456
  %v3529 = vunpack.c.l.b16 %v3457
  %v3530 = vunpack.c.h.b16 %v3457
  %v3531 = vunpack.c.l.b16 %v3458
  %v3532 = vunpack.c.h.b16 %v3458
  %v3533 = vunpack.c.l.b16 %v3459
  %v3534 = vunpack.c.h.b16 %v3459
  %v3535 = vunpack.c.l.b16 %v3460
  %v3536 = vunpack.c.h.b16 %v3460
  %v3537 = vunpack.c.l.b16 %v3461
  %v3538 = vunpack.c.h.b16 %v3461
  %v3539 = vunpack.c.l.b16 %v3462
  %v3540 = vunpack.c.h.b16 %v3462
  %v3541 = vunpack.c.l.b16 %v3463
  %v3542 = vunpack.c.h.b16 %v3463
  %v3543 = vunpack.c.l.b16 %v3464
  %v3544 = vunpack.c.h.b16 %v3464
  %v3545 = vunpack.c.l.b16 %v3465
  %v3546 = vunpack.c.h.b16 %v3465
  %v3547 = vunpack.c.l.b16 %v3466
  %v3548 = vunpack.c.h.b16 %v3466
  %v3549 = vunpack.c.l.b16 %v3467
  %v3550 = vunpack.c.h.b16 %v3467
  %v3551 = vunpack.c.l.b16 %v3468
  %v3552 = vunpack.c.h.b16 %v3468
  %v3553 = vunpack.c.l.b16 %v3469
  %v3554 = vunpack.c.h.b16 %v3469
  %v3555 = vunpack.c.l.b16 %v3470
  %v3556 = vunpack.c.h.b16 %v3470
  %v3557 = vunpack.c.l.b16 %v3471
  %v3558 = vunpack.c.h.b16 %v3471
  %v3559 = vunpack.c.l.b16 %v3472
  %v3560 = vunpack.c.h.b16 %v3472
  %v3561 = vunpack.c.l.b16 %v3473
  %v3562 = vunpack.c.h.b16 %v3473
  %v3563 = vunpack.c.l.b16 %v3474
  %v3564 = vunpack.c.h.b16 %v3474
  %v3565 = vunpack.c.l.b16 %v3475
  %v3566 = vunpack.c.h.b16 %v3475
  %v3567 = vunpack.c.l.b16 %v3476
  %v3568 = vunpack.c.h.b16 %v3476
  %v3569 = vunpack.c.l.b16 %v3477
  %v3570 = vunpack.c.h.b16 %v3477
  %v3571 = vunpack.c.l.b16 %v3478
  %v3572 = vunpack.c.h.b16 %v3478
  %v3573 = vunpack.c.l.b16 %v3479
  %v3574 = vunpack.c.h.b16 %v3479
  %v3575 = vunpack.c.l.b16 %v3480
  %v3576 = vunpack.c.h.b16 %v3480
  %v3577 = vunpack.c.l.b16 %v3481
  %v3578 = vunpack.c.h.b16 %v3481
  %v3579 = vunpack.c.l.b16 %v3482
  %v3580 = vunpack.c.h.b16 %v3482
  %v3581 = vpack.c.b16 %v3525, %v3517
  %v3582 = vpack.c.b16 %v3526, %v3518
  %v3583 = vpack.c.b16 %v3527, %v3519
  %v3584 = vpack.c.b16 %v3528, %v3520
  %v3585 = vpack.c.b16 %v3529, %v3521
  %v3586 = vpack.c.b16 %v3530, %v3522
  %v3587 = vpack.c.b16 %v3531, %v3523
  %v3588 = vpack.c.b16 %v3532, %v3524
  %v3589 = vpack.c.b16 %v3541, %v3533
  %v3590 = vpack.c.b16 %v3542, %v3534
  %v3591 = vpack.c.b16 %v3543, %v3535
  %v3592 = vpack.c.b16 %v3544, %v3536
  %v3593 = vpack.c.b16 %v3545, %v3537
  %v3594 = vpack.c.b16 %v3546, %v3538
  %v3595 = vpack.c.b16 %v3547, %v3539
  %v3596 = vpack.c.b16 %v3548, %v3540
  %v3597 = vpack.c.b16 %v3557, %v3549
  %v3598 = vpack.c.b16 %v3558, %v3550
  %v3599 = vpack.c.b16 %v3559, %v3551
  %v3600 = vpack.c.b16 %v3560, %v3552
  %v3601 = vpack.c.b16 %v3561, %v3553
  %v3602 = vpack.c.b16 %v3562, %v3554
  %v3603 = vpack.c.b16 %v3563, %v3555
  %v3604 = vpack.c.b16 %v3564, %v3556
  %v3605 = vpack.c.b16 %v3573, %v3565
  %v3606 = vpack.c.b16 %v3574, %v3566
  %v3607 = vpack.c.b16 %v3575, %v3567
  %v3608 = vpack.c.b16 %v3576, %v3568
  %v3609 = vpack.c.b16 %v3577, %v3569
  %v3610 = vpack.c.b16 %v3578, %v3570
  %v3611 = vpack.c.b16 %v3579, %v3571
  %v3612 = vpack.c.b16 %v3580, %v3572
  %v3646 = vsel %vm2753, %v3484, 0
  %3648 = vmatprep.subr.bf16.mxu0 0
  %3649 = vmatpush1.bf16.msra.mxu0 0
  %3650 = vmatprep.subr.bf16.mxu0 0
  %3651 = vmatpush1.bf16.msra.mxu0 0
  %3652 = vmatprep.subr.bf16.mxu0 0
  %3653 = vmatpush1.bf16.msra.mxu0 0
  %3654 = vmatprep.subr.bf16.mxu0 0
  %3655 = vmatpush1.bf16.msra.mxu0 0
  %3656 = vmatprep.subr.bf16.mxu0 %v3606
  %3657 = vmatpush1.bf16.msra.mxu0 %v3605
  %3658 = vmatprep.subr.bf16.mxu0 %v3598
  %3659 = vmatpush1.bf16.msra.mxu0 %v3597
  %3660 = vmatprep.subr.bf16.mxu0 %v3590
  %3661 = vmatpush1.bf16.msra.mxu0 %v3589
  %3662 = vmatprep.subr.bf16.mxu0 %v3582
  %3663 = vmatpush1.bf16.msra.mxu0 %v3581
  %3664 = vmatprep.subr.bf16.mxu0 0
  %3665 = vmatpush2.bf16.msra.mxu0 0
  %3666 = vmatprep.subr.bf16.mxu0 0
  %3667 = vmatpush2.bf16.msra.mxu0 0
  %3668 = vmatprep.subr.bf16.mxu0 0
  %3669 = vmatpush2.bf16.msra.mxu0 0
  %3670 = vmatprep.subr.bf16.mxu0 0
  %3671 = vmatpush2.bf16.msra.mxu0 0
  %3672 = vmatprep.subr.bf16.mxu0 0
  %3673 = vmatpush2.bf16.msra.mxu0 0
  %3674 = vmatprep.subr.bf16.mxu0 0
  %3675 = vmatpush2.bf16.msra.mxu0 0
  %3676 = vmatprep.subr.bf16.mxu0 0
  %3677 = vmatpush2.bf16.msra.mxu0 0
  %3678 = vmatprep.subr.bf16.mxu0 0
  %3679 = vmatpush2.bf16.msra.mxu0 0
  %3680 = vmatprep.mubr.bf16.mxu0 0
  %3681 = vmatmul.mubr.bf16.gmra.mxu0 %v3646
  %v3682 = vpop.f32.mrf.mxu0
  %v3683 = vadd.f32 0.0, %v3682
  %v3684 = vpop.f32.mrf.mxu0
  %v3685 = vadd.f32 0.0, %v3684
  %v3686 = vpop.f32.mrf.mxu0
  %v3687 = vpop.f32.mrf.mxu0
  %3688 = vdwg.mxu0
  %3689 = vmatprep.subr.bf16.mxu0 0
  %3690 = vmatpush1.bf16.msra.mxu0 0
  %3691 = vmatprep.subr.bf16.mxu0 0
  %3692 = vmatpush1.bf16.msra.mxu0 0
  %3693 = vmatprep.subr.bf16.mxu0 0
  %3694 = vmatpush1.bf16.msra.mxu0 0
  %3695 = vmatprep.subr.bf16.mxu0 0
  %3696 = vmatpush1.bf16.msra.mxu0 0
  %3697 = vmatprep.subr.bf16.mxu0 %v3608
  %3698 = vmatpush1.bf16.msra.mxu0 %v3607
  %3699 = vmatprep.subr.bf16.mxu0 %v3600
  %3700 = vmatpush1.bf16.msra.mxu0 %v3599
  %3701 = vmatprep.subr.bf16.mxu0 %v3592
  %3702 = vmatpush1.bf16.msra.mxu0 %v3591
  %3703 = vmatprep.subr.bf16.mxu0 %v3584
  %3704 = vmatpush1.bf16.msra.mxu0 %v3583
  %3705 = vmatprep.subr.bf16.mxu0 0
  %3706 = vmatpush2.bf16.msra.mxu0 0
  %3707 = vmatprep.subr.bf16.mxu0 0
  %3708 = vmatpush2.bf16.msra.mxu0 0
  %3709 = vmatprep.subr.bf16.mxu0 0
  %3710 = vmatpush2.bf16.msra.mxu0 0
  %3711 = vmatprep.subr.bf16.mxu0 0
  %3712 = vmatpush2.bf16.msra.mxu0 0
  %3713 = vmatprep.subr.bf16.mxu0 0
  %3714 = vmatpush2.bf16.msra.mxu0 0
  %3715 = vmatprep.subr.bf16.mxu0 0
  %3716 = vmatpush2.bf16.msra.mxu0 0
  %3717 = vmatprep.subr.bf16.mxu0 0
  %3718 = vmatpush2.bf16.msra.mxu0 0
  %3719 = vmatprep.subr.bf16.mxu0 0
  %3720 = vmatpush2.bf16.msra.mxu0 0
  %3721 = vmatprep.mubr.bf16.mxu0 0
  %3722 = vmatmul.mubr.bf16.gmra.mxu0 %v3646
  %v3723 = vpop.f32.mrf.mxu0
  %v3724 = vadd.f32 0.0, %v3723
  %v3725 = vpop.f32.mrf.mxu0
  %v3726 = vadd.f32 0.0, %v3725
  %v3727 = vpop.f32.mrf.mxu0
  %v3728 = vpop.f32.mrf.mxu0
  %3729 = vdwg.mxu0
  %3730 = vmatprep.subr.bf16.mxu0 0
  %3731 = vmatpush1.bf16.msra.mxu0 0
  %3732 = vmatprep.subr.bf16.mxu0 0
  %3733 = vmatpush1.bf16.msra.mxu0 0
  %3734 = vmatprep.subr.bf16.mxu0 0
  %3735 = vmatpush1.bf16.msra.mxu0 0
  %3736 = vmatprep.subr.bf16.mxu0 0
  %3737 = vmatpush1.bf16.msra.mxu0 0
  %3738 = vmatprep.subr.bf16.mxu0 %v3610
  %3739 = vmatpush1.bf16.msra.mxu0 %v3609
  %3740 = vmatprep.subr.bf16.mxu0 %v3602
  %3741 = vmatpush1.bf16.msra.mxu0 %v3601
  %3742 = vmatprep.subr.bf16.mxu0 %v3594
  %3743 = vmatpush1.bf16.msra.mxu0 %v3593
  %3744 = vmatprep.subr.bf16.mxu0 %v3586
  %3745 = vmatpush1.bf16.msra.mxu0 %v3585
  %3746 = vmatprep.subr.bf16.mxu0 0
  %3747 = vmatpush2.bf16.msra.mxu0 0
  %3748 = vmatprep.subr.bf16.mxu0 0
  %3749 = vmatpush2.bf16.msra.mxu0 0
  %3750 = vmatprep.subr.bf16.mxu0 0
  %3751 = vmatpush2.bf16.msra.mxu0 0
  %3752 = vmatprep.subr.bf16.mxu0 0
  %3753 = vmatpush2.bf16.msra.mxu0 0
  %3754 = vmatprep.subr.bf16.mxu0 0
  %3755 = vmatpush2.bf16.msra.mxu0 0
  %3756 = vmatprep.subr.bf16.mxu0 0
  %3757 = vmatpush2.bf16.msra.mxu0 0
  %3758 = vmatprep.subr.bf16.mxu0 0
  %3759 = vmatpush2.bf16.msra.mxu0 0
  %3760 = vmatprep.subr.bf16.mxu0 0
  %3761 = vmatpush2.bf16.msra.mxu0 0
  %3762 = vmatprep.mubr.bf16.mxu0 0
  %3763 = vmatmul.mubr.bf16.gmra.mxu0 %v3646
  %v3764 = vpop.f32.mrf.mxu0
  %v3765 = vadd.f32 0.0, %v3764
  %v3766 = vpop.f32.mrf.mxu0
  %v3767 = vadd.f32 0.0, %v3766
  %v3768 = vpop.f32.mrf.mxu0
  %v3769 = vpop.f32.mrf.mxu0
  %3770 = vdwg.mxu0
  %3771 = vmatprep.subr.bf16.mxu0 0
  %3772 = vmatpush1.bf16.msra.mxu0 0
  %3773 = vmatprep.subr.bf16.mxu0 0
  %3774 = vmatpush1.bf16.msra.mxu0 0
  %3775 = vmatprep.subr.bf16.mxu0 0
  %3776 = vmatpush1.bf16.msra.mxu0 0
  %3777 = vmatprep.subr.bf16.mxu0 0
  %3778 = vmatpush1.bf16.msra.mxu0 0
  %3779 = vmatprep.subr.bf16.mxu0 %v3612
  %3780 = vmatpush1.bf16.msra.mxu0 %v3611
  %3781 = vmatprep.subr.bf16.mxu0 %v3604
  %3782 = vmatpush1.bf16.msra.mxu0 %v3603
  %3783 = vmatprep.subr.bf16.mxu0 %v3596
  %3784 = vmatpush1.bf16.msra.mxu0 %v3595
  %3785 = vmatprep.subr.bf16.mxu0 %v3588
  %3786 = vmatpush1.bf16.msra.mxu0 %v3587
  %3787 = vmatprep.subr.bf16.mxu0 0
  %3788 = vmatpush2.bf16.msra.mxu0 0
  %3789 = vmatprep.subr.bf16.mxu0 0
  %3790 = vmatpush2.bf16.msra.mxu0 0
  %3791 = vmatprep.subr.bf16.mxu0 0
  %3792 = vmatpush2.bf16.msra.mxu0 0
  %3793 = vmatprep.subr.bf16.mxu0 0
  %3794 = vmatpush2.bf16.msra.mxu0 0
  %3795 = vmatprep.subr.bf16.mxu0 0
  %3796 = vmatpush2.bf16.msra.mxu0 0
  %3797 = vmatprep.subr.bf16.mxu0 0
  %3798 = vmatpush2.bf16.msra.mxu0 0
  %3799 = vmatprep.subr.bf16.mxu0 0
  %3800 = vmatpush2.bf16.msra.mxu0 0
  %3801 = vmatprep.subr.bf16.mxu0 0
  %3802 = vmatpush2.bf16.msra.mxu0 0
  %3803 = vmatprep.mubr.bf16.mxu0 0
  %3804 = vmatmul.mubr.bf16.gmra.mxu0 %v3646
  %v3805 = vpop.f32.mrf.mxu0
  %v3806 = vadd.f32 0.0, %v3805
  %v3807 = vpop.f32.mrf.mxu0
  %v3808 = vadd.f32 0.0, %v3807
  %v3809 = vpop.f32.mrf.mxu0
  %v3810 = vpop.f32.mrf.mxu0
  %3811 = vdwg.mxu0
  %v3844 = vunpack.c.l.b16 %v3419
  %v3845 = vunpack.c.h.b16 %v3419
  %v3846 = vunpack.c.l.b16 %v3420
  %v3847 = vunpack.c.h.b16 %v3420
  %v3848 = vunpack.c.l.b16 %v3421
  %v3849 = vunpack.c.h.b16 %v3421
  %v3850 = vunpack.c.l.b16 %v3422
  %v3851 = vunpack.c.h.b16 %v3422
  %v3852 = vunpack.c.l.b16 %v3423
  %v3853 = vunpack.c.h.b16 %v3423
  %v3854 = vunpack.c.l.b16 %v3424
  %v3855 = vunpack.c.h.b16 %v3424
  %v3856 = vunpack.c.l.b16 %v3425
  %v3857 = vunpack.c.h.b16 %v3425
  %v3858 = vunpack.c.l.b16 %v3426
  %v3859 = vunpack.c.h.b16 %v3426
  %v3860 = vunpack.c.l.b16 %v3427
  %v3861 = vunpack.c.h.b16 %v3427
  %v3862 = vunpack.c.l.b16 %v3428
  %v3863 = vunpack.c.h.b16 %v3428
  %v3864 = vunpack.c.l.b16 %v3429
  %v3865 = vunpack.c.h.b16 %v3429
  %v3866 = vunpack.c.l.b16 %v3430
  %v3867 = vunpack.c.h.b16 %v3430
  %v3868 = vunpack.c.l.b16 %v3431
  %v3869 = vunpack.c.h.b16 %v3431
  %v3870 = vunpack.c.l.b16 %v3432
  %v3871 = vunpack.c.h.b16 %v3432
  %v3872 = vunpack.c.l.b16 %v3433
  %v3873 = vunpack.c.h.b16 %v3433
  %v3874 = vunpack.c.l.b16 %v3434
  %v3875 = vunpack.c.h.b16 %v3434
  %v3876 = vunpack.c.l.b16 %v3435
  %v3877 = vunpack.c.h.b16 %v3435
  %v3878 = vunpack.c.l.b16 %v3436
  %v3879 = vunpack.c.h.b16 %v3436
  %v3880 = vunpack.c.l.b16 %v3437
  %v3881 = vunpack.c.h.b16 %v3437
  %v3882 = vunpack.c.l.b16 %v3438
  %v3883 = vunpack.c.h.b16 %v3438
  %v3884 = vunpack.c.l.b16 %v3439
  %v3885 = vunpack.c.h.b16 %v3439
  %v3886 = vunpack.c.l.b16 %v3440
  %v3887 = vunpack.c.h.b16 %v3440
  %v3888 = vunpack.c.l.b16 %v3441
  %v3889 = vunpack.c.h.b16 %v3441
  %v3890 = vunpack.c.l.b16 %v3442
  %v3891 = vunpack.c.h.b16 %v3442
  %v3892 = vunpack.c.l.b16 %v3443
  %v3893 = vunpack.c.h.b16 %v3443
  %v3894 = vunpack.c.l.b16 %v3444
  %v3895 = vunpack.c.h.b16 %v3444
  %v3896 = vunpack.c.l.b16 %v3445
  %v3897 = vunpack.c.h.b16 %v3445
  %v3898 = vunpack.c.l.b16 %v3446
  %v3899 = vunpack.c.h.b16 %v3446
  %v3900 = vunpack.c.l.b16 %v3447
  %v3901 = vunpack.c.h.b16 %v3447
  %v3902 = vunpack.c.l.b16 %v3448
  %v3903 = vunpack.c.h.b16 %v3448
  %v3904 = vunpack.c.l.b16 %v3449
  %v3905 = vunpack.c.h.b16 %v3449
  %v3906 = vunpack.c.l.b16 %v3450
  %v3907 = vunpack.c.h.b16 %v3450
  %v3908 = vpack.c.b16 %v3852, %v3844
  %v3909 = vpack.c.b16 %v3853, %v3845
  %v3910 = vpack.c.b16 %v3854, %v3846
  %v3911 = vpack.c.b16 %v3855, %v3847
  %v3912 = vpack.c.b16 %v3856, %v3848
  %v3913 = vpack.c.b16 %v3857, %v3849
  %v3914 = vpack.c.b16 %v3858, %v3850
  %v3915 = vpack.c.b16 %v3859, %v3851
  %v3916 = vpack.c.b16 %v3868, %v3860
  %v3917 = vpack.c.b16 %v3869, %v3861
  %v3918 = vpack.c.b16 %v3870, %v3862
  %v3919 = vpack.c.b16 %v3871, %v3863
  %v3920 = vpack.c.b16 %v3872, %v3864
  %v3921 = vpack.c.b16 %v3873, %v3865
  %v3922 = vpack.c.b16 %v3874, %v3866
  %v3923 = vpack.c.b16 %v3875, %v3867
  %v3924 = vpack.c.b16 %v3884, %v3876
  %v3925 = vpack.c.b16 %v3885, %v3877
  %v3926 = vpack.c.b16 %v3886, %v3878
  %v3927 = vpack.c.b16 %v3887, %v3879
  %v3928 = vpack.c.b16 %v3888, %v3880
  %v3929 = vpack.c.b16 %v3889, %v3881
  %v3930 = vpack.c.b16 %v3890, %v3882
  %v3931 = vpack.c.b16 %v3891, %v3883
  %v3932 = vpack.c.b16 %v3900, %v3892
  %v3933 = vpack.c.b16 %v3901, %v3893
  %v3934 = vpack.c.b16 %v3902, %v3894
  %v3935 = vpack.c.b16 %v3903, %v3895
  %v3936 = vpack.c.b16 %v3904, %v3896
  %v3937 = vpack.c.b16 %v3905, %v3897
  %v3938 = vpack.c.b16 %v3906, %v3898
  %v3939 = vpack.c.b16 %v3907, %v3899
  %v3973 = vsel %vm2753, %v3418, 0
  %3975 = vmatprep.subr.bf16.mxu0 0
  %3976 = vmatpush1.bf16.msra.mxu0 0
  %3977 = vmatprep.subr.bf16.mxu0 0
  %3978 = vmatpush1.bf16.msra.mxu0 0
  %3979 = vmatprep.subr.bf16.mxu0 0
  %3980 = vmatpush1.bf16.msra.mxu0 0
  %3981 = vmatprep.subr.bf16.mxu0 0
  %3982 = vmatpush1.bf16.msra.mxu0 0
  %3983 = vmatprep.subr.bf16.mxu0 %v3933
  %3984 = vmatpush1.bf16.msra.mxu0 %v3932
  %3985 = vmatprep.subr.bf16.mxu0 %v3925
  %3986 = vmatpush1.bf16.msra.mxu0 %v3924
  %3987 = vmatprep.subr.bf16.mxu0 %v3917
  %3988 = vmatpush1.bf16.msra.mxu0 %v3916
  %3989 = vmatprep.subr.bf16.mxu0 %v3909
  %3990 = vmatpush1.bf16.msra.mxu0 %v3908
  %3991 = vmatprep.subr.bf16.mxu0 0
  %3992 = vmatpush2.bf16.msra.mxu0 0
  %3993 = vmatprep.subr.bf16.mxu0 0
  %3994 = vmatpush2.bf16.msra.mxu0 0
  %3995 = vmatprep.subr.bf16.mxu0 0
  %3996 = vmatpush2.bf16.msra.mxu0 0
  %3997 = vmatprep.subr.bf16.mxu0 0
  %3998 = vmatpush2.bf16.msra.mxu0 0
  %3999 = vmatprep.subr.bf16.mxu0 0
  %4000 = vmatpush2.bf16.msra.mxu0 0
  %4001 = vmatprep.subr.bf16.mxu0 0
  %4002 = vmatpush2.bf16.msra.mxu0 0
  %4003 = vmatprep.subr.bf16.mxu0 0
  %4004 = vmatpush2.bf16.msra.mxu0 0
  %4005 = vmatprep.subr.bf16.mxu0 0
  %4006 = vmatpush2.bf16.msra.mxu0 0
  %4007 = vmatprep.mubr.bf16.mxu0 0
  %4008 = vmatmul.mubr.bf16.gmra.mxu0 %v3973
  %v4009 = vpop.f32.mrf.mxu0
  %v4010 = vadd.f32 %v3683, %v4009
  %v4011 = vpop.f32.mrf.mxu0
  %v4012 = vadd.f32 %v3685, %v4011
  %v4013 = vpop.f32.mrf.mxu0
  %v4014 = vpop.f32.mrf.mxu0
  %4015 = vdwg.mxu0
  %4016 = vmatprep.subr.bf16.mxu0 0
  %4017 = vmatpush1.bf16.msra.mxu0 0
  %4018 = vmatprep.subr.bf16.mxu0 0
  %4019 = vmatpush1.bf16.msra.mxu0 0
  %4020 = vmatprep.subr.bf16.mxu0 0
  %4021 = vmatpush1.bf16.msra.mxu0 0
  %4022 = vmatprep.subr.bf16.mxu0 0
  %4023 = vmatpush1.bf16.msra.mxu0 0
  %4024 = vmatprep.subr.bf16.mxu0 %v3935
  %4025 = vmatpush1.bf16.msra.mxu0 %v3934
  %4026 = vmatprep.subr.bf16.mxu0 %v3927
  %4027 = vmatpush1.bf16.msra.mxu0 %v3926
  %4028 = vmatprep.subr.bf16.mxu0 %v3919
  %4029 = vmatpush1.bf16.msra.mxu0 %v3918
  %4030 = vmatprep.subr.bf16.mxu0 %v3911
  %4031 = vmatpush1.bf16.msra.mxu0 %v3910
  %4032 = vmatprep.subr.bf16.mxu0 0
  %4033 = vmatpush2.bf16.msra.mxu0 0
  %4034 = vmatprep.subr.bf16.mxu0 0
  %4035 = vmatpush2.bf16.msra.mxu0 0
  %4036 = vmatprep.subr.bf16.mxu0 0
  %4037 = vmatpush2.bf16.msra.mxu0 0
  %4038 = vmatprep.subr.bf16.mxu0 0
  %4039 = vmatpush2.bf16.msra.mxu0 0
  %4040 = vmatprep.subr.bf16.mxu0 0
  %4041 = vmatpush2.bf16.msra.mxu0 0
  %4042 = vmatprep.subr.bf16.mxu0 0
  %4043 = vmatpush2.bf16.msra.mxu0 0
  %4044 = vmatprep.subr.bf16.mxu0 0
  %4045 = vmatpush2.bf16.msra.mxu0 0
  %4046 = vmatprep.subr.bf16.mxu0 0
  %4047 = vmatpush2.bf16.msra.mxu0 0
  %4048 = vmatprep.mubr.bf16.mxu0 0
  %4049 = vmatmul.mubr.bf16.gmra.mxu0 %v3973
  %v4050 = vpop.f32.mrf.mxu0
  %v4051 = vadd.f32 %v3724, %v4050
  %v4052 = vpop.f32.mrf.mxu0
  %v4053 = vadd.f32 %v3726, %v4052
  %v4054 = vpop.f32.mrf.mxu0
  %v4055 = vpop.f32.mrf.mxu0
  %4056 = vdwg.mxu0
  %4057 = vmatprep.subr.bf16.mxu0 0
  %4058 = vmatpush1.bf16.msra.mxu0 0
  %4059 = vmatprep.subr.bf16.mxu0 0
  %4060 = vmatpush1.bf16.msra.mxu0 0
  %4061 = vmatprep.subr.bf16.mxu0 0
  %4062 = vmatpush1.bf16.msra.mxu0 0
  %4063 = vmatprep.subr.bf16.mxu0 0
  %4064 = vmatpush1.bf16.msra.mxu0 0
  %4065 = vmatprep.subr.bf16.mxu0 %v3937
  %4066 = vmatpush1.bf16.msra.mxu0 %v3936
  %4067 = vmatprep.subr.bf16.mxu0 %v3929
  %4068 = vmatpush1.bf16.msra.mxu0 %v3928
  %4069 = vmatprep.subr.bf16.mxu0 %v3921
  %4070 = vmatpush1.bf16.msra.mxu0 %v3920
  %4071 = vmatprep.subr.bf16.mxu0 %v3913
  %4072 = vmatpush1.bf16.msra.mxu0 %v3912
  %4073 = vmatprep.subr.bf16.mxu0 0
  %4074 = vmatpush2.bf16.msra.mxu0 0
  %4075 = vmatprep.subr.bf16.mxu0 0
  %4076 = vmatpush2.bf16.msra.mxu0 0
  %4077 = vmatprep.subr.bf16.mxu0 0
  %4078 = vmatpush2.bf16.msra.mxu0 0
  %4079 = vmatprep.subr.bf16.mxu0 0
  %4080 = vmatpush2.bf16.msra.mxu0 0
  %4081 = vmatprep.subr.bf16.mxu0 0
  %4082 = vmatpush2.bf16.msra.mxu0 0
  %4083 = vmatprep.subr.bf16.mxu0 0
  %4084 = vmatpush2.bf16.msra.mxu0 0
  %4085 = vmatprep.subr.bf16.mxu0 0
  %4086 = vmatpush2.bf16.msra.mxu0 0
  %4087 = vmatprep.subr.bf16.mxu0 0
  %4088 = vmatpush2.bf16.msra.mxu0 0
  %4089 = vmatprep.mubr.bf16.mxu0 0
  %4090 = vmatmul.mubr.bf16.gmra.mxu0 %v3973
  %v4091 = vpop.f32.mrf.mxu0
  %v4092 = vadd.f32 %v3765, %v4091
  %v4093 = vpop.f32.mrf.mxu0
  %v4094 = vadd.f32 %v3767, %v4093
  %v4095 = vpop.f32.mrf.mxu0
  %v4096 = vpop.f32.mrf.mxu0
  %4097 = vdwg.mxu0
  %4098 = vmatprep.subr.bf16.mxu0 0
  %4099 = vmatpush1.bf16.msra.mxu0 0
  %4100 = vmatprep.subr.bf16.mxu0 0
  %4101 = vmatpush1.bf16.msra.mxu0 0
  %4102 = vmatprep.subr.bf16.mxu0 0
  %4103 = vmatpush1.bf16.msra.mxu0 0
  %4104 = vmatprep.subr.bf16.mxu0 0
  %4105 = vmatpush1.bf16.msra.mxu0 0
  %4106 = vmatprep.subr.bf16.mxu0 %v3939
  %4107 = vmatpush1.bf16.msra.mxu0 %v3938
  %4108 = vmatprep.subr.bf16.mxu0 %v3931
  %4109 = vmatpush1.bf16.msra.mxu0 %v3930
  %4110 = vmatprep.subr.bf16.mxu0 %v3923
  %4111 = vmatpush1.bf16.msra.mxu0 %v3922
  %4112 = vmatprep.subr.bf16.mxu0 %v3915
  %4113 = vmatpush1.bf16.msra.mxu0 %v3914
  %4114 = vmatprep.subr.bf16.mxu0 0
  %4115 = vmatpush2.bf16.msra.mxu0 0
  %4116 = vmatprep.subr.bf16.mxu0 0
  %4117 = vmatpush2.bf16.msra.mxu0 0
  %4118 = vmatprep.subr.bf16.mxu0 0
  %4119 = vmatpush2.bf16.msra.mxu0 0
  %4120 = vmatprep.subr.bf16.mxu0 0
  %4121 = vmatpush2.bf16.msra.mxu0 0
  %4122 = vmatprep.subr.bf16.mxu0 0
  %4123 = vmatpush2.bf16.msra.mxu0 0
  %4124 = vmatprep.subr.bf16.mxu0 0
  %4125 = vmatpush2.bf16.msra.mxu0 0
  %4126 = vmatprep.subr.bf16.mxu0 0
  %4127 = vmatpush2.bf16.msra.mxu0 0
  %4128 = vmatprep.subr.bf16.mxu0 0
  %4129 = vmatpush2.bf16.msra.mxu0 0
  %4130 = vmatprep.mubr.bf16.mxu0 0
  %4131 = vmatmul.mubr.bf16.gmra.mxu0 %v3973
  %v4132 = vpop.f32.mrf.mxu0
  %v4133 = vadd.f32 %v3806, %v4132
  %v4134 = vpop.f32.mrf.mxu0
  %v4135 = vadd.f32 %v3808, %v4134
  %v4136 = vpop.f32.mrf.mxu0
  %v4137 = vpop.f32.mrf.mxu0
  %4138 = vdwg.mxu0
  %v4139 = vld [vmem:[%s9 + $0x200] sm:$0xff]
  %v4140 = vld [vmem:[%s9 + $0x208] sm:$0xff]
  %v4141 = vld [vmem:[%s9 + $0x210] sm:$0xff]
  %v4142 = vld [vmem:[%s9 + $0x218] sm:$0xff]
  %v4143 = vld [vmem:[%s9 + $0x220] sm:$0xff]
  %v4144 = vld [vmem:[%s9 + $0x228] sm:$0xff]
  %v4145 = vld [vmem:[%s9 + $0x230] sm:$0xff]
  %v4146 = vld [vmem:[%s9 + $0x238] sm:$0xff]
  %v4147 = vld [vmem:[%s9 + $0x240] sm:$0xff]
  %v4148 = vld [vmem:[%s9 + $0x248] sm:$0xff]
  %v4149 = vld [vmem:[%s9 + $0x250] sm:$0xff]
  %v4150 = vld [vmem:[%s9 + $0x258] sm:$0xff]
  %v4151 = vld [vmem:[%s9 + $0x260] sm:$0xff]
  %v4152 = vld [vmem:[%s9 + $0x268] sm:$0xff]
  %v4153 = vld [vmem:[%s9 + $0x270] sm:$0xff]
  %v4154 = vld [vmem:[%s9 + $0x278] sm:$0xff]
  %v4155 = vld [vmem:[%s9 + $0x280] sm:$0xff]
  %v4156 = vld [vmem:[%s9 + $0x288] sm:$0xff]
  %v4157 = vld [vmem:[%s9 + $0x290] sm:$0xff]
  %v4158 = vld [vmem:[%s9 + $0x298] sm:$0xff]
  %v4159 = vld [vmem:[%s9 + $0x2a0] sm:$0xff]
  %v4160 = vld [vmem:[%s9 + $0x2a8] sm:$0xff]
  %v4161 = vld [vmem:[%s9 + $0x2b0] sm:$0xff]
  %v4162 = vld [vmem:[%s9 + $0x2b8] sm:$0xff]
  %v4163 = vld [vmem:[%s9 + $0x2c0] sm:$0xff]
  %v4164 = vld [vmem:[%s9 + $0x2c8] sm:$0xff]
  %v4165 = vld [vmem:[%s9 + $0x2d0] sm:$0xff]
  %v4166 = vld [vmem:[%s9 + $0x2d8] sm:$0xff]
  %v4167 = vld [vmem:[%s9 + $0x2e0] sm:$0xff]
  %v4168 = vld [vmem:[%s9 + $0x2e8] sm:$0xff]
  %v4169 = vld [vmem:[%s9 + $0x2f0] sm:$0xff]
  %v4170 = vld [vmem:[%s9 + $0x2f8] sm:$0xff]
  %v4171 = vrot.slane %v3418, 2
  %v4204 = vunpack.c.l.b16 %v4139
  %v4205 = vunpack.c.h.b16 %v4139
  %v4206 = vunpack.c.l.b16 %v4140
  %v4207 = vunpack.c.h.b16 %v4140
  %v4208 = vunpack.c.l.b16 %v4141
  %v4209 = vunpack.c.h.b16 %v4141
  %v4210 = vunpack.c.l.b16 %v4142
  %v4211 = vunpack.c.h.b16 %v4142
  %v4212 = vunpack.c.l.b16 %v4143
  %v4213 = vunpack.c.h.b16 %v4143
  %v4214 = vunpack.c.l.b16 %v4144
  %v4215 = vunpack.c.h.b16 %v4144
  %v4216 = vunpack.c.l.b16 %v4145
  %v4217 = vunpack.c.h.b16 %v4145
  %v4218 = vunpack.c.l.b16 %v4146
  %v4219 = vunpack.c.h.b16 %v4146
  %v4220 = vunpack.c.l.b16 %v4147
  %v4221 = vunpack.c.h.b16 %v4147
  %v4222 = vunpack.c.l.b16 %v4148
  %v4223 = vunpack.c.h.b16 %v4148
  %v4224 = vunpack.c.l.b16 %v4149
  %v4225 = vunpack.c.h.b16 %v4149
  %v4226 = vunpack.c.l.b16 %v4150
  %v4227 = vunpack.c.h.b16 %v4150
  %v4228 = vunpack.c.l.b16 %v4151
  %v4229 = vunpack.c.h.b16 %v4151
  %v4230 = vunpack.c.l.b16 %v4152
  %v4231 = vunpack.c.h.b16 %v4152
  %v4232 = vunpack.c.l.b16 %v4153
  %v4233 = vunpack.c.h.b16 %v4153
  %v4234 = vunpack.c.l.b16 %v4154
  %v4235 = vunpack.c.h.b16 %v4154
  %v4236 = vunpack.c.l.b16 %v4155
  %v4237 = vunpack.c.h.b16 %v4155
  %v4238 = vunpack.c.l.b16 %v4156
  %v4239 = vunpack.c.h.b16 %v4156
  %v4240 = vunpack.c.l.b16 %v4157
  %v4241 = vunpack.c.h.b16 %v4157
  %v4242 = vunpack.c.l.b16 %v4158
  %v4243 = vunpack.c.h.b16 %v4158
  %v4244 = vunpack.c.l.b16 %v4159
  %v4245 = vunpack.c.h.b16 %v4159
  %v4246 = vunpack.c.l.b16 %v4160
  %v4247 = vunpack.c.h.b16 %v4160
  %v4248 = vunpack.c.l.b16 %v4161
  %v4249 = vunpack.c.h.b16 %v4161
  %v4250 = vunpack.c.l.b16 %v4162
  %v4251 = vunpack.c.h.b16 %v4162
  %v4252 = vunpack.c.l.b16 %v4163
  %v4253 = vunpack.c.h.b16 %v4163
  %v4254 = vunpack.c.l.b16 %v4164
  %v4255 = vunpack.c.h.b16 %v4164
  %v4256 = vunpack.c.l.b16 %v4165
  %v4257 = vunpack.c.h.b16 %v4165
  %v4258 = vunpack.c.l.b16 %v4166
  %v4259 = vunpack.c.h.b16 %v4166
  %v4260 = vunpack.c.l.b16 %v4167
  %v4261 = vunpack.c.h.b16 %v4167
  %v4262 = vunpack.c.l.b16 %v4168
  %v4263 = vunpack.c.h.b16 %v4168
  %v4264 = vunpack.c.l.b16 %v4169
  %v4265 = vunpack.c.h.b16 %v4169
  %v4266 = vunpack.c.l.b16 %v4170
  %v4267 = vunpack.c.h.b16 %v4170
  %v4268 = vpack.c.b16 %v4212, %v4204
  %v4269 = vpack.c.b16 %v4213, %v4205
  %v4270 = vpack.c.b16 %v4214, %v4206
  %v4271 = vpack.c.b16 %v4215, %v4207
  %v4272 = vpack.c.b16 %v4216, %v4208
  %v4273 = vpack.c.b16 %v4217, %v4209
  %v4274 = vpack.c.b16 %v4218, %v4210
  %v4275 = vpack.c.b16 %v4219, %v4211
  %v4276 = vpack.c.b16 %v4228, %v4220
  %v4277 = vpack.c.b16 %v4229, %v4221
  %v4278 = vpack.c.b16 %v4230, %v4222
  %v4279 = vpack.c.b16 %v4231, %v4223
  %v4280 = vpack.c.b16 %v4232, %v4224
  %v4281 = vpack.c.b16 %v4233, %v4225
  %v4282 = vpack.c.b16 %v4234, %v4226
  %v4283 = vpack.c.b16 %v4235, %v4227
  %v4284 = vpack.c.b16 %v4244, %v4236
  %v4285 = vpack.c.b16 %v4245, %v4237
  %v4286 = vpack.c.b16 %v4246, %v4238
  %v4287 = vpack.c.b16 %v4247, %v4239
  %v4288 = vpack.c.b16 %v4248, %v4240
  %v4289 = vpack.c.b16 %v4249, %v4241
  %v4290 = vpack.c.b16 %v4250, %v4242
  %v4291 = vpack.c.b16 %v4251, %v4243
  %v4292 = vpack.c.b16 %v4260, %v4252
  %v4293 = vpack.c.b16 %v4261, %v4253
  %v4294 = vpack.c.b16 %v4262, %v4254
  %v4295 = vpack.c.b16 %v4263, %v4255
  %v4296 = vpack.c.b16 %v4264, %v4256
  %v4297 = vpack.c.b16 %v4265, %v4257
  %v4298 = vpack.c.b16 %v4266, %v4258
  %v4299 = vpack.c.b16 %v4267, %v4259
  %v4333 = vsel %vm2753, %v4171, 0
  %4335 = vmatprep.subr.bf16.mxu0 0
  %4336 = vmatpush1.bf16.msra.mxu0 0
  %4337 = vmatprep.subr.bf16.mxu0 0
  %4338 = vmatpush1.bf16.msra.mxu0 0
  %4339 = vmatprep.subr.bf16.mxu0 0
  %4340 = vmatpush1.bf16.msra.mxu0 0
  %4341 = vmatprep.subr.bf16.mxu0 0
  %4342 = vmatpush1.bf16.msra.mxu0 0
  %4343 = vmatprep.subr.bf16.mxu0 %v4293
  %4344 = vmatpush1.bf16.msra.mxu0 %v4292
  %4345 = vmatprep.subr.bf16.mxu0 %v4285
  %4346 = vmatpush1.bf16.msra.mxu0 %v4284
  %4347 = vmatprep.subr.bf16.mxu0 %v4277
  %4348 = vmatpush1.bf16.msra.mxu0 %v4276
  %4349 = vmatprep.subr.bf16.mxu0 %v4269
  %4350 = vmatpush1.bf16.msra.mxu0 %v4268
  %4351 = vmatprep.subr.bf16.mxu0 0
  %4352 = vmatpush2.bf16.msra.mxu0 0
  %4353 = vmatprep.subr.bf16.mxu0 0
  %4354 = vmatpush2.bf16.msra.mxu0 0
  %4355 = vmatprep.subr.bf16.mxu0 0
  %4356 = vmatpush2.bf16.msra.mxu0 0
  %4357 = vmatprep.subr.bf16.mxu0 0
  %4358 = vmatpush2.bf16.msra.mxu0 0
  %4359 = vmatprep.subr.bf16.mxu0 0
  %4360 = vmatpush2.bf16.msra.mxu0 0
  %4361 = vmatprep.subr.bf16.mxu0 0
  %4362 = vmatpush2.bf16.msra.mxu0 0
  %4363 = vmatprep.subr.bf16.mxu0 0
  %4364 = vmatpush2.bf16.msra.mxu0 0
  %4365 = vmatprep.subr.bf16.mxu0 0
  %4366 = vmatpush2.bf16.msra.mxu0 0
  %4367 = vmatprep.mubr.bf16.mxu0 0
  %4368 = vmatmul.mubr.bf16.gmra.mxu0 %v4333
  %v4369 = vpop.f32.mrf.mxu0
  %v4370 = vadd.f32 0.0, %v4369
  %v4371 = vpop.f32.mrf.mxu0
  %v4372 = vadd.f32 0.0, %v4371
  %v4373 = vpop.f32.mrf.mxu0
  %v4374 = vpop.f32.mrf.mxu0
  %4375 = vdwg.mxu0
  %4376 = vmatprep.subr.bf16.mxu0 0
  %4377 = vmatpush1.bf16.msra.mxu0 0
  %4378 = vmatprep.subr.bf16.mxu0 0
  %4379 = vmatpush1.bf16.msra.mxu0 0
  %4380 = vmatprep.subr.bf16.mxu0 0
  %4381 = vmatpush1.bf16.msra.mxu0 0
  %4382 = vmatprep.subr.bf16.mxu0 0
  %4383 = vmatpush1.bf16.msra.mxu0 0
  %4384 = vmatprep.subr.bf16.mxu0 %v4295
  %4385 = vmatpush1.bf16.msra.mxu0 %v4294
  %4386 = vmatprep.subr.bf16.mxu0 %v4287
  %4387 = vmatpush1.bf16.msra.mxu0 %v4286
  %4388 = vmatprep.subr.bf16.mxu0 %v4279
  %4389 = vmatpush1.bf16.msra.mxu0 %v4278
  %4390 = vmatprep.subr.bf16.mxu0 %v4271
  %4391 = vmatpush1.bf16.msra.mxu0 %v4270
  %4392 = vmatprep.subr.bf16.mxu0 0
  %4393 = vmatpush2.bf16.msra.mxu0 0
  %4394 = vmatprep.subr.bf16.mxu0 0
  %4395 = vmatpush2.bf16.msra.mxu0 0
  %4396 = vmatprep.subr.bf16.mxu0 0
  %4397 = vmatpush2.bf16.msra.mxu0 0
  %4398 = vmatprep.subr.bf16.mxu0 0
  %4399 = vmatpush2.bf16.msra.mxu0 0
  %4400 = vmatprep.subr.bf16.mxu0 0
  %4401 = vmatpush2.bf16.msra.mxu0 0
  %4402 = vmatprep.subr.bf16.mxu0 0
  %4403 = vmatpush2.bf16.msra.mxu0 0
  %4404 = vmatprep.subr.bf16.mxu0 0
  %4405 = vmatpush2.bf16.msra.mxu0 0
  %4406 = vmatprep.subr.bf16.mxu0 0
  %4407 = vmatpush2.bf16.msra.mxu0 0
  %4408 = vmatprep.mubr.bf16.mxu0 0
  %4409 = vmatmul.mubr.bf16.gmra.mxu0 %v4333
  %v4410 = vpop.f32.mrf.mxu0
  %v4411 = vadd.f32 0.0, %v4410
  %v4412 = vpop.f32.mrf.mxu0
  %v4413 = vadd.f32 0.0, %v4412
  %v4414 = vpop.f32.mrf.mxu0
  %v4415 = vpop.f32.mrf.mxu0
  %4416 = vdwg.mxu0
  %4417 = vmatprep.subr.bf16.mxu0 0
  %4418 = vmatpush1.bf16.msra.mxu0 0
  %4419 = vmatprep.subr.bf16.mxu0 0
  %4420 = vmatpush1.bf16.msra.mxu0 0
  %4421 = vmatprep.subr.bf16.mxu0 0
  %4422 = vmatpush1.bf16.msra.mxu0 0
  %4423 = vmatprep.subr.bf16.mxu0 0
  %4424 = vmatpush1.bf16.msra.mxu0 0
  %4425 = vmatprep.subr.bf16.mxu0 %v4297
  %4426 = vmatpush1.bf16.msra.mxu0 %v4296
  %4427 = vmatprep.subr.bf16.mxu0 %v4289
  %4428 = vmatpush1.bf16.msra.mxu0 %v4288
  %4429 = vmatprep.subr.bf16.mxu0 %v4281
  %4430 = vmatpush1.bf16.msra.mxu0 %v4280
  %4431 = vmatprep.subr.bf16.mxu0 %v4273
  %4432 = vmatpush1.bf16.msra.mxu0 %v4272
  %4433 = vmatprep.subr.bf16.mxu0 0
  %4434 = vmatpush2.bf16.msra.mxu0 0
  %4435 = vmatprep.subr.bf16.mxu0 0
  %4436 = vmatpush2.bf16.msra.mxu0 0
  %4437 = vmatprep.subr.bf16.mxu0 0
  %4438 = vmatpush2.bf16.msra.mxu0 0
  %4439 = vmatprep.subr.bf16.mxu0 0
  %4440 = vmatpush2.bf16.msra.mxu0 0
  %4441 = vmatprep.subr.bf16.mxu0 0
  %4442 = vmatpush2.bf16.msra.mxu0 0
  %4443 = vmatprep.subr.bf16.mxu0 0
  %4444 = vmatpush2.bf16.msra.mxu0 0
  %4445 = vmatprep.subr.bf16.mxu0 0
  %4446 = vmatpush2.bf16.msra.mxu0 0
  %4447 = vmatprep.subr.bf16.mxu0 0
  %4448 = vmatpush2.bf16.msra.mxu0 0
  %4449 = vmatprep.mubr.bf16.mxu0 0
  %4450 = vmatmul.mubr.bf16.gmra.mxu0 %v4333
  %v4451 = vpop.f32.mrf.mxu0
  %v4452 = vadd.f32 0.0, %v4451
  %v4453 = vpop.f32.mrf.mxu0
  %v4454 = vadd.f32 0.0, %v4453
  %v4455 = vpop.f32.mrf.mxu0
  %v4456 = vpop.f32.mrf.mxu0
  %4457 = vdwg.mxu0
  %4458 = vmatprep.subr.bf16.mxu0 0
  %4459 = vmatpush1.bf16.msra.mxu0 0
  %4460 = vmatprep.subr.bf16.mxu0 0
  %4461 = vmatpush1.bf16.msra.mxu0 0
  %4462 = vmatprep.subr.bf16.mxu0 0
  %4463 = vmatpush1.bf16.msra.mxu0 0
  %4464 = vmatprep.subr.bf16.mxu0 0
  %4465 = vmatpush1.bf16.msra.mxu0 0
  %4466 = vmatprep.subr.bf16.mxu0 %v4299
  %4467 = vmatpush1.bf16.msra.mxu0 %v4298
  %4468 = vmatprep.subr.bf16.mxu0 %v4291
  %4469 = vmatpush1.bf16.msra.mxu0 %v4290
  %4470 = vmatprep.subr.bf16.mxu0 %v4283
  %4471 = vmatpush1.bf16.msra.mxu0 %v4282
  %4472 = vmatprep.subr.bf16.mxu0 %v4275
  %4473 = vmatpush1.bf16.msra.mxu0 %v4274
  %4474 = vmatprep.subr.bf16.mxu0 0
  %4475 = vmatpush2.bf16.msra.mxu0 0
  %4476 = vmatprep.subr.bf16.mxu0 0
  %4477 = vmatpush2.bf16.msra.mxu0 0
  %4478 = vmatprep.subr.bf16.mxu0 0
  %4479 = vmatpush2.bf16.msra.mxu0 0
  %4480 = vmatprep.subr.bf16.mxu0 0
  %4481 = vmatpush2.bf16.msra.mxu0 0
  %4482 = vmatprep.subr.bf16.mxu0 0
  %4483 = vmatpush2.bf16.msra.mxu0 0
  %4484 = vmatprep.subr.bf16.mxu0 0
  %4485 = vmatpush2.bf16.msra.mxu0 0
  %4486 = vmatprep.subr.bf16.mxu0 0
  %4487 = vmatpush2.bf16.msra.mxu0 0
  %4488 = vmatprep.subr.bf16.mxu0 0
  %4489 = vmatpush2.bf16.msra.mxu0 0
  %4490 = vmatprep.mubr.bf16.mxu0 0
  %4491 = vmatmul.mubr.bf16.gmra.mxu0 %v4333
  %v4492 = vpop.f32.mrf.mxu0
  %v4493 = vadd.f32 0.0, %v4492
  %v4494 = vpop.f32.mrf.mxu0
  %v4495 = vadd.f32 0.0, %v4494
  %v4496 = vpop.f32.mrf.mxu0
  %v4497 = vpop.f32.mrf.mxu0
  %4498 = vdwg.mxu0
  %v4499 = vadd.f32 %v4010, %v4370
  %v4500 = vadd.f32 %v4012, %v4372
  %v4501 = vadd.f32 %v4051, %v4411
  %v4502 = vadd.f32 %v4053, %v4413
  %v4503 = vadd.f32 %v4092, %v4452
  %v4504 = vadd.f32 %v4094, %v4454
  %v4505 = vadd.f32 %v4133, %v4493
  %v4506 = vadd.f32 %v4135, %v4495
  %v4507 = vld [vmem:[%s9 + $0x300] sm:$0xff]
  %v4508 = vld [vmem:[%s9 + $0x308] sm:$0xff]
  %v4509 = vld [vmem:[%s9 + $0x310] sm:$0xff]
  %v4510 = vld [vmem:[%s9 + $0x318] sm:$0xff]
  %v4511 = vld [vmem:[%s9 + $0x320] sm:$0xff]
  %v4512 = vld [vmem:[%s9 + $0x328] sm:$0xff]
  %v4513 = vld [vmem:[%s9 + $0x330] sm:$0xff]
  %v4514 = vld [vmem:[%s9 + $0x338] sm:$0xff]
  %v4515 = vld [vmem:[%s9 + $0x340] sm:$0xff]
  %v4516 = vld [vmem:[%s9 + $0x348] sm:$0xff]
  %v4517 = vld [vmem:[%s9 + $0x350] sm:$0xff]
  %v4518 = vld [vmem:[%s9 + $0x358] sm:$0xff]
  %v4519 = vld [vmem:[%s9 + $0x360] sm:$0xff]
  %v4520 = vld [vmem:[%s9 + $0x368] sm:$0xff]
  %v4521 = vld [vmem:[%s9 + $0x370] sm:$0xff]
  %v4522 = vld [vmem:[%s9 + $0x378] sm:$0xff]
  %v4523 = vld [vmem:[%s9 + $0x380] sm:$0xff]
  %v4524 = vld [vmem:[%s9 + $0x388] sm:$0xff]
  %v4525 = vld [vmem:[%s9 + $0x390] sm:$0xff]
  %v4526 = vld [vmem:[%s9 + $0x398] sm:$0xff]
  %v4527 = vld [vmem:[%s9 + $0x3a0] sm:$0xff]
  %v4528 = vld [vmem:[%s9 + $0x3a8] sm:$0xff]
  %v4529 = vld [vmem:[%s9 + $0x3b0] sm:$0xff]
  %v4530 = vld [vmem:[%s9 + $0x3b8] sm:$0xff]
  %v4531 = vld [vmem:[%s9 + $0x3c0] sm:$0xff]
  %v4532 = vld [vmem:[%s9 + $0x3c8] sm:$0xff]
  %v4533 = vld [vmem:[%s9 + $0x3d0] sm:$0xff]
  %v4534 = vld [vmem:[%s9 + $0x3d8] sm:$0xff]
  %v4535 = vld [vmem:[%s9 + $0x3e0] sm:$0xff]
  %v4536 = vld [vmem:[%s9 + $0x3e8] sm:$0xff]
  %v4537 = vld [vmem:[%s9 + $0x3f0] sm:$0xff]
  %v4538 = vld [vmem:[%s9 + $0x3f8] sm:$0xff]
  %v4539 = vrot.slane %v3418, 3
  %v4572 = vunpack.c.l.b16 %v4507
  %v4573 = vunpack.c.h.b16 %v4507
  %v4574 = vunpack.c.l.b16 %v4508
  %v4575 = vunpack.c.h.b16 %v4508
  %v4576 = vunpack.c.l.b16 %v4509
  %v4577 = vunpack.c.h.b16 %v4509
  %v4578 = vunpack.c.l.b16 %v4510
  %v4579 = vunpack.c.h.b16 %v4510
  %v4580 = vunpack.c.l.b16 %v4511
  %v4581 = vunpack.c.h.b16 %v4511
  %v4582 = vunpack.c.l.b16 %v4512
  %v4583 = vunpack.c.h.b16 %v4512
  %v4584 = vunpack.c.l.b16 %v4513
  %v4585 = vunpack.c.h.b16 %v4513
  %v4586 = vunpack.c.l.b16 %v4514
  %v4587 = vunpack.c.h.b16 %v4514
  %v4588 = vunpack.c.l.b16 %v4515
  %v4589 = vunpack.c.h.b16 %v4515
  %v4590 = vunpack.c.l.b16 %v4516
  %v4591 = vunpack.c.h.b16 %v4516
  %v4592 = vunpack.c.l.b16 %v4517
  %v4593 = vunpack.c.h.b16 %v4517
  %v4594 = vunpack.c.l.b16 %v4518
  %v4595 = vunpack.c.h.b16 %v4518
  %v4596 = vunpack.c.l.b16 %v4519
  %v4597 = vunpack.c.h.b16 %v4519
  %v4598 = vunpack.c.l.b16 %v4520
  %v4599 = vunpack.c.h.b16 %v4520
  %v4600 = vunpack.c.l.b16 %v4521
  %v4601 = vunpack.c.h.b16 %v4521
  %v4602 = vunpack.c.l.b16 %v4522
  %v4603 = vunpack.c.h.b16 %v4522
  %v4604 = vunpack.c.l.b16 %v4523
  %v4605 = vunpack.c.h.b16 %v4523
  %v4606 = vunpack.c.l.b16 %v4524
  %v4607 = vunpack.c.h.b16 %v4524
  %v4608 = vunpack.c.l.b16 %v4525
  %v4609 = vunpack.c.h.b16 %v4525
  %v4610 = vunpack.c.l.b16 %v4526
  %v4611 = vunpack.c.h.b16 %v4526
  %v4612 = vunpack.c.l.b16 %v4527
  %v4613 = vunpack.c.h.b16 %v4527
  %v4614 = vunpack.c.l.b16 %v4528
  %v4615 = vunpack.c.h.b16 %v4528
  %v4616 = vunpack.c.l.b16 %v4529
  %v4617 = vunpack.c.h.b16 %v4529
  %v4618 = vunpack.c.l.b16 %v4530
  %v4619 = vunpack.c.h.b16 %v4530
  %v4620 = vunpack.c.l.b16 %v4531
  %v4621 = vunpack.c.h.b16 %v4531
  %v4622 = vunpack.c.l.b16 %v4532
  %v4623 = vunpack.c.h.b16 %v4532
  %v4624 = vunpack.c.l.b16 %v4533
  %v4625 = vunpack.c.h.b16 %v4533
  %v4626 = vunpack.c.l.b16 %v4534
  %v4627 = vunpack.c.h.b16 %v4534
  %v4628 = vunpack.c.l.b16 %v4535
  %v4629 = vunpack.c.h.b16 %v4535
  %v4630 = vunpack.c.l.b16 %v4536
  %v4631 = vunpack.c.h.b16 %v4536
  %v4632 = vunpack.c.l.b16 %v4537
  %v4633 = vunpack.c.h.b16 %v4537
  %v4634 = vunpack.c.l.b16 %v4538
  %v4635 = vunpack.c.h.b16 %v4538
  %v4636 = vpack.c.b16 %v4580, %v4572
  %v4637 = vpack.c.b16 %v4581, %v4573
  %v4638 = vpack.c.b16 %v4582, %v4574
  %v4639 = vpack.c.b16 %v4583, %v4575
  %v4640 = vpack.c.b16 %v4584, %v4576
  %v4641 = vpack.c.b16 %v4585, %v4577
  %v4642 = vpack.c.b16 %v4586, %v4578
  %v4643 = vpack.c.b16 %v4587, %v4579
  %v4644 = vpack.c.b16 %v4596, %v4588
  %v4645 = vpack.c.b16 %v4597, %v4589
  %v4646 = vpack.c.b16 %v4598, %v4590
  %v4647 = vpack.c.b16 %v4599, %v4591
  %v4648 = vpack.c.b16 %v4600, %v4592
  %v4649 = vpack.c.b16 %v4601, %v4593
  %v4650 = vpack.c.b16 %v4602, %v4594
  %v4651 = vpack.c.b16 %v4603, %v4595
  %v4652 = vpack.c.b16 %v4612, %v4604
  %v4653 = vpack.c.b16 %v4613, %v4605
  %v4654 = vpack.c.b16 %v4614, %v4606
  %v4655 = vpack.c.b16 %v4615, %v4607
  %v4656 = vpack.c.b16 %v4616, %v4608
  %v4657 = vpack.c.b16 %v4617, %v4609
  %v4658 = vpack.c.b16 %v4618, %v4610
  %v4659 = vpack.c.b16 %v4619, %v4611
  %v4660 = vpack.c.b16 %v4628, %v4620
  %v4661 = vpack.c.b16 %v4629, %v4621
  %v4662 = vpack.c.b16 %v4630, %v4622
  %v4663 = vpack.c.b16 %v4631, %v4623
  %v4664 = vpack.c.b16 %v4632, %v4624
  %v4665 = vpack.c.b16 %v4633, %v4625
  %v4666 = vpack.c.b16 %v4634, %v4626
  %v4667 = vpack.c.b16 %v4635, %v4627
  %v4701 = vsel %vm2753, %v4539, 0
  %4703 = vmatprep.subr.bf16.mxu0 0
  %4704 = vmatpush1.bf16.msra.mxu0 0
  %4705 = vmatprep.subr.bf16.mxu0 0
  %4706 = vmatpush1.bf16.msra.mxu0 0
  %4707 = vmatprep.subr.bf16.mxu0 0
  %4708 = vmatpush1.bf16.msra.mxu0 0
  %4709 = vmatprep.subr.bf16.mxu0 0
  %4710 = vmatpush1.bf16.msra.mxu0 0
  %4711 = vmatprep.subr.bf16.mxu0 %v4661
  %4712 = vmatpush1.bf16.msra.mxu0 %v4660
  %4713 = vmatprep.subr.bf16.mxu0 %v4653
  %4714 = vmatpush1.bf16.msra.mxu0 %v4652
  %4715 = vmatprep.subr.bf16.mxu0 %v4645
  %4716 = vmatpush1.bf16.msra.mxu0 %v4644
  %4717 = vmatprep.subr.bf16.mxu0 %v4637
  %4718 = vmatpush1.bf16.msra.mxu0 %v4636
  %4719 = vmatprep.subr.bf16.mxu0 0
  %4720 = vmatpush2.bf16.msra.mxu0 0
  %4721 = vmatprep.subr.bf16.mxu0 0
  %4722 = vmatpush2.bf16.msra.mxu0 0
  %4723 = vmatprep.subr.bf16.mxu0 0
  %4724 = vmatpush2.bf16.msra.mxu0 0
  %4725 = vmatprep.subr.bf16.mxu0 0
  %4726 = vmatpush2.bf16.msra.mxu0 0
  %4727 = vmatprep.subr.bf16.mxu0 0
  %4728 = vmatpush2.bf16.msra.mxu0 0
  %4729 = vmatprep.subr.bf16.mxu0 0
  %4730 = vmatpush2.bf16.msra.mxu0 0
  %4731 = vmatprep.subr.bf16.mxu0 0
  %4732 = vmatpush2.bf16.msra.mxu0 0
  %4733 = vmatprep.subr.bf16.mxu0 0
  %4734 = vmatpush2.bf16.msra.mxu0 0
  %4735 = vmatprep.mubr.bf16.mxu0 0
  %4736 = vmatmul.mubr.bf16.gmra.mxu0 %v4701
  %v4737 = vpop.f32.mrf.mxu0
  %v4738 = vadd.f32 0.0, %v4737
  %v4739 = vpop.f32.mrf.mxu0
  %v4740 = vadd.f32 0.0, %v4739
  %v4741 = vpop.f32.mrf.mxu0
  %v4742 = vpop.f32.mrf.mxu0
  %4743 = vdwg.mxu0
  %4744 = vmatprep.subr.bf16.mxu0 0
  %4745 = vmatpush1.bf16.msra.mxu0 0
  %4746 = vmatprep.subr.bf16.mxu0 0
  %4747 = vmatpush1.bf16.msra.mxu0 0
  %4748 = vmatprep.subr.bf16.mxu0 0
  %4749 = vmatpush1.bf16.msra.mxu0 0
  %4750 = vmatprep.subr.bf16.mxu0 0
  %4751 = vmatpush1.bf16.msra.mxu0 0
  %4752 = vmatprep.subr.bf16.mxu0 %v4663
  %4753 = vmatpush1.bf16.msra.mxu0 %v4662
  %4754 = vmatprep.subr.bf16.mxu0 %v4655
  %4755 = vmatpush1.bf16.msra.mxu0 %v4654
  %4756 = vmatprep.subr.bf16.mxu0 %v4647
  %4757 = vmatpush1.bf16.msra.mxu0 %v4646
  %4758 = vmatprep.subr.bf16.mxu0 %v4639
  %4759 = vmatpush1.bf16.msra.mxu0 %v4638
  %4760 = vmatprep.subr.bf16.mxu0 0
  %4761 = vmatpush2.bf16.msra.mxu0 0
  %4762 = vmatprep.subr.bf16.mxu0 0
  %4763 = vmatpush2.bf16.msra.mxu0 0
  %4764 = vmatprep.subr.bf16.mxu0 0
  %4765 = vmatpush2.bf16.msra.mxu0 0
  %4766 = vmatprep.subr.bf16.mxu0 0
  %4767 = vmatpush2.bf16.msra.mxu0 0
  %4768 = vmatprep.subr.bf16.mxu0 0
  %4769 = vmatpush2.bf16.msra.mxu0 0
  %4770 = vmatprep.subr.bf16.mxu0 0
  %4771 = vmatpush2.bf16.msra.mxu0 0
  %4772 = vmatprep.subr.bf16.mxu0 0
  %4773 = vmatpush2.bf16.msra.mxu0 0
  %4774 = vmatprep.subr.bf16.mxu0 0
  %4775 = vmatpush2.bf16.msra.mxu0 0
  %4776 = vmatprep.mubr.bf16.mxu0 0
  %4777 = vmatmul.mubr.bf16.gmra.mxu0 %v4701
  %v4778 = vpop.f32.mrf.mxu0
  %v4779 = vadd.f32 0.0, %v4778
  %v4780 = vpop.f32.mrf.mxu0
  %v4781 = vadd.f32 0.0, %v4780
  %v4782 = vpop.f32.mrf.mxu0
  %v4783 = vpop.f32.mrf.mxu0
  %4784 = vdwg.mxu0
  %4785 = vmatprep.subr.bf16.mxu0 0
  %4786 = vmatpush1.bf16.msra.mxu0 0
  %4787 = vmatprep.subr.bf16.mxu0 0
  %4788 = vmatpush1.bf16.msra.mxu0 0
  %4789 = vmatprep.subr.bf16.mxu0 0
  %4790 = vmatpush1.bf16.msra.mxu0 0
  %4791 = vmatprep.subr.bf16.mxu0 0
  %4792 = vmatpush1.bf16.msra.mxu0 0
  %4793 = vmatprep.subr.bf16.mxu0 %v4665
  %4794 = vmatpush1.bf16.msra.mxu0 %v4664
  %4795 = vmatprep.subr.bf16.mxu0 %v4657
  %4796 = vmatpush1.bf16.msra.mxu0 %v4656
  %4797 = vmatprep.subr.bf16.mxu0 %v4649
  %4798 = vmatpush1.bf16.msra.mxu0 %v4648
  %4799 = vmatprep.subr.bf16.mxu0 %v4641
  %4800 = vmatpush1.bf16.msra.mxu0 %v4640
  %4801 = vmatprep.subr.bf16.mxu0 0
  %4802 = vmatpush2.bf16.msra.mxu0 0
  %4803 = vmatprep.subr.bf16.mxu0 0
  %4804 = vmatpush2.bf16.msra.mxu0 0
  %4805 = vmatprep.subr.bf16.mxu0 0
  %4806 = vmatpush2.bf16.msra.mxu0 0
  %4807 = vmatprep.subr.bf16.mxu0 0
  %4808 = vmatpush2.bf16.msra.mxu0 0
  %4809 = vmatprep.subr.bf16.mxu0 0
  %4810 = vmatpush2.bf16.msra.mxu0 0
  %4811 = vmatprep.subr.bf16.mxu0 0
  %4812 = vmatpush2.bf16.msra.mxu0 0
  %4813 = vmatprep.subr.bf16.mxu0 0
  %4814 = vmatpush2.bf16.msra.mxu0 0
  %4815 = vmatprep.subr.bf16.mxu0 0
  %4816 = vmatpush2.bf16.msra.mxu0 0
  %4817 = vmatprep.mubr.bf16.mxu0 0
  %4818 = vmatmul.mubr.bf16.gmra.mxu0 %v4701
  %v4819 = vpop.f32.mrf.mxu0
  %v4820 = vadd.f32 0.0, %v4819
  %v4821 = vpop.f32.mrf.mxu0
  %v4822 = vadd.f32 0.0, %v4821
  %v4823 = vpop.f32.mrf.mxu0
  %v4824 = vpop.f32.mrf.mxu0
  %4825 = vdwg.mxu0
  %4826 = vmatprep.subr.bf16.mxu0 0
  %4827 = vmatpush1.bf16.msra.mxu0 0
  %4828 = vmatprep.subr.bf16.mxu0 0
  %4829 = vmatpush1.bf16.msra.mxu0 0
  %4830 = vmatprep.subr.bf16.mxu0 0
  %4831 = vmatpush1.bf16.msra.mxu0 0
  %4832 = vmatprep.subr.bf16.mxu0 0
  %4833 = vmatpush1.bf16.msra.mxu0 0
  %4834 = vmatprep.subr.bf16.mxu0 %v4667
  %4835 = vmatpush1.bf16.msra.mxu0 %v4666
  %4836 = vmatprep.subr.bf16.mxu0 %v4659
  %4837 = vmatpush1.bf16.msra.mxu0 %v4658
  %4838 = vmatprep.subr.bf16.mxu0 %v4651
  %4839 = vmatpush1.bf16.msra.mxu0 %v4650
  %4840 = vmatprep.subr.bf16.mxu0 %v4643
  %4841 = vmatpush1.bf16.msra.mxu0 %v4642
  %4842 = vmatprep.subr.bf16.mxu0 0
  %4843 = vmatpush2.bf16.msra.mxu0 0
  %4844 = vmatprep.subr.bf16.mxu0 0
  %4845 = vmatpush2.bf16.msra.mxu0 0
  %4846 = vmatprep.subr.bf16.mxu0 0
  %4847 = vmatpush2.bf16.msra.mxu0 0
  %4848 = vmatprep.subr.bf16.mxu0 0
  %4849 = vmatpush2.bf16.msra.mxu0 0
  %4850 = vmatprep.subr.bf16.mxu0 0
  %4851 = vmatpush2.bf16.msra.mxu0 0
  %4852 = vmatprep.subr.bf16.mxu0 0
  %4853 = vmatpush2.bf16.msra.mxu0 0
  %4854 = vmatprep.subr.bf16.mxu0 0
  %4855 = vmatpush2.bf16.msra.mxu0 0
  %4856 = vmatprep.subr.bf16.mxu0 0
  %4857 = vmatpush2.bf16.msra.mxu0 0
  %4858 = vmatprep.mubr.bf16.mxu0 0
  %4859 = vmatmul.mubr.bf16.gmra.mxu0 %v4701
  %v4860 = vpop.f32.mrf.mxu0
  %v4861 = vadd.f32 0.0, %v4860
  %v4862 = vpop.f32.mrf.mxu0
  %v4863 = vadd.f32 0.0, %v4862
  %v4864 = vpop.f32.mrf.mxu0
  %v4865 = vpop.f32.mrf.mxu0
  %4866 = vdwg.mxu0
  %v4867 = vadd.f32 %v4499, %v4738
  %v4868 = vadd.f32 %v4500, %v4740
  %v4869 = vadd.f32 %v4501, %v4779
  %v4870 = vadd.f32 %v4502, %v4781
  %v4871 = vadd.f32 %v4503, %v4820
  %v4872 = vadd.f32 %v4504, %v4822
  %v4873 = vadd.f32 %v4505, %v4861
  %v4874 = vadd.f32 %v4506, %v4863
  %v4875 = vld [vmem:[%s10] sm:$0xff]
  %v4877 = vlaneseq
  %v4878 = vshrl.u32 %v4877, 7
  %v4879 = vsub.s32 0, %v4878
  %v4880 = vrot.slane %v4875, %v4879
  %v4881 = vlaneseq
  %v4882 = vshrl.u32 %v4881, 7
  %v4883 = vsub.s32 1, %v4882
  %v4884 = vrot.slane %v4875, %v4883
  %v4885 = vlaneseq
  %v4886 = vshrl.u32 %v4885, 7
  %v4887 = vsub.s32 2, %v4886
  %v4888 = vrot.slane %v4875, %v4887
  %v4889 = vlaneseq
  %v4890 = vshrl.u32 %v4889, 7
  %v4891 = vsub.s32 3, %v4890
  %v4892 = vrot.slane %v4875, %v4891
  %v4893 = vlaneseq
  %v4894 = vshrl.u32 %v4893, 7
  %v4895 = vsub.s32 4, %v4894
  %v4896 = vrot.slane %v4875, %v4895
  %v4897 = vlaneseq
  %v4898 = vshrl.u32 %v4897, 7
  %v4899 = vsub.s32 5, %v4898
  %v4900 = vrot.slane %v4875, %v4899
  %v4901 = vlaneseq
  %v4902 = vshrl.u32 %v4901, 7
  %v4903 = vsub.s32 6, %v4902
  %v4904 = vrot.slane %v4875, %v4903
  %v4905 = vlaneseq
  %v4906 = vshrl.u32 %v4905, 7
  %v4907 = vsub.s32 7, %v4906
  %v4908 = vrot.slane %v4875, %v4907
  %v4917 = vadd.f32 %v4867, %v4880
  %v4918 = vadd.f32 %v4868, %v4884
  %v4919 = vadd.f32 %v4869, %v4888
  %v4920 = vadd.f32 %v4870, %v4892
  %v4921 = vadd.f32 %v4871, %v4896
  %v4922 = vadd.f32 %v4872, %v4900
  %v4923 = vadd.f32 %v4873, %v4904
  %v4924 = vadd.f32 %v4874, %v4908
  %v4925 = vmax.f32 %v4917, 0.0
  %v4926 = vmax.f32 %v4918, 0.0
  %v4927 = vmax.f32 %v4919, 0.0
  %v4928 = vmax.f32 %v4920, 0.0
  %v4929 = vmax.f32 %v4921, 0.0
  %v4930 = vmax.f32 %v4922, 0.0
  %v4931 = vmax.f32 %v4923, 0.0
  %v4932 = vmax.f32 %v4924, 0.0
  %v4933 = vpack.c.bf16 %v4925, %v4925
  %v4934 = vpack.c.bf16 %v4926, %v4926
  %v4935 = vpack.c.bf16 %v4927, %v4927
  %v4936 = vpack.c.bf16 %v4928, %v4928
  %v4937 = vpack.c.bf16 %v4929, %v4929
  %v4938 = vpack.c.bf16 %v4930, %v4930
  %v4939 = vpack.c.bf16 %v4931, %v4931
  %v4940 = vpack.c.bf16 %v4932, %v4932
  %v4941 = vld [vmem:[%s11] sm:$0xff]
  %v4942 = vld [vmem:[%s11 + $0x8] sm:$0xff]
  %v4943 = vld [vmem:[%s11 + $0x10] sm:$0xff]
  %v4944 = vld [vmem:[%s11 + $0x18] sm:$0xff]
  %v4945 = vld [vmem:[%s11 + $0x20] sm:$0xff]
  %v4946 = vld [vmem:[%s11 + $0x28] sm:$0xff]
  %v4947 = vld [vmem:[%s11 + $0x30] sm:$0xff]
  %v4948 = vld [vmem:[%s11 + $0x38] sm:$0xff]
  %v4949 = vld [vmem:[%s11 + $0x40] sm:$0xff]
  %v4950 = vld [vmem:[%s11 + $0x48] sm:$0xff]
  %v4951 = vld [vmem:[%s11 + $0x50] sm:$0xff]
  %v4952 = vld [vmem:[%s11 + $0x58] sm:$0xff]
  %v4953 = vld [vmem:[%s11 + $0x60] sm:$0xff]
  %v4954 = vld [vmem:[%s11 + $0x68] sm:$0xff]
  %v4955 = vld [vmem:[%s11 + $0x70] sm:$0xff]
  %v4956 = vld [vmem:[%s11 + $0x78] sm:$0xff]
  %v4957 = vld [vmem:[%s11 + $0x80] sm:$0xff]
  %v4958 = vld [vmem:[%s11 + $0x88] sm:$0xff]
  %v4959 = vld [vmem:[%s11 + $0x90] sm:$0xff]
  %v4960 = vld [vmem:[%s11 + $0x98] sm:$0xff]
  %v4961 = vld [vmem:[%s11 + $0xa0] sm:$0xff]
  %v4962 = vld [vmem:[%s11 + $0xa8] sm:$0xff]
  %v4963 = vld [vmem:[%s11 + $0xb0] sm:$0xff]
  %v4964 = vld [vmem:[%s11 + $0xb8] sm:$0xff]
  %v4965 = vld [vmem:[%s11 + $0xc0] sm:$0xff]
  %v4966 = vld [vmem:[%s11 + $0xc8] sm:$0xff]
  %v4967 = vld [vmem:[%s11 + $0xd0] sm:$0xff]
  %v4968 = vld [vmem:[%s11 + $0xd8] sm:$0xff]
  %v4969 = vld [vmem:[%s11 + $0xe0] sm:$0xff]
  %v4970 = vld [vmem:[%s11 + $0xe8] sm:$0xff]
  %v4971 = vld [vmem:[%s11 + $0xf0] sm:$0xff]
  %v4972 = vld [vmem:[%s11 + $0xf8] sm:$0xff]
  %v4973 = vld [vmem:[%s11 + $0x100] sm:$0xff]
  %v4974 = vld [vmem:[%s11 + $0x108] sm:$0xff]
  %v4975 = vld [vmem:[%s11 + $0x110] sm:$0xff]
  %v4976 = vld [vmem:[%s11 + $0x118] sm:$0xff]
  %v4977 = vld [vmem:[%s11 + $0x120] sm:$0xff]
  %v4978 = vld [vmem:[%s11 + $0x128] sm:$0xff]
  %v4979 = vld [vmem:[%s11 + $0x130] sm:$0xff]
  %v4980 = vld [vmem:[%s11 + $0x138] sm:$0xff]
  %v4981 = vld [vmem:[%s11 + $0x140] sm:$0xff]
  %v4982 = vld [vmem:[%s11 + $0x148] sm:$0xff]
  %v4983 = vld [vmem:[%s11 + $0x150] sm:$0xff]
  %v4984 = vld [vmem:[%s11 + $0x158] sm:$0xff]
  %v4985 = vld [vmem:[%s11 + $0x160] sm:$0xff]
  %v4986 = vld [vmem:[%s11 + $0x168] sm:$0xff]
  %v4987 = vld [vmem:[%s11 + $0x170] sm:$0xff]
  %v4988 = vld [vmem:[%s11 + $0x178] sm:$0xff]
  %v4989 = vld [vmem:[%s11 + $0x180] sm:$0xff]
  %v4990 = vld [vmem:[%s11 + $0x188] sm:$0xff]
  %v4991 = vld [vmem:[%s11 + $0x190] sm:$0xff]
  %v4992 = vld [vmem:[%s11 + $0x198] sm:$0xff]
  %v4993 = vld [vmem:[%s11 + $0x1a0] sm:$0xff]
  %v4994 = vld [vmem:[%s11 + $0x1a8] sm:$0xff]
  %v4995 = vld [vmem:[%s11 + $0x1b0] sm:$0xff]
  %v4996 = vld [vmem:[%s11 + $0x1b8] sm:$0xff]
  %v4997 = vld [vmem:[%s11 + $0x1c0] sm:$0xff]
  %v4998 = vld [vmem:[%s11 + $0x1c8] sm:$0xff]
  %v4999 = vld [vmem:[%s11 + $0x1d0] sm:$0xff]
  %v5000 = vld [vmem:[%s11 + $0x1d8] sm:$0xff]
  %v5001 = vld [vmem:[%s11 + $0x1e0] sm:$0xff]
  %v5002 = vld [vmem:[%s11 + $0x1e8] sm:$0xff]
  %v5003 = vld [vmem:[%s11 + $0x1f0] sm:$0xff]
  %v5004 = vld [vmem:[%s11 + $0x1f8] sm:$0xff]
  %v5005 = vld [vmem:[%s11 + $0x200] sm:$0xff]
  %v5006 = vld [vmem:[%s11 + $0x208] sm:$0xff]
  %v5007 = vld [vmem:[%s11 + $0x210] sm:$0xff]
  %v5008 = vld [vmem:[%s11 + $0x218] sm:$0xff]
  %v5009 = vld [vmem:[%s11 + $0x220] sm:$0xff]
  %v5010 = vld [vmem:[%s11 + $0x228] sm:$0xff]
  %v5011 = vld [vmem:[%s11 + $0x230] sm:$0xff]
  %v5012 = vld [vmem:[%s11 + $0x238] sm:$0xff]
  %v5013 = vld [vmem:[%s11 + $0x240] sm:$0xff]
  %v5014 = vld [vmem:[%s11 + $0x248] sm:$0xff]
  %v5015 = vld [vmem:[%s11 + $0x250] sm:$0xff]
  %v5016 = vld [vmem:[%s11 + $0x258] sm:$0xff]
  %v5017 = vld [vmem:[%s11 + $0x260] sm:$0xff]
  %v5018 = vld [vmem:[%s11 + $0x268] sm:$0xff]
  %v5019 = vld [vmem:[%s11 + $0x270] sm:$0xff]
  %v5020 = vld [vmem:[%s11 + $0x278] sm:$0xff]
  %v5021 = vld [vmem:[%s11 + $0x280] sm:$0xff]
  %v5022 = vld [vmem:[%s11 + $0x288] sm:$0xff]
  %v5023 = vld [vmem:[%s11 + $0x290] sm:$0xff]
  %v5024 = vld [vmem:[%s11 + $0x298] sm:$0xff]
  %v5025 = vld [vmem:[%s11 + $0x2a0] sm:$0xff]
  %v5026 = vld [vmem:[%s11 + $0x2a8] sm:$0xff]
  %v5027 = vld [vmem:[%s11 + $0x2b0] sm:$0xff]
  %v5028 = vld [vmem:[%s11 + $0x2b8] sm:$0xff]
  %v5029 = vld [vmem:[%s11 + $0x2c0] sm:$0xff]
  %v5030 = vld [vmem:[%s11 + $0x2c8] sm:$0xff]
  %v5031 = vld [vmem:[%s11 + $0x2d0] sm:$0xff]
  %v5032 = vld [vmem:[%s11 + $0x2d8] sm:$0xff]
  %v5033 = vld [vmem:[%s11 + $0x2e0] sm:$0xff]
  %v5034 = vld [vmem:[%s11 + $0x2e8] sm:$0xff]
  %v5035 = vld [vmem:[%s11 + $0x2f0] sm:$0xff]
  %v5036 = vld [vmem:[%s11 + $0x2f8] sm:$0xff]
  %v5037 = vld [vmem:[%s11 + $0x300] sm:$0xff]
  %v5038 = vld [vmem:[%s11 + $0x308] sm:$0xff]
  %v5039 = vld [vmem:[%s11 + $0x310] sm:$0xff]
  %v5040 = vld [vmem:[%s11 + $0x318] sm:$0xff]
  %v5041 = vld [vmem:[%s11 + $0x320] sm:$0xff]
  %v5042 = vld [vmem:[%s11 + $0x328] sm:$0xff]
  %v5043 = vld [vmem:[%s11 + $0x330] sm:$0xff]
  %v5044 = vld [vmem:[%s11 + $0x338] sm:$0xff]
  %v5045 = vld [vmem:[%s11 + $0x340] sm:$0xff]
  %v5046 = vld [vmem:[%s11 + $0x348] sm:$0xff]
  %v5047 = vld [vmem:[%s11 + $0x350] sm:$0xff]
  %v5048 = vld [vmem:[%s11 + $0x358] sm:$0xff]
  %v5049 = vld [vmem:[%s11 + $0x360] sm:$0xff]
  %v5050 = vld [vmem:[%s11 + $0x368] sm:$0xff]
  %v5051 = vld [vmem:[%s11 + $0x370] sm:$0xff]
  %v5052 = vld [vmem:[%s11 + $0x378] sm:$0xff]
  %v5053 = vld [vmem:[%s11 + $0x380] sm:$0xff]
  %v5054 = vld [vmem:[%s11 + $0x388] sm:$0xff]
  %v5055 = vld [vmem:[%s11 + $0x390] sm:$0xff]
  %v5056 = vld [vmem:[%s11 + $0x398] sm:$0xff]
  %v5057 = vld [vmem:[%s11 + $0x3a0] sm:$0xff]
  %v5058 = vld [vmem:[%s11 + $0x3a8] sm:$0xff]
  %v5059 = vld [vmem:[%s11 + $0x3b0] sm:$0xff]
  %v5060 = vld [vmem:[%s11 + $0x3b8] sm:$0xff]
  %v5061 = vld [vmem:[%s11 + $0x3c0] sm:$0xff]
  %v5062 = vld [vmem:[%s11 + $0x3c8] sm:$0xff]
  %v5063 = vld [vmem:[%s11 + $0x3d0] sm:$0xff]
  %v5064 = vld [vmem:[%s11 + $0x3d8] sm:$0xff]
  %v5065 = vld [vmem:[%s11 + $0x3e0] sm:$0xff]
  %v5066 = vld [vmem:[%s11 + $0x3e8] sm:$0xff]
  %v5067 = vld [vmem:[%s11 + $0x3f0] sm:$0xff]
  %v5068 = vld [vmem:[%s11 + $0x3f8] sm:$0xff]
  %v5069 = vld [vmem:[%s12] sm:$0xf]
  %v5071 = vlaneseq
  %v5072 = vshrl.u32 %v5071, 7
  %v5073 = vsub.s32 0, %v5072
  %v5074 = vrot.slane %v5069, %v5073
  %v5075 = vlaneseq
  %v5076 = vshrl.u32 %v5075, 7
  %v5077 = vsub.s32 1, %v5076
  %v5078 = vrot.slane %v5069, %v5077
  %v5079 = vlaneseq
  %v5080 = vshrl.u32 %v5079, 7
  %v5081 = vsub.s32 2, %v5080
  %v5082 = vrot.slane %v5069, %v5081
  %v5083 = vlaneseq
  %v5084 = vshrl.u32 %v5083, 7
  %v5085 = vsub.s32 3, %v5084
  %v5086 = vrot.slane %v5069, %v5085
  %v5219 = vunpack.c.l.b16 %v4941
  %v5220 = vunpack.c.h.b16 %v4941
  %v5221 = vunpack.c.l.b16 %v4942
  %v5222 = vunpack.c.h.b16 %v4942
  %v5223 = vunpack.c.l.b16 %v4943
  %v5224 = vunpack.c.h.b16 %v4943
  %v5225 = vunpack.c.l.b16 %v4944
  %v5226 = vunpack.c.h.b16 %v4944
  %v5227 = vunpack.c.l.b16 %v4945
  %v5228 = vunpack.c.h.b16 %v4945
  %v5229 = vunpack.c.l.b16 %v4946
  %v5230 = vunpack.c.h.b16 %v4946
  %v5231 = vunpack.c.l.b16 %v4947
  %v5232 = vunpack.c.h.b16 %v4947
  %v5233 = vunpack.c.l.b16 %v4948
  %v5234 = vunpack.c.h.b16 %v4948
  %v5235 = vunpack.c.l.b16 %v4949
  %v5236 = vunpack.c.h.b16 %v4949
  %v5237 = vunpack.c.l.b16 %v4950
  %v5238 = vunpack.c.h.b16 %v4950
  %v5239 = vunpack.c.l.b16 %v4951
  %v5240 = vunpack.c.h.b16 %v4951
  %v5241 = vunpack.c.l.b16 %v4952
  %v5242 = vunpack.c.h.b16 %v4952
  %v5243 = vunpack.c.l.b16 %v4953
  %v5244 = vunpack.c.h.b16 %v4953
  %v5245 = vunpack.c.l.b16 %v4954
  %v5246 = vunpack.c.h.b16 %v4954
  %v5247 = vunpack.c.l.b16 %v4955
  %v5248 = vunpack.c.h.b16 %v4955
  %v5249 = vunpack.c.l.b16 %v4956
  %v5250 = vunpack.c.h.b16 %v4956
  %v5251 = vunpack.c.l.b16 %v4957
  %v5252 = vunpack.c.h.b16 %v4957
  %v5253 = vunpack.c.l.b16 %v4958
  %v5254 = vunpack.c.h.b16 %v4958
  %v5255 = vunpack.c.l.b16 %v4959
  %v5256 = vunpack.c.h.b16 %v4959
  %v5257 = vunpack.c.l.b16 %v4960
  %v5258 = vunpack.c.h.b16 %v4960
  %v5259 = vunpack.c.l.b16 %v4961
  %v5260 = vunpack.c.h.b16 %v4961
  %v5261 = vunpack.c.l.b16 %v4962
  %v5262 = vunpack.c.h.b16 %v4962
  %v5263 = vunpack.c.l.b16 %v4963
  %v5264 = vunpack.c.h.b16 %v4963
  %v5265 = vunpack.c.l.b16 %v4964
  %v5266 = vunpack.c.h.b16 %v4964
  %v5267 = vunpack.c.l.b16 %v4965
  %v5268 = vunpack.c.h.b16 %v4965
  %v5269 = vunpack.c.l.b16 %v4966
  %v5270 = vunpack.c.h.b16 %v4966
  %v5271 = vunpack.c.l.b16 %v4967
  %v5272 = vunpack.c.h.b16 %v4967
  %v5273 = vunpack.c.l.b16 %v4968
  %v5274 = vunpack.c.h.b16 %v4968
  %v5275 = vunpack.c.l.b16 %v4969
  %v5276 = vunpack.c.h.b16 %v4969
  %v5277 = vunpack.c.l.b16 %v4970
  %v5278 = vunpack.c.h.b16 %v4970
  %v5279 = vunpack.c.l.b16 %v4971
  %v5280 = vunpack.c.h.b16 %v4971
  %v5281 = vunpack.c.l.b16 %v4972
  %v5282 = vunpack.c.h.b16 %v4972
  %v5283 = vunpack.c.l.b16 %v4973
  %v5284 = vunpack.c.h.b16 %v4973
  %v5285 = vunpack.c.l.b16 %v4974
  %v5286 = vunpack.c.h.b16 %v4974
  %v5287 = vunpack.c.l.b16 %v4975
  %v5288 = vunpack.c.h.b16 %v4975
  %v5289 = vunpack.c.l.b16 %v4976
  %v5290 = vunpack.c.h.b16 %v4976
  %v5291 = vunpack.c.l.b16 %v4977
  %v5292 = vunpack.c.h.b16 %v4977
  %v5293 = vunpack.c.l.b16 %v4978
  %v5294 = vunpack.c.h.b16 %v4978
  %v5295 = vunpack.c.l.b16 %v4979
  %v5296 = vunpack.c.h.b16 %v4979
  %v5297 = vunpack.c.l.b16 %v4980
  %v5298 = vunpack.c.h.b16 %v4980
  %v5299 = vunpack.c.l.b16 %v4981
  %v5300 = vunpack.c.h.b16 %v4981
  %v5301 = vunpack.c.l.b16 %v4982
  %v5302 = vunpack.c.h.b16 %v4982
  %v5303 = vunpack.c.l.b16 %v4983
  %v5304 = vunpack.c.h.b16 %v4983
  %v5305 = vunpack.c.l.b16 %v4984
  %v5306 = vunpack.c.h.b16 %v4984
  %v5307 = vunpack.c.l.b16 %v4985
  %v5308 = vunpack.c.h.b16 %v4985
  %v5309 = vunpack.c.l.b16 %v4986
  %v5310 = vunpack.c.h.b16 %v4986
  %v5311 = vunpack.c.l.b16 %v4987
  %v5312 = vunpack.c.h.b16 %v4987
  %v5313 = vunpack.c.l.b16 %v4988
  %v5314 = vunpack.c.h.b16 %v4988
  %v5315 = vunpack.c.l.b16 %v4989
  %v5316 = vunpack.c.h.b16 %v4989
  %v5317 = vunpack.c.l.b16 %v4990
  %v5318 = vunpack.c.h.b16 %v4990
  %v5319 = vunpack.c.l.b16 %v4991
  %v5320 = vunpack.c.h.b16 %v4991
  %v5321 = vunpack.c.l.b16 %v4992
  %v5322 = vunpack.c.h.b16 %v4992
  %v5323 = vunpack.c.l.b16 %v4993
  %v5324 = vunpack.c.h.b16 %v4993
  %v5325 = vunpack.c.l.b16 %v4994
  %v5326 = vunpack.c.h.b16 %v4994
  %v5327 = vunpack.c.l.b16 %v4995
  %v5328 = vunpack.c.h.b16 %v4995
  %v5329 = vunpack.c.l.b16 %v4996
  %v5330 = vunpack.c.h.b16 %v4996
  %v5331 = vunpack.c.l.b16 %v4997
  %v5332 = vunpack.c.h.b16 %v4997
  %v5333 = vunpack.c.l.b16 %v4998
  %v5334 = vunpack.c.h.b16 %v4998
  %v5335 = vunpack.c.l.b16 %v4999
  %v5336 = vunpack.c.h.b16 %v4999
  %v5337 = vunpack.c.l.b16 %v5000
  %v5338 = vunpack.c.h.b16 %v5000
  %v5339 = vunpack.c.l.b16 %v5001
  %v5340 = vunpack.c.h.b16 %v5001
  %v5341 = vunpack.c.l.b16 %v5002
  %v5342 = vunpack.c.h.b16 %v5002
  %v5343 = vunpack.c.l.b16 %v5003
  %v5344 = vunpack.c.h.b16 %v5003
  %v5345 = vunpack.c.l.b16 %v5004
  %v5346 = vunpack.c.h.b16 %v5004
  %v5347 = vunpack.c.l.b16 %v5005
  %v5348 = vunpack.c.h.b16 %v5005
  %v5349 = vunpack.c.l.b16 %v5006
  %v5350 = vunpack.c.h.b16 %v5006
  %v5351 = vunpack.c.l.b16 %v5007
  %v5352 = vunpack.c.h.b16 %v5007
  %v5353 = vunpack.c.l.b16 %v5008
  %v5354 = vunpack.c.h.b16 %v5008
  %v5355 = vunpack.c.l.b16 %v5009
  %v5356 = vunpack.c.h.b16 %v5009
  %v5357 = vunpack.c.l.b16 %v5010
  %v5358 = vunpack.c.h.b16 %v5010
  %v5359 = vunpack.c.l.b16 %v5011
  %v5360 = vunpack.c.h.b16 %v5011
  %v5361 = vunpack.c.l.b16 %v5012
  %v5362 = vunpack.c.h.b16 %v5012
  %v5363 = vunpack.c.l.b16 %v5013
  %v5364 = vunpack.c.h.b16 %v5013
  %v5365 = vunpack.c.l.b16 %v5014
  %v5366 = vunpack.c.h.b16 %v5014
  %v5367 = vunpack.c.l.b16 %v5015
  %v5368 = vunpack.c.h.b16 %v5015
  %v5369 = vunpack.c.l.b16 %v5016
  %v5370 = vunpack.c.h.b16 %v5016
  %v5371 = vunpack.c.l.b16 %v5017
  %v5372 = vunpack.c.h.b16 %v5017
  %v5373 = vunpack.c.l.b16 %v5018
  %v5374 = vunpack.c.h.b16 %v5018
  %v5375 = vunpack.c.l.b16 %v5019
  %v5376 = vunpack.c.h.b16 %v5019
  %v5377 = vunpack.c.l.b16 %v5020
  %v5378 = vunpack.c.h.b16 %v5020
  %v5379 = vunpack.c.l.b16 %v5021
  %v5380 = vunpack.c.h.b16 %v5021
  %v5381 = vunpack.c.l.b16 %v5022
  %v5382 = vunpack.c.h.b16 %v5022
  %v5383 = vunpack.c.l.b16 %v5023
  %v5384 = vunpack.c.h.b16 %v5023
  %v5385 = vunpack.c.l.b16 %v5024
  %v5386 = vunpack.c.h.b16 %v5024
  %v5387 = vunpack.c.l.b16 %v5025
  %v5388 = vunpack.c.h.b16 %v5025
  %v5389 = vunpack.c.l.b16 %v5026
  %v5390 = vunpack.c.h.b16 %v5026
  %v5391 = vunpack.c.l.b16 %v5027
  %v5392 = vunpack.c.h.b16 %v5027
  %v5393 = vunpack.c.l.b16 %v5028
  %v5394 = vunpack.c.h.b16 %v5028
  %v5395 = vunpack.c.l.b16 %v5029
  %v5396 = vunpack.c.h.b16 %v5029
  %v5397 = vunpack.c.l.b16 %v5030
  %v5398 = vunpack.c.h.b16 %v5030
  %v5399 = vunpack.c.l.b16 %v5031
  %v5400 = vunpack.c.h.b16 %v5031
  %v5401 = vunpack.c.l.b16 %v5032
  %v5402 = vunpack.c.h.b16 %v5032
  %v5403 = vunpack.c.l.b16 %v5033
  %v5404 = vunpack.c.h.b16 %v5033
  %v5405 = vunpack.c.l.b16 %v5034
  %v5406 = vunpack.c.h.b16 %v5034
  %v5407 = vunpack.c.l.b16 %v5035
  %v5408 = vunpack.c.h.b16 %v5035
  %v5409 = vunpack.c.l.b16 %v5036
  %v5410 = vunpack.c.h.b16 %v5036
  %v5411 = vunpack.c.l.b16 %v5037
  %v5412 = vunpack.c.h.b16 %v5037
  %v5413 = vunpack.c.l.b16 %v5038
  %v5414 = vunpack.c.h.b16 %v5038
  %v5415 = vunpack.c.l.b16 %v5039
  %v5416 = vunpack.c.h.b16 %v5039
  %v5417 = vunpack.c.l.b16 %v5040
  %v5418 = vunpack.c.h.b16 %v5040
  %v5419 = vunpack.c.l.b16 %v5041
  %v5420 = vunpack.c.h.b16 %v5041
  %v5421 = vunpack.c.l.b16 %v5042
  %v5422 = vunpack.c.h.b16 %v5042
  %v5423 = vunpack.c.l.b16 %v5043
  %v5424 = vunpack.c.h.b16 %v5043
  %v5425 = vunpack.c.l.b16 %v5044
  %v5426 = vunpack.c.h.b16 %v5044
  %v5427 = vunpack.c.l.b16 %v5045
  %v5428 = vunpack.c.h.b16 %v5045
  %v5429 = vunpack.c.l.b16 %v5046
  %v5430 = vunpack.c.h.b16 %v5046
  %v5431 = vunpack.c.l.b16 %v5047
  %v5432 = vunpack.c.h.b16 %v5047
  %v5433 = vunpack.c.l.b16 %v5048
  %v5434 = vunpack.c.h.b16 %v5048
  %v5435 = vunpack.c.l.b16 %v5049
  %v5436 = vunpack.c.h.b16 %v5049
  %v5437 = vunpack.c.l.b16 %v5050
  %v5438 = vunpack.c.h.b16 %v5050
  %v5439 = vunpack.c.l.b16 %v5051
  %v5440 = vunpack.c.h.b16 %v5051
  %v5441 = vunpack.c.l.b16 %v5052
  %v5442 = vunpack.c.h.b16 %v5052
  %v5443 = vunpack.c.l.b16 %v5053
  %v5444 = vunpack.c.h.b16 %v5053
  %v5445 = vunpack.c.l.b16 %v5054
  %v5446 = vunpack.c.h.b16 %v5054
  %v5447 = vunpack.c.l.b16 %v5055
  %v5448 = vunpack.c.h.b16 %v5055
  %v5449 = vunpack.c.l.b16 %v5056
  %v5450 = vunpack.c.h.b16 %v5056
  %v5451 = vunpack.c.l.b16 %v5057
  %v5452 = vunpack.c.h.b16 %v5057
  %v5453 = vunpack.c.l.b16 %v5058
  %v5454 = vunpack.c.h.b16 %v5058
  %v5455 = vunpack.c.l.b16 %v5059
  %v5456 = vunpack.c.h.b16 %v5059
  %v5457 = vunpack.c.l.b16 %v5060
  %v5458 = vunpack.c.h.b16 %v5060
  %v5459 = vunpack.c.l.b16 %v5061
  %v5460 = vunpack.c.h.b16 %v5061
  %v5461 = vunpack.c.l.b16 %v5062
  %v5462 = vunpack.c.h.b16 %v5062
  %v5463 = vunpack.c.l.b16 %v5063
  %v5464 = vunpack.c.h.b16 %v5063
  %v5465 = vunpack.c.l.b16 %v5064
  %v5466 = vunpack.c.h.b16 %v5064
  %v5467 = vunpack.c.l.b16 %v5065
  %v5468 = vunpack.c.h.b16 %v5065
  %v5469 = vunpack.c.l.b16 %v5066
  %v5470 = vunpack.c.h.b16 %v5066
  %v5471 = vunpack.c.l.b16 %v5067
  %v5472 = vunpack.c.h.b16 %v5067
  %v5473 = vunpack.c.l.b16 %v5068
  %v5474 = vunpack.c.h.b16 %v5068
  %v5475 = vpack.c.b16 %v5223, %v5219
  %v5476 = vpack.c.b16 %v5224, %v5220
  %v5477 = vpack.c.b16 %v5225, %v5221
  %v5478 = vpack.c.b16 %v5226, %v5222
  %v5479 = vpack.c.b16 %v5231, %v5227
  %v5480 = vpack.c.b16 %v5232, %v5228
  %v5481 = vpack.c.b16 %v5233, %v5229
  %v5482 = vpack.c.b16 %v5234, %v5230
  %v5483 = vpack.c.b16 %v5239, %v5235
  %v5484 = vpack.c.b16 %v5240, %v5236
  %v5485 = vpack.c.b16 %v5241, %v5237
  %v5486 = vpack.c.b16 %v5242, %v5238
  %v5487 = vpack.c.b16 %v5247, %v5243
  %v5488 = vpack.c.b16 %v5248, %v5244
  %v5489 = vpack.c.b16 %v5249, %v5245
  %v5490 = vpack.c.b16 %v5250, %v5246
  %v5491 = vpack.c.b16 %v5255, %v5251
  %v5492 = vpack.c.b16 %v5256, %v5252
  %v5493 = vpack.c.b16 %v5257, %v5253
  %v5494 = vpack.c.b16 %v5258, %v5254
  %v5495 = vpack.c.b16 %v5263, %v5259
  %v5496 = vpack.c.b16 %v5264, %v5260
  %v5497 = vpack.c.b16 %v5265, %v5261
  %v5498 = vpack.c.b16 %v5266, %v5262
  %v5499 = vpack.c.b16 %v5271, %v5267
  %v5500 = vpack.c.b16 %v5272, %v5268
  %v5501 = vpack.c.b16 %v5273, %v5269
  %v5502 = vpack.c.b16 %v5274, %v5270
  %v5503 = vpack.c.b16 %v5279, %v5275
  %v5504 = vpack.c.b16 %v5280, %v5276
  %v5505 = vpack.c.b16 %v5281, %v5277
  %v5506 = vpack.c.b16 %v5282, %v5278
  %v5507 = vpack.c.b16 %v5287, %v5283
  %v5508 = vpack.c.b16 %v5288, %v5284
  %v5509 = vpack.c.b16 %v5289, %v5285
  %v5510 = vpack.c.b16 %v5290, %v5286
  %v5511 = vpack.c.b16 %v5295, %v5291
  %v5512 = vpack.c.b16 %v5296, %v5292
  %v5513 = vpack.c.b16 %v5297, %v5293
  %v5514 = vpack.c.b16 %v5298, %v5294
  %v5515 = vpack.c.b16 %v5303, %v5299
  %v5516 = vpack.c.b16 %v5304, %v5300
  %v5517 = vpack.c.b16 %v5305, %v5301
  %v5518 = vpack.c.b16 %v5306, %v5302
  %v5519 = vpack.c.b16 %v5311, %v5307
  %v5520 = vpack.c.b16 %v5312, %v5308
  %v5521 = vpack.c.b16 %v5313, %v5309
  %v5522 = vpack.c.b16 %v5314, %v5310
  %v5523 = vpack.c.b16 %v5319, %v5315
  %v5524 = vpack.c.b16 %v5320, %v5316
  %v5525 = vpack.c.b16 %v5321, %v5317
  %v5526 = vpack.c.b16 %v5322, %v5318
  %v5527 = vpack.c.b16 %v5327, %v5323
  %v5528 = vpack.c.b16 %v5328, %v5324
  %v5529 = vpack.c.b16 %v5329, %v5325
  %v5530 = vpack.c.b16 %v5330, %v5326
  %v5531 = vpack.c.b16 %v5335, %v5331
  %v5532 = vpack.c.b16 %v5336, %v5332
  %v5533 = vpack.c.b16 %v5337, %v5333
  %v5534 = vpack.c.b16 %v5338, %v5334
  %v5535 = vpack.c.b16 %v5343, %v5339
  %v5536 = vpack.c.b16 %v5344, %v5340
  %v5537 = vpack.c.b16 %v5345, %v5341
  %v5538 = vpack.c.b16 %v5346, %v5342
  %v5539 = vpack.c.b16 %v5351, %v5347
  %v5540 = vpack.c.b16 %v5352, %v5348
  %v5541 = vpack.c.b16 %v5353, %v5349
  %v5542 = vpack.c.b16 %v5354, %v5350
  %v5543 = vpack.c.b16 %v5359, %v5355
  %v5544 = vpack.c.b16 %v5360, %v5356
  %v5545 = vpack.c.b16 %v5361, %v5357
  %v5546 = vpack.c.b16 %v5362, %v5358
  %v5547 = vpack.c.b16 %v5367, %v5363
  %v5548 = vpack.c.b16 %v5368, %v5364
  %v5549 = vpack.c.b16 %v5369, %v5365
  %v5550 = vpack.c.b16 %v5370, %v5366
  %v5551 = vpack.c.b16 %v5375, %v5371
  %v5552 = vpack.c.b16 %v5376, %v5372
  %v5553 = vpack.c.b16 %v5377, %v5373
  %v5554 = vpack.c.b16 %v5378, %v5374
  %v5555 = vpack.c.b16 %v5383, %v5379
  %v5556 = vpack.c.b16 %v5384, %v5380
  %v5557 = vpack.c.b16 %v5385, %v5381
  %v5558 = vpack.c.b16 %v5386, %v5382
  %v5559 = vpack.c.b16 %v5391, %v5387
  %v5560 = vpack.c.b16 %v5392, %v5388
  %v5561 = vpack.c.b16 %v5393, %v5389
  %v5562 = vpack.c.b16 %v5394, %v5390
  %v5563 = vpack.c.b16 %v5399, %v5395
  %v5564 = vpack.c.b16 %v5400, %v5396
  %v5565 = vpack.c.b16 %v5401, %v5397
  %v5566 = vpack.c.b16 %v5402, %v5398
  %v5567 = vpack.c.b16 %v5407, %v5403
  %v5568 = vpack.c.b16 %v5408, %v5404
  %v5569 = vpack.c.b16 %v5409, %v5405
  %v5570 = vpack.c.b16 %v5410, %v5406
  %v5571 = vpack.c.b16 %v5415, %v5411
  %v5572 = vpack.c.b16 %v5416, %v5412
  %v5573 = vpack.c.b16 %v5417, %v5413
  %v5574 = vpack.c.b16 %v5418, %v5414
  %v5575 = vpack.c.b16 %v5423, %v5419
  %v5576 = vpack.c.b16 %v5424, %v5420
  %v5577 = vpack.c.b16 %v5425, %v5421
  %v5578 = vpack.c.b16 %v5426, %v5422
  %v5579 = vpack.c.b16 %v5431, %v5427
  %v5580 = vpack.c.b16 %v5432, %v5428
  %v5581 = vpack.c.b16 %v5433, %v5429
  %v5582 = vpack.c.b16 %v5434, %v5430
  %v5583 = vpack.c.b16 %v5439, %v5435
  %v5584 = vpack.c.b16 %v5440, %v5436
  %v5585 = vpack.c.b16 %v5441, %v5437
  %v5586 = vpack.c.b16 %v5442, %v5438
  %v5587 = vpack.c.b16 %v5447, %v5443
  %v5588 = vpack.c.b16 %v5448, %v5444
  %v5589 = vpack.c.b16 %v5449, %v5445
  %v5590 = vpack.c.b16 %v5450, %v5446
  %v5591 = vpack.c.b16 %v5455, %v5451
  %v5592 = vpack.c.b16 %v5456, %v5452
  %v5593 = vpack.c.b16 %v5457, %v5453
  %v5594 = vpack.c.b16 %v5458, %v5454
  %v5595 = vpack.c.b16 %v5463, %v5459
  %v5596 = vpack.c.b16 %v5464, %v5460
  %v5597 = vpack.c.b16 %v5465, %v5461
  %v5598 = vpack.c.b16 %v5466, %v5462
  %v5599 = vpack.c.b16 %v5471, %v5467
  %v5600 = vpack.c.b16 %v5472, %v5468
  %v5601 = vpack.c.b16 %v5473, %v5469
  %v5602 = vpack.c.b16 %v5474, %v5470
  %5731 = vmatprep.subr.bf16.mxu0 %v5504
  %5732 = vmatpush1.bf16.msra.mxu0 %v5503
  %5733 = vmatprep.subr.bf16.mxu0 %v5500
  %5734 = vmatpush1.bf16.msra.mxu0 %v5499
  %5735 = vmatprep.subr.bf16.mxu0 %v5496
  %5736 = vmatpush1.bf16.msra.mxu0 %v5495
  %5737 = vmatprep.subr.bf16.mxu0 %v5492
  %5738 = vmatpush1.bf16.msra.mxu0 %v5491
  %5739 = vmatprep.subr.bf16.mxu0 %v5488
  %5740 = vmatpush1.bf16.msra.mxu0 %v5487
  %5741 = vmatprep.subr.bf16.mxu0 %v5484
  %5742 = vmatpush1.bf16.msra.mxu0 %v5483
  %5743 = vmatprep.subr.bf16.mxu0 %v5480
  %5744 = vmatpush1.bf16.msra.mxu0 %v5479
  %5745 = vmatprep.subr.bf16.mxu0 %v5476
  %5746 = vmatpush1.bf16.msra.mxu0 %v5475
  %5747 = vmatprep.subr.bf16.mxu0 %v5536
  %5748 = vmatpush2.bf16.msra.mxu0 %v5535
  %5749 = vmatprep.subr.bf16.mxu0 %v5532
  %5750 = vmatpush2.bf16.msra.mxu0 %v5531
  %5751 = vmatprep.subr.bf16.mxu0 %v5528
  %5752 = vmatpush2.bf16.msra.mxu0 %v5527
  %5753 = vmatprep.subr.bf16.mxu0 %v5524
  %5754 = vmatpush2.bf16.msra.mxu0 %v5523
  %5755 = vmatprep.subr.bf16.mxu0 %v5520
  %5756 = vmatpush2.bf16.msra.mxu0 %v5519
  %5757 = vmatprep.subr.bf16.mxu0 %v5516
  %5758 = vmatpush2.bf16.msra.mxu0 %v5515
  %5759 = vmatprep.subr.bf16.mxu0 %v5512
  %5760 = vmatpush2.bf16.msra.mxu0 %v5511
  %5761 = vmatprep.subr.bf16.mxu0 %v5508
  %5762 = vmatpush2.bf16.msra.mxu0 %v5507
  %5763 = vmatprep.mubr.bf16.mxu0 %v4934
  %5764 = vmatmul.mubr.bf16.gmra.mxu0 %v4933
  %v5765 = vpop.f32.mrf.mxu0
  %v5766 = vadd.f32 %v5074, %v5765
  %v5767 = vpop.f32.mrf.mxu0
  %v5768 = vadd.f32 %v5078, %v5767
  %v5769 = vpop.f32.mrf.mxu0
  %v5770 = vpop.f32.mrf.mxu0
  %5771 = vdwg.mxu0
  %5772 = vmatprep.subr.bf16.mxu0 %v5568
  %5773 = vmatpush1.bf16.msra.mxu0 %v5567
  %5774 = vmatprep.subr.bf16.mxu0 %v5564
  %5775 = vmatpush1.bf16.msra.mxu0 %v5563
  %5776 = vmatprep.subr.bf16.mxu0 %v5560
  %5777 = vmatpush1.bf16.msra.mxu0 %v5559
  %5778 = vmatprep.subr.bf16.mxu0 %v5556
  %5779 = vmatpush1.bf16.msra.mxu0 %v5555
  %5780 = vmatprep.subr.bf16.mxu0 %v5552
  %5781 = vmatpush1.bf16.msra.mxu0 %v5551
  %5782 = vmatprep.subr.bf16.mxu0 %v5548
  %5783 = vmatpush1.bf16.msra.mxu0 %v5547
  %5784 = vmatprep.subr.bf16.mxu0 %v5544
  %5785 = vmatpush1.bf16.msra.mxu0 %v5543
  %5786 = vmatprep.subr.bf16.mxu0 %v5540
  %5787 = vmatpush1.bf16.msra.mxu0 %v5539
  %5788 = vmatprep.subr.bf16.mxu0 %v5600
  %5789 = vmatpush2.bf16.msra.mxu0 %v5599
  %5790 = vmatprep.subr.bf16.mxu0 %v5596
  %5791 = vmatpush2.bf16.msra.mxu0 %v5595
  %5792 = vmatprep.subr.bf16.mxu0 %v5592
  %5793 = vmatpush2.bf16.msra.mxu0 %v5591
  %5794 = vmatprep.subr.bf16.mxu0 %v5588
  %5795 = vmatpush2.bf16.msra.mxu0 %v5587
  %5796 = vmatprep.subr.bf16.mxu0 %v5584
  %5797 = vmatpush2.bf16.msra.mxu0 %v5583
  %5798 = vmatprep.subr.bf16.mxu0 %v5580
  %5799 = vmatpush2.bf16.msra.mxu0 %v5579
  %5800 = vmatprep.subr.bf16.mxu0 %v5576
  %5801 = vmatpush2.bf16.msra.mxu0 %v5575
  %5802 = vmatprep.subr.bf16.mxu0 %v5572
  %5803 = vmatpush2.bf16.msra.mxu0 %v5571
  %5804 = vmatprep.mubr.bf16.mxu0 %v4936
  %5805 = vmatmul.mubr.bf16.gmra.mxu0 %v4935
  %v5806 = vpop.f32.mrf.mxu0
  %v5807 = vadd.f32 %v5766, %v5806
  %v5808 = vpop.f32.mrf.mxu0
  %v5809 = vadd.f32 %v5768, %v5808
  %v5810 = vpop.f32.mrf.mxu0
  %v5811 = vpop.f32.mrf.mxu0
  %5812 = vdwg.mxu0
  %5813 = vmatprep.subr.bf16.mxu0 %v5506
  %5814 = vmatpush1.bf16.msra.mxu0 %v5505
  %5815 = vmatprep.subr.bf16.mxu0 %v5502
  %5816 = vmatpush1.bf16.msra.mxu0 %v5501
  %5817 = vmatprep.subr.bf16.mxu0 %v5498
  %5818 = vmatpush1.bf16.msra.mxu0 %v5497
  %5819 = vmatprep.subr.bf16.mxu0 %v5494
  %5820 = vmatpush1.bf16.msra.mxu0 %v5493
  %5821 = vmatprep.subr.bf16.mxu0 %v5490
  %5822 = vmatpush1.bf16.msra.mxu0 %v5489
  %5823 = vmatprep.subr.bf16.mxu0 %v5486
  %5824 = vmatpush1.bf16.msra.mxu0 %v5485
  %5825 = vmatprep.subr.bf16.mxu0 %v5482
  %5826 = vmatpush1.bf16.msra.mxu0 %v5481
  %5827 = vmatprep.subr.bf16.mxu0 %v5478
  %5828 = vmatpush1.bf16.msra.mxu0 %v5477
  %5829 = vmatprep.subr.bf16.mxu0 %v5538
  %5830 = vmatpush2.bf16.msra.mxu0 %v5537
  %5831 = vmatprep.subr.bf16.mxu0 %v5534
  %5832 = vmatpush2.bf16.msra.mxu0 %v5533
  %5833 = vmatprep.subr.bf16.mxu0 %v5530
  %5834 = vmatpush2.bf16.msra.mxu0 %v5529
  %5835 = vmatprep.subr.bf16.mxu0 %v5526
  %5836 = vmatpush2.bf16.msra.mxu0 %v5525
  %5837 = vmatprep.subr.bf16.mxu0 %v5522
  %5838 = vmatpush2.bf16.msra.mxu0 %v5521
  %5839 = vmatprep.subr.bf16.mxu0 %v5518
  %5840 = vmatpush2.bf16.msra.mxu0 %v5517
  %5841 = vmatprep.subr.bf16.mxu0 %v5514
  %5842 = vmatpush2.bf16.msra.mxu0 %v5513
  %5843 = vmatprep.subr.bf16.mxu0 %v5510
  %5844 = vmatpush2.bf16.msra.mxu0 %v5509
  %5845 = vmatprep.mubr.bf16.mxu0 %v4934
  %5846 = vmatmul.mubr.bf16.gmra.mxu0 %v4933
  %v5847 = vpop.f32.mrf.mxu0
  %v5848 = vadd.f32 %v5082, %v5847
  %v5849 = vpop.f32.mrf.mxu0
  %v5850 = vadd.f32 %v5086, %v5849
  %v5851 = vpop.f32.mrf.mxu0
  %v5852 = vpop.f32.mrf.mxu0
  %5853 = vdwg.mxu0
  %5854 = vmatprep.subr.bf16.mxu0 %v5570
  %5855 = vmatpush1.bf16.msra.mxu0 %v5569
  %5856 = vmatprep.subr.bf16.mxu0 %v5566
  %5857 = vmatpush1.bf16.msra.mxu0 %v5565
  %5858 = vmatprep.subr.bf16.mxu0 %v5562
  %5859 = vmatpush1.bf16.msra.mxu0 %v5561
  %5860 = vmatprep.subr.bf16.mxu0 %v5558
  %5861 = vmatpush1.bf16.msra.mxu0 %v5557
  %5862 = vmatprep.subr.bf16.mxu0 %v5554
  %5863 = vmatpush1.bf16.msra.mxu0 %v5553
  %5864 = vmatprep.subr.bf16.mxu0 %v5550
  %5865 = vmatpush1.bf16.msra.mxu0 %v5549
  %5866 = vmatprep.subr.bf16.mxu0 %v5546
  %5867 = vmatpush1.bf16.msra.mxu0 %v5545
  %5868 = vmatprep.subr.bf16.mxu0 %v5542
  %5869 = vmatpush1.bf16.msra.mxu0 %v5541
  %5870 = vmatprep.subr.bf16.mxu0 %v5602
  %5871 = vmatpush2.bf16.msra.mxu0 %v5601
  %5872 = vmatprep.subr.bf16.mxu0 %v5598
  %5873 = vmatpush2.bf16.msra.mxu0 %v5597
  %5874 = vmatprep.subr.bf16.mxu0 %v5594
  %5875 = vmatpush2.bf16.msra.mxu0 %v5593
  %5876 = vmatprep.subr.bf16.mxu0 %v5590
  %5877 = vmatpush2.bf16.msra.mxu0 %v5589
  %5878 = vmatprep.subr.bf16.mxu0 %v5586
  %5879 = vmatpush2.bf16.msra.mxu0 %v5585
  %5880 = vmatprep.subr.bf16.mxu0 %v5582
  %5881 = vmatpush2.bf16.msra.mxu0 %v5581
  %5882 = vmatprep.subr.bf16.mxu0 %v5578
  %5883 = vmatpush2.bf16.msra.mxu0 %v5577
  %5884 = vmatprep.subr.bf16.mxu0 %v5574
  %5885 = vmatpush2.bf16.msra.mxu0 %v5573
  %5886 = vmatprep.mubr.bf16.mxu0 %v4936
  %5887 = vmatmul.mubr.bf16.gmra.mxu0 %v4935
  %v5888 = vpop.f32.mrf.mxu0
  %v5889 = vadd.f32 %v5848, %v5888
  %v5890 = vpop.f32.mrf.mxu0
  %v5891 = vadd.f32 %v5850, %v5890
  %v5892 = vpop.f32.mrf.mxu0
  %v5893 = vpop.f32.mrf.mxu0
  %5894 = vdwg.mxu0
  %v5895 = vmax.f32 %v5807, 0.0
  %v5896 = vmax.f32 %v5809, 0.0
  %v5897 = vmax.f32 %v5889, 0.0
  %v5898 = vmax.f32 %v5891, 0.0
  %v5899 = vpack.c.bf16 %v5895, %v5895
  %v5900 = vpack.c.bf16 %v5896, %v5896
  %v5901 = vpack.c.bf16 %v5897, %v5897
  %v5902 = vpack.c.bf16 %v5898, %v5898
  %v5903 = vld [vmem:[%s13] sm:$0xff]
  %v5904 = vld [vmem:[%s13 + $0x8] sm:$0xff]
  %v5905 = vld [vmem:[%s13 + $0x10] sm:$0xff]
  %v5906 = vld [vmem:[%s13 + $0x18] sm:$0xff]
  %v5907 = vld [vmem:[%s13 + $0x20] sm:$0xff]
  %v5908 = vld [vmem:[%s13 + $0x28] sm:$0xff]
  %v5909 = vld [vmem:[%s13 + $0x30] sm:$0xff]
  %v5910 = vld [vmem:[%s13 + $0x38] sm:$0xff]
  %v5911 = vld [vmem:[%s13 + $0x40] sm:$0xff]
  %v5912 = vld [vmem:[%s13 + $0x48] sm:$0xff]
  %v5913 = vld [vmem:[%s13 + $0x50] sm:$0xff]
  %v5914 = vld [vmem:[%s13 + $0x58] sm:$0xff]
  %v5915 = vld [vmem:[%s13 + $0x60] sm:$0xff]
  %v5916 = vld [vmem:[%s13 + $0x68] sm:$0xff]
  %v5917 = vld [vmem:[%s13 + $0x70] sm:$0xff]
  %v5918 = vld [vmem:[%s13 + $0x78] sm:$0xff]
  %v5919 = vld [vmem:[%s13 + $0x80] sm:$0xff]
  %v5920 = vld [vmem:[%s13 + $0x88] sm:$0xff]
  %v5921 = vld [vmem:[%s13 + $0x90] sm:$0xff]
  %v5922 = vld [vmem:[%s13 + $0x98] sm:$0xff]
  %v5923 = vld [vmem:[%s13 + $0xa0] sm:$0xff]
  %v5924 = vld [vmem:[%s13 + $0xa8] sm:$0xff]
  %v5925 = vld [vmem:[%s13 + $0xb0] sm:$0xff]
  %v5926 = vld [vmem:[%s13 + $0xb8] sm:$0xff]
  %v5927 = vld [vmem:[%s13 + $0xc0] sm:$0xff]
  %v5928 = vld [vmem:[%s13 + $0xc8] sm:$0xff]
  %v5929 = vld [vmem:[%s13 + $0xd0] sm:$0xff]
  %v5930 = vld [vmem:[%s13 + $0xd8] sm:$0xff]
  %v5931 = vld [vmem:[%s13 + $0xe0] sm:$0xff]
  %v5932 = vld [vmem:[%s13 + $0xe8] sm:$0xff]
  %v5933 = vld [vmem:[%s13 + $0xf0] sm:$0xff]
  %v5934 = vld [vmem:[%s13 + $0xf8] sm:$0xff]
  %v5935 = vld [vmem:[%s13 + $0x100] sm:$0xff]
  %v5936 = vld [vmem:[%s13 + $0x108] sm:$0xff]
  %v5937 = vld [vmem:[%s13 + $0x110] sm:$0xff]
  %v5938 = vld [vmem:[%s13 + $0x118] sm:$0xff]
  %v5939 = vld [vmem:[%s13 + $0x120] sm:$0xff]
  %v5940 = vld [vmem:[%s13 + $0x128] sm:$0xff]
  %v5941 = vld [vmem:[%s13 + $0x130] sm:$0xff]
  %v5942 = vld [vmem:[%s13 + $0x138] sm:$0xff]
  %v5943 = vld [vmem:[%s13 + $0x140] sm:$0xff]
  %v5944 = vld [vmem:[%s13 + $0x148] sm:$0xff]
  %v5945 = vld [vmem:[%s13 + $0x150] sm:$0xff]
  %v5946 = vld [vmem:[%s13 + $0x158] sm:$0xff]
  %v5947 = vld [vmem:[%s13 + $0x160] sm:$0xff]
  %v5948 = vld [vmem:[%s13 + $0x168] sm:$0xff]
  %v5949 = vld [vmem:[%s13 + $0x170] sm:$0xff]
  %v5950 = vld [vmem:[%s13 + $0x178] sm:$0xff]
  %v5951 = vld [vmem:[%s13 + $0x180] sm:$0xff]
  %v5952 = vld [vmem:[%s13 + $0x188] sm:$0xff]
  %v5953 = vld [vmem:[%s13 + $0x190] sm:$0xff]
  %v5954 = vld [vmem:[%s13 + $0x198] sm:$0xff]
  %v5955 = vld [vmem:[%s13 + $0x1a0] sm:$0xff]
  %v5956 = vld [vmem:[%s13 + $0x1a8] sm:$0xff]
  %v5957 = vld [vmem:[%s13 + $0x1b0] sm:$0xff]
  %v5958 = vld [vmem:[%s13 + $0x1b8] sm:$0xff]
  %v5959 = vld [vmem:[%s13 + $0x1c0] sm:$0xff]
  %v5960 = vld [vmem:[%s13 + $0x1c8] sm:$0xff]
  %v5961 = vld [vmem:[%s13 + $0x1d0] sm:$0xff]
  %v5962 = vld [vmem:[%s13 + $0x1d8] sm:$0xff]
  %v5963 = vld [vmem:[%s13 + $0x1e0] sm:$0xff]
  %v5964 = vld [vmem:[%s13 + $0x1e8] sm:$0xff]
  %v5965 = vld [vmem:[%s13 + $0x1f0] sm:$0xff]
  %v5966 = vld [vmem:[%s13 + $0x1f8] sm:$0xff]
  %v5967 = vld [vmem:[%s13 + $0x200] sm:$0xff]
  %v5968 = vld [vmem:[%s13 + $0x208] sm:$0xff]
  %v5969 = vld [vmem:[%s13 + $0x210] sm:$0xff]
  %v5970 = vld [vmem:[%s13 + $0x218] sm:$0xff]
  %v5971 = vld [vmem:[%s13 + $0x220] sm:$0xff]
  %v5972 = vld [vmem:[%s13 + $0x228] sm:$0xff]
  %v5973 = vld [vmem:[%s13 + $0x230] sm:$0xff]
  %v5974 = vld [vmem:[%s13 + $0x238] sm:$0xff]
  %v5975 = vld [vmem:[%s13 + $0x240] sm:$0xff]
  %v5976 = vld [vmem:[%s13 + $0x248] sm:$0xff]
  %v5977 = vld [vmem:[%s13 + $0x250] sm:$0xff]
  %v5978 = vld [vmem:[%s13 + $0x258] sm:$0xff]
  %v5979 = vld [vmem:[%s13 + $0x260] sm:$0xff]
  %v5980 = vld [vmem:[%s13 + $0x268] sm:$0xff]
  %v5981 = vld [vmem:[%s13 + $0x270] sm:$0xff]
  %v5982 = vld [vmem:[%s13 + $0x278] sm:$0xff]
  %v5983 = vld [vmem:[%s13 + $0x280] sm:$0xff]
  %v5984 = vld [vmem:[%s13 + $0x288] sm:$0xff]
  %v5985 = vld [vmem:[%s13 + $0x290] sm:$0xff]
  %v5986 = vld [vmem:[%s13 + $0x298] sm:$0xff]
  %v5987 = vld [vmem:[%s13 + $0x2a0] sm:$0xff]
  %v5988 = vld [vmem:[%s13 + $0x2a8] sm:$0xff]
  %v5989 = vld [vmem:[%s13 + $0x2b0] sm:$0xff]
  %v5990 = vld [vmem:[%s13 + $0x2b8] sm:$0xff]
  %v5991 = vld [vmem:[%s13 + $0x2c0] sm:$0xff]
  %v5992 = vld [vmem:[%s13 + $0x2c8] sm:$0xff]
  %v5993 = vld [vmem:[%s13 + $0x2d0] sm:$0xff]
  %v5994 = vld [vmem:[%s13 + $0x2d8] sm:$0xff]
  %v5995 = vld [vmem:[%s13 + $0x2e0] sm:$0xff]
  %v5996 = vld [vmem:[%s13 + $0x2e8] sm:$0xff]
  %v5997 = vld [vmem:[%s13 + $0x2f0] sm:$0xff]
  %v5998 = vld [vmem:[%s13 + $0x2f8] sm:$0xff]
  %v5999 = vld [vmem:[%s13 + $0x300] sm:$0xff]
  %v6000 = vld [vmem:[%s13 + $0x308] sm:$0xff]
  %v6001 = vld [vmem:[%s13 + $0x310] sm:$0xff]
  %v6002 = vld [vmem:[%s13 + $0x318] sm:$0xff]
  %v6003 = vld [vmem:[%s13 + $0x320] sm:$0xff]
  %v6004 = vld [vmem:[%s13 + $0x328] sm:$0xff]
  %v6005 = vld [vmem:[%s13 + $0x330] sm:$0xff]
  %v6006 = vld [vmem:[%s13 + $0x338] sm:$0xff]
  %v6007 = vld [vmem:[%s13 + $0x340] sm:$0xff]
  %v6008 = vld [vmem:[%s13 + $0x348] sm:$0xff]
  %v6009 = vld [vmem:[%s13 + $0x350] sm:$0xff]
  %v6010 = vld [vmem:[%s13 + $0x358] sm:$0xff]
  %v6011 = vld [vmem:[%s13 + $0x360] sm:$0xff]
  %v6012 = vld [vmem:[%s13 + $0x368] sm:$0xff]
  %v6013 = vld [vmem:[%s13 + $0x370] sm:$0xff]
  %v6014 = vld [vmem:[%s13 + $0x378] sm:$0xff]
  %v6015 = vld [vmem:[%s13 + $0x380] sm:$0xff]
  %v6016 = vld [vmem:[%s13 + $0x388] sm:$0xff]
  %v6017 = vld [vmem:[%s13 + $0x390] sm:$0xff]
  %v6018 = vld [vmem:[%s13 + $0x398] sm:$0xff]
  %v6019 = vld [vmem:[%s13 + $0x3a0] sm:$0xff]
  %v6020 = vld [vmem:[%s13 + $0x3a8] sm:$0xff]
  %v6021 = vld [vmem:[%s13 + $0x3b0] sm:$0xff]
  %v6022 = vld [vmem:[%s13 + $0x3b8] sm:$0xff]
  %v6023 = vld [vmem:[%s13 + $0x3c0] sm:$0xff]
  %v6024 = vld [vmem:[%s13 + $0x3c8] sm:$0xff]
  %v6025 = vld [vmem:[%s13 + $0x3d0] sm:$0xff]
  %v6026 = vld [vmem:[%s13 + $0x3d8] sm:$0xff]
  %v6027 = vld [vmem:[%s13 + $0x3e0] sm:$0xff]
  %v6028 = vld [vmem:[%s13 + $0x3e8] sm:$0xff]
  %v6029 = vld [vmem:[%s13 + $0x3f0] sm:$0xff]
  %v6030 = vld [vmem:[%s13 + $0x3f8] sm:$0xff]
  %v6031 = vld [vmem:[%s14] sm:$0xf]
  %v6033 = vlaneseq
  %v6034 = vshrl.u32 %v6033, 7
  %v6035 = vsub.s32 0, %v6034
  %v6036 = vrot.slane %v6031, %v6035
  %v6037 = vlaneseq
  %v6038 = vshrl.u32 %v6037, 7
  %v6039 = vsub.s32 1, %v6038
  %v6040 = vrot.slane %v6031, %v6039
  %v6041 = vlaneseq
  %v6042 = vshrl.u32 %v6041, 7
  %v6043 = vsub.s32 2, %v6042
  %v6044 = vrot.slane %v6031, %v6043
  %v6045 = vlaneseq
  %v6046 = vshrl.u32 %v6045, 7
  %v6047 = vsub.s32 3, %v6046
  %v6048 = vrot.slane %v6031, %v6047
  %v6181 = vunpack.c.l.b16 %v5903
  %v6182 = vunpack.c.h.b16 %v5903
  %v6183 = vunpack.c.l.b16 %v5904
  %v6184 = vunpack.c.h.b16 %v5904
  %v6185 = vunpack.c.l.b16 %v5905
  %v6186 = vunpack.c.h.b16 %v5905
  %v6187 = vunpack.c.l.b16 %v5906
  %v6188 = vunpack.c.h.b16 %v5906
  %v6189 = vunpack.c.l.b16 %v5907
  %v6190 = vunpack.c.h.b16 %v5907
  %v6191 = vunpack.c.l.b16 %v5908
  %v6192 = vunpack.c.h.b16 %v5908
  %v6193 = vunpack.c.l.b16 %v5909
  %v6194 = vunpack.c.h.b16 %v5909
  %v6195 = vunpack.c.l.b16 %v5910
  %v6196 = vunpack.c.h.b16 %v5910
  %v6197 = vunpack.c.l.b16 %v5911
  %v6198 = vunpack.c.h.b16 %v5911
  %v6199 = vunpack.c.l.b16 %v5912
  %v6200 = vunpack.c.h.b16 %v5912
  %v6201 = vunpack.c.l.b16 %v5913
  %v6202 = vunpack.c.h.b16 %v5913
  %v6203 = vunpack.c.l.b16 %v5914
  %v6204 = vunpack.c.h.b16 %v5914
  %v6205 = vunpack.c.l.b16 %v5915
  %v6206 = vunpack.c.h.b16 %v5915
  %v6207 = vunpack.c.l.b16 %v5916
  %v6208 = vunpack.c.h.b16 %v5916
  %v6209 = vunpack.c.l.b16 %v5917
  %v6210 = vunpack.c.h.b16 %v5917
  %v6211 = vunpack.c.l.b16 %v5918
  %v6212 = vunpack.c.h.b16 %v5918
  %v6213 = vunpack.c.l.b16 %v5919
  %v6214 = vunpack.c.h.b16 %v5919
  %v6215 = vunpack.c.l.b16 %v5920
  %v6216 = vunpack.c.h.b16 %v5920
  %v6217 = vunpack.c.l.b16 %v5921
  %v6218 = vunpack.c.h.b16 %v5921
  %v6219 = vunpack.c.l.b16 %v5922
  %v6220 = vunpack.c.h.b16 %v5922
  %v6221 = vunpack.c.l.b16 %v5923
  %v6222 = vunpack.c.h.b16 %v5923
  %v6223 = vunpack.c.l.b16 %v5924
  %v6224 = vunpack.c.h.b16 %v5924
  %v6225 = vunpack.c.l.b16 %v5925
  %v6226 = vunpack.c.h.b16 %v5925
  %v6227 = vunpack.c.l.b16 %v5926
  %v6228 = vunpack.c.h.b16 %v5926
  %v6229 = vunpack.c.l.b16 %v5927
  %v6230 = vunpack.c.h.b16 %v5927
  %v6231 = vunpack.c.l.b16 %v5928
  %v6232 = vunpack.c.h.b16 %v5928
  %v6233 = vunpack.c.l.b16 %v5929
  %v6234 = vunpack.c.h.b16 %v5929
  %v6235 = vunpack.c.l.b16 %v5930
  %v6236 = vunpack.c.h.b16 %v5930
  %v6237 = vunpack.c.l.b16 %v5931
  %v6238 = vunpack.c.h.b16 %v5931
  %v6239 = vunpack.c.l.b16 %v5932
  %v6240 = vunpack.c.h.b16 %v5932
  %v6241 = vunpack.c.l.b16 %v5933
  %v6242 = vunpack.c.h.b16 %v5933
  %v6243 = vunpack.c.l.b16 %v5934
  %v6244 = vunpack.c.h.b16 %v5934
  %v6245 = vunpack.c.l.b16 %v5935
  %v6246 = vunpack.c.h.b16 %v5935
  %v6247 = vunpack.c.l.b16 %v5936
  %v6248 = vunpack.c.h.b16 %v5936
  %v6249 = vunpack.c.l.b16 %v5937
  %v6250 = vunpack.c.h.b16 %v5937
  %v6251 = vunpack.c.l.b16 %v5938
  %v6252 = vunpack.c.h.b16 %v5938
  %v6253 = vunpack.c.l.b16 %v5939
  %v6254 = vunpack.c.h.b16 %v5939
  %v6255 = vunpack.c.l.b16 %v5940
  %v6256 = vunpack.c.h.b16 %v5940
  %v6257 = vunpack.c.l.b16 %v5941
  %v6258 = vunpack.c.h.b16 %v5941
  %v6259 = vunpack.c.l.b16 %v5942
  %v6260 = vunpack.c.h.b16 %v5942
  %v6261 = vunpack.c.l.b16 %v5943
  %v6262 = vunpack.c.h.b16 %v5943
  %v6263 = vunpack.c.l.b16 %v5944
  %v6264 = vunpack.c.h.b16 %v5944
  %v6265 = vunpack.c.l.b16 %v5945
  %v6266 = vunpack.c.h.b16 %v5945
  %v6267 = vunpack.c.l.b16 %v5946
  %v6268 = vunpack.c.h.b16 %v5946
  %v6269 = vunpack.c.l.b16 %v5947
  %v6270 = vunpack.c.h.b16 %v5947
  %v6271 = vunpack.c.l.b16 %v5948
  %v6272 = vunpack.c.h.b16 %v5948
  %v6273 = vunpack.c.l.b16 %v5949
  %v6274 = vunpack.c.h.b16 %v5949
  %v6275 = vunpack.c.l.b16 %v5950
  %v6276 = vunpack.c.h.b16 %v5950
  %v6277 = vunpack.c.l.b16 %v5951
  %v6278 = vunpack.c.h.b16 %v5951
  %v6279 = vunpack.c.l.b16 %v5952
  %v6280 = vunpack.c.h.b16 %v5952
  %v6281 = vunpack.c.l.b16 %v5953
  %v6282 = vunpack.c.h.b16 %v5953
  %v6283 = vunpack.c.l.b16 %v5954
  %v6284 = vunpack.c.h.b16 %v5954
  %v6285 = vunpack.c.l.b16 %v5955
  %v6286 = vunpack.c.h.b16 %v5955
  %v6287 = vunpack.c.l.b16 %v5956
  %v6288 = vunpack.c.h.b16 %v5956
  %v6289 = vunpack.c.l.b16 %v5957
  %v6290 = vunpack.c.h.b16 %v5957
  %v6291 = vunpack.c.l.b16 %v5958
  %v6292 = vunpack.c.h.b16 %v5958
  %v6293 = vunpack.c.l.b16 %v5959
  %v6294 = vunpack.c.h.b16 %v5959
  %v6295 = vunpack.c.l.b16 %v5960
  %v6296 = vunpack.c.h.b16 %v5960
  %v6297 = vunpack.c.l.b16 %v5961
  %v6298 = vunpack.c.h.b16 %v5961
  %v6299 = vunpack.c.l.b16 %v5962
  %v6300 = vunpack.c.h.b16 %v5962
  %v6301 = vunpack.c.l.b16 %v5963
  %v6302 = vunpack.c.h.b16 %v5963
  %v6303 = vunpack.c.l.b16 %v5964
  %v6304 = vunpack.c.h.b16 %v5964
  %v6305 = vunpack.c.l.b16 %v5965
  %v6306 = vunpack.c.h.b16 %v5965
  %v6307 = vunpack.c.l.b16 %v5966
  %v6308 = vunpack.c.h.b16 %v5966
  %v6309 = vunpack.c.l.b16 %v5967
  %v6310 = vunpack.c.h.b16 %v5967
  %v6311 = vunpack.c.l.b16 %v5968
  %v6312 = vunpack.c.h.b16 %v5968
  %v6313 = vunpack.c.l.b16 %v5969
  %v6314 = vunpack.c.h.b16 %v5969
  %v6315 = vunpack.c.l.b16 %v5970
  %v6316 = vunpack.c.h.b16 %v5970
  %v6317 = vunpack.c.l.b16 %v5971
  %v6318 = vunpack.c.h.b16 %v5971
  %v6319 = vunpack.c.l.b16 %v5972
  %v6320 = vunpack.c.h.b16 %v5972
  %v6321 = vunpack.c.l.b16 %v5973
  %v6322 = vunpack.c.h.b16 %v5973
  %v6323 = vunpack.c.l.b16 %v5974
  %v6324 = vunpack.c.h.b16 %v5974
  %v6325 = vunpack.c.l.b16 %v5975
  %v6326 = vunpack.c.h.b16 %v5975
  %v6327 = vunpack.c.l.b16 %v5976
  %v6328 = vunpack.c.h.b16 %v5976
  %v6329 = vunpack.c.l.b16 %v5977
  %v6330 = vunpack.c.h.b16 %v5977
  %v6331 = vunpack.c.l.b16 %v5978
  %v6332 = vunpack.c.h.b16 %v5978
  %v6333 = vunpack.c.l.b16 %v5979
  %v6334 = vunpack.c.h.b16 %v5979
  %v6335 = vunpack.c.l.b16 %v5980
  %v6336 = vunpack.c.h.b16 %v5980
  %v6337 = vunpack.c.l.b16 %v5981
  %v6338 = vunpack.c.h.b16 %v5981
  %v6339 = vunpack.c.l.b16 %v5982
  %v6340 = vunpack.c.h.b16 %v5982
  %v6341 = vunpack.c.l.b16 %v5983
  %v6342 = vunpack.c.h.b16 %v5983
  %v6343 = vunpack.c.l.b16 %v5984
  %v6344 = vunpack.c.h.b16 %v5984
  %v6345 = vunpack.c.l.b16 %v5985
  %v6346 = vunpack.c.h.b16 %v5985
  %v6347 = vunpack.c.l.b16 %v5986
  %v6348 = vunpack.c.h.b16 %v5986
  %v6349 = vunpack.c.l.b16 %v5987
  %v6350 = vunpack.c.h.b16 %v5987
  %v6351 = vunpack.c.l.b16 %v5988
  %v6352 = vunpack.c.h.b16 %v5988
  %v6353 = vunpack.c.l.b16 %v5989
  %v6354 = vunpack.c.h.b16 %v5989
  %v6355 = vunpack.c.l.b16 %v5990
  %v6356 = vunpack.c.h.b16 %v5990
  %v6357 = vunpack.c.l.b16 %v5991
  %v6358 = vunpack.c.h.b16 %v5991
  %v6359 = vunpack.c.l.b16 %v5992
  %v6360 = vunpack.c.h.b16 %v5992
  %v6361 = vunpack.c.l.b16 %v5993
  %v6362 = vunpack.c.h.b16 %v5993
  %v6363 = vunpack.c.l.b16 %v5994
  %v6364 = vunpack.c.h.b16 %v5994
  %v6365 = vunpack.c.l.b16 %v5995
  %v6366 = vunpack.c.h.b16 %v5995
  %v6367 = vunpack.c.l.b16 %v5996
  %v6368 = vunpack.c.h.b16 %v5996
  %v6369 = vunpack.c.l.b16 %v5997
  %v6370 = vunpack.c.h.b16 %v5997
  %v6371 = vunpack.c.l.b16 %v5998
  %v6372 = vunpack.c.h.b16 %v5998
  %v6373 = vunpack.c.l.b16 %v5999
  %v6374 = vunpack.c.h.b16 %v5999
  %v6375 = vunpack.c.l.b16 %v6000
  %v6376 = vunpack.c.h.b16 %v6000
  %v6377 = vunpack.c.l.b16 %v6001
  %v6378 = vunpack.c.h.b16 %v6001
  %v6379 = vunpack.c.l.b16 %v6002
  %v6380 = vunpack.c.h.b16 %v6002
  %v6381 = vunpack.c.l.b16 %v6003
  %v6382 = vunpack.c.h.b16 %v6003
  %v6383 = vunpack.c.l.b16 %v6004
  %v6384 = vunpack.c.h.b16 %v6004
  %v6385 = vunpack.c.l.b16 %v6005
  %v6386 = vunpack.c.h.b16 %v6005
  %v6387 = vunpack.c.l.b16 %v6006
  %v6388 = vunpack.c.h.b16 %v6006
  %v6389 = vunpack.c.l.b16 %v6007
  %v6390 = vunpack.c.h.b16 %v6007
  %v6391 = vunpack.c.l.b16 %v6008
  %v6392 = vunpack.c.h.b16 %v6008
  %v6393 = vunpack.c.l.b16 %v6009
  %v6394 = vunpack.c.h.b16 %v6009
  %v6395 = vunpack.c.l.b16 %v6010
  %v6396 = vunpack.c.h.b16 %v6010
  %v6397 = vunpack.c.l.b16 %v6011
  %v6398 = vunpack.c.h.b16 %v6011
  %v6399 = vunpack.c.l.b16 %v6012
  %v6400 = vunpack.c.h.b16 %v6012
  %v6401 = vunpack.c.l.b16 %v6013
  %v6402 = vunpack.c.h.b16 %v6013
  %v6403 = vunpack.c.l.b16 %v6014
  %v6404 = vunpack.c.h.b16 %v6014
  %v6405 = vunpack.c.l.b16 %v6015
  %v6406 = vunpack.c.h.b16 %v6015
  %v6407 = vunpack.c.l.b16 %v6016
  %v6408 = vunpack.c.h.b16 %v6016
  %v6409 = vunpack.c.l.b16 %v6017
  %v6410 = vunpack.c.h.b16 %v6017
  %v6411 = vunpack.c.l.b16 %v6018
  %v6412 = vunpack.c.h.b16 %v6018
  %v6413 = vunpack.c.l.b16 %v6019
  %v6414 = vunpack.c.h.b16 %v6019
  %v6415 = vunpack.c.l.b16 %v6020
  %v6416 = vunpack.c.h.b16 %v6020
  %v6417 = vunpack.c.l.b16 %v6021
  %v6418 = vunpack.c.h.b16 %v6021
  %v6419 = vunpack.c.l.b16 %v6022
  %v6420 = vunpack.c.h.b16 %v6022
  %v6421 = vunpack.c.l.b16 %v6023
  %v6422 = vunpack.c.h.b16 %v6023
  %v6423 = vunpack.c.l.b16 %v6024
  %v6424 = vunpack.c.h.b16 %v6024
  %v6425 = vunpack.c.l.b16 %v6025
  %v6426 = vunpack.c.h.b16 %v6025
  %v6427 = vunpack.c.l.b16 %v6026
  %v6428 = vunpack.c.h.b16 %v6026
  %v6429 = vunpack.c.l.b16 %v6027
  %v6430 = vunpack.c.h.b16 %v6027
  %v6431 = vunpack.c.l.b16 %v6028
  %v6432 = vunpack.c.h.b16 %v6028
  %v6433 = vunpack.c.l.b16 %v6029
  %v6434 = vunpack.c.h.b16 %v6029
  %v6435 = vunpack.c.l.b16 %v6030
  %v6436 = vunpack.c.h.b16 %v6030
  %v6437 = vpack.c.b16 %v6185, %v6181
  %v6438 = vpack.c.b16 %v6186, %v6182
  %v6439 = vpack.c.b16 %v6187, %v6183
  %v6440 = vpack.c.b16 %v6188, %v6184
  %v6441 = vpack.c.b16 %v6193, %v6189
  %v6442 = vpack.c.b16 %v6194, %v6190
  %v6443 = vpack.c.b16 %v6195, %v6191
  %v6444 = vpack.c.b16 %v6196, %v6192
  %v6445 = vpack.c.b16 %v6201, %v6197
  %v6446 = vpack.c.b16 %v6202, %v6198
  %v6447 = vpack.c.b16 %v6203, %v6199
  %v6448 = vpack.c.b16 %v6204, %v6200
  %v6449 = vpack.c.b16 %v6209, %v6205
  %v6450 = vpack.c.b16 %v6210, %v6206
  %v6451 = vpack.c.b16 %v6211, %v6207
  %v6452 = vpack.c.b16 %v6212, %v6208
  %v6453 = vpack.c.b16 %v6217, %v6213
  %v6454 = vpack.c.b16 %v6218, %v6214
  %v6455 = vpack.c.b16 %v6219, %v6215
  %v6456 = vpack.c.b16 %v6220, %v6216
  %v6457 = vpack.c.b16 %v6225, %v6221
  %v6458 = vpack.c.b16 %v6226, %v6222
  %v6459 = vpack.c.b16 %v6227, %v6223
  %v6460 = vpack.c.b16 %v6228, %v6224
  %v6461 = vpack.c.b16 %v6233, %v6229
  %v6462 = vpack.c.b16 %v6234, %v6230
  %v6463 = vpack.c.b16 %v6235, %v6231
  %v6464 = vpack.c.b16 %v6236, %v6232
  %v6465 = vpack.c.b16 %v6241, %v6237
  %v6466 = vpack.c.b16 %v6242, %v6238
  %v6467 = vpack.c.b16 %v6243, %v6239
  %v6468 = vpack.c.b16 %v6244, %v6240
  %v6469 = vpack.c.b16 %v6249, %v6245
  %v6470 = vpack.c.b16 %v6250, %v6246
  %v6471 = vpack.c.b16 %v6251, %v6247
  %v6472 = vpack.c.b16 %v6252, %v6248
  %v6473 = vpack.c.b16 %v6257, %v6253
  %v6474 = vpack.c.b16 %v6258, %v6254
  %v6475 = vpack.c.b16 %v6259, %v6255
  %v6476 = vpack.c.b16 %v6260, %v6256
  %v6477 = vpack.c.b16 %v6265, %v6261
  %v6478 = vpack.c.b16 %v6266, %v6262
  %v6479 = vpack.c.b16 %v6267, %v6263
  %v6480 = vpack.c.b16 %v6268, %v6264
  %v6481 = vpack.c.b16 %v6273, %v6269
  %v6482 = vpack.c.b16 %v6274, %v6270
  %v6483 = vpack.c.b16 %v6275, %v6271
  %v6484 = vpack.c.b16 %v6276, %v6272
  %v6485 = vpack.c.b16 %v6281, %v6277
  %v6486 = vpack.c.b16 %v6282, %v6278
  %v6487 = vpack.c.b16 %v6283, %v6279
  %v6488 = vpack.c.b16 %v6284, %v6280
  %v6489 = vpack.c.b16 %v6289, %v6285
  %v6490 = vpack.c.b16 %v6290, %v6286
  %v6491 = vpack.c.b16 %v6291, %v6287
  %v6492 = vpack.c.b16 %v6292, %v6288
  %v6493 = vpack.c.b16 %v6297, %v6293
  %v6494 = vpack.c.b16 %v6298, %v6294
  %v6495 = vpack.c.b16 %v6299, %v6295
  %v6496 = vpack.c.b16 %v6300, %v6296
  %v6497 = vpack.c.b16 %v6305, %v6301
  %v6498 = vpack.c.b16 %v6306, %v6302
  %v6499 = vpack.c.b16 %v6307, %v6303
  %v6500 = vpack.c.b16 %v6308, %v6304
  %v6501 = vpack.c.b16 %v6313, %v6309
  %v6502 = vpack.c.b16 %v6314, %v6310
  %v6503 = vpack.c.b16 %v6315, %v6311
  %v6504 = vpack.c.b16 %v6316, %v6312
  %v6505 = vpack.c.b16 %v6321, %v6317
  %v6506 = vpack.c.b16 %v6322, %v6318
  %v6507 = vpack.c.b16 %v6323, %v6319
  %v6508 = vpack.c.b16 %v6324, %v6320
  %v6509 = vpack.c.b16 %v6329, %v6325
  %v6510 = vpack.c.b16 %v6330, %v6326
  %v6511 = vpack.c.b16 %v6331, %v6327
  %v6512 = vpack.c.b16 %v6332, %v6328
  %v6513 = vpack.c.b16 %v6337, %v6333
  %v6514 = vpack.c.b16 %v6338, %v6334
  %v6515 = vpack.c.b16 %v6339, %v6335
  %v6516 = vpack.c.b16 %v6340, %v6336
  %v6517 = vpack.c.b16 %v6345, %v6341
  %v6518 = vpack.c.b16 %v6346, %v6342
  %v6519 = vpack.c.b16 %v6347, %v6343
  %v6520 = vpack.c.b16 %v6348, %v6344
  %v6521 = vpack.c.b16 %v6353, %v6349
  %v6522 = vpack.c.b16 %v6354, %v6350
  %v6523 = vpack.c.b16 %v6355, %v6351
  %v6524 = vpack.c.b16 %v6356, %v6352
  %v6525 = vpack.c.b16 %v6361, %v6357
  %v6526 = vpack.c.b16 %v6362, %v6358
  %v6527 = vpack.c.b16 %v6363, %v6359
  %v6528 = vpack.c.b16 %v6364, %v6360
  %v6529 = vpack.c.b16 %v6369, %v6365
  %v6530 = vpack.c.b16 %v6370, %v6366
  %v6531 = vpack.c.b16 %v6371, %v6367
  %v6532 = vpack.c.b16 %v6372, %v6368
  %v6533 = vpack.c.b16 %v6377, %v6373
  %v6534 = vpack.c.b16 %v6378, %v6374
  %v6535 = vpack.c.b16 %v6379, %v6375
  %v6536 = vpack.c.b16 %v6380, %v6376
  %v6537 = vpack.c.b16 %v6385, %v6381
  %v6538 = vpack.c.b16 %v6386, %v6382
  %v6539 = vpack.c.b16 %v6387, %v6383
  %v6540 = vpack.c.b16 %v6388, %v6384
  %v6541 = vpack.c.b16 %v6393, %v6389
  %v6542 = vpack.c.b16 %v6394, %v6390
  %v6543 = vpack.c.b16 %v6395, %v6391
  %v6544 = vpack.c.b16 %v6396, %v6392
  %v6545 = vpack.c.b16 %v6401, %v6397
  %v6546 = vpack.c.b16 %v6402, %v6398
  %v6547 = vpack.c.b16 %v6403, %v6399
  %v6548 = vpack.c.b16 %v6404, %v6400
  %v6549 = vpack.c.b16 %v6409, %v6405
  %v6550 = vpack.c.b16 %v6410, %v6406
  %v6551 = vpack.c.b16 %v6411, %v6407
  %v6552 = vpack.c.b16 %v6412, %v6408
  %v6553 = vpack.c.b16 %v6417, %v6413
  %v6554 = vpack.c.b16 %v6418, %v6414
  %v6555 = vpack.c.b16 %v6419, %v6415
  %v6556 = vpack.c.b16 %v6420, %v6416
  %v6557 = vpack.c.b16 %v6425, %v6421
  %v6558 = vpack.c.b16 %v6426, %v6422
  %v6559 = vpack.c.b16 %v6427, %v6423
  %v6560 = vpack.c.b16 %v6428, %v6424
  %v6561 = vpack.c.b16 %v6433, %v6429
  %v6562 = vpack.c.b16 %v6434, %v6430
  %v6563 = vpack.c.b16 %v6435, %v6431
  %v6564 = vpack.c.b16 %v6436, %v6432
  %6693 = vmatprep.subr.bf16.mxu0 %v6466
  %6694 = vmatpush1.bf16.msra.mxu0 %v6465
  %6695 = vmatprep.subr.bf16.mxu0 %v6462
  %6696 = vmatpush1.bf16.msra.mxu0 %v6461
  %6697 = vmatprep.subr.bf16.mxu0 %v6458
  %6698 = vmatpush1.bf16.msra.mxu0 %v6457
  %6699 = vmatprep.subr.bf16.mxu0 %v6454
  %6700 = vmatpush1.bf16.msra.mxu0 %v6453
  %6701 = vmatprep.subr.bf16.mxu0 %v6450
  %6702 = vmatpush1.bf16.msra.mxu0 %v6449
  %6703 = vmatprep.subr.bf16.mxu0 %v6446
  %6704 = vmatpush1.bf16.msra.mxu0 %v6445
  %6705 = vmatprep.subr.bf16.mxu0 %v6442
  %6706 = vmatpush1.bf16.msra.mxu0 %v6441
  %6707 = vmatprep.subr.bf16.mxu0 %v6438
  %6708 = vmatpush1.bf16.msra.mxu0 %v6437
  %6709 = vmatprep.subr.bf16.mxu0 %v6498
  %6710 = vmatpush2.bf16.msra.mxu0 %v6497
  %6711 = vmatprep.subr.bf16.mxu0 %v6494
  %6712 = vmatpush2.bf16.msra.mxu0 %v6493
  %6713 = vmatprep.subr.bf16.mxu0 %v6490
  %6714 = vmatpush2.bf16.msra.mxu0 %v6489
  %6715 = vmatprep.subr.bf16.mxu0 %v6486
  %6716 = vmatpush2.bf16.msra.mxu0 %v6485
  %6717 = vmatprep.subr.bf16.mxu0 %v6482
  %6718 = vmatpush2.bf16.msra.mxu0 %v6481
  %6719 = vmatprep.subr.bf16.mxu0 %v6478
  %6720 = vmatpush2.bf16.msra.mxu0 %v6477
  %6721 = vmatprep.subr.bf16.mxu0 %v6474
  %6722 = vmatpush2.bf16.msra.mxu0 %v6473
  %6723 = vmatprep.subr.bf16.mxu0 %v6470
  %6724 = vmatpush2.bf16.msra.mxu0 %v6469
  %6725 = vmatprep.mubr.bf16.mxu0 %v4938
  %6726 = vmatmul.mubr.bf16.gmra.mxu0 %v4937
  %v6727 = vpop.f32.mrf.mxu0
  %v6728 = vadd.f32 %v6036, %v6727
  %v6729 = vpop.f32.mrf.mxu0
  %v6730 = vadd.f32 %v6040, %v6729
  %v6731 = vpop.f32.mrf.mxu0
  %v6732 = vpop.f32.mrf.mxu0
  %6733 = vdwg.mxu0
  %6734 = vmatprep.subr.bf16.mxu0 %v6530
  %6735 = vmatpush1.bf16.msra.mxu0 %v6529
  %6736 = vmatprep.subr.bf16.mxu0 %v6526
  %6737 = vmatpush1.bf16.msra.mxu0 %v6525
  %6738 = vmatprep.subr.bf16.mxu0 %v6522
  %6739 = vmatpush1.bf16.msra.mxu0 %v6521
  %6740 = vmatprep.subr.bf16.mxu0 %v6518
  %6741 = vmatpush1.bf16.msra.mxu0 %v6517
  %6742 = vmatprep.subr.bf16.mxu0 %v6514
  %6743 = vmatpush1.bf16.msra.mxu0 %v6513
  %6744 = vmatprep.subr.bf16.mxu0 %v6510
  %6745 = vmatpush1.bf16.msra.mxu0 %v6509
  %6746 = vmatprep.subr.bf16.mxu0 %v6506
  %6747 = vmatpush1.bf16.msra.mxu0 %v6505
  %6748 = vmatprep.subr.bf16.mxu0 %v6502
  %6749 = vmatpush1.bf16.msra.mxu0 %v6501
  %6750 = vmatprep.subr.bf16.mxu0 %v6562
  %6751 = vmatpush2.bf16.msra.mxu0 %v6561
  %6752 = vmatprep.subr.bf16.mxu0 %v6558
  %6753 = vmatpush2.bf16.msra.mxu0 %v6557
  %6754 = vmatprep.subr.bf16.mxu0 %v6554
  %6755 = vmatpush2.bf16.msra.mxu0 %v6553
  %6756 = vmatprep.subr.bf16.mxu0 %v6550
  %6757 = vmatpush2.bf16.msra.mxu0 %v6549
  %6758 = vmatprep.subr.bf16.mxu0 %v6546
  %6759 = vmatpush2.bf16.msra.mxu0 %v6545
  %6760 = vmatprep.subr.bf16.mxu0 %v6542
  %6761 = vmatpush2.bf16.msra.mxu0 %v6541
  %6762 = vmatprep.subr.bf16.mxu0 %v6538
  %6763 = vmatpush2.bf16.msra.mxu0 %v6537
  %6764 = vmatprep.subr.bf16.mxu0 %v6534
  %6765 = vmatpush2.bf16.msra.mxu0 %v6533
  %6766 = vmatprep.mubr.bf16.mxu0 %v4940
  %6767 = vmatmul.mubr.bf16.gmra.mxu0 %v4939
  %v6768 = vpop.f32.mrf.mxu0
  %v6769 = vadd.f32 %v6728, %v6768
  %v6770 = vpop.f32.mrf.mxu0
  %v6771 = vadd.f32 %v6730, %v6770
  %v6772 = vpop.f32.mrf.mxu0
  %v6773 = vpop.f32.mrf.mxu0
  %6774 = vdwg.mxu0
  %6775 = vmatprep.subr.bf16.mxu0 %v6468
  %6776 = vmatpush1.bf16.msra.mxu0 %v6467
  %6777 = vmatprep.subr.bf16.mxu0 %v6464
  %6778 = vmatpush1.bf16.msra.mxu0 %v6463
  %6779 = vmatprep.subr.bf16.mxu0 %v6460
  %6780 = vmatpush1.bf16.msra.mxu0 %v6459
  %6781 = vmatprep.subr.bf16.mxu0 %v6456
  %6782 = vmatpush1.bf16.msra.mxu0 %v6455
  %6783 = vmatprep.subr.bf16.mxu0 %v6452
  %6784 = vmatpush1.bf16.msra.mxu0 %v6451
  %6785 = vmatprep.subr.bf16.mxu0 %v6448
  %6786 = vmatpush1.bf16.msra.mxu0 %v6447
  %6787 = vmatprep.subr.bf16.mxu0 %v6444
  %6788 = vmatpush1.bf16.msra.mxu0 %v6443
  %6789 = vmatprep.subr.bf16.mxu0 %v6440
  %6790 = vmatpush1.bf16.msra.mxu0 %v6439
  %6791 = vmatprep.subr.bf16.mxu0 %v6500
  %6792 = vmatpush2.bf16.msra.mxu0 %v6499
  %6793 = vmatprep.subr.bf16.mxu0 %v6496
  %6794 = vmatpush2.bf16.msra.mxu0 %v6495
  %6795 = vmatprep.subr.bf16.mxu0 %v6492
  %6796 = vmatpush2.bf16.msra.mxu0 %v6491
  %6797 = vmatprep.subr.bf16.mxu0 %v6488
  %6798 = vmatpush2.bf16.msra.mxu0 %v6487
  %6799 = vmatprep.subr.bf16.mxu0 %v6484
  %6800 = vmatpush2.bf16.msra.mxu0 %v6483
  %6801 = vmatprep.subr.bf16.mxu0 %v6480
  %6802 = vmatpush2.bf16.msra.mxu0 %v6479
  %6803 = vmatprep.subr.bf16.mxu0 %v6476
  %6804 = vmatpush2.bf16.msra.mxu0 %v6475
  %6805 = vmatprep.subr.bf16.mxu0 %v6472
  %6806 = vmatpush2.bf16.msra.mxu0 %v6471
  %6807 = vmatprep.mubr.bf16.mxu0 %v4938
  %6808 = vmatmul.mubr.bf16.gmra.mxu0 %v4937
  %v6809 = vpop.f32.mrf.mxu0
  %v6810 = vadd.f32 %v6044, %v6809
  %v6811 = vpop.f32.mrf.mxu0
  %v6812 = vadd.f32 %v6048, %v6811
  %v6813 = vpop.f32.mrf.mxu0
  %v6814 = vpop.f32.mrf.mxu0
  %6815 = vdwg.mxu0
  %6816 = vmatprep.subr.bf16.mxu0 %v6532
  %6817 = vmatpush1.bf16.msra.mxu0 %v6531
  %6818 = vmatprep.subr.bf16.mxu0 %v6528
  %6819 = vmatpush1.bf16.msra.mxu0 %v6527
  %6820 = vmatprep.subr.bf16.mxu0 %v6524
  %6821 = vmatpush1.bf16.msra.mxu0 %v6523
  %6822 = vmatprep.subr.bf16.mxu0 %v6520
  %6823 = vmatpush1.bf16.msra.mxu0 %v6519
  %6824 = vmatprep.subr.bf16.mxu0 %v6516
  %6825 = vmatpush1.bf16.msra.mxu0 %v6515
  %6826 = vmatprep.subr.bf16.mxu0 %v6512
  %6827 = vmatpush1.bf16.msra.mxu0 %v6511
  %6828 = vmatprep.subr.bf16.mxu0 %v6508
  %6829 = vmatpush1.bf16.msra.mxu0 %v6507
  %6830 = vmatprep.subr.bf16.mxu0 %v6504
  %6831 = vmatpush1.bf16.msra.mxu0 %v6503
  %6832 = vmatprep.subr.bf16.mxu0 %v6564
  %6833 = vmatpush2.bf16.msra.mxu0 %v6563
  %6834 = vmatprep.subr.bf16.mxu0 %v6560
  %6835 = vmatpush2.bf16.msra.mxu0 %v6559
  %6836 = vmatprep.subr.bf16.mxu0 %v6556
  %6837 = vmatpush2.bf16.msra.mxu0 %v6555
  %6838 = vmatprep.subr.bf16.mxu0 %v6552
  %6839 = vmatpush2.bf16.msra.mxu0 %v6551
  %6840 = vmatprep.subr.bf16.mxu0 %v6548
  %6841 = vmatpush2.bf16.msra.mxu0 %v6547
  %6842 = vmatprep.subr.bf16.mxu0 %v6544
  %6843 = vmatpush2.bf16.msra.mxu0 %v6543
  %6844 = vmatprep.subr.bf16.mxu0 %v6540
  %6845 = vmatpush2.bf16.msra.mxu0 %v6539
  %6846 = vmatprep.subr.bf16.mxu0 %v6536
  %6847 = vmatpush2.bf16.msra.mxu0 %v6535
  %6848 = vmatprep.mubr.bf16.mxu0 %v4940
  %6849 = vmatmul.mubr.bf16.gmra.mxu0 %v4939
  %v6850 = vpop.f32.mrf.mxu0
  %v6851 = vadd.f32 %v6810, %v6850
  %v6852 = vpop.f32.mrf.mxu0
  %v6853 = vadd.f32 %v6812, %v6852
  %v6854 = vpop.f32.mrf.mxu0
  %v6855 = vpop.f32.mrf.mxu0
  %6856 = vdwg.mxu0
  %v6857 = vmax.f32 %v6769, 0.0
  %v6858 = vmax.f32 %v6771, 0.0
  %v6859 = vmax.f32 %v6851, 0.0
  %v6860 = vmax.f32 %v6853, 0.0
  %v6861 = vpack.c.bf16 %v6857, %v6857
  %v6862 = vpack.c.bf16 %v6858, %v6858
  %v6863 = vpack.c.bf16 %v6859, %v6859
  %v6864 = vpack.c.bf16 %v6860, %v6860
  %v6865 = vld [vmem:[%s15] sm:$0xf]
  %v6866 = vld [vmem:[%s15 + $0x4] sm:$0xf]
  %v6867 = vld [vmem:[%s15 + $0x8] sm:$0xf]
  %v6868 = vld [vmem:[%s15 + $0xc] sm:$0xf]
  %v6869 = vld [vmem:[%s15 + $0x10] sm:$0xf]
  %v6870 = vld [vmem:[%s15 + $0x14] sm:$0xf]
  %v6871 = vld [vmem:[%s15 + $0x18] sm:$0xf]
  %v6872 = vld [vmem:[%s15 + $0x1c] sm:$0xf]
  %v6873 = vld [vmem:[%s15 + $0x20] sm:$0xf]
  %v6874 = vld [vmem:[%s15 + $0x24] sm:$0xf]
  %v6875 = vld [vmem:[%s15 + $0x28] sm:$0xf]
  %v6876 = vld [vmem:[%s15 + $0x2c] sm:$0xf]
  %v6877 = vld [vmem:[%s15 + $0x30] sm:$0xf]
  %v6878 = vld [vmem:[%s15 + $0x34] sm:$0xf]
  %v6879 = vld [vmem:[%s15 + $0x38] sm:$0xf]
  %v6880 = vld [vmem:[%s15 + $0x3c] sm:$0xf]
  %v6881 = vld [vmem:[%s15 + $0x40] sm:$0xf]
  %v6882 = vld [vmem:[%s15 + $0x44] sm:$0xf]
  %v6883 = vld [vmem:[%s15 + $0x48] sm:$0xf]
  %v6884 = vld [vmem:[%s15 + $0x4c] sm:$0xf]
  %v6885 = vld [vmem:[%s15 + $0x50] sm:$0xf]
  %v6886 = vld [vmem:[%s15 + $0x54] sm:$0xf]
  %v6887 = vld [vmem:[%s15 + $0x58] sm:$0xf]
  %v6888 = vld [vmem:[%s15 + $0x5c] sm:$0xf]
  %v6889 = vld [vmem:[%s15 + $0x60] sm:$0xf]
  %v6890 = vld [vmem:[%s15 + $0x64] sm:$0xf]
  %v6891 = vld [vmem:[%s15 + $0x68] sm:$0xf]
  %v6892 = vld [vmem:[%s15 + $0x6c] sm:$0xf]
  %v6893 = vld [vmem:[%s15 + $0x70] sm:$0xf]
  %v6894 = vld [vmem:[%s15 + $0x74] sm:$0xf]
  %v6895 = vld [vmem:[%s15 + $0x78] sm:$0xf]
  %v6896 = vld [vmem:[%s15 + $0x7c] sm:$0xf]
  %v6897 = vld [vmem:[%s15 + $0x80] sm:$0xf]
  %v6898 = vld [vmem:[%s15 + $0x84] sm:$0xf]
  %v6899 = vld [vmem:[%s15 + $0x88] sm:$0xf]
  %v6900 = vld [vmem:[%s15 + $0x8c] sm:$0xf]
  %v6901 = vld [vmem:[%s15 + $0x90] sm:$0xf]
  %v6902 = vld [vmem:[%s15 + $0x94] sm:$0xf]
  %v6903 = vld [vmem:[%s15 + $0x98] sm:$0xf]
  %v6904 = vld [vmem:[%s15 + $0x9c] sm:$0xf]
  %v6905 = vld [vmem:[%s15 + $0xa0] sm:$0xf]
  %v6906 = vld [vmem:[%s15 + $0xa4] sm:$0xf]
  %v6907 = vld [vmem:[%s15 + $0xa8] sm:$0xf]
  %v6908 = vld [vmem:[%s15 + $0xac] sm:$0xf]
  %v6909 = vld [vmem:[%s15 + $0xb0] sm:$0xf]
  %v6910 = vld [vmem:[%s15 + $0xb4] sm:$0xf]
  %v6911 = vld [vmem:[%s15 + $0xb8] sm:$0xf]
  %v6912 = vld [vmem:[%s15 + $0xbc] sm:$0xf]
  %v6913 = vld [vmem:[%s15 + $0xc0] sm:$0xf]
  %v6914 = vld [vmem:[%s15 + $0xc4] sm:$0xf]
  %v6915 = vld [vmem:[%s15 + $0xc8] sm:$0xf]
  %v6916 = vld [vmem:[%s15 + $0xcc] sm:$0xf]
  %v6917 = vld [vmem:[%s15 + $0xd0] sm:$0xf]
  %v6918 = vld [vmem:[%s15 + $0xd4] sm:$0xf]
  %v6919 = vld [vmem:[%s15 + $0xd8] sm:$0xf]
  %v6920 = vld [vmem:[%s15 + $0xdc] sm:$0xf]
  %v6921 = vld [vmem:[%s15 + $0xe0] sm:$0xf]
  %v6922 = vld [vmem:[%s15 + $0xe4] sm:$0xf]
  %v6923 = vld [vmem:[%s15 + $0xe8] sm:$0xf]
  %v6924 = vld [vmem:[%s15 + $0xec] sm:$0xf]
  %v6925 = vld [vmem:[%s15 + $0xf0] sm:$0xf]
  %v6926 = vld [vmem:[%s15 + $0xf4] sm:$0xf]
  %v6927 = vld [vmem:[%s15 + $0xf8] sm:$0xf]
  %v6928 = vld [vmem:[%s15 + $0xfc] sm:$0xf]
  %v6929 = vld [vmem:[%s15 + $0x100] sm:$0xf]
  %v6930 = vld [vmem:[%s15 + $0x104] sm:$0xf]
  %v6931 = vld [vmem:[%s15 + $0x108] sm:$0xf]
  %v6932 = vld [vmem:[%s15 + $0x10c] sm:$0xf]
  %v6933 = vld [vmem:[%s15 + $0x110] sm:$0xf]
  %v6934 = vld [vmem:[%s15 + $0x114] sm:$0xf]
  %v6935 = vld [vmem:[%s15 + $0x118] sm:$0xf]
  %v6936 = vld [vmem:[%s15 + $0x11c] sm:$0xf]
  %v6937 = vld [vmem:[%s15 + $0x120] sm:$0xf]
  %v6938 = vld [vmem:[%s15 + $0x124] sm:$0xf]
  %v6939 = vld [vmem:[%s15 + $0x128] sm:$0xf]
  %v6940 = vld [vmem:[%s15 + $0x12c] sm:$0xf]
  %v6941 = vld [vmem:[%s15 + $0x130] sm:$0xf]
  %v6942 = vld [vmem:[%s15 + $0x134] sm:$0xf]
  %v6943 = vld [vmem:[%s15 + $0x138] sm:$0xf]
  %v6944 = vld [vmem:[%s15 + $0x13c] sm:$0xf]
  %v6945 = vld [vmem:[%s15 + $0x140] sm:$0xf]
  %v6946 = vld [vmem:[%s15 + $0x144] sm:$0xf]
  %v6947 = vld [vmem:[%s15 + $0x148] sm:$0xf]
  %v6948 = vld [vmem:[%s15 + $0x14c] sm:$0xf]
  %v6949 = vld [vmem:[%s15 + $0x150] sm:$0xf]
  %v6950 = vld [vmem:[%s15 + $0x154] sm:$0xf]
  %v6951 = vld [vmem:[%s15 + $0x158] sm:$0xf]
  %v6952 = vld [vmem:[%s15 + $0x15c] sm:$0xf]
  %v6953 = vld [vmem:[%s15 + $0x160] sm:$0xf]
  %v6954 = vld [vmem:[%s15 + $0x164] sm:$0xf]
  %v6955 = vld [vmem:[%s15 + $0x168] sm:$0xf]
  %v6956 = vld [vmem:[%s15 + $0x16c] sm:$0xf]
  %v6957 = vld [vmem:[%s15 + $0x170] sm:$0xf]
  %v6958 = vld [vmem:[%s15 + $0x174] sm:$0xf]
  %v6959 = vld [vmem:[%s15 + $0x178] sm:$0xf]
  %v6960 = vld [vmem:[%s15 + $0x17c] sm:$0xf]
  %v6961 = vld [vmem:[%s15 + $0x180] sm:$0xf]
  %v6962 = vld [vmem:[%s15 + $0x184] sm:$0xf]
  %v6963 = vld [vmem:[%s15 + $0x188] sm:$0xf]
  %v6964 = vld [vmem:[%s15 + $0x18c] sm:$0xf]
  %v6965 = vld [vmem:[%s15 + $0x190] sm:$0xf]
  %v6966 = vld [vmem:[%s15 + $0x194] sm:$0xf]
  %v6967 = vld [vmem:[%s15 + $0x198] sm:$0xf]
  %v6968 = vld [vmem:[%s15 + $0x19c] sm:$0xf]
  %v6969 = vld [vmem:[%s15 + $0x1a0] sm:$0xf]
  %v6970 = vld [vmem:[%s15 + $0x1a4] sm:$0xf]
  %v6971 = vld [vmem:[%s15 + $0x1a8] sm:$0xf]
  %v6972 = vld [vmem:[%s15 + $0x1ac] sm:$0xf]
  %v6973 = vld [vmem:[%s15 + $0x1b0] sm:$0xf]
  %v6974 = vld [vmem:[%s15 + $0x1b4] sm:$0xf]
  %v6975 = vld [vmem:[%s15 + $0x1b8] sm:$0xf]
  %v6976 = vld [vmem:[%s15 + $0x1bc] sm:$0xf]
  %v6977 = vld [vmem:[%s15 + $0x1c0] sm:$0xf]
  %v6978 = vld [vmem:[%s15 + $0x1c4] sm:$0xf]
  %v6979 = vld [vmem:[%s15 + $0x1c8] sm:$0xf]
  %v6980 = vld [vmem:[%s15 + $0x1cc] sm:$0xf]
  %v6981 = vld [vmem:[%s15 + $0x1d0] sm:$0xf]
  %v6982 = vld [vmem:[%s15 + $0x1d4] sm:$0xf]
  %v6983 = vld [vmem:[%s15 + $0x1d8] sm:$0xf]
  %v6984 = vld [vmem:[%s15 + $0x1dc] sm:$0xf]
  %v6985 = vld [vmem:[%s15 + $0x1e0] sm:$0xf]
  %v6986 = vld [vmem:[%s15 + $0x1e4] sm:$0xf]
  %v6987 = vld [vmem:[%s15 + $0x1e8] sm:$0xf]
  %v6988 = vld [vmem:[%s15 + $0x1ec] sm:$0xf]
  %v6989 = vld [vmem:[%s15 + $0x1f0] sm:$0xf]
  %v6990 = vld [vmem:[%s15 + $0x1f4] sm:$0xf]
  %v6991 = vld [vmem:[%s15 + $0x1f8] sm:$0xf]
  %v6992 = vld [vmem:[%s15 + $0x1fc] sm:$0xf]
  %v7057 = vunpack.c.l.b16 %v6929
  %v7058 = vunpack.c.l.b16 %v6930
  %v7059 = vunpack.c.l.b16 %v6931
  %v7060 = vunpack.c.l.b16 %v6932
  %v7061 = vunpack.c.l.b16 %v6933
  %v7062 = vunpack.c.l.b16 %v6934
  %v7063 = vunpack.c.l.b16 %v6935
  %v7064 = vunpack.c.l.b16 %v6936
  %v7065 = vunpack.c.l.b16 %v6937
  %v7066 = vunpack.c.l.b16 %v6938
  %v7067 = vunpack.c.l.b16 %v6939
  %v7068 = vunpack.c.l.b16 %v6940
  %v7069 = vunpack.c.l.b16 %v6941
  %v7070 = vunpack.c.l.b16 %v6942
  %v7071 = vunpack.c.l.b16 %v6943
  %v7072 = vunpack.c.l.b16 %v6944
  %v7073 = vunpack.c.l.b16 %v6945
  %v7074 = vunpack.c.l.b16 %v6946
  %v7075 = vunpack.c.l.b16 %v6947
  %v7076 = vunpack.c.l.b16 %v6948
  %v7077 = vunpack.c.l.b16 %v6949
  %v7078 = vunpack.c.l.b16 %v6950
  %v7079 = vunpack.c.l.b16 %v6951
  %v7080 = vunpack.c.l.b16 %v6952
  %v7081 = vunpack.c.l.b16 %v6953
  %v7082 = vunpack.c.l.b16 %v6954
  %v7083 = vunpack.c.l.b16 %v6955
  %v7084 = vunpack.c.l.b16 %v6956
  %v7085 = vunpack.c.l.b16 %v6957
  %v7086 = vunpack.c.l.b16 %v6958
  %v7087 = vunpack.c.l.b16 %v6959
  %v7088 = vunpack.c.l.b16 %v6960
  %v7089 = vunpack.c.l.b16 %v6961
  %v7090 = vunpack.c.l.b16 %v6962
  %v7091 = vunpack.c.l.b16 %v6963
  %v7092 = vunpack.c.l.b16 %v6964
  %v7093 = vunpack.c.l.b16 %v6965
  %v7094 = vunpack.c.l.b16 %v6966
  %v7095 = vunpack.c.l.b16 %v6967
  %v7096 = vunpack.c.l.b16 %v6968
  %v7097 = vunpack.c.l.b16 %v6969
  %v7098 = vunpack.c.l.b16 %v6970
  %v7099 = vunpack.c.l.b16 %v6971
  %v7100 = vunpack.c.l.b16 %v6972
  %v7101 = vunpack.c.l.b16 %v6973
  %v7102 = vunpack.c.l.b16 %v6974
  %v7103 = vunpack.c.l.b16 %v6975
  %v7104 = vunpack.c.l.b16 %v6976
  %v7105 = vunpack.c.l.b16 %v6977
  %v7106 = vunpack.c.l.b16 %v6978
  %v7107 = vunpack.c.l.b16 %v6979
  %v7108 = vunpack.c.l.b16 %v6980
  %v7109 = vunpack.c.l.b16 %v6981
  %v7110 = vunpack.c.l.b16 %v6982
  %v7111 = vunpack.c.l.b16 %v6983
  %v7112 = vunpack.c.l.b16 %v6984
  %v7113 = vunpack.c.l.b16 %v6985
  %v7114 = vunpack.c.l.b16 %v6986
  %v7115 = vunpack.c.l.b16 %v6987
  %v7116 = vunpack.c.l.b16 %v6988
  %v7117 = vunpack.c.l.b16 %v6989
  %v7118 = vunpack.c.l.b16 %v6990
  %v7119 = vunpack.c.l.b16 %v6991
  %v7120 = vunpack.c.l.b16 %v6992
  %v7121 = vpack.c.b16 %v7058, %v7057
  %v7122 = vpack.c.b16 %v7060, %v7059
  %v7123 = vpack.c.b16 %v7062, %v7061
  %v7124 = vpack.c.b16 %v7064, %v7063
  %v7125 = vpack.c.b16 %v7066, %v7065
  %v7126 = vpack.c.b16 %v7068, %v7067
  %v7127 = vpack.c.b16 %v7070, %v7069
  %v7128 = vpack.c.b16 %v7072, %v7071
  %v7129 = vpack.c.b16 %v7074, %v7073
  %v7130 = vpack.c.b16 %v7076, %v7075
  %v7131 = vpack.c.b16 %v7078, %v7077
  %v7132 = vpack.c.b16 %v7080, %v7079
  %v7133 = vpack.c.b16 %v7082, %v7081
  %v7134 = vpack.c.b16 %v7084, %v7083
  %v7135 = vpack.c.b16 %v7086, %v7085
  %v7136 = vpack.c.b16 %v7088, %v7087
  %v7137 = vpack.c.b16 %v7090, %v7089
  %v7138 = vpack.c.b16 %v7092, %v7091
  %v7139 = vpack.c.b16 %v7094, %v7093
  %v7140 = vpack.c.b16 %v7096, %v7095
  %v7141 = vpack.c.b16 %v7098, %v7097
  %v7142 = vpack.c.b16 %v7100, %v7099
  %v7143 = vpack.c.b16 %v7102, %v7101
  %v7144 = vpack.c.b16 %v7104, %v7103
  %v7145 = vpack.c.b16 %v7106, %v7105
  %v7146 = vpack.c.b16 %v7108, %v7107
  %v7147 = vpack.c.b16 %v7110, %v7109
  %v7148 = vpack.c.b16 %v7112, %v7111
  %v7149 = vpack.c.b16 %v7114, %v7113
  %v7150 = vpack.c.b16 %v7116, %v7115
  %v7151 = vpack.c.b16 %v7118, %v7117
  %v7152 = vpack.c.b16 %v7120, %v7119
  %7185 = vmatprep.subr.bf16.mxu0 0
  %7186 = vmatpush1.bf16.msra.mxu0 %v7128
  %7187 = vmatprep.subr.bf16.mxu0 0
  %7188 = vmatpush1.bf16.msra.mxu0 %v7127
  %7189 = vmatprep.subr.bf16.mxu0 0
  %7190 = vmatpush1.bf16.msra.mxu0 %v7126
  %7191 = vmatprep.subr.bf16.mxu0 0
  %7192 = vmatpush1.bf16.msra.mxu0 %v7125
  %7193 = vmatprep.subr.bf16.mxu0 0
  %7194 = vmatpush1.bf16.msra.mxu0 %v7124
  %7195 = vmatprep.subr.bf16.mxu0 0
  %7196 = vmatpush1.bf16.msra.mxu0 %v7123
  %7197 = vmatprep.subr.bf16.mxu0 0
  %7198 = vmatpush1.bf16.msra.mxu0 %v7122
  %7199 = vmatprep.subr.bf16.mxu0 0
  %7200 = vmatpush1.bf16.msra.mxu0 %v7121
  %7201 = vmatprep.subr.bf16.mxu0 0
  %7202 = vmatpush2.bf16.msra.mxu0 %v7136
  %7203 = vmatprep.subr.bf16.mxu0 0
  %7204 = vmatpush2.bf16.msra.mxu0 %v7135
  %7205 = vmatprep.subr.bf16.mxu0 0
  %7206 = vmatpush2.bf16.msra.mxu0 %v7134
  %7207 = vmatprep.subr.bf16.mxu0 0
  %7208 = vmatpush2.bf16.msra.mxu0 %v7133
  %7209 = vmatprep.subr.bf16.mxu0 0
  %7210 = vmatpush2.bf16.msra.mxu0 %v7132
  %7211 = vmatprep.subr.bf16.mxu0 0
  %7212 = vmatpush2.bf16.msra.mxu0 %v7131
  %7213 = vmatprep.subr.bf16.mxu0 0
  %7214 = vmatpush2.bf16.msra.mxu0 %v7130
  %7215 = vmatprep.subr.bf16.mxu0 0
  %7216 = vmatpush2.bf16.msra.mxu0 %v7129
  %7217 = vmatprep.mubr.bf16.mxu0 %v6862
  %7218 = vmatmul.mubr.bf16.gmra.mxu0 %v6861
  %v7219 = vpop.f32.mrf.mxu0
  %v7220 = vadd.f32 0.0, %v7219
  %v7221 = vpop.f32.mrf.mxu0
  %v7222 = vpop.f32.mrf.mxu0
  %v7223 = vpop.f32.mrf.mxu0
  %7224 = vdwg.mxu0
  %7225 = vmatprep.subr.bf16.mxu0 0
  %7226 = vmatpush1.bf16.msra.mxu0 %v7144
  %7227 = vmatprep.subr.bf16.mxu0 0
  %7228 = vmatpush1.bf16.msra.mxu0 %v7143
  %7229 = vmatprep.subr.bf16.mxu0 0
  %7230 = vmatpush1.bf16.msra.mxu0 %v7142
  %7231 = vmatprep.subr.bf16.mxu0 0
  %7232 = vmatpush1.bf16.msra.mxu0 %v7141
  %7233 = vmatprep.subr.bf16.mxu0 0
  %7234 = vmatpush1.bf16.msra.mxu0 %v7140
  %7235 = vmatprep.subr.bf16.mxu0 0
  %7236 = vmatpush1.bf16.msra.mxu0 %v7139
  %7237 = vmatprep.subr.bf16.mxu0 0
  %7238 = vmatpush1.bf16.msra.mxu0 %v7138
  %7239 = vmatprep.subr.bf16.mxu0 0
  %7240 = vmatpush1.bf16.msra.mxu0 %v7137
  %7241 = vmatprep.subr.bf16.mxu0 0
  %7242 = vmatpush2.bf16.msra.mxu0 %v7152
  %7243 = vmatprep.subr.bf16.mxu0 0
  %7244 = vmatpush2.bf16.msra.mxu0 %v7151
  %7245 = vmatprep.subr.bf16.mxu0 0
  %7246 = vmatpush2.bf16.msra.mxu0 %v7150
  %7247 = vmatprep.subr.bf16.mxu0 0
  %7248 = vmatpush2.bf16.msra.mxu0 %v7149
  %7249 = vmatprep.subr.bf16.mxu0 0
  %7250 = vmatpush2.bf16.msra.mxu0 %v7148
  %7251 = vmatprep.subr.bf16.mxu0 0
  %7252 = vmatpush2.bf16.msra.mxu0 %v7147
  %7253 = vmatprep.subr.bf16.mxu0 0
  %7254 = vmatpush2.bf16.msra.mxu0 %v7146
  %7255 = vmatprep.subr.bf16.mxu0 0
  %7256 = vmatpush2.bf16.msra.mxu0 %v7145
  %7257 = vmatprep.mubr.bf16.mxu0 %v6864
  %7258 = vmatmul.mubr.bf16.gmra.mxu0 %v6863
  %v7259 = vpop.f32.mrf.mxu0
  %v7260 = vadd.f32 %v7220, %v7259
  %v7261 = vpop.f32.mrf.mxu0
  %v7262 = vpop.f32.mrf.mxu0
  %v7263 = vpop.f32.mrf.mxu0
  %7264 = vdwg.mxu0
  %v7329 = vunpack.c.l.b16 %v6865
  %v7330 = vunpack.c.l.b16 %v6866
  %v7331 = vunpack.c.l.b16 %v6867
  %v7332 = vunpack.c.l.b16 %v6868
  %v7333 = vunpack.c.l.b16 %v6869
  %v7334 = vunpack.c.l.b16 %v6870
  %v7335 = vunpack.c.l.b16 %v6871
  %v7336 = vunpack.c.l.b16 %v6872
  %v7337 = vunpack.c.l.b16 %v6873
  %v7338 = vunpack.c.l.b16 %v6874
  %v7339 = vunpack.c.l.b16 %v6875
  %v7340 = vunpack.c.l.b16 %v6876
  %v7341 = vunpack.c.l.b16 %v6877
  %v7342 = vunpack.c.l.b16 %v6878
  %v7343 = vunpack.c.l.b16 %v6879
  %v7344 = vunpack.c.l.b16 %v6880
  %v7345 = vunpack.c.l.b16 %v6881
  %v7346 = vunpack.c.l.b16 %v6882
  %v7347 = vunpack.c.l.b16 %v6883
  %v7348 = vunpack.c.l.b16 %v6884
  %v7349 = vunpack.c.l.b16 %v6885
  %v7350 = vunpack.c.l.b16 %v6886
  %v7351 = vunpack.c.l.b16 %v6887
  %v7352 = vunpack.c.l.b16 %v6888
  %v7353 = vunpack.c.l.b16 %v6889
  %v7354 = vunpack.c.l.b16 %v6890
  %v7355 = vunpack.c.l.b16 %v6891
  %v7356 = vunpack.c.l.b16 %v6892
  %v7357 = vunpack.c.l.b16 %v6893
  %v7358 = vunpack.c.l.b16 %v6894
  %v7359 = vunpack.c.l.b16 %v6895
  %v7360 = vunpack.c.l.b16 %v6896
  %v7361 = vunpack.c.l.b16 %v6897
  %v7362 = vunpack.c.l.b16 %v6898
  %v7363 = vunpack.c.l.b16 %v6899
  %v7364 = vunpack.c.l.b16 %v6900
  %v7365 = vunpack.c.l.b16 %v6901
  %v7366 = vunpack.c.l.b16 %v6902
  %v7367 = vunpack.c.l.b16 %v6903
  %v7368 = vunpack.c.l.b16 %v6904
  %v7369 = vunpack.c.l.b16 %v6905
  %v7370 = vunpack.c.l.b16 %v6906
  %v7371 = vunpack.c.l.b16 %v6907
  %v7372 = vunpack.c.l.b16 %v6908
  %v7373 = vunpack.c.l.b16 %v6909
  %v7374 = vunpack.c.l.b16 %v6910
  %v7375 = vunpack.c.l.b16 %v6911
  %v7376 = vunpack.c.l.b16 %v6912
  %v7377 = vunpack.c.l.b16 %v6913
  %v7378 = vunpack.c.l.b16 %v6914
  %v7379 = vunpack.c.l.b16 %v6915
  %v7380 = vunpack.c.l.b16 %v6916
  %v7381 = vunpack.c.l.b16 %v6917
  %v7382 = vunpack.c.l.b16 %v6918
  %v7383 = vunpack.c.l.b16 %v6919
  %v7384 = vunpack.c.l.b16 %v6920
  %v7385 = vunpack.c.l.b16 %v6921
  %v7386 = vunpack.c.l.b16 %v6922
  %v7387 = vunpack.c.l.b16 %v6923
  %v7388 = vunpack.c.l.b16 %v6924
  %v7389 = vunpack.c.l.b16 %v6925
  %v7390 = vunpack.c.l.b16 %v6926
  %v7391 = vunpack.c.l.b16 %v6927
  %v7392 = vunpack.c.l.b16 %v6928
  %v7393 = vpack.c.b16 %v7330, %v7329
  %v7394 = vpack.c.b16 %v7332, %v7331
  %v7395 = vpack.c.b16 %v7334, %v7333
  %v7396 = vpack.c.b16 %v7336, %v7335
  %v7397 = vpack.c.b16 %v7338, %v7337
  %v7398 = vpack.c.b16 %v7340, %v7339
  %v7399 = vpack.c.b16 %v7342, %v7341
  %v7400 = vpack.c.b16 %v7344, %v7343
  %v7401 = vpack.c.b16 %v7346, %v7345
  %v7402 = vpack.c.b16 %v7348, %v7347
  %v7403 = vpack.c.b16 %v7350, %v7349
  %v7404 = vpack.c.b16 %v7352, %v7351
  %v7405 = vpack.c.b16 %v7354, %v7353
  %v7406 = vpack.c.b16 %v7356, %v7355
  %v7407 = vpack.c.b16 %v7358, %v7357
  %v7408 = vpack.c.b16 %v7360, %v7359
  %v7409 = vpack.c.b16 %v7362, %v7361
  %v7410 = vpack.c.b16 %v7364, %v7363
  %v7411 = vpack.c.b16 %v7366, %v7365
  %v7412 = vpack.c.b16 %v7368, %v7367
  %v7413 = vpack.c.b16 %v7370, %v7369
  %v7414 = vpack.c.b16 %v7372, %v7371
  %v7415 = vpack.c.b16 %v7374, %v7373
  %v7416 = vpack.c.b16 %v7376, %v7375
  %v7417 = vpack.c.b16 %v7378, %v7377
  %v7418 = vpack.c.b16 %v7380, %v7379
  %v7419 = vpack.c.b16 %v7382, %v7381
  %v7420 = vpack.c.b16 %v7384, %v7383
  %v7421 = vpack.c.b16 %v7386, %v7385
  %v7422 = vpack.c.b16 %v7388, %v7387
  %v7423 = vpack.c.b16 %v7390, %v7389
  %v7424 = vpack.c.b16 %v7392, %v7391
  %7457 = vmatprep.subr.bf16.mxu0 0
  %7458 = vmatpush1.bf16.msra.mxu0 %v7400
  %7459 = vmatprep.subr.bf16.mxu0 0
  %7460 = vmatpush1.bf16.msra.mxu0 %v7399
  %7461 = vmatprep.subr.bf16.mxu0 0
  %7462 = vmatpush1.bf16.msra.mxu0 %v7398
  %7463 = vmatprep.subr.bf16.mxu0 0
  %7464 = vmatpush1.bf16.msra.mxu0 %v7397
  %7465 = vmatprep.subr.bf16.mxu0 0
  %7466 = vmatpush1.bf16.msra.mxu0 %v7396
  %7467 = vmatprep.subr.bf16.mxu0 0
  %7468 = vmatpush1.bf16.msra.mxu0 %v7395
  %7469 = vmatprep.subr.bf16.mxu0 0
  %7470 = vmatpush1.bf16.msra.mxu0 %v7394
  %7471 = vmatprep.subr.bf16.mxu0 0
  %7472 = vmatpush1.bf16.msra.mxu0 %v7393
  %7473 = vmatprep.subr.bf16.mxu0 0
  %7474 = vmatpush2.bf16.msra.mxu0 %v7408
  %7475 = vmatprep.subr.bf16.mxu0 0
  %7476 = vmatpush2.bf16.msra.mxu0 %v7407
  %7477 = vmatprep.subr.bf16.mxu0 0
  %7478 = vmatpush2.bf16.msra.mxu0 %v7406
  %7479 = vmatprep.subr.bf16.mxu0 0
  %7480 = vmatpush2.bf16.msra.mxu0 %v7405
  %7481 = vmatprep.subr.bf16.mxu0 0
  %7482 = vmatpush2.bf16.msra.mxu0 %v7404
  %7483 = vmatprep.subr.bf16.mxu0 0
  %7484 = vmatpush2.bf16.msra.mxu0 %v7403
  %7485 = vmatprep.subr.bf16.mxu0 0
  %7486 = vmatpush2.bf16.msra.mxu0 %v7402
  %7487 = vmatprep.subr.bf16.mxu0 0
  %7488 = vmatpush2.bf16.msra.mxu0 %v7401
  %7489 = vmatprep.mubr.bf16.mxu0 %v5900
  %7490 = vmatmul.mubr.bf16.gmra.mxu0 %v5899
  %v7491 = vpop.f32.mrf.mxu0
  %v7492 = vadd.f32 %v7260, %v7491
  %v7493 = vpop.f32.mrf.mxu0
  %v7494 = vpop.f32.mrf.mxu0
  %v7495 = vpop.f32.mrf.mxu0
  %7496 = vdwg.mxu0
  %7497 = vmatprep.subr.bf16.mxu0 0
  %7498 = vmatpush1.bf16.msra.mxu0 %v7416
  %7499 = vmatprep.subr.bf16.mxu0 0
  %7500 = vmatpush1.bf16.msra.mxu0 %v7415
  %7501 = vmatprep.subr.bf16.mxu0 0
  %7502 = vmatpush1.bf16.msra.mxu0 %v7414
  %7503 = vmatprep.subr.bf16.mxu0 0
  %7504 = vmatpush1.bf16.msra.mxu0 %v7413
  %7505 = vmatprep.subr.bf16.mxu0 0
  %7506 = vmatpush1.bf16.msra.mxu0 %v7412
  %7507 = vmatprep.subr.bf16.mxu0 0
  %7508 = vmatpush1.bf16.msra.mxu0 %v7411
  %7509 = vmatprep.subr.bf16.mxu0 0
  %7510 = vmatpush1.bf16.msra.mxu0 %v7410
  %7511 = vmatprep.subr.bf16.mxu0 0
  %7512 = vmatpush1.bf16.msra.mxu0 %v7409
  %7513 = vmatprep.subr.bf16.mxu0 0
  %7514 = vmatpush2.bf16.msra.mxu0 %v7424
  %7515 = vmatprep.subr.bf16.mxu0 0
  %7516 = vmatpush2.bf16.msra.mxu0 %v7423
  %7517 = vmatprep.subr.bf16.mxu0 0
  %7518 = vmatpush2.bf16.msra.mxu0 %v7422
  %7519 = vmatprep.subr.bf16.mxu0 0
  %7520 = vmatpush2.bf16.msra.mxu0 %v7421
  %7521 = vmatprep.subr.bf16.mxu0 0
  %7522 = vmatpush2.bf16.msra.mxu0 %v7420
  %7523 = vmatprep.subr.bf16.mxu0 0
  %7524 = vmatpush2.bf16.msra.mxu0 %v7419
  %7525 = vmatprep.subr.bf16.mxu0 0
  %7526 = vmatpush2.bf16.msra.mxu0 %v7418
  %7527 = vmatprep.subr.bf16.mxu0 0
  %7528 = vmatpush2.bf16.msra.mxu0 %v7417
  %7529 = vmatprep.mubr.bf16.mxu0 %v5902
  %7530 = vmatmul.mubr.bf16.gmra.mxu0 %v5901
  %v7531 = vpop.f32.mrf.mxu0
  %v7532 = vadd.f32 %v7492, %v7531
  %v7533 = vpop.f32.mrf.mxu0
  %v7534 = vpop.f32.mrf.mxu0
  %v7535 = vpop.f32.mrf.mxu0
  %7536 = vdwg.mxu0
  %v7537 = vld [vmem:[%s16] sm:$0x1]
  %v7539 = vlaneseq
  %v7540 = vshrl.u32 %v7539, 7
  %v7541 = vsub.s32 0, %v7540
  %v7542 = vrot.slane %v7537, %v7541
  %v7544 = vadd.f32 %v7532, %v7542
  %v7545 = vlaneseq
  %v7546 = vand.u32 %v7545, 127
  %vm7547 = vcmp.ge.s32.totalorder %v7546, 1
  %vm7548 = vcmp.le.s32.totalorder %v7546, 8
  %vm7549 = vmand %vm7547, %vm7548
  %v7550 = vsel %vm7549, 1, 0
  %v7551 = vcvt.s32.f32 %v7550
  %v7552 = vmul.f32 %v7544, %v7551
  %vm7553 = vcmask 1041408
  %v7554 = vsel %vm7553, %v7552, 0.0
  %7555 = vadd.xlane.f32.xlu0 %v7554
  %v7556 = vpop.xlane.xlu0 %7555
  %v7557 = vrot.slane %v7556, 4
  %v7558 = vadd.f32 %v7556, %v7557
  %v7559 = vrot.slane %v7558, 2
  %v7560 = vadd.f32 %v7558, %v7559
  %v7561 = vrot.slane %v7560, 1
  %v7562 = vadd.f32 %v7560, %v7561
  %s7563 = vtos %v7562
  %v7564 = vstv %s7563
  %v7565 = vmul.f32 %v7564, 0.0625
  %7567 = vset.pattern.permute.xlu0 0
  %7568 = vperm.xlu0 %7567, %v7544
  %v7569 = vpop.permute.xlu0 %7568
  %v7571 = vadd.f32 %v7569, %v7544
  %v7572 = vsub.f32 %v7571, %v7565
  %7573 = vst [vmem:[%s17] sm:$0x3] %v7572
  // Predicated region
  $region70: #{forward.1} parent=0 // pred_check
    _
  $region71: #{forward.1} parent=0 // pred_check_branch
    %7575 = sbr.rel (0) target = $region73
  $region72: #{forward.1} parent=0 // pred_region
    _
  $region73: #{forward.1} parent=0 // pred_fallthru
    _
  // Predicated region
  $region74: #{forward.1} parent=0 // pred_check
    _
  $region75: #{forward.1} parent=0 // pred_check_branch
    %7577 = sbr.rel (0) target = $region77
  $region76: #{forward.1} parent=0 // pred_region
    _
  $region77: #{forward.1} parent=0 // pred_fallthru
    _

</llo_original>
